<compile_context>
chip_gen: v6e
topology: v6e:2x2x1
jax: 0.10.0
libtpu: 0.0.40
codegen_flags: <defaults>
</compile_context>

<pallas_src>
import jax
import jax.numpy as jnp
from jax import lax
from jax.experimental import pallas as pl
from jax.experimental.pallas import tpu as pltpu

EPS = 1e-5

# ---- fixed model geometry (15x15 board) -----------------------------------
GH = 15                 # grid height
GW = 16                 # padded grid width (15 valid cols + 1 scratch col)
GPB = GH * GW           # 240 grid rows per sample
KP1 = 9                 # conv1 taps (3x3, cin=1)
C1 = 128                # conv1 output channels
C2 = 64                 # conv2 output channels
NPOOL = 7               # pooled spatial size (7x7)
FLAT = NPOOL * NPOOL * C2   # 3136 flattened features
FC_HID = 256


# ------------------------------ fused kernel -------------------------------- #

def _agent_kernel(pat1_ref, w1_ref, b1_ref, w2_ref, b2_ref,
                  fc1w_hbm, fc1b_ref, fc2w_ref, fc2b_ref,
                  out_ref, h1_s, h2_s, p4_s, fc1w_s, fc1_sem):
    f32, bf16 = jnp.float32, jnp.bfloat16
    B = out_ref.shape[0]
    R = B * GPB                                   # grid rows (480 for B=2)

    # Prefetch the fc1 weight (1.6 MB bf16) HBM -> VMEM, overlapped with conv/pool.
    fc1_cp = pltpu.make_async_copy(fc1w_hbm, fc1w_s, fc1_sem)
    fc1_cp.start()

    # conv1 (3x3, pad=1) + folded BN + ReLU: bf16 MXU, f32 epilogue, bf16 scratch.
    h1 = jnp.dot(pat1_ref[...], w1_ref[...], preferred_element_type=f32)   # (R+32, 128)
    h1_s[...] = jnp.maximum(h1 + b1_ref[...], 0.0).astype(bf16)

    # conv2 (2x2) + folded BN + ReLU.  Grid row r = b*240 + i*16 + j; tap (dh,dw)
    # of output r is h1 row r + dh*16 + dw.  K=512 split over the 4 taps and
    # accumulated in the f32 h2 VMEM scratch (low vreg pressure, MRB-friendly).
    taps = (0, 1, GW, GW + 1)                                               # (dh,dw)
    h2_s[...] = jnp.dot(h1_s[0:R, :], w2_ref[0:C1, :],
                        preferred_element_type=f32)                         # (R, 64)
    for t in range(1, 4):
        ofs = taps[t]
        h2_s[...] += jnp.dot(h1_s[ofs:ofs + R, :],
                             w2_ref[t * C1:(t + 1) * C1, :],
                             preferred_element_type=f32)
    h2_s[...] = jnp.maximum(h2_s[...] + b2_ref[...], 0.0)

    # 2x2 max-pool on the padded grid (valid windows start at even (i, j)).
    jmax = jnp.maximum(h2_s[0:R - 16, :], h2_s[1:R - 15, :])                # max over dw
    p4_s[...] = jnp.maximum(jmax[0:R - 32, :], jmax[16:R - 16, :])          # max over dh

    # fc1: Linear(3136,256) as 49 accumulated (B,64)x(64,256) dots read straight
    # off the pooled grid (no flatten buffer).  fc1 weight rows are HWC-permuted.
    fc1_cp.wait()
    acc = None
    for ph in range(NPOOL):
        for pw in range(NPOOL):
            start = 2 * ph * GW + 2 * pw
            m = (ph * NPOOL + pw) * C2
            lhs = p4_s[pl.ds(start, B, stride=GPB), :].astype(bf16)        # (B, 64)
            part = jnp.dot(lhs, fc1w_s[m:m + C2, :], preferred_element_type=f32)
            acc = part if acc is None else acc + part
    h = jnp.maximum(acc + fc1b_ref[...], 0.0)                              # (B, 256)

    # fc2: Linear(256, n_out), bf16 weights, f32 accumulation.
    out_ref[...] = jnp.dot(h.astype(bf16), fc2w_ref[...],
                           preferred_element_type=f32) + fc2b_ref[...]


# ------------------------------ forward wrapper ----------------------------- #

def agent_forward(x_nchw, p):
    """x_nchw: (B, 1, 15, 15) float32 -> (B, table[0]*table[1]) float32."""
    B = x_nchw.shape[0]
    n_out = p["fc2_b"].shape[1]
    R = B * GPB
    R1 = R + 32                                   # zero rows so shifted tap reads stay in range

    # im2col for conv1 on the width-padded 15x16 output grid (tiny, built in XLA).
    x = x_nchw[:, 0]                              # (B, 15, 15)
    xpad = jnp.pad(x, ((0, 0), (1, 1), (1, 2)))   # (B, 17, 18)
    pat1 = jnp.stack([xpad[:, dh:dh + GH, dw:dw + GW]
                      for dh in range(3) for dw in range(3)], axis=-1)      # (B,15,16,9)
    pat1 = jnp.pad(pat1.reshape(R, KP1), ((0, R1 - R), (0, 0))).astype(jnp.bfloat16)

    full = lambda s: pl.BlockSpec(s, lambda i, n=len(s): (0,) * n)
    return pl.pallas_call(
        _agent_kernel,
        out_shape=jax.ShapeDtypeStruct((B, n_out), jnp.float32),
        grid=(1,),
        in_specs=[full((R1, KP1)), full((KP1, C1)), full((1, C1)),
                  full((4 * C1, C2)), full((1, C2)),
                  pl.BlockSpec(memory_space=pl.ANY),        # fc1 weight stays in HBM
                  full((1, FC_HID)),
                  full((FC_HID, n_out)), full((1, n_out))],
        out_specs=full((B, n_out)),
        scratch_shapes=[pltpu.VMEM((R1, C1), jnp.bfloat16),       # h1 (bf16)
                        pltpu.VMEM((R, C2), jnp.float32),         # h2
                        pltpu.VMEM((R - 32, C2), jnp.float32),    # pooled (padded grid)
                        pltpu.VMEM((FLAT, FC_HID), jnp.bfloat16),  # fc1 weight landing buffer
                        pltpu.SemaphoreType.DMA(())],             # fc1 weight DMA sem
        compiler_params=pltpu.CompilerParams(dimension_semantics=("arbitrary",)),
    )(pat1, p["w1"], p["b1"], p["w2"], p["b2"],
      p["fc1_w"], p["fc1_b"], p["fc2_w"], p["fc2_b"])


# ------------------------------ parameter setup ----------------------------- #

def make_params(key, table):
    n_out = table[0] * table[1]
    ks = jax.random.split(key, 16)
    raw = dict(
        w1=0.10 * jax.random.normal(ks[0], (C1, 1, 3, 3), jnp.float32),
        cb1=0.10 * jax.random.normal(ks[1], (C1,), jnp.float32),
        g1=1.0 + 0.10 * jax.random.normal(ks[2], (C1,), jnp.float32),
        be1=0.10 * jax.random.normal(ks[3], (C1,), jnp.float32),
        m1=0.05 * jax.random.normal(ks[4], (C1,), jnp.float32),
        v1=jnp.abs(1.0 + 0.10 * jax.random.normal(ks[5], (C1,), jnp.float32)),
        w2=0.05 * jax.random.normal(ks[6], (C2, C1, 2, 2), jnp.float32),
        cb2=0.10 * jax.random.normal(ks[7], (C2,), jnp.float32),
        g2=1.0 + 0.10 * jax.random.normal(ks[8], (C2,), jnp.float32),
        be2=0.10 * jax.random.normal(ks[9], (C2,), jnp.float32),
        m2=0.05 * jax.random.normal(ks[10], (C2,), jnp.float32),
        v2=jnp.abs(1.0 + 0.10 * jax.random.normal(ks[11], (C2,), jnp.float32)),
        fc1_w=0.02 * jax.random.normal(ks[12], (FC_HID, FLAT), jnp.float32),
        fc1_b=0.02 * jax.random.normal(ks[13], (FC_HID,), jnp.float32),
        fc2_w=0.05 * jax.random.normal(ks[14], (n_out, FC_HID), jnp.float32),
        fc2_b=0.02 * jax.random.normal(ks[15], (n_out,), jnp.float32),
    )
    # fold eval-mode BN: scale into the conv weights, bias stays in the epilogue.
    s1 = raw["g1"] / jnp.sqrt(raw["v1"] + EPS)
    b1 = raw["be1"] + (raw["cb1"] - raw["m1"]) * s1
    s2 = raw["g2"] / jnp.sqrt(raw["v2"] + EPS)
    b2 = raw["be2"] + (raw["cb2"] - raw["m2"]) * s2

    w1k = (jnp.transpose(raw["w1"], (2, 3, 1, 0)).reshape(KP1, C1)
           * s1[None, :]).astype(jnp.bfloat16)                                          # (9,128)
    w2k = (jnp.transpose(raw["w2"], (2, 3, 1, 0)).reshape(4 * C1, C2)
           * s2[None, :]).astype(jnp.bfloat16)                                          # (512,64)
    fc1w = jnp.transpose(raw["fc1_w"].reshape(FC_HID, C2, NPOOL, NPOOL),
                         (2, 3, 1, 0)).reshape(FLAT, FC_HID).astype(jnp.bfloat16)       # HWC order
    fc2w = raw["fc2_w"].T.astype(jnp.bfloat16)

    kernel_params = dict(
        w1=w1k, b1=b1.reshape(1, C1),
        w2=w2k, b2=b2.reshape(1, C2),
        fc1_w=fc1w, fc1_b=raw["fc1_b"].reshape(1, FC_HID),
        fc2_w=fc2w, fc2_b=raw["fc2_b"].reshape(1, n_out),
    )
    return raw, kernel_params


# -------------------------- pure-JAX reference (NCHW, f32) ------------------ #

def reference_forward(x_nchw, raw):
    def bn(y, g, b, m, v):
        inv = 1.0 / jnp.sqrt(v + EPS)
        return (y - m[None, :, None, None]) * (g * inv)[None, :, None, None] + b[None, :, None, None]

    dn = ("NCHW", "OIHW", "NCHW")
    y = lax.conv_general_dilated(x_nchw, raw["w1"], (1, 1), ((1, 1), (1, 1)),
                                 dimension_numbers=dn) + raw["cb1"][None, :, None, None]
    y = jnp.maximum(bn(y, raw["g1"], raw["be1"], raw["m1"], raw["v1"]), 0.0)
    y = lax.conv_general_dilated(y, raw["w2"], (1, 1), ((0, 0), (0, 0)),
                                 dimension_numbers=dn) + raw["cb2"][None, :, None, None]
    y = jnp.maximum(bn(y, raw["g2"], raw["be2"], raw["m2"], raw["v2"]), 0.0)
    y = lax.reduce_window(y, -jnp.inf, lax.max, (1, 1, 2, 2), (1, 1, 2, 2), "VALID")
    y = y.reshape(y.shape[0], -1)
    y = jnp.maximum(y @ raw["fc1_w"].T + raw["fc1_b"], 0.0)
    return y @ raw["fc2_w"].T + raw["fc2_b"]


# ----------------------------------- main ----------------------------------- #

if __name__ == "__main__":
    table = (15, 15)                              # 15x15 board -> fc in = 64*7*7 = 3136
    key = jax.random.PRNGKey(0)
    kx, kp = jax.random.split(key)
    x = jax.random.normal(kx, (2, 1, 15, 15), jnp.float32)   # NCHW, like PyTorch

    raw, params = make_params(kp, table)

    fwd = jax.jit(agent_forward)
    out = jax.block_until_ready(fwd(x, params))
    ref = reference_forward(x, raw)

    assert out.shape == (2, table[0] * table[1]), out.shape
    # bf16 weights / bf16 MXU operands (f32 accumulation) => slightly looser tolerance.
    assert jnp.allclose(out, ref, atol=3e-2, rtol=3e-2), float(jnp.max(jnp.abs(out - ref)))
    print("KERNEL_OK")
</pallas_src>

<mosaic_0001>
module attributes {stable_mosaic.version = 11 : i64} {
  func.func @_agent_kernel(%arg0: i32, %arg1: memref<512x9xbf16, #tpu.memory_space<vmem>>, %arg2: memref<9x128xbf16, #tpu.memory_space<vmem>>, %arg3: memref<1x128xf32, #tpu.memory_space<vmem>>, %arg4: memref<512x64xbf16, #tpu.memory_space<vmem>>, %arg5: memref<1x64xf32, #tpu.memory_space<vmem>>, %arg6: memref<3136x256xbf16, #tpu.memory_space<any>>, %arg7: memref<1x256xf32, #tpu.memory_space<vmem>>, %arg8: memref<256x225xbf16, #tpu.memory_space<vmem>>, %arg9: memref<1x225xf32, #tpu.memory_space<vmem>>, %arg10: memref<2x225xf32, #tpu.memory_space<vmem>>, %arg11: memref<512x128xbf16, #tpu.memory_space<vmem>>, %arg12: memref<480x64xf32, #tpu.memory_space<vmem>>, %arg13: memref<448x64xf32, #tpu.memory_space<vmem>>, %arg14: memref<3136x256xbf16, #tpu.memory_space<vmem>>, %arg15: memref<!tpu.dma_semaphore, #tpu.memory_space<semaphore_mem>>) attributes {dimension_semantics = [#tpu.dimension_semantics<arbitrary>], iteration_bounds = array<i64: 1>, scalar_prefetch = 0 : i64, scratch_operands = 5 : i64, tpu.core_type = #tpu.core_type<tc>, window_params = [{pipeline_mode = #tpu.pipeline_mode<synchronous>, transform_indices = @transform_0, window_bounds = array<i64: 512, 9>}, {pipeline_mode = #tpu.pipeline_mode<synchronous>, transform_indices = @transform_1, window_bounds = array<i64: 9, 128>}, {pipeline_mode = #tpu.pipeline_mode<synchronous>, transform_indices = @transform_2, window_bounds = array<i64: 1, 128>}, {pipeline_mode = #tpu.pipeline_mode<synchronous>, transform_indices = @transform_3, window_bounds = array<i64: 512, 64>}, {pipeline_mode = #tpu.pipeline_mode<synchronous>, transform_indices = @transform_4, window_bounds = array<i64: 1, 64>}, {}, {pipeline_mode = #tpu.pipeline_mode<synchronous>, transform_indices = @transform_6, window_bounds = array<i64: 1, 256>}, {pipeline_mode = #tpu.pipeline_mode<synchronous>, transform_indices = @transform_7, window_bounds = array<i64: 256, 225>}, {pipeline_mode = #tpu.pipeline_mode<synchronous>, transform_indices = @transform_8, window_bounds = array<i64: 1, 225>}, {pipeline_mode = #tpu.pipeline_mode<synchronous>, transform_indices = @transform_9, window_bounds = array<i64: 2, 225>}]} {
    tpu.enqueue_dma source(%arg6 : memref<3136x256xbf16, #tpu.memory_space<any>>) target(%arg14 : memref<3136x256xbf16, #tpu.memory_space<vmem>>) target_semaphore(%arg15 : memref<!tpu.dma_semaphore, #tpu.memory_space<semaphore_mem>>)
    %c0 = arith.constant 0 : index
    %c0_0 = arith.constant 0 : index
    %0 = vector.load %arg1[%c0, %c0_0] : memref<512x9xbf16, #tpu.memory_space<vmem>>, vector<512x9xbf16>
    %c0_1 = arith.constant 0 : index
    %c0_2 = arith.constant 0 : index
    %1 = vector.load %arg2[%c0_1, %c0_2] : memref<9x128xbf16, #tpu.memory_space<vmem>>, vector<9x128xbf16>
    %cst = arith.constant dense<0.000000e+00> : vector<512x128xf32>
    %2 = tpu.matmul %0, %1, %cst {dimension_numbers = #tpu.dot_dimension_numbers<[1], [0], [0], [1], [0, 0, 1, 1], [], []>} : vector<512x9xbf16>, vector<9x128xbf16>, vector<512x128xf32> -> vector<512x128xf32>
    %c0_3 = arith.constant 0 : index
    %c0_4 = arith.constant 0 : index
    %3 = vector.load %arg3[%c0_3, %c0_4] : memref<1x128xf32, #tpu.memory_space<vmem>>, vector<1x128xf32>
    %4 = vector.broadcast %3 : vector<1x128xf32> to vector<512x128xf32>
    %5 = arith.addf %2, %4 : vector<512x128xf32>
    %cst_5 = arith.constant 0.000000e+00 : f32
    %6 = vector.broadcast %cst_5 : f32 to vector<512x128xf32>
    %7 = arith.maximumf %5, %6 : vector<512x128xf32>
    %8 = arith.truncf %7 : vector<512x128xf32> to vector<512x128xbf16>
    %c0_6 = arith.constant 0 : index
    %c0_7 = arith.constant 0 : index
    %9 = vector.load %arg11[%c0_6, %c0_7] : memref<512x128xbf16, #tpu.memory_space<vmem>>, vector<512x128xbf16>
    tpu.vector_store %arg11[%c0_6, %c0_7], %8 {strides = array<i32>} : memref<512x128xbf16, #tpu.memory_space<vmem>>, vector<512x128xbf16>,
    %c0_8 = arith.constant 0 : index
    %c0_9 = arith.constant 0 : index
    %10 = vector.load %arg11[%c0_8, %c0_9] : memref<512x128xbf16, #tpu.memory_space<vmem>>, vector<480x128xbf16>
    %c0_10 = arith.constant 0 : index
    %c0_11 = arith.constant 0 : index
    %11 = vector.load %arg4[%c0_10, %c0_11] : memref<512x64xbf16, #tpu.memory_space<vmem>>, vector<128x64xbf16>
    %cst_12 = arith.constant dense<0.000000e+00> : vector<480x64xf32>
    %12 = tpu.matmul %10, %11, %cst_12 {dimension_numbers = #tpu.dot_dimension_numbers<[1], [0], [0], [1], [0, 0, 1, 1], [], []>} : vector<480x128xbf16>, vector<128x64xbf16>, vector<480x64xf32> -> vector<480x64xf32>
    %c0_13 = arith.constant 0 : index
    %c0_14 = arith.constant 0 : index
    %13 = vector.load %arg12[%c0_13, %c0_14] : memref<480x64xf32, #tpu.memory_space<vmem>>, vector<480x64xf32>
    tpu.vector_store %arg12[%c0_13, %c0_14], %12 {strides = array<i32>} : memref<480x64xf32, #tpu.memory_space<vmem>>, vector<480x64xf32>,
    %c0_15 = arith.constant 0 : index
    %c0_16 = arith.constant 0 : index
    %14 = vector.load %arg12[%c0_15, %c0_16] : memref<480x64xf32, #tpu.memory_space<vmem>>, vector<480x64xf32>
    %c1 = arith.constant 1 : index
    %c0_17 = arith.constant 0 : index
    %15 = vector.load %arg11[%c1, %c0_17] : memref<512x128xbf16, #tpu.memory_space<vmem>>, vector<480x128xbf16>
    %c128 = arith.constant 128 : index
    %c0_18 = arith.constant 0 : index
    %16 = vector.load %arg4[%c128, %c0_18] : memref<512x64xbf16, #tpu.memory_space<vmem>>, vector<128x64xbf16>
    %cst_19 = arith.constant dense<0.000000e+00> : vector<480x64xf32>
    %17 = tpu.matmul %15, %16, %cst_19 {dimension_numbers = #tpu.dot_dimension_numbers<[1], [0], [0], [1], [0, 0, 1, 1], [], []>} : vector<480x128xbf16>, vector<128x64xbf16>, vector<480x64xf32> -> vector<480x64xf32>
    %18 = arith.addf %14, %17 : vector<480x64xf32>
    %c0_20 = arith.constant 0 : index
    %c0_21 = arith.constant 0 : index
    %19 = vector.load %arg12[%c0_20, %c0_21] : memref<480x64xf32, #tpu.memory_space<vmem>>, vector<480x64xf32>
    tpu.vector_store %arg12[%c0_20, %c0_21], %18 {strides = array<i32>} : memref<480x64xf32, #tpu.memory_space<vmem>>, vector<480x64xf32>,
    %c0_22 = arith.constant 0 : index
    %c0_23 = arith.constant 0 : index
    %20 = vector.load %arg12[%c0_22, %c0_23] : memref<480x64xf32, #tpu.memory_space<vmem>>, vector<480x64xf32>
    %c16 = arith.constant 16 : index
    %c0_24 = arith.constant 0 : index
    %21 = vector.load %arg11[%c16, %c0_24] : memref<512x128xbf16, #tpu.memory_space<vmem>>, vector<480x128xbf16>
    %c256 = arith.constant 256 : index
    %c0_25 = arith.constant 0 : index
    %22 = vector.load %arg4[%c256, %c0_25] : memref<512x64xbf16, #tpu.memory_space<vmem>>, vector<128x64xbf16>
    %cst_26 = arith.constant dense<0.000000e+00> : vector<480x64xf32>
    %23 = tpu.matmul %21, %22, %cst_26 {dimension_numbers = #tpu.dot_dimension_numbers<[1], [0], [0], [1], [0, 0, 1, 1], [], []>} : vector<480x128xbf16>, vector<128x64xbf16>, vector<480x64xf32> -> vector<480x64xf32>
    %24 = arith.addf %20, %23 : vector<480x64xf32>
    %c0_27 = arith.constant 0 : index
    %c0_28 = arith.constant 0 : index
    %25 = vector.load %arg12[%c0_27, %c0_28] : memref<480x64xf32, #tpu.memory_space<vmem>>, vector<480x64xf32>
    tpu.vector_store %arg12[%c0_27, %c0_28], %24 {strides = array<i32>} : memref<480x64xf32, #tpu.memory_space<vmem>>, vector<480x64xf32>,
    %c0_29 = arith.constant 0 : index
    %c0_30 = arith.constant 0 : index
    %26 = vector.load %arg12[%c0_29, %c0_30] : memref<480x64xf32, #tpu.memory_space<vmem>>, vector<480x64xf32>
    %c17 = arith.constant 17 : index
    %c0_31 = arith.constant 0 : index
    %27 = vector.load %arg11[%c17, %c0_31] : memref<512x128xbf16, #tpu.memory_space<vmem>>, vector<480x128xbf16>
    %c384 = arith.constant 384 : index
    %c0_32 = arith.constant 0 : index
    %28 = vector.load %arg4[%c384, %c0_32] : memref<512x64xbf16, #tpu.memory_space<vmem>>, vector<128x64xbf16>
    %cst_33 = arith.constant dense<0.000000e+00> : vector<480x64xf32>
    %29 = tpu.matmul %27, %28, %cst_33 {dimension_numbers = #tpu.dot_dimension_numbers<[1], [0], [0], [1], [0, 0, 1, 1], [], []>} : vector<480x128xbf16>, vector<128x64xbf16>, vector<480x64xf32> -> vector<480x64xf32>
    %30 = arith.addf %26, %29 : vector<480x64xf32>
    %c0_34 = arith.constant 0 : index
    %c0_35 = arith.constant 0 : index
    %31 = vector.load %arg12[%c0_34, %c0_35] : memref<480x64xf32, #tpu.memory_space<vmem>>, vector<480x64xf32>
    tpu.vector_store %arg12[%c0_34, %c0_35], %30 {strides = array<i32>} : memref<480x64xf32, #tpu.memory_space<vmem>>, vector<480x64xf32>,
    %c0_36 = arith.constant 0 : index
    %c0_37 = arith.constant 0 : index
    %32 = vector.load %arg12[%c0_36, %c0_37] : memref<480x64xf32, #tpu.memory_space<vmem>>, vector<480x64xf32>
    %c0_38 = arith.constant 0 : index
    %c0_39 = arith.constant 0 : index
    %33 = vector.load %arg5[%c0_38, %c0_39] : memref<1x64xf32, #tpu.memory_space<vmem>>, vector<1x64xf32>
    %34 = vector.broadcast %33 : vector<1x64xf32> to vector<480x64xf32>
    %35 = arith.addf %32, %34 : vector<480x64xf32>
    %cst_40 = arith.constant 0.000000e+00 : f32
    %36 = vector.broadcast %cst_40 : f32 to vector<480x64xf32>
    %37 = arith.maximumf %35, %36 : vector<480x64xf32>
    %c0_41 = arith.constant 0 : index
    %c0_42 = arith.constant 0 : index
    %38 = vector.load %arg12[%c0_41, %c0_42] : memref<480x64xf32, #tpu.memory_space<vmem>>, vector<480x64xf32>
    tpu.vector_store %arg12[%c0_41, %c0_42], %37 {strides = array<i32>} : memref<480x64xf32, #tpu.memory_space<vmem>>, vector<480x64xf32>,
    %c0_43 = arith.constant 0 : index
    %c0_44 = arith.constant 0 : index
    %39 = vector.load %arg12[%c0_43, %c0_44] : memref<480x64xf32, #tpu.memory_space<vmem>>, vector<464x64xf32>
    %c1_45 = arith.constant 1 : index
    %c0_46 = arith.constant 0 : index
    %40 = vector.load %arg12[%c1_45, %c0_46] : memref<480x64xf32, #tpu.memory_space<vmem>>, vector<464x64xf32>
    %41 = arith.maximumf %39, %40 : vector<464x64xf32>
    %42 = vector.extract_strided_slice %41 {offsets = [0, 0], sizes = [448, 64], strides = [1, 1]} : vector<464x64xf32> to vector<448x64xf32>
    %43 = vector.extract_strided_slice %41 {offsets = [16, 0], sizes = [448, 64], strides = [1, 1]} : vector<464x64xf32> to vector<448x64xf32>
    %44 = arith.maximumf %42, %43 : vector<448x64xf32>
    %c0_47 = arith.constant 0 : index
    %c0_48 = arith.constant 0 : index
    %45 = vector.load %arg13[%c0_47, %c0_48] : memref<448x64xf32, #tpu.memory_space<vmem>>, vector<448x64xf32>
    tpu.vector_store %arg13[%c0_47, %c0_48], %44 {strides = array<i32>} : memref<448x64xf32, #tpu.memory_space<vmem>>, vector<448x64xf32>,
    tpu.wait_dma2 semaphore(%arg15 : memref<!tpu.dma_semaphore, #tpu.memory_space<semaphore_mem>>) src(%arg6 : memref<3136x256xbf16, #tpu.memory_space<any>>) dst(%arg14 : memref<3136x256xbf16, #tpu.memory_space<vmem>>)
    %c0_49 = arith.constant 0 : index
    %c0_50 = arith.constant 0 : index
    %46 = tpu.strided_load %arg13[%c0_49, %c0_50] {strides = array<i32: 240, 1>} : memref<448x64xf32, #tpu.memory_space<vmem>>, vector<2x64xf32>
    %47 = arith.truncf %46 : vector<2x64xf32> to vector<2x64xbf16>
    %c0_51 = arith.constant 0 : index
    %c0_52 = arith.constant 0 : index
    %48 = vector.load %arg14[%c0_51, %c0_52] : memref<3136x256xbf16, #tpu.memory_space<vmem>>, vector<64x256xbf16>
    %cst_53 = arith.constant dense<0.000000e+00> : vector<2x256xf32>
    %49 = tpu.matmul %47, %48, %cst_53 {dimension_numbers = #tpu.dot_dimension_numbers<[1], [0], [0], [1], [0, 0, 1, 1], [], []>} : vector<2x64xbf16>, vector<64x256xbf16>, vector<2x256xf32> -> vector<2x256xf32>
    %c2 = arith.constant 2 : index
    %c0_54 = arith.constant 0 : index
    %50 = tpu.strided_load %arg13[%c2, %c0_54] {strides = array<i32: 240, 1>} : memref<448x64xf32, #tpu.memory_space<vmem>>, vector<2x64xf32>
    %51 = arith.truncf %50 : vector<2x64xf32> to vector<2x64xbf16>
    %c64 = arith.constant 64 : index
    %c0_55 = arith.constant 0 : index
    %52 = vector.load %arg14[%c64, %c0_55] : memref<3136x256xbf16, #tpu.memory_space<vmem>>, vector<64x256xbf16>
    %cst_56 = arith.constant dense<0.000000e+00> : vector<2x256xf32>
    %53 = tpu.matmul %51, %52, %cst_56 {dimension_numbers = #tpu.dot_dimension_numbers<[1], [0], [0], [1], [0, 0, 1, 1], [], []>} : vector<2x64xbf16>, vector<64x256xbf16>, vector<2x256xf32> -> vector<2x256xf32>
    %54 = arith.addf %49, %53 : vector<2x256xf32>
    %c4 = arith.constant 4 : index
    %c0_57 = arith.constant 0 : index
    %55 = tpu.strided_load %arg13[%c4, %c0_57] {strides = array<i32: 240, 1>} : memref<448x64xf32, #tpu.memory_space<vmem>>, vector<2x64xf32>
    %56 = arith.truncf %55 : vector<2x64xf32> to vector<2x64xbf16>
    %c128_58 = arith.constant 128 : index
    %c0_59 = arith.constant 0 : index
    %57 = vector.load %arg14[%c128_58, %c0_59] : memref<3136x256xbf16, #tpu.memory_space<vmem>>, vector<64x256xbf16>
    %cst_60 = arith.constant dense<0.000000e+00> : vector<2x256xf32>
    %58 = tpu.matmul %56, %57, %cst_60 {dimension_numbers = #tpu.dot_dimension_numbers<[1], [0], [0], [1], [0, 0, 1, 1], [], []>} : vector<2x64xbf16>, vector<64x256xbf16>, vector<2x256xf32> -> vector<2x256xf32>
    %59 = arith.addf %54, %58 : vector<2x256xf32>
    %c6 = arith.constant 6 : index
    %c0_61 = arith.constant 0 : index
    %60 = tpu.strided_load %arg13[%c6, %c0_61] {strides = array<i32: 240, 1>} : memref<448x64xf32, #tpu.memory_space<vmem>>, vector<2x64xf32>
    %61 = arith.truncf %60 : vector<2x64xf32> to vector<2x64xbf16>
    %c192 = arith.constant 192 : index
    %c0_62 = arith.constant 0 : index
    %62 = vector.load %arg14[%c192, %c0_62] : memref<3136x256xbf16, #tpu.memory_space<vmem>>, vector<64x256xbf16>
    %cst_63 = arith.constant dense<0.000000e+00> : vector<2x256xf32>
    %63 = tpu.matmul %61, %62, %cst_63 {dimension_numbers = #tpu.dot_dimension_numbers<[1], [0], [0], [1], [0, 0, 1, 1], [], []>} : vector<2x64xbf16>, vector<64x256xbf16>, vector<2x256xf32> -> vector<2x256xf32>
    %64 = arith.addf %59, %63 : vector<2x256xf32>
    %c8 = arith.constant 8 : index
    %c0_64 = arith.constant 0 : index
    %65 = tpu.strided_load %arg13[%c8, %c0_64] {strides = array<i32: 240, 1>} : memref<448x64xf32, #tpu.memory_space<vmem>>, vector<2x64xf32>
    %66 = arith.truncf %65 : vector<2x64xf32> to vector<2x64xbf16>
    %c256_65 = arith.constant 256 : index
    %c0_66 = arith.constant 0 : index
    %67 = vector.load %arg14[%c256_65, %c0_66] : memref<3136x256xbf16, #tpu.memory_space<vmem>>, vector<64x256xbf16>
    %cst_67 = arith.constant dense<0.000000e+00> : vector<2x256xf32>
    %68 = tpu.matmul %66, %67, %cst_67 {dimension_numbers = #tpu.dot_dimension_numbers<[1], [0], [0], [1], [0, 0, 1, 1], [], []>} : vector<2x64xbf16>, vector<64x256xbf16>, vector<2x256xf32> -> vector<2x256xf32>
    %69 = arith.addf %64, %68 : vector<2x256xf32>
    %c10 = arith.constant 10 : index
    %c0_68 = arith.constant 0 : index
    %70 = tpu.strided_load %arg13[%c10, %c0_68] {strides = array<i32: 240, 1>} : memref<448x64xf32, #tpu.memory_space<vmem>>, vector<2x64xf32>
    %71 = arith.truncf %70 : vector<2x64xf32> to vector<2x64xbf16>
    %c320 = arith.constant 320 : index
    %c0_69 = arith.constant 0 : index
    %72 = vector.load %arg14[%c320, %c0_69] : memref<3136x256xbf16, #tpu.memory_space<vmem>>, vector<64x256xbf16>
    %cst_70 = arith.constant dense<0.000000e+00> : vector<2x256xf32>
    %73 = tpu.matmul %71, %72, %cst_70 {dimension_numbers = #tpu.dot_dimension_numbers<[1], [0], [0], [1], [0, 0, 1, 1], [], []>} : vector<2x64xbf16>, vector<64x256xbf16>, vector<2x256xf32> -> vector<2x256xf32>
    %74 = arith.addf %69, %73 : vector<2x256xf32>
    %c12 = arith.constant 12 : index
    %c0_71 = arith.constant 0 : index
    %75 = tpu.strided_load %arg13[%c12, %c0_71] {strides = array<i32: 240, 1>} : memref<448x64xf32, #tpu.memory_space<vmem>>, vector<2x64xf32>
    %76 = arith.truncf %75 : vector<2x64xf32> to vector<2x64xbf16>
    %c384_72 = arith.constant 384 : index
    %c0_73 = arith.constant 0 : index
    %77 = vector.load %arg14[%c384_72, %c0_73] : memref<3136x256xbf16, #tpu.memory_space<vmem>>, vector<64x256xbf16>
    %cst_74 = arith.constant dense<0.000000e+00> : vector<2x256xf32>
    %78 = tpu.matmul %76, %77, %cst_74 {dimension_numbers = #tpu.dot_dimension_numbers<[1], [0], [0], [1], [0, 0, 1, 1], [], []>} : vector<2x64xbf16>, vector<64x256xbf16>, vector<2x256xf32> -> vector<2x256xf32>
    %79 = arith.addf %74, %78 : vector<2x256xf32>
    %c32 = arith.constant 32 : index
    %c0_75 = arith.constant 0 : index
    %80 = tpu.strided_load %arg13[%c32, %c0_75] {strides = array<i32: 240, 1>} : memref<448x64xf32, #tpu.memory_space<vmem>>, vector<2x64xf32>
    %81 = arith.truncf %80 : vector<2x64xf32> to vector<2x64xbf16>
    %c448 = arith.constant 448 : index
    %c0_76 = arith.constant 0 : index
    %82 = vector.load %arg14[%c448, %c0_76] : memref<3136x256xbf16, #tpu.memory_space<vmem>>, vector<64x256xbf16>
    %cst_77 = arith.constant dense<0.000000e+00> : vector<2x256xf32>
    %83 = tpu.matmul %81, %82, %cst_77 {dimension_numbers = #tpu.dot_dimension_numbers<[1], [0], [0], [1], [0, 0, 1, 1], [], []>} : vector<2x64xbf16>, vector<64x256xbf16>, vector<2x256xf32> -> vector<2x256xf32>
    %84 = arith.addf %79, %83 : vector<2x256xf32>
    %c34 = arith.constant 34 : index
    %c0_78 = arith.constant 0 : index
    %85 = tpu.strided_load %arg13[%c34, %c0_78] {strides = array<i32: 240, 1>} : memref<448x64xf32, #tpu.memory_space<vmem>>, vector<2x64xf32>
    %86 = arith.truncf %85 : vector<2x64xf32> to vector<2x64xbf16>
    %c512 = arith.constant 512 : index
    %c0_79 = arith.constant 0 : index
    %87 = vector.load %arg14[%c512, %c0_79] : memref<3136x256xbf16, #tpu.memory_space<vmem>>, vector<64x256xbf16>
    %cst_80 = arith.constant dense<0.000000e+00> : vector<2x256xf32>
    %88 = tpu.matmul %86, %87, %cst_80 {dimension_numbers = #tpu.dot_dimension_numbers<[1], [0], [0], [1], [0, 0, 1, 1], [], []>} : vector<2x64xbf16>, vector<64x256xbf16>, vector<2x256xf32> -> vector<2x256xf32>
    %89 = arith.addf %84, %88 : vector<2x256xf32>
    %c36 = arith.constant 36 : index
    %c0_81 = arith.constant 0 : index
    %90 = tpu.strided_load %arg13[%c36, %c0_81] {strides = array<i32: 240, 1>} : memref<448x64xf32, #tpu.memory_space<vmem>>, vector<2x64xf32>
    %91 = arith.truncf %90 : vector<2x64xf32> to vector<2x64xbf16>
    %c576 = arith.constant 576 : index
    %c0_82 = arith.constant 0 : index
    %92 = vector.load %arg14[%c576, %c0_82] : memref<3136x256xbf16, #tpu.memory_space<vmem>>, vector<64x256xbf16>
    %cst_83 = arith.constant dense<0.000000e+00> : vector<2x256xf32>
    %93 = tpu.matmul %91, %92, %cst_83 {dimension_numbers = #tpu.dot_dimension_numbers<[1], [0], [0], [1], [0, 0, 1, 1], [], []>} : vector<2x64xbf16>, vector<64x256xbf16>, vector<2x256xf32> -> vector<2x256xf32>
    %94 = arith.addf %89, %93 : vector<2x256xf32>
    %c38 = arith.constant 38 : index
    %c0_84 = arith.constant 0 : index
    %95 = tpu.strided_load %arg13[%c38, %c0_84] {strides = array<i32: 240, 1>} : memref<448x64xf32, #tpu.memory_space<vmem>>, vector<2x64xf32>
    %96 = arith.truncf %95 : vector<2x64xf32> to vector<2x64xbf16>
    %c640 = arith.constant 640 : index
    %c0_85 = arith.constant 0 : index
    %97 = vector.load %arg14[%c640, %c0_85] : memref<3136x256xbf16, #tpu.memory_space<vmem>>, vector<64x256xbf16>
    %cst_86 = arith.constant dense<0.000000e+00> : vector<2x256xf32>
    %98 = tpu.matmul %96, %97, %cst_86 {dimension_numbers = #tpu.dot_dimension_numbers<[1], [0], [0], [1], [0, 0, 1, 1], [], []>} : vector<2x64xbf16>, vector<64x256xbf16>, vector<2x256xf32> -> vector<2x256xf32>
    %99 = arith.addf %94, %98 : vector<2x256xf32>
    %c40 = arith.constant 40 : index
    %c0_87 = arith.constant 0 : index
    %100 = tpu.strided_load %arg13[%c40, %c0_87] {strides = array<i32: 240, 1>} : memref<448x64xf32, #tpu.memory_space<vmem>>, vector<2x64xf32>
    %101 = arith.truncf %100 : vector<2x64xf32> to vector<2x64xbf16>
    %c704 = arith.constant 704 : index
    %c0_88 = arith.constant 0 : index
    %102 = vector.load %arg14[%c704, %c0_88] : memref<3136x256xbf16, #tpu.memory_space<vmem>>, vector<64x256xbf16>
    %cst_89 = arith.constant dense<0.000000e+00> : vector<2x256xf32>
    %103 = tpu.matmul %101, %102, %cst_89 {dimension_numbers = #tpu.dot_dimension_numbers<[1], [0], [0], [1], [0, 0, 1, 1], [], []>} : vector<2x64xbf16>, vector<64x256xbf16>, vector<2x256xf32> -> vector<2x256xf32>
    %104 = arith.addf %99, %103 : vector<2x256xf32>
    %c42 = arith.constant 42 : index
    %c0_90 = arith.constant 0 : index
    %105 = tpu.strided_load %arg13[%c42, %c0_90] {strides = array<i32: 240, 1>} : memref<448x64xf32, #tpu.memory_space<vmem>>, vector<2x64xf32>
    %106 = arith.truncf %105 : vector<2x64xf32> to vector<2x64xbf16>
    %c768 = arith.constant 768 : index
    %c0_91 = arith.constant 0 : index
    %107 = vector.load %arg14[%c768, %c0_91] : memref<3136x256xbf16, #tpu.memory_space<vmem>>, vector<64x256xbf16>
    %cst_92 = arith.constant dense<0.000000e+00> : vector<2x256xf32>
    %108 = tpu.matmul %106, %107, %cst_92 {dimension_numbers = #tpu.dot_dimension_numbers<[1], [0], [0], [1], [0, 0, 1, 1], [], []>} : vector<2x64xbf16>, vector<64x256xbf16>, vector<2x256xf32> -> vector<2x256xf32>
    %109 = arith.addf %104, %108 : vector<2x256xf32>
    %c44 = arith.constant 44 : index
    %c0_93 = arith.constant 0 : index
    %110 = tpu.strided_load %arg13[%c44, %c0_93] {strides = array<i32: 240, 1>} : memref<448x64xf32, #tpu.memory_space<vmem>>, vector<2x64xf32>
    %111 = arith.truncf %110 : vector<2x64xf32> to vector<2x64xbf16>
    %c832 = arith.constant 832 : index
    %c0_94 = arith.constant 0 : index
    %112 = vector.load %arg14[%c832, %c0_94] : memref<3136x256xbf16, #tpu.memory_space<vmem>>, vector<64x256xbf16>
    %cst_95 = arith.constant dense<0.000000e+00> : vector<2x256xf32>
    %113 = tpu.matmul %111, %112, %cst_95 {dimension_numbers = #tpu.dot_dimension_numbers<[1], [0], [0], [1], [0, 0, 1, 1], [], []>} : vector<2x64xbf16>, vector<64x256xbf16>, vector<2x256xf32> -> vector<2x256xf32>
    %114 = arith.addf %109, %113 : vector<2x256xf32>
    %c64_96 = arith.constant 64 : index
    %c0_97 = arith.constant 0 : index
    %115 = tpu.strided_load %arg13[%c64_96, %c0_97] {strides = array<i32: 240, 1>} : memref<448x64xf32, #tpu.memory_space<vmem>>, vector<2x64xf32>
    %116 = arith.truncf %115 : vector<2x64xf32> to vector<2x64xbf16>
    %c896 = arith.constant 896 : index
    %c0_98 = arith.constant 0 : index
    %117 = vector.load %arg14[%c896, %c0_98] : memref<3136x256xbf16, #tpu.memory_space<vmem>>, vector<64x256xbf16>
    %cst_99 = arith.constant dense<0.000000e+00> : vector<2x256xf32>
    %118 = tpu.matmul %116, %117, %cst_99 {dimension_numbers = #tpu.dot_dimension_numbers<[1], [0], [0], [1], [0, 0, 1, 1], [], []>} : vector<2x64xbf16>, vector<64x256xbf16>, vector<2x256xf32> -> vector<2x256xf32>
    %119 = arith.addf %114, %118 : vector<2x256xf32>
    %c66 = arith.constant 66 : index
    %c0_100 = arith.constant 0 : index
    %120 = tpu.strided_load %arg13[%c66, %c0_100] {strides = array<i32: 240, 1>} : memref<448x64xf32, #tpu.memory_space<vmem>>, vector<2x64xf32>
    %121 = arith.truncf %120 : vector<2x64xf32> to vector<2x64xbf16>
    %c960 = arith.constant 960 : index
    %c0_101 = arith.constant 0 : index
    %122 = vector.load %arg14[%c960, %c0_101] : memref<3136x256xbf16, #tpu.memory_space<vmem>>, vector<64x256xbf16>
    %cst_102 = arith.constant dense<0.000000e+00> : vector<2x256xf32>
    %123 = tpu.matmul %121, %122, %cst_102 {dimension_numbers = #tpu.dot_dimension_numbers<[1], [0], [0], [1], [0, 0, 1, 1], [], []>} : vector<2x64xbf16>, vector<64x256xbf16>, vector<2x256xf32> -> vector<2x256xf32>
    %124 = arith.addf %119, %123 : vector<2x256xf32>
    %c68 = arith.constant 68 : index
    %c0_103 = arith.constant 0 : index
    %125 = tpu.strided_load %arg13[%c68, %c0_103] {strides = array<i32: 240, 1>} : memref<448x64xf32, #tpu.memory_space<vmem>>, vector<2x64xf32>
    %126 = arith.truncf %125 : vector<2x64xf32> to vector<2x64xbf16>
    %c1024 = arith.constant 1024 : index
    %c0_104 = arith.constant 0 : index
    %127 = vector.load %arg14[%c1024, %c0_104] : memref<3136x256xbf16, #tpu.memory_space<vmem>>, vector<64x256xbf16>
    %cst_105 = arith.constant dense<0.000000e+00> : vector<2x256xf32>
    %128 = tpu.matmul %126, %127, %cst_105 {dimension_numbers = #tpu.dot_dimension_numbers<[1], [0], [0], [1], [0, 0, 1, 1], [], []>} : vector<2x64xbf16>, vector<64x256xbf16>, vector<2x256xf32> -> vector<2x256xf32>
    %129 = arith.addf %124, %128 : vector<2x256xf32>
    %c70 = arith.constant 70 : index
    %c0_106 = arith.constant 0 : index
    %130 = tpu.strided_load %arg13[%c70, %c0_106] {strides = array<i32: 240, 1>} : memref<448x64xf32, #tpu.memory_space<vmem>>, vector<2x64xf32>
    %131 = arith.truncf %130 : vector<2x64xf32> to vector<2x64xbf16>
    %c1088 = arith.constant 1088 : index
    %c0_107 = arith.constant 0 : index
    %132 = vector.load %arg14[%c1088, %c0_107] : memref<3136x256xbf16, #tpu.memory_space<vmem>>, vector<64x256xbf16>
    %cst_108 = arith.constant dense<0.000000e+00> : vector<2x256xf32>
    %133 = tpu.matmul %131, %132, %cst_108 {dimension_numbers = #tpu.dot_dimension_numbers<[1], [0], [0], [1], [0, 0, 1, 1], [], []>} : vector<2x64xbf16>, vector<64x256xbf16>, vector<2x256xf32> -> vector<2x256xf32>
    %134 = arith.addf %129, %133 : vector<2x256xf32>
    %c72 = arith.constant 72 : index
    %c0_109 = arith.constant 0 : index
    %135 = tpu.strided_load %arg13[%c72, %c0_109] {strides = array<i32: 240, 1>} : memref<448x64xf32, #tpu.memory_space<vmem>>, vector<2x64xf32>
    %136 = arith.truncf %135 : vector<2x64xf32> to vector<2x64xbf16>
    %c1152 = arith.constant 1152 : index
    %c0_110 = arith.constant 0 : index
    %137 = vector.load %arg14[%c1152, %c0_110] : memref<3136x256xbf16, #tpu.memory_space<vmem>>, vector<64x256xbf16>
    %cst_111 = arith.constant dense<0.000000e+00> : vector<2x256xf32>
    %138 = tpu.matmul %136, %137, %cst_111 {dimension_numbers = #tpu.dot_dimension_numbers<[1], [0], [0], [1], [0, 0, 1, 1], [], []>} : vector<2x64xbf16>, vector<64x256xbf16>, vector<2x256xf32> -> vector<2x256xf32>
    %139 = arith.addf %134, %138 : vector<2x256xf32>
    %c74 = arith.constant 74 : index
    %c0_112 = arith.constant 0 : index
    %140 = tpu.strided_load %arg13[%c74, %c0_112] {strides = array<i32: 240, 1>} : memref<448x64xf32, #tpu.memory_space<vmem>>, vector<2x64xf32>
    %141 = arith.truncf %140 : vector<2x64xf32> to vector<2x64xbf16>
    %c1216 = arith.constant 1216 : index
    %c0_113 = arith.constant 0 : index
    %142 = vector.load %arg14[%c1216, %c0_113] : memref<3136x256xbf16, #tpu.memory_space<vmem>>, vector<64x256xbf16>
    %cst_114 = arith.constant dense<0.000000e+00> : vector<2x256xf32>
    %143 = tpu.matmul %141, %142, %cst_114 {dimension_numbers = #tpu.dot_dimension_numbers<[1], [0], [0], [1], [0, 0, 1, 1], [], []>} : vector<2x64xbf16>, vector<64x256xbf16>, vector<2x256xf32> -> vector<2x256xf32>
    %144 = arith.addf %139, %143 : vector<2x256xf32>
    %c76 = arith.constant 76 : index
    %c0_115 = arith.constant 0 : index
    %145 = tpu.strided_load %arg13[%c76, %c0_115] {strides = array<i32: 240, 1>} : memref<448x64xf32, #tpu.memory_space<vmem>>, vector<2x64xf32>
    %146 = arith.truncf %145 : vector<2x64xf32> to vector<2x64xbf16>
    %c1280 = arith.constant 1280 : index
    %c0_116 = arith.constant 0 : index
    %147 = vector.load %arg14[%c1280, %c0_116] : memref<3136x256xbf16, #tpu.memory_space<vmem>>, vector<64x256xbf16>
    %cst_117 = arith.constant dense<0.000000e+00> : vector<2x256xf32>
    %148 = tpu.matmul %146, %147, %cst_117 {dimension_numbers = #tpu.dot_dimension_numbers<[1], [0], [0], [1], [0, 0, 1, 1], [], []>} : vector<2x64xbf16>, vector<64x256xbf16>, vector<2x256xf32> -> vector<2x256xf32>
    %149 = arith.addf %144, %148 : vector<2x256xf32>
    %c96 = arith.constant 96 : index
    %c0_118 = arith.constant 0 : index
    %150 = tpu.strided_load %arg13[%c96, %c0_118] {strides = array<i32: 240, 1>} : memref<448x64xf32, #tpu.memory_space<vmem>>, vector<2x64xf32>
    %151 = arith.truncf %150 : vector<2x64xf32> to vector<2x64xbf16>
    %c1344 = arith.constant 1344 : index
    %c0_119 = arith.constant 0 : index
    %152 = vector.load %arg14[%c1344, %c0_119] : memref<3136x256xbf16, #tpu.memory_space<vmem>>, vector<64x256xbf16>
    %cst_120 = arith.constant dense<0.000000e+00> : vector<2x256xf32>
    %153 = tpu.matmul %151, %152, %cst_120 {dimension_numbers = #tpu.dot_dimension_numbers<[1], [0], [0], [1], [0, 0, 1, 1], [], []>} : vector<2x64xbf16>, vector<64x256xbf16>, vector<2x256xf32> -> vector<2x256xf32>
    %154 = arith.addf %149, %153 : vector<2x256xf32>
    %c98 = arith.constant 98 : index
    %c0_121 = arith.constant 0 : index
    %155 = tpu.strided_load %arg13[%c98, %c0_121] {strides = array<i32: 240, 1>} : memref<448x64xf32, #tpu.memory_space<vmem>>, vector<2x64xf32>
    %156 = arith.truncf %155 : vector<2x64xf32> to vector<2x64xbf16>
    %c1408 = arith.constant 1408 : index
    %c0_122 = arith.constant 0 : index
    %157 = vector.load %arg14[%c1408, %c0_122] : memref<3136x256xbf16, #tpu.memory_space<vmem>>, vector<64x256xbf16>
    %cst_123 = arith.constant dense<0.000000e+00> : vector<2x256xf32>
    %158 = tpu.matmul %156, %157, %cst_123 {dimension_numbers = #tpu.dot_dimension_numbers<[1], [0], [0], [1], [0, 0, 1, 1], [], []>} : vector<2x64xbf16>, vector<64x256xbf16>, vector<2x256xf32> -> vector<2x256xf32>
    %159 = arith.addf %154, %158 : vector<2x256xf32>
    %c100 = arith.constant 100 : index
    %c0_124 = arith.constant 0 : index
    %160 = tpu.strided_load %arg13[%c100, %c0_124] {strides = array<i32: 240, 1>} : memref<448x64xf32, #tpu.memory_space<vmem>>, vector<2x64xf32>
    %161 = arith.truncf %160 : vector<2x64xf32> to vector<2x64xbf16>
    %c1472 = arith.constant 1472 : index
    %c0_125 = arith.constant 0 : index
    %162 = vector.load %arg14[%c1472, %c0_125] : memref<3136x256xbf16, #tpu.memory_space<vmem>>, vector<64x256xbf16>
    %cst_126 = arith.constant dense<0.000000e+00> : vector<2x256xf32>
    %163 = tpu.matmul %161, %162, %cst_126 {dimension_numbers = #tpu.dot_dimension_numbers<[1], [0], [0], [1], [0, 0, 1, 1], [], []>} : vector<2x64xbf16>, vector<64x256xbf16>, vector<2x256xf32> -> vector<2x256xf32>
    %164 = arith.addf %159, %163 : vector<2x256xf32>
    %c102 = arith.constant 102 : index
    %c0_127 = arith.constant 0 : index
    %165 = tpu.strided_load %arg13[%c102, %c0_127] {strides = array<i32: 240, 1>} : memref<448x64xf32, #tpu.memory_space<vmem>>, vector<2x64xf32>
    %166 = arith.truncf %165 : vector<2x64xf32> to vector<2x64xbf16>
    %c1536 = arith.constant 1536 : index
    %c0_128 = arith.constant 0 : index
    %167 = vector.load %arg14[%c1536, %c0_128] : memref<3136x256xbf16, #tpu.memory_space<vmem>>, vector<64x256xbf16>
    %cst_129 = arith.constant dense<0.000000e+00> : vector<2x256xf32>
    %168 = tpu.matmul %166, %167, %cst_129 {dimension_numbers = #tpu.dot_dimension_numbers<[1], [0], [0], [1], [0, 0, 1, 1], [], []>} : vector<2x64xbf16>, vector<64x256xbf16>, vector<2x256xf32> -> vector<2x256xf32>
    %169 = arith.addf %164, %168 : vector<2x256xf32>
    %c104 = arith.constant 104 : index
    %c0_130 = arith.constant 0 : index
    %170 = tpu.strided_load %arg13[%c104, %c0_130] {strides = array<i32: 240, 1>} : memref<448x64xf32, #tpu.memory_space<vmem>>, vector<2x64xf32>
    %171 = arith.truncf %170 : vector<2x64xf32> to vector<2x64xbf16>
    %c1600 = arith.constant 1600 : index
    %c0_131 = arith.constant 0 : index
    %172 = vector.load %arg14[%c1600, %c0_131] : memref<3136x256xbf16, #tpu.memory_space<vmem>>, vector<64x256xbf16>
    %cst_132 = arith.constant dense<0.000000e+00> : vector<2x256xf32>
    %173 = tpu.matmul %171, %172, %cst_132 {dimension_numbers = #tpu.dot_dimension_numbers<[1], [0], [0], [1], [0, 0, 1, 1], [], []>} : vector<2x64xbf16>, vector<64x256xbf16>, vector<2x256xf32> -> vector<2x256xf32>
    %174 = arith.addf %169, %173 : vector<2x256xf32>
    %c106 = arith.constant 106 : index
    %c0_133 = arith.constant 0 : index
    %175 = tpu.strided_load %arg13[%c106, %c0_133] {strides = array<i32: 240, 1>} : memref<448x64xf32, #tpu.memory_space<vmem>>, vector<2x64xf32>
    %176 = arith.truncf %175 : vector<2x64xf32> to vector<2x64xbf16>
    %c1664 = arith.constant 1664 : index
    %c0_134 = arith.constant 0 : index
    %177 = vector.load %arg14[%c1664, %c0_134] : memref<3136x256xbf16, #tpu.memory_space<vmem>>, vector<64x256xbf16>
    %cst_135 = arith.constant dense<0.000000e+00> : vector<2x256xf32>
    %178 = tpu.matmul %176, %177, %cst_135 {dimension_numbers = #tpu.dot_dimension_numbers<[1], [0], [0], [1], [0, 0, 1, 1], [], []>} : vector<2x64xbf16>, vector<64x256xbf16>, vector<2x256xf32> -> vector<2x256xf32>
    %179 = arith.addf %174, %178 : vector<2x256xf32>
    %c108 = arith.constant 108 : index
    %c0_136 = arith.constant 0 : index
    %180 = tpu.strided_load %arg13[%c108, %c0_136] {strides = array<i32: 240, 1>} : memref<448x64xf32, #tpu.memory_space<vmem>>, vector<2x64xf32>
    %181 = arith.truncf %180 : vector<2x64xf32> to vector<2x64xbf16>
    %c1728 = arith.constant 1728 : index
    %c0_137 = arith.constant 0 : index
    %182 = vector.load %arg14[%c1728, %c0_137] : memref<3136x256xbf16, #tpu.memory_space<vmem>>, vector<64x256xbf16>
    %cst_138 = arith.constant dense<0.000000e+00> : vector<2x256xf32>
    %183 = tpu.matmul %181, %182, %cst_138 {dimension_numbers = #tpu.dot_dimension_numbers<[1], [0], [0], [1], [0, 0, 1, 1], [], []>} : vector<2x64xbf16>, vector<64x256xbf16>, vector<2x256xf32> -> vector<2x256xf32>
    %184 = arith.addf %179, %183 : vector<2x256xf32>
    %c128_139 = arith.constant 128 : index
    %c0_140 = arith.constant 0 : index
    %185 = tpu.strided_load %arg13[%c128_139, %c0_140] {strides = array<i32: 240, 1>} : memref<448x64xf32, #tpu.memory_space<vmem>>, vector<2x64xf32>
    %186 = arith.truncf %185 : vector<2x64xf32> to vector<2x64xbf16>
    %c1792 = arith.constant 1792 : index
    %c0_141 = arith.constant 0 : index
    %187 = vector.load %arg14[%c1792, %c0_141] : memref<3136x256xbf16, #tpu.memory_space<vmem>>, vector<64x256xbf16>
    %cst_142 = arith.constant dense<0.000000e+00> : vector<2x256xf32>
    %188 = tpu.matmul %186, %187, %cst_142 {dimension_numbers = #tpu.dot_dimension_numbers<[1], [0], [0], [1], [0, 0, 1, 1], [], []>} : vector<2x64xbf16>, vector<64x256xbf16>, vector<2x256xf32> -> vector<2x256xf32>
    %189 = arith.addf %184, %188 : vector<2x256xf32>
    %c130 = arith.constant 130 : index
    %c0_143 = arith.constant 0 : index
    %190 = tpu.strided_load %arg13[%c130, %c0_143] {strides = array<i32: 240, 1>} : memref<448x64xf32, #tpu.memory_space<vmem>>, vector<2x64xf32>
    %191 = arith.truncf %190 : vector<2x64xf32> to vector<2x64xbf16>
    %c1856 = arith.constant 1856 : index
    %c0_144 = arith.constant 0 : index
    %192 = vector.load %arg14[%c1856, %c0_144] : memref<3136x256xbf16, #tpu.memory_space<vmem>>, vector<64x256xbf16>
    %cst_145 = arith.constant dense<0.000000e+00> : vector<2x256xf32>
    %193 = tpu.matmul %191, %192, %cst_145 {dimension_numbers = #tpu.dot_dimension_numbers<[1], [0], [0], [1], [0, 0, 1, 1], [], []>} : vector<2x64xbf16>, vector<64x256xbf16>, vector<2x256xf32> -> vector<2x256xf32>
    %194 = arith.addf %189, %193 : vector<2x256xf32>
    %c132 = arith.constant 132 : index
    %c0_146 = arith.constant 0 : index
    %195 = tpu.strided_load %arg13[%c132, %c0_146] {strides = array<i32: 240, 1>} : memref<448x64xf32, #tpu.memory_space<vmem>>, vector<2x64xf32>
    %196 = arith.truncf %195 : vector<2x64xf32> to vector<2x64xbf16>
    %c1920 = arith.constant 1920 : index
    %c0_147 = arith.constant 0 : index
    %197 = vector.load %arg14[%c1920, %c0_147] : memref<3136x256xbf16, #tpu.memory_space<vmem>>, vector<64x256xbf16>
    %cst_148 = arith.constant dense<0.000000e+00> : vector<2x256xf32>
    %198 = tpu.matmul %196, %197, %cst_148 {dimension_numbers = #tpu.dot_dimension_numbers<[1], [0], [0], [1], [0, 0, 1, 1], [], []>} : vector<2x64xbf16>, vector<64x256xbf16>, vector<2x256xf32> -> vector<2x256xf32>
    %199 = arith.addf %194, %198 : vector<2x256xf32>
    %c134 = arith.constant 134 : index
    %c0_149 = arith.constant 0 : index
    %200 = tpu.strided_load %arg13[%c134, %c0_149] {strides = array<i32: 240, 1>} : memref<448x64xf32, #tpu.memory_space<vmem>>, vector<2x64xf32>
    %201 = arith.truncf %200 : vector<2x64xf32> to vector<2x64xbf16>
    %c1984 = arith.constant 1984 : index
    %c0_150 = arith.constant 0 : index
    %202 = vector.load %arg14[%c1984, %c0_150] : memref<3136x256xbf16, #tpu.memory_space<vmem>>, vector<64x256xbf16>
    %cst_151 = arith.constant dense<0.000000e+00> : vector<2x256xf32>
    %203 = tpu.matmul %201, %202, %cst_151 {dimension_numbers = #tpu.dot_dimension_numbers<[1], [0], [0], [1], [0, 0, 1, 1], [], []>} : vector<2x64xbf16>, vector<64x256xbf16>, vector<2x256xf32> -> vector<2x256xf32>
    %204 = arith.addf %199, %203 : vector<2x256xf32>
    %c136 = arith.constant 136 : index
    %c0_152 = arith.constant 0 : index
    %205 = tpu.strided_load %arg13[%c136, %c0_152] {strides = array<i32: 240, 1>} : memref<448x64xf32, #tpu.memory_space<vmem>>, vector<2x64xf32>
    %206 = arith.truncf %205 : vector<2x64xf32> to vector<2x64xbf16>
    %c2048 = arith.constant 2048 : index
    %c0_153 = arith.constant 0 : index
    %207 = vector.load %arg14[%c2048, %c0_153] : memref<3136x256xbf16, #tpu.memory_space<vmem>>, vector<64x256xbf16>
    %cst_154 = arith.constant dense<0.000000e+00> : vector<2x256xf32>
    %208 = tpu.matmul %206, %207, %cst_154 {dimension_numbers = #tpu.dot_dimension_numbers<[1], [0], [0], [1], [0, 0, 1, 1], [], []>} : vector<2x64xbf16>, vector<64x256xbf16>, vector<2x256xf32> -> vector<2x256xf32>
    %209 = arith.addf %204, %208 : vector<2x256xf32>
    %c138 = arith.constant 138 : index
    %c0_155 = arith.constant 0 : index
    %210 = tpu.strided_load %arg13[%c138, %c0_155] {strides = array<i32: 240, 1>} : memref<448x64xf32, #tpu.memory_space<vmem>>, vector<2x64xf32>
    %211 = arith.truncf %210 : vector<2x64xf32> to vector<2x64xbf16>
    %c2112 = arith.constant 2112 : index
    %c0_156 = arith.constant 0 : index
    %212 = vector.load %arg14[%c2112, %c0_156] : memref<3136x256xbf16, #tpu.memory_space<vmem>>, vector<64x256xbf16>
    %cst_157 = arith.constant dense<0.000000e+00> : vector<2x256xf32>
    %213 = tpu.matmul %211, %212, %cst_157 {dimension_numbers = #tpu.dot_dimension_numbers<[1], [0], [0], [1], [0, 0, 1, 1], [], []>} : vector<2x64xbf16>, vector<64x256xbf16>, vector<2x256xf32> -> vector<2x256xf32>
    %214 = arith.addf %209, %213 : vector<2x256xf32>
    %c140 = arith.constant 140 : index
    %c0_158 = arith.constant 0 : index
    %215 = tpu.strided_load %arg13[%c140, %c0_158] {strides = array<i32: 240, 1>} : memref<448x64xf32, #tpu.memory_space<vmem>>, vector<2x64xf32>
    %216 = arith.truncf %215 : vector<2x64xf32> to vector<2x64xbf16>
    %c2176 = arith.constant 2176 : index
    %c0_159 = arith.constant 0 : index
    %217 = vector.load %arg14[%c2176, %c0_159] : memref<3136x256xbf16, #tpu.memory_space<vmem>>, vector<64x256xbf16>
    %cst_160 = arith.constant dense<0.000000e+00> : vector<2x256xf32>
    %218 = tpu.matmul %216, %217, %cst_160 {dimension_numbers = #tpu.dot_dimension_numbers<[1], [0], [0], [1], [0, 0, 1, 1], [], []>} : vector<2x64xbf16>, vector<64x256xbf16>, vector<2x256xf32> -> vector<2x256xf32>
    %219 = arith.addf %214, %218 : vector<2x256xf32>
    %c160 = arith.constant 160 : index
    %c0_161 = arith.constant 0 : index
    %220 = tpu.strided_load %arg13[%c160, %c0_161] {strides = array<i32: 240, 1>} : memref<448x64xf32, #tpu.memory_space<vmem>>, vector<2x64xf32>
    %221 = arith.truncf %220 : vector<2x64xf32> to vector<2x64xbf16>
    %c2240 = arith.constant 2240 : index
    %c0_162 = arith.constant 0 : index
    %222 = vector.load %arg14[%c2240, %c0_162] : memref<3136x256xbf16, #tpu.memory_space<vmem>>, vector<64x256xbf16>
    %cst_163 = arith.constant dense<0.000000e+00> : vector<2x256xf32>
    %223 = tpu.matmul %221, %222, %cst_163 {dimension_numbers = #tpu.dot_dimension_numbers<[1], [0], [0], [1], [0, 0, 1, 1], [], []>} : vector<2x64xbf16>, vector<64x256xbf16>, vector<2x256xf32> -> vector<2x256xf32>
    %224 = arith.addf %219, %223 : vector<2x256xf32>
    %c162 = arith.constant 162 : index
    %c0_164 = arith.constant 0 : index
    %225 = tpu.strided_load %arg13[%c162, %c0_164] {strides = array<i32: 240, 1>} : memref<448x64xf32, #tpu.memory_space<vmem>>, vector<2x64xf32>
    %226 = arith.truncf %225 : vector<2x64xf32> to vector<2x64xbf16>
    %c2304 = arith.constant 2304 : index
    %c0_165 = arith.constant 0 : index
    %227 = vector.load %arg14[%c2304, %c0_165] : memref<3136x256xbf16, #tpu.memory_space<vmem>>, vector<64x256xbf16>
    %cst_166 = arith.constant dense<0.000000e+00> : vector<2x256xf32>
    %228 = tpu.matmul %226, %227, %cst_166 {dimension_numbers = #tpu.dot_dimension_numbers<[1], [0], [0], [1], [0, 0, 1, 1], [], []>} : vector<2x64xbf16>, vector<64x256xbf16>, vector<2x256xf32> -> vector<2x256xf32>
    %229 = arith.addf %224, %228 : vector<2x256xf32>
    %c164 = arith.constant 164 : index
    %c0_167 = arith.constant 0 : index
    %230 = tpu.strided_load %arg13[%c164, %c0_167] {strides = array<i32: 240, 1>} : memref<448x64xf32, #tpu.memory_space<vmem>>, vector<2x64xf32>
    %231 = arith.truncf %230 : vector<2x64xf32> to vector<2x64xbf16>
    %c2368 = arith.constant 2368 : index
    %c0_168 = arith.constant 0 : index
    %232 = vector.load %arg14[%c2368, %c0_168] : memref<3136x256xbf16, #tpu.memory_space<vmem>>, vector<64x256xbf16>
    %cst_169 = arith.constant dense<0.000000e+00> : vector<2x256xf32>
    %233 = tpu.matmul %231, %232, %cst_169 {dimension_numbers = #tpu.dot_dimension_numbers<[1], [0], [0], [1], [0, 0, 1, 1], [], []>} : vector<2x64xbf16>, vector<64x256xbf16>, vector<2x256xf32> -> vector<2x256xf32>
    %234 = arith.addf %229, %233 : vector<2x256xf32>
    %c166 = arith.constant 166 : index
    %c0_170 = arith.constant 0 : index
    %235 = tpu.strided_load %arg13[%c166, %c0_170] {strides = array<i32: 240, 1>} : memref<448x64xf32, #tpu.memory_space<vmem>>, vector<2x64xf32>
    %236 = arith.truncf %235 : vector<2x64xf32> to vector<2x64xbf16>
    %c2432 = arith.constant 2432 : index
    %c0_171 = arith.constant 0 : index
    %237 = vector.load %arg14[%c2432, %c0_171] : memref<3136x256xbf16, #tpu.memory_space<vmem>>, vector<64x256xbf16>
    %cst_172 = arith.constant dense<0.000000e+00> : vector<2x256xf32>
    %238 = tpu.matmul %236, %237, %cst_172 {dimension_numbers = #tpu.dot_dimension_numbers<[1], [0], [0], [1], [0, 0, 1, 1], [], []>} : vector<2x64xbf16>, vector<64x256xbf16>, vector<2x256xf32> -> vector<2x256xf32>
    %239 = arith.addf %234, %238 : vector<2x256xf32>
    %c168 = arith.constant 168 : index
    %c0_173 = arith.constant 0 : index
    %240 = tpu.strided_load %arg13[%c168, %c0_173] {strides = array<i32: 240, 1>} : memref<448x64xf32, #tpu.memory_space<vmem>>, vector<2x64xf32>
    %241 = arith.truncf %240 : vector<2x64xf32> to vector<2x64xbf16>
    %c2496 = arith.constant 2496 : index
    %c0_174 = arith.constant 0 : index
    %242 = vector.load %arg14[%c2496, %c0_174] : memref<3136x256xbf16, #tpu.memory_space<vmem>>, vector<64x256xbf16>
    %cst_175 = arith.constant dense<0.000000e+00> : vector<2x256xf32>
    %243 = tpu.matmul %241, %242, %cst_175 {dimension_numbers = #tpu.dot_dimension_numbers<[1], [0], [0], [1], [0, 0, 1, 1], [], []>} : vector<2x64xbf16>, vector<64x256xbf16>, vector<2x256xf32> -> vector<2x256xf32>
    %244 = arith.addf %239, %243 : vector<2x256xf32>
    %c170 = arith.constant 170 : index
    %c0_176 = arith.constant 0 : index
    %245 = tpu.strided_load %arg13[%c170, %c0_176] {strides = array<i32: 240, 1>} : memref<448x64xf32, #tpu.memory_space<vmem>>, vector<2x64xf32>
    %246 = arith.truncf %245 : vector<2x64xf32> to vector<2x64xbf16>
    %c2560 = arith.constant 2560 : index
    %c0_177 = arith.constant 0 : index
    %247 = vector.load %arg14[%c2560, %c0_177] : memref<3136x256xbf16, #tpu.memory_space<vmem>>, vector<64x256xbf16>
    %cst_178 = arith.constant dense<0.000000e+00> : vector<2x256xf32>
    %248 = tpu.matmul %246, %247, %cst_178 {dimension_numbers = #tpu.dot_dimension_numbers<[1], [0], [0], [1], [0, 0, 1, 1], [], []>} : vector<2x64xbf16>, vector<64x256xbf16>, vector<2x256xf32> -> vector<2x256xf32>
    %249 = arith.addf %244, %248 : vector<2x256xf32>
    %c172 = arith.constant 172 : index
    %c0_179 = arith.constant 0 : index
    %250 = tpu.strided_load %arg13[%c172, %c0_179] {strides = array<i32: 240, 1>} : memref<448x64xf32, #tpu.memory_space<vmem>>, vector<2x64xf32>
    %251 = arith.truncf %250 : vector<2x64xf32> to vector<2x64xbf16>
    %c2624 = arith.constant 2624 : index
    %c0_180 = arith.constant 0 : index
    %252 = vector.load %arg14[%c2624, %c0_180] : memref<3136x256xbf16, #tpu.memory_space<vmem>>, vector<64x256xbf16>
    %cst_181 = arith.constant dense<0.000000e+00> : vector<2x256xf32>
    %253 = tpu.matmul %251, %252, %cst_181 {dimension_numbers = #tpu.dot_dimension_numbers<[1], [0], [0], [1], [0, 0, 1, 1], [], []>} : vector<2x64xbf16>, vector<64x256xbf16>, vector<2x256xf32> -> vector<2x256xf32>
    %254 = arith.addf %249, %253 : vector<2x256xf32>
    %c192_182 = arith.constant 192 : index
    %c0_183 = arith.constant 0 : index
    %255 = tpu.strided_load %arg13[%c192_182, %c0_183] {strides = array<i32: 240, 1>} : memref<448x64xf32, #tpu.memory_space<vmem>>, vector<2x64xf32>
    %256 = arith.truncf %255 : vector<2x64xf32> to vector<2x64xbf16>
    %c2688 = arith.constant 2688 : index
    %c0_184 = arith.constant 0 : index
    %257 = vector.load %arg14[%c2688, %c0_184] : memref<3136x256xbf16, #tpu.memory_space<vmem>>, vector<64x256xbf16>
    %cst_185 = arith.constant dense<0.000000e+00> : vector<2x256xf32>
    %258 = tpu.matmul %256, %257, %cst_185 {dimension_numbers = #tpu.dot_dimension_numbers<[1], [0], [0], [1], [0, 0, 1, 1], [], []>} : vector<2x64xbf16>, vector<64x256xbf16>, vector<2x256xf32> -> vector<2x256xf32>
    %259 = arith.addf %254, %258 : vector<2x256xf32>
    %c194 = arith.constant 194 : index
    %c0_186 = arith.constant 0 : index
    %260 = tpu.strided_load %arg13[%c194, %c0_186] {strides = array<i32: 240, 1>} : memref<448x64xf32, #tpu.memory_space<vmem>>, vector<2x64xf32>
    %261 = arith.truncf %260 : vector<2x64xf32> to vector<2x64xbf16>
    %c2752 = arith.constant 2752 : index
    %c0_187 = arith.constant 0 : index
    %262 = vector.load %arg14[%c2752, %c0_187] : memref<3136x256xbf16, #tpu.memory_space<vmem>>, vector<64x256xbf16>
    %cst_188 = arith.constant dense<0.000000e+00> : vector<2x256xf32>
    %263 = tpu.matmul %261, %262, %cst_188 {dimension_numbers = #tpu.dot_dimension_numbers<[1], [0], [0], [1], [0, 0, 1, 1], [], []>} : vector<2x64xbf16>, vector<64x256xbf16>, vector<2x256xf32> -> vector<2x256xf32>
    %264 = arith.addf %259, %263 : vector<2x256xf32>
    %c196 = arith.constant 196 : index
    %c0_189 = arith.constant 0 : index
    %265 = tpu.strided_load %arg13[%c196, %c0_189] {strides = array<i32: 240, 1>} : memref<448x64xf32, #tpu.memory_space<vmem>>, vector<2x64xf32>
    %266 = arith.truncf %265 : vector<2x64xf32> to vector<2x64xbf16>
    %c2816 = arith.constant 2816 : index
    %c0_190 = arith.constant 0 : index
    %267 = vector.load %arg14[%c2816, %c0_190] : memref<3136x256xbf16, #tpu.memory_space<vmem>>, vector<64x256xbf16>
    %cst_191 = arith.constant dense<0.000000e+00> : vector<2x256xf32>
    %268 = tpu.matmul %266, %267, %cst_191 {dimension_numbers = #tpu.dot_dimension_numbers<[1], [0], [0], [1], [0, 0, 1, 1], [], []>} : vector<2x64xbf16>, vector<64x256xbf16>, vector<2x256xf32> -> vector<2x256xf32>
    %269 = arith.addf %264, %268 : vector<2x256xf32>
    %c198 = arith.constant 198 : index
    %c0_192 = arith.constant 0 : index
    %270 = tpu.strided_load %arg13[%c198, %c0_192] {strides = array<i32: 240, 1>} : memref<448x64xf32, #tpu.memory_space<vmem>>, vector<2x64xf32>
    %271 = arith.truncf %270 : vector<2x64xf32> to vector<2x64xbf16>
    %c2880 = arith.constant 2880 : index
    %c0_193 = arith.constant 0 : index
    %272 = vector.load %arg14[%c2880, %c0_193] : memref<3136x256xbf16, #tpu.memory_space<vmem>>, vector<64x256xbf16>
    %cst_194 = arith.constant dense<0.000000e+00> : vector<2x256xf32>
    %273 = tpu.matmul %271, %272, %cst_194 {dimension_numbers = #tpu.dot_dimension_numbers<[1], [0], [0], [1], [0, 0, 1, 1], [], []>} : vector<2x64xbf16>, vector<64x256xbf16>, vector<2x256xf32> -> vector<2x256xf32>
    %274 = arith.addf %269, %273 : vector<2x256xf32>
    %c200 = arith.constant 200 : index
    %c0_195 = arith.constant 0 : index
    %275 = tpu.strided_load %arg13[%c200, %c0_195] {strides = array<i32: 240, 1>} : memref<448x64xf32, #tpu.memory_space<vmem>>, vector<2x64xf32>
    %276 = arith.truncf %275 : vector<2x64xf32> to vector<2x64xbf16>
    %c2944 = arith.constant 2944 : index
    %c0_196 = arith.constant 0 : index
    %277 = vector.load %arg14[%c2944, %c0_196] : memref<3136x256xbf16, #tpu.memory_space<vmem>>, vector<64x256xbf16>
    %cst_197 = arith.constant dense<0.000000e+00> : vector<2x256xf32>
    %278 = tpu.matmul %276, %277, %cst_197 {dimension_numbers = #tpu.dot_dimension_numbers<[1], [0], [0], [1], [0, 0, 1, 1], [], []>} : vector<2x64xbf16>, vector<64x256xbf16>, vector<2x256xf32> -> vector<2x256xf32>
    %279 = arith.addf %274, %278 : vector<2x256xf32>
    %c202 = arith.constant 202 : index
    %c0_198 = arith.constant 0 : index
    %280 = tpu.strided_load %arg13[%c202, %c0_198] {strides = array<i32: 240, 1>} : memref<448x64xf32, #tpu.memory_space<vmem>>, vector<2x64xf32>
    %281 = arith.truncf %280 : vector<2x64xf32> to vector<2x64xbf16>
    %c3008 = arith.constant 3008 : index
    %c0_199 = arith.constant 0 : index
    %282 = vector.load %arg14[%c3008, %c0_199] : memref<3136x256xbf16, #tpu.memory_space<vmem>>, vector<64x256xbf16>
    %cst_200 = arith.constant dense<0.000000e+00> : vector<2x256xf32>
    %283 = tpu.matmul %281, %282, %cst_200 {dimension_numbers = #tpu.dot_dimension_numbers<[1], [0], [0], [1], [0, 0, 1, 1], [], []>} : vector<2x64xbf16>, vector<64x256xbf16>, vector<2x256xf32> -> vector<2x256xf32>
    %284 = arith.addf %279, %283 : vector<2x256xf32>
    %c204 = arith.constant 204 : index
    %c0_201 = arith.constant 0 : index
    %285 = tpu.strided_load %arg13[%c204, %c0_201] {strides = array<i32: 240, 1>} : memref<448x64xf32, #tpu.memory_space<vmem>>, vector<2x64xf32>
    %286 = arith.truncf %285 : vector<2x64xf32> to vector<2x64xbf16>
    %c3072 = arith.constant 3072 : index
    %c0_202 = arith.constant 0 : index
    %287 = vector.load %arg14[%c3072, %c0_202] : memref<3136x256xbf16, #tpu.memory_space<vmem>>, vector<64x256xbf16>
    %cst_203 = arith.constant dense<0.000000e+00> : vector<2x256xf32>
    %288 = tpu.matmul %286, %287, %cst_203 {dimension_numbers = #tpu.dot_dimension_numbers<[1], [0], [0], [1], [0, 0, 1, 1], [], []>} : vector<2x64xbf16>, vector<64x256xbf16>, vector<2x256xf32> -> vector<2x256xf32>
    %289 = arith.addf %284, %288 : vector<2x256xf32>
    %c0_204 = arith.constant 0 : index
    %c0_205 = arith.constant 0 : index
    %290 = vector.load %arg7[%c0_204, %c0_205] : memref<1x256xf32, #tpu.memory_space<vmem>>, vector<1x256xf32>
    %291 = vector.broadcast %290 : vector<1x256xf32> to vector<2x256xf32>
    %292 = arith.addf %289, %291 : vector<2x256xf32>
    %cst_206 = arith.constant 0.000000e+00 : f32
    %293 = vector.broadcast %cst_206 : f32 to vector<2x256xf32>
    %294 = arith.maximumf %292, %293 : vector<2x256xf32>
    %295 = arith.truncf %294 : vector<2x256xf32> to vector<2x256xbf16>
    %c0_207 = arith.constant 0 : index
    %c0_208 = arith.constant 0 : index
    %296 = vector.load %arg8[%c0_207, %c0_208] : memref<256x225xbf16, #tpu.memory_space<vmem>>, vector<256x225xbf16>
    %cst_209 = arith.constant dense<0.000000e+00> : vector<2x225xf32>
    %297 = tpu.matmul %295, %296, %cst_209 {dimension_numbers = #tpu.dot_dimension_numbers<[1], [0], [0], [1], [0, 0, 1, 1], [], []>} : vector<2x256xbf16>, vector<256x225xbf16>, vector<2x225xf32> -> vector<2x225xf32>
    %c0_210 = arith.constant 0 : index
    %c0_211 = arith.constant 0 : index
    %298 = vector.load %arg9[%c0_210, %c0_211] : memref<1x225xf32, #tpu.memory_space<vmem>>, vector<1x225xf32>
    %299 = vector.broadcast %298 : vector<1x225xf32> to vector<2x225xf32>
    %300 = arith.addf %297, %299 : vector<2x225xf32>
    %c0_212 = arith.constant 0 : index
    %c0_213 = arith.constant 0 : index
    %301 = vector.load %arg10[%c0_212, %c0_213] : memref<2x225xf32, #tpu.memory_space<vmem>>, vector<2x225xf32>
    tpu.vector_store %arg10[%c0_212, %c0_213], %300 {strides = array<i32>} : memref<2x225xf32, #tpu.memory_space<vmem>>, vector<2x225xf32>,
    return
  }
  func.func @transform_0(%arg0: i32) -> (i32, i32) {
    %c0_i32 = arith.constant 0 : i32
    %c0_i32_0 = arith.constant 0 : i32
    %c0_i32_1 = arith.constant 0 : i32
    return %c0_i32, %c0_i32_0 : i32, i32
  }
  func.func @transform_1(%arg0: i32) -> (i32, i32) {
    %c0_i32 = arith.constant 0 : i32
    %c0_i32_0 = arith.constant 0 : i32
    %c0_i32_1 = arith.constant 0 : i32
    return %c0_i32, %c0_i32_0 : i32, i32
  }
  func.func @transform_2(%arg0: i32) -> (i32, i32) {
    %c0_i32 = arith.constant 0 : i32
    %c0_i32_0 = arith.constant 0 : i32
    %c0_i32_1 = arith.constant 0 : i32
    return %c0_i32, %c0_i32_0 : i32, i32
  }
  func.func @transform_3(%arg0: i32) -> (i32, i32) {
    %c0_i32 = arith.constant 0 : i32
    %c0_i32_0 = arith.constant 0 : i32
    %c0_i32_1 = arith.constant 0 : i32
    return %c0_i32, %c0_i32_0 : i32, i32
  }
  func.func @transform_4(%arg0: i32) -> (i32, i32) {
    %c0_i32 = arith.constant 0 : i32
    %c0_i32_0 = arith.constant 0 : i32
    %c0_i32_1 = arith.constant 0 : i32
    return %c0_i32, %c0_i32_0 : i32, i32
  }
  func.func @transform_6(%arg0: i32) -> (i32, i32) {
    %c0_i32 = arith.constant 0 : i32
    %c0_i32_0 = arith.constant 0 : i32
    %c0_i32_1 = arith.constant 0 : i32
    return %c0_i32, %c0_i32_0 : i32, i32
  }
  func.func @transform_7(%arg0: i32) -> (i32, i32) {
    %c0_i32 = arith.constant 0 : i32
    %c0_i32_0 = arith.constant 0 : i32
    %c0_i32_1 = arith.constant 0 : i32
    return %c0_i32, %c0_i32_0 : i32, i32
  }
  func.func @transform_8(%arg0: i32) -> (i32, i32) {
    %c0_i32 = arith.constant 0 : i32
    %c0_i32_0 = arith.constant 0 : i32
    %c0_i32_1 = arith.constant 0 : i32
    return %c0_i32, %c0_i32_0 : i32, i32
  }
  func.func @transform_9(%arg0: i32) -> (i32, i32) {
    %c0_i32 = arith.constant 0 : i32
    %c0_i32_0 = arith.constant 0 : i32
    %c0_i32_1 = arith.constant 0 : i32
    return %c0_i32, %c0_i32_0 : i32, i32
  }
}

</mosaic_0001>

<llo_original>
// kernel: agent_forward.1
$region0: #{agent_forward.1}
  #allocation0 [shape = 'u32[]', space=smem, size = 0x4, offset = 0x4, fixed_abs, tag = 'smem constant byte address 0x4 - core index']
  #allocation1 [shape = 'u32[144,128]{1,0:T(1,128)}', space=vmem, size = 0x12000, scoped, tag = 'internal scratch']
  #allocation2 [shape = 'bf16[512,128]{1,0:T(8,128)(2,1)}', space=vmem, size = 0x20000, scoped, tag = 'scratch operand']
  #allocation3 [shape = 'f32[480,64]{1,0:T(8,128)}', space=vmem, size = 0x3c000, scoped, tag = 'scratch operand']
  #allocation4 [shape = 'f32[448,64]{1,0:T(8,128)}', space=vmem, size = 0x38000, scoped, tag = 'scratch operand']
  #allocation5 [shape = 'bf16[3136,256]{1,0:T(8,128)(2,1)}', space=vmem, size = 0x188000, scoped, tag = 'scratch operand']
  #allocation6 [shape = 's32[1]{0}', space=sflag, size = 0x4, scoped, tag = 'scratch operand']
  #allocation17 [shape = 's32[]', space=sflag, size = 0x4, offset = 0, fixed_abs, tag = 'sflag constant byte address 0x0 - dummy sync flag']
  #allocation18 [shape = 's32[]', space=sflag, size = 0x4, offset = 0, fixed_abs, tag = 'sflag constant byte address 0x0 - dummy sync flag']
  #allocation19 [shape = 'u32[]', space=smem, size = 0x4, offset = 0x44, fixed_abs, tag = 'smem constant byte address 0x44 - assertion arg 0']
  #allocation20 [shape = 'u32[]', space=smem, size = 0x4, offset = 0x48, fixed_abs, tag = 'smem constant byte address 0x48 - assertion arg 1']
  %s0 = inlined_call_operand.vmem [shape: bf16[512,9], index: 0, kind: input, shape index: {}]
  %s1 = inlined_call_operand.hbm [shape: bf16[9,128], index: 1, kind: input, shape index: {}]
  %s2 = inlined_call_operand.hbm [shape: f32[1,128], index: 2, kind: input, shape index: {}]
  %s3 = inlined_call_operand.vmem [shape: bf16[512,64], index: 3, kind: input, shape index: {}]
  %s4 = inlined_call_operand.hbm [shape: f32[1,64], index: 4, kind: input, shape index: {}]
  %s5 = inlined_call_operand.hbm [shape: bf16[3136,256], index: 5, kind: input, shape index: {}]
  %s6 = inlined_call_operand.hbm [shape: f32[1,256], index: 6, kind: input, shape index: {}]
  %s7 = inlined_call_operand.vmem [shape: bf16[256,225], index: 7, kind: input, shape index: {}]
  %s8 = inlined_call_operand.hbm [shape: f32[1,225], index: 8, kind: input, shape index: {}]
  %s9 = inlined_call_operand.hbm [shape: f32[2,225], index: 9, kind: output, shape index: {}]
  %s10 = sld [smem:[#allocation0]]
  $region66: #{agent_forward.1} parent=0
    _
  %s12 = ssub.s32 1, %s10
  %s13 = scalar_select 0, %s12, %s10
  $region1: #{agent_forward.1} parent=0
    #allocation7 [shape = 'u8[4096]{0}', space=vmem, size = 0x1000, scoped, tag = 'input window, operand 1, single buffered']
    #allocation8 [shape = 's32[1]{0}', space=sflag, size = 0x4, scoped, tag = 'scoped memory for agent_forward.1']
    #allocation9 [shape = 's32[1]{0}', space=sflag, size = 0x4, scoped, tag = 'scoped memory for agent_forward.1']
    #allocation10 [shape = 'u8[512]{0}', space=vmem, size = 0x400, scoped, tag = 'input window, operand 2, single buffered']
    #allocation11 [shape = 's32[1]{0}', space=sflag, size = 0x4, scoped, tag = 'scoped memory for agent_forward.1']
    #allocation12 [shape = 'u8[512]{0}', space=vmem, size = 0x400, scoped, tag = 'input window, operand 4, single buffered']
    #allocation13 [shape = 'u8[1024]{0}', space=vmem, size = 0x400, scoped, tag = 'input window, operand 6, single buffered']
    #allocation14 [shape = 's32[1]{0}', space=sflag, size = 0x4, scoped, tag = 'scoped memory for agent_forward.1']
    #allocation15 [shape = 'u8[1024]{0}', space=vmem, size = 0x400, scoped, tag = 'input window, operand 8, single buffered']
    #allocation16 [shape = 'u8[2048]{0}', space=vmem, size = 0x800, scoped, tag = 'output window, operand 0, single buffered']
    %14 = vsyncpa [#allocation8], 0
    %15 = vsyncpa [#allocation11], 0
    %16 = vsyncpa [#allocation14], 0
    %17 = vsyncpa [#allocation9], 0
    // Predicated region
    $region2: #{agent_forward.1} parent=1 // pred_check
      _
    $region3: #{agent_forward.1} parent=1 // pred_check_branch
      %19 = sbr.rel (0) target = $region5
    $region4: #{agent_forward.1} parent=1 // pred_region
      _
    $region5: #{agent_forward.1} parent=1 // pred_fallthru
      _
    // Predicated region
    $region6: #{agent_forward.1} parent=1 // pred_check
      _
    $region7: #{agent_forward.1} parent=1 // pred_check_branch
      %21 = sbr.rel (0) target = $region9
    $region8: #{agent_forward.1} parent=1 // pred_region
      %s23 = ssub.s32 128, 128
      %24 = vsyncadd [#allocation8], %s23
      %s25 = sshll.u32 [#allocation7], 4
      %s26 = int_to_ptr.vmem [resolvable:$true] %s25
      %31 = dma.hbm_to_vmem [thread:$0]  %s1, 128, %s26, [#allocation8], 64, 64, 4
    $region9: #{agent_forward.1} parent=1 // pred_fallthru
      _
    // Predicated region
    $region10: #{agent_forward.1} parent=1 // pred_check
      _
    $region11: #{agent_forward.1} parent=1 // pred_check_branch
      %33 = sbr.rel (0) target = $region13
    $region12: #{agent_forward.1} parent=1 // pred_region
      %s35 = ssub.s32 16, 16
      %36 = vsyncadd [#allocation11], %s35
      %s38 = sshll.u32 [#allocation10], 4
      %s39 = int_to_ptr.vmem [resolvable:$true] %s38
      %41 = dma.hbm_to_vmem [thread:$0]  %s2, 16, %s39, [#allocation11]
    $region13: #{agent_forward.1} parent=1 // pred_fallthru
      _
    // Predicated region
    $region14: #{agent_forward.1} parent=1 // pred_check
      _
    $region15: #{agent_forward.1} parent=1 // pred_check_branch
      %43 = sbr.rel (0) target = $region17
    $region16: #{agent_forward.1} parent=1 // pred_region
      _
    $region17: #{agent_forward.1} parent=1 // pred_fallthru
      _
    // Predicated region
    $region18: #{agent_forward.1} parent=1 // pred_check
      _
    $region19: #{agent_forward.1} parent=1 // pred_check_branch
      %45 = sbr.rel (0) target = $region21
    $region20: #{agent_forward.1} parent=1 // pred_region
      %s47 = ssub.s32 16, 16
      %48 = vsyncadd [#allocation11], %s47
      %s50 = sshll.u32 [#allocation12], 4
      %s51 = int_to_ptr.vmem [resolvable:$true] %s50
      %53 = dma.hbm_to_vmem [thread:$0]  %s4, 16, %s51, [#allocation11]
    $region21: #{agent_forward.1} parent=1 // pred_fallthru
      _
    // Predicated region
    $region22: #{agent_forward.1} parent=1 // pred_check
      _
    $region23: #{agent_forward.1} parent=1 // pred_check_branch
      %55 = sbr.rel (0) target = $region25
    $region24: #{agent_forward.1} parent=1 // pred_region
      %s57 = ssub.s32 32, 32
      %58 = vsyncadd [#allocation14], %s57
      %s60 = sshll.u32 [#allocation13], 4
      %s61 = int_to_ptr.vmem [resolvable:$true] %s60
      %63 = dma.hbm_to_vmem [thread:$0]  %s6, 32, %s61, [#allocation14]
    $region25: #{agent_forward.1} parent=1 // pred_fallthru
      _
    // Predicated region
    $region26: #{agent_forward.1} parent=1 // pred_check
      _
    $region27: #{agent_forward.1} parent=1 // pred_check_branch
      %65 = sbr.rel (0) target = $region29
    $region28: #{agent_forward.1} parent=1 // pred_region
      _
    $region29: #{agent_forward.1} parent=1 // pred_fallthru
      _
    // Predicated region
    $region30: #{agent_forward.1} parent=1 // pred_check
      _
    $region31: #{agent_forward.1} parent=1 // pred_check_branch
      %67 = sbr.rel (0) target = $region33
    $region32: #{agent_forward.1} parent=1 // pred_region
      %s69 = ssub.s32 32, 32
      %70 = vsyncadd [#allocation14], %s69
      %s72 = sshll.u32 [#allocation15], 4
      %s73 = int_to_ptr.vmem [resolvable:$true] %s72
      %75 = dma.hbm_to_vmem [thread:$0]  %s8, 32, %s73, [#allocation14]
    $region33: #{agent_forward.1} parent=1 // pred_fallthru
      _
    // Predicated region
    $region34: #{agent_forward.1} parent=1 // pred_check
      _
    $region35: #{agent_forward.1} parent=1 // pred_check_branch
      %77 = sbr.rel (0) target = $region37
    $region36: #{agent_forward.1} parent=1 // pred_region
      %78 = dma.done [#allocation8], 128
    $region37: #{agent_forward.1} parent=1 // pred_fallthru
      _
    // Predicated region
    $region38: #{agent_forward.1} parent=1 // pred_check
      _
    $region39: #{agent_forward.1} parent=1 // pred_check_branch
      %80 = sbr.rel (0) target = $region41
    $region40: #{agent_forward.1} parent=1 // pred_region
      %81 = dma.done [#allocation11], 16
    $region41: #{agent_forward.1} parent=1 // pred_fallthru
      _
    // Predicated region
    $region42: #{agent_forward.1} parent=1 // pred_check
      _
    $region43: #{agent_forward.1} parent=1 // pred_check_branch
      %83 = sbr.rel (0) target = $region45
    $region44: #{agent_forward.1} parent=1 // pred_region
      %84 = dma.done [#allocation11], 16
    $region45: #{agent_forward.1} parent=1 // pred_fallthru
      _
    // Predicated region
    $region46: #{agent_forward.1} parent=1 // pred_check
      _
    $region47: #{agent_forward.1} parent=1 // pred_check_branch
      %86 = sbr.rel (0) target = $region49
    $region48: #{agent_forward.1} parent=1 // pred_region
      %87 = dma.done [#allocation14], 32
    $region49: #{agent_forward.1} parent=1 // pred_fallthru
      _
    // Predicated region
    $region50: #{agent_forward.1} parent=1 // pred_check
      _
    $region51: #{agent_forward.1} parent=1 // pred_check_branch
      %89 = sbr.rel (0) target = $region53
    $region52: #{agent_forward.1} parent=1 // pred_region
      %90 = dma.done [#allocation14], 32
    $region53: #{agent_forward.1} parent=1 // pred_fallthru
      _
    // Predicated region
    $region54: #{agent_forward.1} parent=1 // pred_check
      _
    $region55: #{agent_forward.1} parent=1 // pred_check_branch
      %93 = sbr.rel target = $region57
    $region56: #{agent_forward.1} parent=1 // pred_region
      %94 = sst [smem:[#allocation19]] [#allocation18]
      %95 = sst [smem:[#allocation20]] [#allocation17]
    $region57: #{agent_forward.1} parent=1 // pred_fallthru
      _
    %97 = shalt.err (0)
    %s99 = sshll.u32 [#allocation5], 4
    %s100 = int_to_ptr.vmem [resolvable:$true] %s99
    %102 = dma.hbm_to_vmem [thread:$0]  %s5, 50176, %s100, [#allocation6]
    %v103 = vld [vmem:[%s0] sm:$0xf]
    %v104 = vld [vmem:[%s0 + $0x4] sm:$0xf]
    %v105 = vld [vmem:[%s0 + $0x8] sm:$0xf]
    %v106 = vld [vmem:[%s0 + $0xc] sm:$0xf]
    %v107 = vld [vmem:[%s0 + $0x10] sm:$0xf]
    %v108 = vld [vmem:[%s0 + $0x14] sm:$0xf]
    %v109 = vld [vmem:[%s0 + $0x18] sm:$0xf]
    %v110 = vld [vmem:[%s0 + $0x1c] sm:$0xf]
    %v111 = vld [vmem:[%s0 + $0x20] sm:$0xf]
    %v112 = vld [vmem:[%s0 + $0x24] sm:$0xf]
    %v113 = vld [vmem:[%s0 + $0x28] sm:$0xf]
    %v114 = vld [vmem:[%s0 + $0x2c] sm:$0xf]
    %v115 = vld [vmem:[%s0 + $0x30] sm:$0xf]
    %v116 = vld [vmem:[%s0 + $0x34] sm:$0xf]
    %v117 = vld [vmem:[%s0 + $0x38] sm:$0xf]
    %v118 = vld [vmem:[%s0 + $0x3c] sm:$0xf]
    %v119 = vld [vmem:[%s0 + $0x40] sm:$0xf]
    %v120 = vld [vmem:[%s0 + $0x44] sm:$0xf]
    %v121 = vld [vmem:[%s0 + $0x48] sm:$0xf]
    %v122 = vld [vmem:[%s0 + $0x4c] sm:$0xf]
    %v123 = vld [vmem:[%s0 + $0x50] sm:$0xf]
    %v124 = vld [vmem:[%s0 + $0x54] sm:$0xf]
    %v125 = vld [vmem:[%s0 + $0x58] sm:$0xf]
    %v126 = vld [vmem:[%s0 + $0x5c] sm:$0xf]
    %v127 = vld [vmem:[%s0 + $0x60] sm:$0xf]
    %v128 = vld [vmem:[%s0 + $0x64] sm:$0xf]
    %v129 = vld [vmem:[%s0 + $0x68] sm:$0xf]
    %v130 = vld [vmem:[%s0 + $0x6c] sm:$0xf]
    %v131 = vld [vmem:[%s0 + $0x70] sm:$0xf]
    %v132 = vld [vmem:[%s0 + $0x74] sm:$0xf]
    %v133 = vld [vmem:[%s0 + $0x78] sm:$0xf]
    %v134 = vld [vmem:[%s0 + $0x7c] sm:$0xf]
    %v135 = vld [vmem:[%s0 + $0x80] sm:$0xf]
    %v136 = vld [vmem:[%s0 + $0x84] sm:$0xf]
    %v137 = vld [vmem:[%s0 + $0x88] sm:$0xf]
    %v138 = vld [vmem:[%s0 + $0x8c] sm:$0xf]
    %v139 = vld [vmem:[%s0 + $0x90] sm:$0xf]
    %v140 = vld [vmem:[%s0 + $0x94] sm:$0xf]
    %v141 = vld [vmem:[%s0 + $0x98] sm:$0xf]
    %v142 = vld [vmem:[%s0 + $0x9c] sm:$0xf]
    %v143 = vld [vmem:[%s0 + $0xa0] sm:$0xf]
    %v144 = vld [vmem:[%s0 + $0xa4] sm:$0xf]
    %v145 = vld [vmem:[%s0 + $0xa8] sm:$0xf]
    %v146 = vld [vmem:[%s0 + $0xac] sm:$0xf]
    %v147 = vld [vmem:[%s0 + $0xb0] sm:$0xf]
    %v148 = vld [vmem:[%s0 + $0xb4] sm:$0xf]
    %v149 = vld [vmem:[%s0 + $0xb8] sm:$0xf]
    %v150 = vld [vmem:[%s0 + $0xbc] sm:$0xf]
    %v151 = vld [vmem:[%s0 + $0xc0] sm:$0xf]
    %v152 = vld [vmem:[%s0 + $0xc4] sm:$0xf]
    %v153 = vld [vmem:[%s0 + $0xc8] sm:$0xf]
    %v154 = vld [vmem:[%s0 + $0xcc] sm:$0xf]
    %v155 = vld [vmem:[%s0 + $0xd0] sm:$0xf]
    %v156 = vld [vmem:[%s0 + $0xd4] sm:$0xf]
    %v157 = vld [vmem:[%s0 + $0xd8] sm:$0xf]
    %v158 = vld [vmem:[%s0 + $0xdc] sm:$0xf]
    %v159 = vld [vmem:[%s0 + $0xe0] sm:$0xf]
    %v160 = vld [vmem:[%s0 + $0xe4] sm:$0xf]
    %v161 = vld [vmem:[%s0 + $0xe8] sm:$0xf]
    %v162 = vld [vmem:[%s0 + $0xec] sm:$0xf]
    %v163 = vld [vmem:[%s0 + $0xf0] sm:$0xf]
    %v164 = vld [vmem:[%s0 + $0xf4] sm:$0xf]
    %v165 = vld [vmem:[%s0 + $0xf8] sm:$0xf]
    %v166 = vld [vmem:[%s0 + $0xfc] sm:$0xf]
    %v167 = vld [vmem:[#allocation7] sm:$0xf]
    %v168 = vld [vmem:[#allocation7 + $0x4] sm:$0x1]
    %v169 = vld [vmem:[#allocation10] sm:$0x1]
    %v171 = vlaneseq
    %v172 = vshrl.u32 %v171, 7
    %v173 = vsub.s32 0, %v172
    %v174 = vrot.slane %v169, %v173
    %v240 = vunpack.c.l.b16 %v103
    %v241 = vunpack.c.l.b16 %v104
    %v242 = vunpack.c.l.b16 %v105
    %v243 = vunpack.c.l.b16 %v106
    %v244 = vunpack.c.l.b16 %v107
    %v245 = vunpack.c.l.b16 %v108
    %v246 = vunpack.c.l.b16 %v109
    %v247 = vunpack.c.l.b16 %v110
    %v248 = vunpack.c.l.b16 %v111
    %v249 = vunpack.c.l.b16 %v112
    %v250 = vunpack.c.l.b16 %v113
    %v251 = vunpack.c.l.b16 %v114
    %v252 = vunpack.c.l.b16 %v115
    %v253 = vunpack.c.l.b16 %v116
    %v254 = vunpack.c.l.b16 %v117
    %v255 = vunpack.c.l.b16 %v118
    %v256 = vunpack.c.l.b16 %v119
    %v257 = vunpack.c.l.b16 %v120
    %v258 = vunpack.c.l.b16 %v121
    %v259 = vunpack.c.l.b16 %v122
    %v260 = vunpack.c.l.b16 %v123
    %v261 = vunpack.c.l.b16 %v124
    %v262 = vunpack.c.l.b16 %v125
    %v263 = vunpack.c.l.b16 %v126
    %v264 = vunpack.c.l.b16 %v127
    %v265 = vunpack.c.l.b16 %v128
    %v266 = vunpack.c.l.b16 %v129
    %v267 = vunpack.c.l.b16 %v130
    %v268 = vunpack.c.l.b16 %v131
    %v269 = vunpack.c.l.b16 %v132
    %v270 = vunpack.c.l.b16 %v133
    %v271 = vunpack.c.l.b16 %v134
    %v272 = vunpack.c.l.b16 %v135
    %v273 = vunpack.c.l.b16 %v136
    %v274 = vunpack.c.l.b16 %v137
    %v275 = vunpack.c.l.b16 %v138
    %v276 = vunpack.c.l.b16 %v139
    %v277 = vunpack.c.l.b16 %v140
    %v278 = vunpack.c.l.b16 %v141
    %v279 = vunpack.c.l.b16 %v142
    %v280 = vunpack.c.l.b16 %v143
    %v281 = vunpack.c.l.b16 %v144
    %v282 = vunpack.c.l.b16 %v145
    %v283 = vunpack.c.l.b16 %v146
    %v284 = vunpack.c.l.b16 %v147
    %v285 = vunpack.c.l.b16 %v148
    %v286 = vunpack.c.l.b16 %v149
    %v287 = vunpack.c.l.b16 %v150
    %v288 = vunpack.c.l.b16 %v151
    %v289 = vunpack.c.l.b16 %v152
    %v290 = vunpack.c.l.b16 %v153
    %v291 = vunpack.c.l.b16 %v154
    %v292 = vunpack.c.l.b16 %v155
    %v293 = vunpack.c.l.b16 %v156
    %v294 = vunpack.c.l.b16 %v157
    %v295 = vunpack.c.l.b16 %v158
    %v296 = vunpack.c.l.b16 %v159
    %v297 = vunpack.c.l.b16 %v160
    %v298 = vunpack.c.l.b16 %v161
    %v299 = vunpack.c.l.b16 %v162
    %v300 = vunpack.c.l.b16 %v163
    %v301 = vunpack.c.l.b16 %v164
    %v302 = vunpack.c.l.b16 %v165
    %v303 = vunpack.c.l.b16 %v166
    %v304 = vpack.c.b16 %v241, %v240
    %v305 = vpack.c.b16 %v243, %v242
    %v306 = vpack.c.b16 %v245, %v244
    %v307 = vpack.c.b16 %v247, %v246
    %v308 = vpack.c.b16 %v249, %v248
    %v309 = vpack.c.b16 %v251, %v250
    %v310 = vpack.c.b16 %v253, %v252
    %v311 = vpack.c.b16 %v255, %v254
    %v312 = vpack.c.b16 %v257, %v256
    %v313 = vpack.c.b16 %v259, %v258
    %v314 = vpack.c.b16 %v261, %v260
    %v315 = vpack.c.b16 %v263, %v262
    %v316 = vpack.c.b16 %v265, %v264
    %v317 = vpack.c.b16 %v267, %v266
    %v318 = vpack.c.b16 %v269, %v268
    %v319 = vpack.c.b16 %v271, %v270
    %v320 = vpack.c.b16 %v273, %v272
    %v321 = vpack.c.b16 %v275, %v274
    %v322 = vpack.c.b16 %v277, %v276
    %v323 = vpack.c.b16 %v279, %v278
    %v324 = vpack.c.b16 %v281, %v280
    %v325 = vpack.c.b16 %v283, %v282
    %v326 = vpack.c.b16 %v285, %v284
    %v327 = vpack.c.b16 %v287, %v286
    %v328 = vpack.c.b16 %v289, %v288
    %v329 = vpack.c.b16 %v291, %v290
    %v330 = vpack.c.b16 %v293, %v292
    %v331 = vpack.c.b16 %v295, %v294
    %v332 = vpack.c.b16 %v297, %v296
    %v333 = vpack.c.b16 %v299, %v298
    %v334 = vpack.c.b16 %v301, %v300
    %v335 = vpack.c.b16 %v303, %v302
    %v338 = vunpack.c.l.b16 %v167
    %v339 = vunpack.c.l.b16 %v168
    %v340 = vpack.c.b16 %v339, %v338
    %vm341 = vcmask 72704
    %v343 = vsel %vm341, %v304, 0
    %v346 = vsel %vm341, %v305, 0
    %v349 = vsel %vm341, %v306, 0
    %v352 = vsel %vm341, %v307, 0
    %v355 = vsel %vm341, %v308, 0
    %v358 = vsel %vm341, %v309, 0
    %v361 = vsel %vm341, %v310, 0
    %v364 = vsel %vm341, %v311, 0
    %v367 = vsel %vm341, %v312, 0
    %v370 = vsel %vm341, %v313, 0
    %v373 = vsel %vm341, %v314, 0
    %v376 = vsel %vm341, %v315, 0
    %v379 = vsel %vm341, %v316, 0
    %v382 = vsel %vm341, %v317, 0
    %v385 = vsel %vm341, %v318, 0
    %v388 = vsel %vm341, %v319, 0
    %v391 = vsel %vm341, %v320, 0
    %v394 = vsel %vm341, %v321, 0
    %v397 = vsel %vm341, %v322, 0
    %v400 = vsel %vm341, %v323, 0
    %v403 = vsel %vm341, %v324, 0
    %v406 = vsel %vm341, %v325, 0
    %v409 = vsel %vm341, %v326, 0
    %v412 = vsel %vm341, %v327, 0
    %v415 = vsel %vm341, %v328, 0
    %v418 = vsel %vm341, %v329, 0
    %v421 = vsel %vm341, %v330, 0
    %v424 = vsel %vm341, %v331, 0
    %v427 = vsel %vm341, %v332, 0
    %v430 = vsel %vm341, %v333, 0
    %v433 = vsel %vm341, %v334, 0
    %v436 = vsel %vm341, %v335, 0
    %vm438 = vcmask 1043456
    %vm439 = vcmask 1044480
    %v440 = vsel %vm438, 4294967295, 65535
    %v441 = vsel %vm439, %v440, 0
    %v443 = vand.u32 %v340, %v441
    %445 = vmatprep.subr.bf16.mxu0 0
    %446 = vmatpush1.bf16.msra.mxu0 0
    %447 = vmatprep.subr.bf16.mxu0 0
    %448 = vmatpush1.bf16.msra.mxu0 0
    %449 = vmatprep.subr.bf16.mxu0 0
    %450 = vmatpush1.bf16.msra.mxu0 0
    %451 = vmatprep.subr.bf16.mxu0 0
    %452 = vmatpush1.bf16.msra.mxu0 0
    %453 = vmatprep.subr.bf16.mxu0 0
    %454 = vmatpush1.bf16.msra.mxu0 0
    %455 = vmatprep.subr.bf16.mxu0 0
    %456 = vmatpush1.bf16.msra.mxu0 0
    %457 = vmatprep.subr.bf16.mxu0 0
    %458 = vmatpush1.bf16.msra.mxu0 0
    %459 = vmatprep.subr.bf16.mxu0 0
    %460 = vmatpush1.bf16.msra.mxu0 %v443
    %461 = vmatprep.subr.bf16.mxu0 0
    %462 = vmatpush2.bf16.msra.mxu0 0
    %463 = vmatprep.subr.bf16.mxu0 0
    %464 = vmatpush2.bf16.msra.mxu0 0
    %465 = vmatprep.subr.bf16.mxu0 0
    %466 = vmatpush2.bf16.msra.mxu0 0
    %467 = vmatprep.subr.bf16.mxu0 0
    %468 = vmatpush2.bf16.msra.mxu0 0
    %469 = vmatprep.subr.bf16.mxu0 0
    %470 = vmatpush2.bf16.msra.mxu0 0
    %471 = vmatprep.subr.bf16.mxu0 0
    %472 = vmatpush2.bf16.msra.mxu0 0
    %473 = vmatprep.subr.bf16.mxu0 0
    %474 = vmatpush2.bf16.msra.mxu0 0
    %475 = vmatprep.subr.bf16.mxu0 0
    %476 = vmatpush2.bf16.msra.mxu0 0
    %477 = vmatprep.mubr.bf16.mxu0 0
    %478 = vmatmul.mubr.bf16.gmra.mxu0 %v343
    %v479 = vpop.f32.mrf.mxu0
    %v480 = vadd.f32 %v174, %v479
    %v481 = vpop.f32.mrf.mxu0
    %v482 = vpop.f32.mrf.mxu0
    %v483 = vadd.f32 %v174, %v482
    %v484 = vpop.f32.mrf.mxu0
    %485 = vmatprep.mubr.bf16.mxu0 0
    %486 = vmatmul.mubr.bf16.gmra.mxu0 %v346
    %v487 = vpop.f32.mrf.mxu0
    %v488 = vadd.f32 %v174, %v487
    %v489 = vpop.f32.mrf.mxu0
    %v490 = vpop.f32.mrf.mxu0
    %v491 = vadd.f32 %v174, %v490
    %v492 = vpop.f32.mrf.mxu0
    %493 = vmatprep.mubr.bf16.mxu0 0
    %494 = vmatmul.mubr.bf16.gmra.mxu0 %v349
    %v495 = vpop.f32.mrf.mxu0
    %v496 = vadd.f32 %v174, %v495
    %v497 = vpop.f32.mrf.mxu0
    %v498 = vpop.f32.mrf.mxu0
    %v499 = vadd.f32 %v174, %v498
    %v500 = vpop.f32.mrf.mxu0
    %501 = vmatprep.mubr.bf16.mxu0 0
    %502 = vmatmul.mubr.bf16.gmra.mxu0 %v352
    %v503 = vpop.f32.mrf.mxu0
    %v504 = vadd.f32 %v174, %v503
    %v505 = vpop.f32.mrf.mxu0
    %v506 = vpop.f32.mrf.mxu0
    %v507 = vadd.f32 %v174, %v506
    %v508 = vpop.f32.mrf.mxu0
    %509 = vmatprep.mubr.bf16.mxu0 0
    %510 = vmatmul.mubr.bf16.gmra.mxu0 %v355
    %v511 = vpop.f32.mrf.mxu0
    %v512 = vadd.f32 %v174, %v511
    %v513 = vpop.f32.mrf.mxu0
    %v514 = vpop.f32.mrf.mxu0
    %v515 = vadd.f32 %v174, %v514
    %v516 = vpop.f32.mrf.mxu0
    %517 = vmatprep.mubr.bf16.mxu0 0
    %518 = vmatmul.mubr.bf16.gmra.mxu0 %v358
    %v519 = vpop.f32.mrf.mxu0
    %v520 = vadd.f32 %v174, %v519
    %v521 = vpop.f32.mrf.mxu0
    %v522 = vpop.f32.mrf.mxu0
    %v523 = vadd.f32 %v174, %v522
    %v524 = vpop.f32.mrf.mxu0
    %525 = vmatprep.mubr.bf16.mxu0 0
    %526 = vmatmul.mubr.bf16.gmra.mxu0 %v361
    %v527 = vpop.f32.mrf.mxu0
    %v528 = vadd.f32 %v174, %v527
    %v529 = vpop.f32.mrf.mxu0
    %v530 = vpop.f32.mrf.mxu0
    %v531 = vadd.f32 %v174, %v530
    %v532 = vpop.f32.mrf.mxu0
    %533 = vmatprep.mubr.bf16.mxu0 0
    %534 = vmatmul.mubr.bf16.gmra.mxu0 %v364
    %v535 = vpop.f32.mrf.mxu0
    %v536 = vadd.f32 %v174, %v535
    %v537 = vpop.f32.mrf.mxu0
    %v538 = vpop.f32.mrf.mxu0
    %v539 = vadd.f32 %v174, %v538
    %v540 = vpop.f32.mrf.mxu0
    %541 = vmatprep.mubr.bf16.mxu0 0
    %542 = vmatmul.mubr.bf16.gmra.mxu0 %v367
    %v543 = vpop.f32.mrf.mxu0
    %v544 = vadd.f32 %v174, %v543
    %v545 = vpop.f32.mrf.mxu0
    %v546 = vpop.f32.mrf.mxu0
    %v547 = vadd.f32 %v174, %v546
    %v548 = vpop.f32.mrf.mxu0
    %549 = vmatprep.mubr.bf16.mxu0 0
    %550 = vmatmul.mubr.bf16.gmra.mxu0 %v370
    %v551 = vpop.f32.mrf.mxu0
    %v552 = vadd.f32 %v174, %v551
    %v553 = vpop.f32.mrf.mxu0
    %v554 = vpop.f32.mrf.mxu0
    %v555 = vadd.f32 %v174, %v554
    %v556 = vpop.f32.mrf.mxu0
    %557 = vmatprep.mubr.bf16.mxu0 0
    %558 = vmatmul.mubr.bf16.gmra.mxu0 %v373
    %v559 = vpop.f32.mrf.mxu0
    %v560 = vadd.f32 %v174, %v559
    %v561 = vpop.f32.mrf.mxu0
    %v562 = vpop.f32.mrf.mxu0
    %v563 = vadd.f32 %v174, %v562
    %v564 = vpop.f32.mrf.mxu0
    %565 = vmatprep.mubr.bf16.mxu0 0
    %566 = vmatmul.mubr.bf16.gmra.mxu0 %v376
    %v567 = vpop.f32.mrf.mxu0
    %v568 = vadd.f32 %v174, %v567
    %v569 = vpop.f32.mrf.mxu0
    %v570 = vpop.f32.mrf.mxu0
    %v571 = vadd.f32 %v174, %v570
    %v572 = vpop.f32.mrf.mxu0
    %573 = vmatprep.mubr.bf16.mxu0 0
    %574 = vmatmul.mubr.bf16.gmra.mxu0 %v379
    %v575 = vpop.f32.mrf.mxu0
    %v576 = vadd.f32 %v174, %v575
    %v577 = vpop.f32.mrf.mxu0
    %v578 = vpop.f32.mrf.mxu0
    %v579 = vadd.f32 %v174, %v578
    %v580 = vpop.f32.mrf.mxu0
    %581 = vmatprep.mubr.bf16.mxu0 0
    %582 = vmatmul.mubr.bf16.gmra.mxu0 %v382
    %v583 = vpop.f32.mrf.mxu0
    %v584 = vadd.f32 %v174, %v583
    %v585 = vpop.f32.mrf.mxu0
    %v586 = vpop.f32.mrf.mxu0
    %v587 = vadd.f32 %v174, %v586
    %v588 = vpop.f32.mrf.mxu0
    %589 = vmatprep.mubr.bf16.mxu0 0
    %590 = vmatmul.mubr.bf16.gmra.mxu0 %v385
    %v591 = vpop.f32.mrf.mxu0
    %v592 = vadd.f32 %v174, %v591
    %v593 = vpop.f32.mrf.mxu0
    %v594 = vpop.f32.mrf.mxu0
    %v595 = vadd.f32 %v174, %v594
    %v596 = vpop.f32.mrf.mxu0
    %597 = vmatprep.mubr.bf16.mxu0 0
    %598 = vmatmul.mubr.bf16.gmra.mxu0 %v388
    %v599 = vpop.f32.mrf.mxu0
    %v600 = vadd.f32 %v174, %v599
    %v601 = vpop.f32.mrf.mxu0
    %v602 = vpop.f32.mrf.mxu0
    %v603 = vadd.f32 %v174, %v602
    %v604 = vpop.f32.mrf.mxu0
    %605 = vmatprep.mubr.bf16.mxu0 0
    %606 = vmatmul.mubr.bf16.gmra.mxu0 %v391
    %v607 = vpop.f32.mrf.mxu0
    %v608 = vadd.f32 %v174, %v607
    %v609 = vpop.f32.mrf.mxu0
    %v610 = vpop.f32.mrf.mxu0
    %v611 = vadd.f32 %v174, %v610
    %v612 = vpop.f32.mrf.mxu0
    %613 = vmatprep.mubr.bf16.mxu0 0
    %614 = vmatmul.mubr.bf16.gmra.mxu0 %v394
    %v615 = vpop.f32.mrf.mxu0
    %v616 = vadd.f32 %v174, %v615
    %v617 = vpop.f32.mrf.mxu0
    %v618 = vpop.f32.mrf.mxu0
    %v619 = vadd.f32 %v174, %v618
    %v620 = vpop.f32.mrf.mxu0
    %621 = vmatprep.mubr.bf16.mxu0 0
    %622 = vmatmul.mubr.bf16.gmra.mxu0 %v397
    %v623 = vpop.f32.mrf.mxu0
    %v624 = vadd.f32 %v174, %v623
    %v625 = vpop.f32.mrf.mxu0
    %v626 = vpop.f32.mrf.mxu0
    %v627 = vadd.f32 %v174, %v626
    %v628 = vpop.f32.mrf.mxu0
    %629 = vmatprep.mubr.bf16.mxu0 0
    %630 = vmatmul.mubr.bf16.gmra.mxu0 %v400
    %v631 = vpop.f32.mrf.mxu0
    %v632 = vadd.f32 %v174, %v631
    %v633 = vpop.f32.mrf.mxu0
    %v634 = vpop.f32.mrf.mxu0
    %v635 = vadd.f32 %v174, %v634
    %v636 = vpop.f32.mrf.mxu0
    %637 = vmatprep.mubr.bf16.mxu0 0
    %638 = vmatmul.mubr.bf16.gmra.mxu0 %v403
    %v639 = vpop.f32.mrf.mxu0
    %v640 = vadd.f32 %v174, %v639
    %v641 = vpop.f32.mrf.mxu0
    %v642 = vpop.f32.mrf.mxu0
    %v643 = vadd.f32 %v174, %v642
    %v644 = vpop.f32.mrf.mxu0
    %645 = vmatprep.mubr.bf16.mxu0 0
    %646 = vmatmul.mubr.bf16.gmra.mxu0 %v406
    %v647 = vpop.f32.mrf.mxu0
    %v648 = vadd.f32 %v174, %v647
    %v649 = vpop.f32.mrf.mxu0
    %v650 = vpop.f32.mrf.mxu0
    %v651 = vadd.f32 %v174, %v650
    %v652 = vpop.f32.mrf.mxu0
    %653 = vmatprep.mubr.bf16.mxu0 0
    %654 = vmatmul.mubr.bf16.gmra.mxu0 %v409
    %v655 = vpop.f32.mrf.mxu0
    %v656 = vadd.f32 %v174, %v655
    %v657 = vpop.f32.mrf.mxu0
    %v658 = vpop.f32.mrf.mxu0
    %v659 = vadd.f32 %v174, %v658
    %v660 = vpop.f32.mrf.mxu0
    %661 = vmatprep.mubr.bf16.mxu0 0
    %662 = vmatmul.mubr.bf16.gmra.mxu0 %v412
    %v663 = vpop.f32.mrf.mxu0
    %v664 = vadd.f32 %v174, %v663
    %v665 = vpop.f32.mrf.mxu0
    %v666 = vpop.f32.mrf.mxu0
    %v667 = vadd.f32 %v174, %v666
    %v668 = vpop.f32.mrf.mxu0
    %669 = vmatprep.mubr.bf16.mxu0 0
    %670 = vmatmul.mubr.bf16.gmra.mxu0 %v415
    %v671 = vpop.f32.mrf.mxu0
    %v672 = vadd.f32 %v174, %v671
    %v673 = vpop.f32.mrf.mxu0
    %v674 = vpop.f32.mrf.mxu0
    %v675 = vadd.f32 %v174, %v674
    %v676 = vpop.f32.mrf.mxu0
    %677 = vmatprep.mubr.bf16.mxu0 0
    %678 = vmatmul.mubr.bf16.gmra.mxu0 %v418
    %v679 = vpop.f32.mrf.mxu0
    %v680 = vadd.f32 %v174, %v679
    %v681 = vpop.f32.mrf.mxu0
    %v682 = vpop.f32.mrf.mxu0
    %v683 = vadd.f32 %v174, %v682
    %v684 = vpop.f32.mrf.mxu0
    %685 = vmatprep.mubr.bf16.mxu0 0
    %686 = vmatmul.mubr.bf16.gmra.mxu0 %v421
    %v687 = vpop.f32.mrf.mxu0
    %v688 = vadd.f32 %v174, %v687
    %v689 = vpop.f32.mrf.mxu0
    %v690 = vpop.f32.mrf.mxu0
    %v691 = vadd.f32 %v174, %v690
    %v692 = vpop.f32.mrf.mxu0
    %693 = vmatprep.mubr.bf16.mxu0 0
    %694 = vmatmul.mubr.bf16.gmra.mxu0 %v424
    %v695 = vpop.f32.mrf.mxu0
    %v696 = vadd.f32 %v174, %v695
    %v697 = vpop.f32.mrf.mxu0
    %v698 = vpop.f32.mrf.mxu0
    %v699 = vadd.f32 %v174, %v698
    %v700 = vpop.f32.mrf.mxu0
    %701 = vmatprep.mubr.bf16.mxu0 0
    %702 = vmatmul.mubr.bf16.gmra.mxu0 %v427
    %v703 = vpop.f32.mrf.mxu0
    %v704 = vadd.f32 %v174, %v703
    %v705 = vpop.f32.mrf.mxu0
    %v706 = vpop.f32.mrf.mxu0
    %v707 = vadd.f32 %v174, %v706
    %v708 = vpop.f32.mrf.mxu0
    %709 = vmatprep.mubr.bf16.mxu0 0
    %710 = vmatmul.mubr.bf16.gmra.mxu0 %v430
    %v711 = vpop.f32.mrf.mxu0
    %v712 = vadd.f32 %v174, %v711
    %v713 = vpop.f32.mrf.mxu0
    %v714 = vpop.f32.mrf.mxu0
    %v715 = vadd.f32 %v174, %v714
    %v716 = vpop.f32.mrf.mxu0
    %717 = vmatprep.mubr.bf16.mxu0 0
    %718 = vmatmul.mubr.bf16.gmra.mxu0 %v433
    %v719 = vpop.f32.mrf.mxu0
    %v720 = vadd.f32 %v174, %v719
    %v721 = vpop.f32.mrf.mxu0
    %v722 = vpop.f32.mrf.mxu0
    %v723 = vadd.f32 %v174, %v722
    %v724 = vpop.f32.mrf.mxu0
    %725 = vmatprep.mubr.bf16.mxu0 0
    %726 = vmatmul.mubr.bf16.gmra.mxu0 %v436
    %v727 = vpop.f32.mrf.mxu0
    %v728 = vadd.f32 %v174, %v727
    %v729 = vpop.f32.mrf.mxu0
    %v730 = vpop.f32.mrf.mxu0
    %v731 = vadd.f32 %v174, %v730
    %v732 = vpop.f32.mrf.mxu0
    %733 = vdwg.mxu0
    %v734 = vmax.f32 %v480, 0.0
    %v735 = vmax.f32 %v483, 0.0
    %v736 = vmax.f32 %v488, 0.0
    %v737 = vmax.f32 %v491, 0.0
    %v738 = vmax.f32 %v496, 0.0
    %v739 = vmax.f32 %v499, 0.0
    %v740 = vmax.f32 %v504, 0.0
    %v741 = vmax.f32 %v507, 0.0
    %v742 = vmax.f32 %v512, 0.0
    %v743 = vmax.f32 %v515, 0.0
    %v744 = vmax.f32 %v520, 0.0
    %v745 = vmax.f32 %v523, 0.0
    %v746 = vmax.f32 %v528, 0.0
    %v747 = vmax.f32 %v531, 0.0
    %v748 = vmax.f32 %v536, 0.0
    %v749 = vmax.f32 %v539, 0.0
    %v750 = vmax.f32 %v544, 0.0
    %v751 = vmax.f32 %v547, 0.0
    %v752 = vmax.f32 %v552, 0.0
    %v753 = vmax.f32 %v555, 0.0
    %v754 = vmax.f32 %v560, 0.0
    %v755 = vmax.f32 %v563, 0.0
    %v756 = vmax.f32 %v568, 0.0
    %v757 = vmax.f32 %v571, 0.0
    %v758 = vmax.f32 %v576, 0.0
    %v759 = vmax.f32 %v579, 0.0
    %v760 = vmax.f32 %v584, 0.0
    %v761 = vmax.f32 %v587, 0.0
    %v762 = vmax.f32 %v592, 0.0
    %v763 = vmax.f32 %v595, 0.0
    %v764 = vmax.f32 %v600, 0.0
    %v765 = vmax.f32 %v603, 0.0
    %v766 = vmax.f32 %v608, 0.0
    %v767 = vmax.f32 %v611, 0.0
    %v768 = vmax.f32 %v616, 0.0
    %v769 = vmax.f32 %v619, 0.0
    %v770 = vmax.f32 %v624, 0.0
    %v771 = vmax.f32 %v627, 0.0
    %v772 = vmax.f32 %v632, 0.0
    %v773 = vmax.f32 %v635, 0.0
    %v774 = vmax.f32 %v640, 0.0
    %v775 = vmax.f32 %v643, 0.0
    %v776 = vmax.f32 %v648, 0.0
    %v777 = vmax.f32 %v651, 0.0
    %v778 = vmax.f32 %v656, 0.0
    %v779 = vmax.f32 %v659, 0.0
    %v780 = vmax.f32 %v664, 0.0
    %v781 = vmax.f32 %v667, 0.0
    %v782 = vmax.f32 %v672, 0.0
    %v783 = vmax.f32 %v675, 0.0
    %v784 = vmax.f32 %v680, 0.0
    %v785 = vmax.f32 %v683, 0.0
    %v786 = vmax.f32 %v688, 0.0
    %v787 = vmax.f32 %v691, 0.0
    %v788 = vmax.f32 %v696, 0.0
    %v789 = vmax.f32 %v699, 0.0
    %v790 = vmax.f32 %v704, 0.0
    %v791 = vmax.f32 %v707, 0.0
    %v792 = vmax.f32 %v712, 0.0
    %v793 = vmax.f32 %v715, 0.0
    %v794 = vmax.f32 %v720, 0.0
    %v795 = vmax.f32 %v723, 0.0
    %v796 = vmax.f32 %v728, 0.0
    %v797 = vmax.f32 %v731, 0.0
    %v798 = vpack.c.bf16 %v735, %v734
    %v799 = vpack.c.bf16 %v737, %v736
    %v800 = vpack.c.bf16 %v739, %v738
    %v801 = vpack.c.bf16 %v741, %v740
    %v802 = vpack.c.bf16 %v743, %v742
    %v803 = vpack.c.bf16 %v745, %v744
    %v804 = vpack.c.bf16 %v747, %v746
    %v805 = vpack.c.bf16 %v749, %v748
    %v806 = vpack.c.bf16 %v751, %v750
    %v807 = vpack.c.bf16 %v753, %v752
    %v808 = vpack.c.bf16 %v755, %v754
    %v809 = vpack.c.bf16 %v757, %v756
    %v810 = vpack.c.bf16 %v759, %v758
    %v811 = vpack.c.bf16 %v761, %v760
    %v812 = vpack.c.bf16 %v763, %v762
    %v813 = vpack.c.bf16 %v765, %v764
    %v814 = vpack.c.bf16 %v767, %v766
    %v815 = vpack.c.bf16 %v769, %v768
    %v816 = vpack.c.bf16 %v771, %v770
    %v817 = vpack.c.bf16 %v773, %v772
    %v818 = vpack.c.bf16 %v775, %v774
    %v819 = vpack.c.bf16 %v777, %v776
    %v820 = vpack.c.bf16 %v779, %v778
    %v821 = vpack.c.bf16 %v781, %v780
    %v822 = vpack.c.bf16 %v783, %v782
    %v823 = vpack.c.bf16 %v785, %v784
    %v824 = vpack.c.bf16 %v787, %v786
    %v825 = vpack.c.bf16 %v789, %v788
    %v826 = vpack.c.bf16 %v791, %v790
    %v827 = vpack.c.bf16 %v793, %v792
    %v828 = vpack.c.bf16 %v795, %v794
    %v829 = vpack.c.bf16 %v797, %v796
    %v862 = vunpack.c.l.b16 %v798
    %v863 = vunpack.c.h.b16 %v798
    %v864 = vunpack.c.l.b16 %v799
    %v865 = vunpack.c.h.b16 %v799
    %v866 = vunpack.c.l.b16 %v800
    %v867 = vunpack.c.h.b16 %v800
    %v868 = vunpack.c.l.b16 %v801
    %v869 = vunpack.c.h.b16 %v801
    %v870 = vunpack.c.l.b16 %v802
    %v871 = vunpack.c.h.b16 %v802
    %v872 = vunpack.c.l.b16 %v803
    %v873 = vunpack.c.h.b16 %v803
    %v874 = vunpack.c.l.b16 %v804
    %v875 = vunpack.c.h.b16 %v804
    %v876 = vunpack.c.l.b16 %v805
    %v877 = vunpack.c.h.b16 %v805
    %v878 = vunpack.c.l.b16 %v806
    %v879 = vunpack.c.h.b16 %v806
    %v880 = vunpack.c.l.b16 %v807
    %v881 = vunpack.c.h.b16 %v807
    %v882 = vunpack.c.l.b16 %v808
    %v883 = vunpack.c.h.b16 %v808
    %v884 = vunpack.c.l.b16 %v809
    %v885 = vunpack.c.h.b16 %v809
    %v886 = vunpack.c.l.b16 %v810
    %v887 = vunpack.c.h.b16 %v810
    %v888 = vunpack.c.l.b16 %v811
    %v889 = vunpack.c.h.b16 %v811
    %v890 = vunpack.c.l.b16 %v812
    %v891 = vunpack.c.h.b16 %v812
    %v892 = vunpack.c.l.b16 %v813
    %v893 = vunpack.c.h.b16 %v813
    %v894 = vunpack.c.l.b16 %v814
    %v895 = vunpack.c.h.b16 %v814
    %v896 = vunpack.c.l.b16 %v815
    %v897 = vunpack.c.h.b16 %v815
    %v898 = vunpack.c.l.b16 %v816
    %v899 = vunpack.c.h.b16 %v816
    %v900 = vunpack.c.l.b16 %v817
    %v901 = vunpack.c.h.b16 %v817
    %v902 = vunpack.c.l.b16 %v818
    %v903 = vunpack.c.h.b16 %v818
    %v904 = vunpack.c.l.b16 %v819
    %v905 = vunpack.c.h.b16 %v819
    %v906 = vunpack.c.l.b16 %v820
    %v907 = vunpack.c.h.b16 %v820
    %v908 = vunpack.c.l.b16 %v821
    %v909 = vunpack.c.h.b16 %v821
    %v910 = vunpack.c.l.b16 %v822
    %v911 = vunpack.c.h.b16 %v822
    %v912 = vunpack.c.l.b16 %v823
    %v913 = vunpack.c.h.b16 %v823
    %v914 = vunpack.c.l.b16 %v824
    %v915 = vunpack.c.h.b16 %v824
    %v916 = vunpack.c.l.b16 %v825
    %v917 = vunpack.c.h.b16 %v825
    %v918 = vunpack.c.l.b16 %v826
    %v919 = vunpack.c.h.b16 %v826
    %v920 = vunpack.c.l.b16 %v827
    %v921 = vunpack.c.h.b16 %v827
    %v922 = vunpack.c.l.b16 %v828
    %v923 = vunpack.c.h.b16 %v828
    %v924 = vunpack.c.l.b16 %v829
    %v925 = vunpack.c.h.b16 %v829
    %v926 = vpack.c.b16 %v862, %v862
    %v927 = vpack.c.b16 %v863, %v863
    %v928 = vpack.c.b16 %v864, %v864
    %v929 = vpack.c.b16 %v865, %v865
    %v930 = vpack.c.b16 %v866, %v866
    %v931 = vpack.c.b16 %v867, %v867
    %v932 = vpack.c.b16 %v868, %v868
    %v933 = vpack.c.b16 %v869, %v869
    %v934 = vpack.c.b16 %v870, %v870
    %v935 = vpack.c.b16 %v871, %v871
    %v936 = vpack.c.b16 %v872, %v872
    %v937 = vpack.c.b16 %v873, %v873
    %v938 = vpack.c.b16 %v874, %v874
    %v939 = vpack.c.b16 %v875, %v875
    %v940 = vpack.c.b16 %v876, %v876
    %v941 = vpack.c.b16 %v877, %v877
    %v942 = vpack.c.b16 %v878, %v878
    %v943 = vpack.c.b16 %v879, %v879
    %v944 = vpack.c.b16 %v880, %v880
    %v945 = vpack.c.b16 %v881, %v881
    %v946 = vpack.c.b16 %v882, %v882
    %v947 = vpack.c.b16 %v883, %v883
    %v948 = vpack.c.b16 %v884, %v884
    %v949 = vpack.c.b16 %v885, %v885
    %v950 = vpack.c.b16 %v886, %v886
    %v951 = vpack.c.b16 %v887, %v887
    %v952 = vpack.c.b16 %v888, %v888
    %v953 = vpack.c.b16 %v889, %v889
    %v954 = vpack.c.b16 %v890, %v890
    %v955 = vpack.c.b16 %v891, %v891
    %v956 = vpack.c.b16 %v892, %v892
    %v957 = vpack.c.b16 %v893, %v893
    %v958 = vpack.c.b16 %v894, %v894
    %v959 = vpack.c.b16 %v895, %v895
    %v960 = vpack.c.b16 %v896, %v896
    %v961 = vpack.c.b16 %v897, %v897
    %v962 = vpack.c.b16 %v898, %v898
    %v963 = vpack.c.b16 %v899, %v899
    %v964 = vpack.c.b16 %v900, %v900
    %v965 = vpack.c.b16 %v901, %v901
    %v966 = vpack.c.b16 %v902, %v902
    %v967 = vpack.c.b16 %v903, %v903
    %v968 = vpack.c.b16 %v904, %v904
    %v969 = vpack.c.b16 %v905, %v905
    %v970 = vpack.c.b16 %v906, %v906
    %v971 = vpack.c.b16 %v907, %v907
    %v972 = vpack.c.b16 %v908, %v908
    %v973 = vpack.c.b16 %v909, %v909
    %v974 = vpack.c.b16 %v910, %v910
    %v975 = vpack.c.b16 %v911, %v911
    %v976 = vpack.c.b16 %v912, %v912
    %v977 = vpack.c.b16 %v913, %v913
    %v978 = vpack.c.b16 %v914, %v914
    %v979 = vpack.c.b16 %v915, %v915
    %v980 = vpack.c.b16 %v916, %v916
    %v981 = vpack.c.b16 %v917, %v917
    %v982 = vpack.c.b16 %v918, %v918
    %v983 = vpack.c.b16 %v919, %v919
    %v984 = vpack.c.b16 %v920, %v920
    %v985 = vpack.c.b16 %v921, %v921
    %v986 = vpack.c.b16 %v922, %v922
    %v987 = vpack.c.b16 %v923, %v923
    %v988 = vpack.c.b16 %v924, %v924
    %v989 = vpack.c.b16 %v925, %v925
    %1054 = vst [vmem:[#allocation2] sm:$0xf] %v926
    %1055 = vst [vmem:[#allocation2 + $0x4] sm:$0xf] %v927
    %1056 = vst [vmem:[#allocation2 + $0x8] sm:$0xf] %v928
    %1057 = vst [vmem:[#allocation2 + $0xc] sm:$0xf] %v929
    %1058 = vst [vmem:[#allocation2 + $0x10] sm:$0xf] %v930
    %1059 = vst [vmem:[#allocation2 + $0x14] sm:$0xf] %v931
    %1060 = vst [vmem:[#allocation2 + $0x18] sm:$0xf] %v932
    %1061 = vst [vmem:[#allocation2 + $0x1c] sm:$0xf] %v933
    %1062 = vst [vmem:[#allocation2 + $0x20] sm:$0xf] %v934
    %1063 = vst [vmem:[#allocation2 + $0x24] sm:$0xf] %v935
    %1064 = vst [vmem:[#allocation2 + $0x28] sm:$0xf] %v936
    %1065 = vst [vmem:[#allocation2 + $0x2c] sm:$0xf] %v937
    %1066 = vst [vmem:[#allocation2 + $0x30] sm:$0xf] %v938
    %1067 = vst [vmem:[#allocation2 + $0x34] sm:$0xf] %v939
    %1068 = vst [vmem:[#allocation2 + $0x38] sm:$0xf] %v940
    %1069 = vst [vmem:[#allocation2 + $0x3c] sm:$0xf] %v941
    %1070 = vst [vmem:[#allocation2 + $0x40] sm:$0xf] %v942
    %1071 = vst [vmem:[#allocation2 + $0x44] sm:$0xf] %v943
    %1072 = vst [vmem:[#allocation2 + $0x48] sm:$0xf] %v944
    %1073 = vst [vmem:[#allocation2 + $0x4c] sm:$0xf] %v945
    %1074 = vst [vmem:[#allocation2 + $0x50] sm:$0xf] %v946
    %1075 = vst [vmem:[#allocation2 + $0x54] sm:$0xf] %v947
    %1076 = vst [vmem:[#allocation2 + $0x58] sm:$0xf] %v948
    %1077 = vst [vmem:[#allocation2 + $0x5c] sm:$0xf] %v949
    %1078 = vst [vmem:[#allocation2 + $0x60] sm:$0xf] %v950
    %1079 = vst [vmem:[#allocation2 + $0x64] sm:$0xf] %v951
    %1080 = vst [vmem:[#allocation2 + $0x68] sm:$0xf] %v952
    %1081 = vst [vmem:[#allocation2 + $0x6c] sm:$0xf] %v953
    %1082 = vst [vmem:[#allocation2 + $0x70] sm:$0xf] %v954
    %1083 = vst [vmem:[#allocation2 + $0x74] sm:$0xf] %v955
    %1084 = vst [vmem:[#allocation2 + $0x78] sm:$0xf] %v956
    %1085 = vst [vmem:[#allocation2 + $0x7c] sm:$0xf] %v957
    %1086 = vst [vmem:[#allocation2 + $0x80] sm:$0xf] %v958
    %1087 = vst [vmem:[#allocation2 + $0x84] sm:$0xf] %v959
    %1088 = vst [vmem:[#allocation2 + $0x88] sm:$0xf] %v960
    %1089 = vst [vmem:[#allocation2 + $0x8c] sm:$0xf] %v961
    %1090 = vst [vmem:[#allocation2 + $0x90] sm:$0xf] %v962
    %1091 = vst [vmem:[#allocation2 + $0x94] sm:$0xf] %v963
    %1092 = vst [vmem:[#allocation2 + $0x98] sm:$0xf] %v964
    %1093 = vst [vmem:[#allocation2 + $0x9c] sm:$0xf] %v965
    %1094 = vst [vmem:[#allocation2 + $0xa0] sm:$0xf] %v966
    %1095 = vst [vmem:[#allocation2 + $0xa4] sm:$0xf] %v967
    %1096 = vst [vmem:[#allocation2 + $0xa8] sm:$0xf] %v968
    %1097 = vst [vmem:[#allocation2 + $0xac] sm:$0xf] %v969
    %1098 = vst [vmem:[#allocation2 + $0xb0] sm:$0xf] %v970
    %1099 = vst [vmem:[#allocation2 + $0xb4] sm:$0xf] %v971
    %1100 = vst [vmem:[#allocation2 + $0xb8] sm:$0xf] %v972
    %1101 = vst [vmem:[#allocation2 + $0xbc] sm:$0xf] %v973
    %1102 = vst [vmem:[#allocation2 + $0xc0] sm:$0xf] %v974
    %1103 = vst [vmem:[#allocation2 + $0xc4] sm:$0xf] %v975
    %1104 = vst [vmem:[#allocation2 + $0xc8] sm:$0xf] %v976
    %1105 = vst [vmem:[#allocation2 + $0xcc] sm:$0xf] %v977
    %1106 = vst [vmem:[#allocation2 + $0xd0] sm:$0xf] %v978
    %1107 = vst [vmem:[#allocation2 + $0xd4] sm:$0xf] %v979
    %1108 = vst [vmem:[#allocation2 + $0xd8] sm:$0xf] %v980
    %1109 = vst [vmem:[#allocation2 + $0xdc] sm:$0xf] %v981
    %1110 = vst [vmem:[#allocation2 + $0xe0] sm:$0xf] %v982
    %1111 = vst [vmem:[#allocation2 + $0xe4] sm:$0xf] %v983
    %1112 = vst [vmem:[#allocation2 + $0xe8] sm:$0xf] %v984
    %1113 = vst [vmem:[#allocation2 + $0xec] sm:$0xf] %v985
    %1114 = vst [vmem:[#allocation2 + $0xf0] sm:$0xf] %v986
    %1115 = vst [vmem:[#allocation2 + $0xf4] sm:$0xf] %v987
    %1116 = vst [vmem:[#allocation2 + $0xf8] sm:$0xf] %v988
    %1117 = vst [vmem:[#allocation2 + $0xfc] sm:$0xf] %v989
    %v1118 = vld [vmem:[#allocation2] sm:$0xf]
    %v1119 = vld [vmem:[#allocation2 + $0x4] sm:$0xf]
    %v1120 = vld [vmem:[#allocation2 + $0x8] sm:$0xf]
    %v1121 = vld [vmem:[#allocation2 + $0xc] sm:$0xf]
    %v1122 = vld [vmem:[#allocation2 + $0x10] sm:$0xf]
    %v1123 = vld [vmem:[#allocation2 + $0x14] sm:$0xf]
    %v1124 = vld [vmem:[#allocation2 + $0x18] sm:$0xf]
    %v1125 = vld [vmem:[#allocation2 + $0x1c] sm:$0xf]
    %v1126 = vld [vmem:[#allocation2 + $0x20] sm:$0xf]
    %v1127 = vld [vmem:[#allocation2 + $0x24] sm:$0xf]
    %v1128 = vld [vmem:[#allocation2 + $0x28] sm:$0xf]
    %v1129 = vld [vmem:[#allocation2 + $0x2c] sm:$0xf]
    %v1130 = vld [vmem:[#allocation2 + $0x30] sm:$0xf]
    %v1131 = vld [vmem:[#allocation2 + $0x34] sm:$0xf]
    %v1132 = vld [vmem:[#allocation2 + $0x38] sm:$0xf]
    %v1133 = vld [vmem:[#allocation2 + $0x3c] sm:$0xf]
    %v1134 = vld [vmem:[#allocation2 + $0x40] sm:$0xf]
    %v1135 = vld [vmem:[#allocation2 + $0x44] sm:$0xf]
    %v1136 = vld [vmem:[#allocation2 + $0x48] sm:$0xf]
    %v1137 = vld [vmem:[#allocation2 + $0x4c] sm:$0xf]
    %v1138 = vld [vmem:[#allocation2 + $0x50] sm:$0xf]
    %v1139 = vld [vmem:[#allocation2 + $0x54] sm:$0xf]
    %v1140 = vld [vmem:[#allocation2 + $0x58] sm:$0xf]
    %v1141 = vld [vmem:[#allocation2 + $0x5c] sm:$0xf]
    %v1142 = vld [vmem:[#allocation2 + $0x60] sm:$0xf]
    %v1143 = vld [vmem:[#allocation2 + $0x64] sm:$0xf]
    %v1144 = vld [vmem:[#allocation2 + $0x68] sm:$0xf]
    %v1145 = vld [vmem:[#allocation2 + $0x6c] sm:$0xf]
    %v1146 = vld [vmem:[#allocation2 + $0x70] sm:$0xf]
    %v1147 = vld [vmem:[#allocation2 + $0x74] sm:$0xf]
    %v1148 = vld [vmem:[#allocation2 + $0x78] sm:$0xf]
    %v1149 = vld [vmem:[#allocation2 + $0x7c] sm:$0xf]
    %v1150 = vld [vmem:[#allocation2 + $0x80] sm:$0xf]
    %v1151 = vld [vmem:[#allocation2 + $0x84] sm:$0xf]
    %v1152 = vld [vmem:[#allocation2 + $0x88] sm:$0xf]
    %v1153 = vld [vmem:[#allocation2 + $0x8c] sm:$0xf]
    %v1154 = vld [vmem:[#allocation2 + $0x90] sm:$0xf]
    %v1155 = vld [vmem:[#allocation2 + $0x94] sm:$0xf]
    %v1156 = vld [vmem:[#allocation2 + $0x98] sm:$0xf]
    %v1157 = vld [vmem:[#allocation2 + $0x9c] sm:$0xf]
    %v1158 = vld [vmem:[#allocation2 + $0xa0] sm:$0xf]
    %v1159 = vld [vmem:[#allocation2 + $0xa4] sm:$0xf]
    %v1160 = vld [vmem:[#allocation2 + $0xa8] sm:$0xf]
    %v1161 = vld [vmem:[#allocation2 + $0xac] sm:$0xf]
    %v1162 = vld [vmem:[#allocation2 + $0xb0] sm:$0xf]
    %v1163 = vld [vmem:[#allocation2 + $0xb4] sm:$0xf]
    %v1164 = vld [vmem:[#allocation2 + $0xb8] sm:$0xf]
    %v1165 = vld [vmem:[#allocation2 + $0xbc] sm:$0xf]
    %v1166 = vld [vmem:[#allocation2 + $0xc0] sm:$0xf]
    %v1167 = vld [vmem:[#allocation2 + $0xc4] sm:$0xf]
    %v1168 = vld [vmem:[#allocation2 + $0xc8] sm:$0xf]
    %v1169 = vld [vmem:[#allocation2 + $0xcc] sm:$0xf]
    %v1170 = vld [vmem:[#allocation2 + $0xd0] sm:$0xf]
    %v1171 = vld [vmem:[#allocation2 + $0xd4] sm:$0xf]
    %v1172 = vld [vmem:[#allocation2 + $0xd8] sm:$0xf]
    %v1173 = vld [vmem:[#allocation2 + $0xdc] sm:$0xf]
    %v1174 = vld [vmem:[#allocation2 + $0xe0] sm:$0xf]
    %v1175 = vld [vmem:[#allocation2 + $0xe4] sm:$0xf]
    %v1176 = vld [vmem:[#allocation2 + $0xe8] sm:$0xf]
    %v1177 = vld [vmem:[#allocation2 + $0xec] sm:$0xf]
    %v1178 = vld [vmem:[%s3] sm:$0xf]
    %v1179 = vld [vmem:[%s3 + $0x4] sm:$0xf]
    %v1180 = vld [vmem:[%s3 + $0x8] sm:$0xf]
    %v1181 = vld [vmem:[%s3 + $0xc] sm:$0xf]
    %v1182 = vld [vmem:[%s3 + $0x10] sm:$0xf]
    %v1183 = vld [vmem:[%s3 + $0x14] sm:$0xf]
    %v1184 = vld [vmem:[%s3 + $0x18] sm:$0xf]
    %v1185 = vld [vmem:[%s3 + $0x1c] sm:$0xf]
    %v1186 = vld [vmem:[%s3 + $0x20] sm:$0xf]
    %v1187 = vld [vmem:[%s3 + $0x24] sm:$0xf]
    %v1188 = vld [vmem:[%s3 + $0x28] sm:$0xf]
    %v1189 = vld [vmem:[%s3 + $0x2c] sm:$0xf]
    %v1190 = vld [vmem:[%s3 + $0x30] sm:$0xf]
    %v1191 = vld [vmem:[%s3 + $0x34] sm:$0xf]
    %v1192 = vld [vmem:[%s3 + $0x38] sm:$0xf]
    %v1193 = vld [vmem:[%s3 + $0x3c] sm:$0xf]
    %v1254 = vunpack.c.l.b16 %v1118
    %v1255 = vunpack.c.l.b16 %v1119
    %v1256 = vunpack.c.l.b16 %v1120
    %v1257 = vunpack.c.l.b16 %v1121
    %v1258 = vunpack.c.l.b16 %v1122
    %v1259 = vunpack.c.l.b16 %v1123
    %v1260 = vunpack.c.l.b16 %v1124
    %v1261 = vunpack.c.l.b16 %v1125
    %v1262 = vunpack.c.l.b16 %v1126
    %v1263 = vunpack.c.l.b16 %v1127
    %v1264 = vunpack.c.l.b16 %v1128
    %v1265 = vunpack.c.l.b16 %v1129
    %v1266 = vunpack.c.l.b16 %v1130
    %v1267 = vunpack.c.l.b16 %v1131
    %v1268 = vunpack.c.l.b16 %v1132
    %v1269 = vunpack.c.l.b16 %v1133
    %v1270 = vunpack.c.l.b16 %v1134
    %v1271 = vunpack.c.l.b16 %v1135
    %v1272 = vunpack.c.l.b16 %v1136
    %v1273 = vunpack.c.l.b16 %v1137
    %v1274 = vunpack.c.l.b16 %v1138
    %v1275 = vunpack.c.l.b16 %v1139
    %v1276 = vunpack.c.l.b16 %v1140
    %v1277 = vunpack.c.l.b16 %v1141
    %v1278 = vunpack.c.l.b16 %v1142
    %v1279 = vunpack.c.l.b16 %v1143
    %v1280 = vunpack.c.l.b16 %v1144
    %v1281 = vunpack.c.l.b16 %v1145
    %v1282 = vunpack.c.l.b16 %v1146
    %v1283 = vunpack.c.l.b16 %v1147
    %v1284 = vunpack.c.l.b16 %v1148
    %v1285 = vunpack.c.l.b16 %v1149
    %v1286 = vunpack.c.l.b16 %v1150
    %v1287 = vunpack.c.l.b16 %v1151
    %v1288 = vunpack.c.l.b16 %v1152
    %v1289 = vunpack.c.l.b16 %v1153
    %v1290 = vunpack.c.l.b16 %v1154
    %v1291 = vunpack.c.l.b16 %v1155
    %v1292 = vunpack.c.l.b16 %v1156
    %v1293 = vunpack.c.l.b16 %v1157
    %v1294 = vunpack.c.l.b16 %v1158
    %v1295 = vunpack.c.l.b16 %v1159
    %v1296 = vunpack.c.l.b16 %v1160
    %v1297 = vunpack.c.l.b16 %v1161
    %v1298 = vunpack.c.l.b16 %v1162
    %v1299 = vunpack.c.l.b16 %v1163
    %v1300 = vunpack.c.l.b16 %v1164
    %v1301 = vunpack.c.l.b16 %v1165
    %v1302 = vunpack.c.l.b16 %v1166
    %v1303 = vunpack.c.l.b16 %v1167
    %v1304 = vunpack.c.l.b16 %v1168
    %v1305 = vunpack.c.l.b16 %v1169
    %v1306 = vunpack.c.l.b16 %v1170
    %v1307 = vunpack.c.l.b16 %v1171
    %v1308 = vunpack.c.l.b16 %v1172
    %v1309 = vunpack.c.l.b16 %v1173
    %v1310 = vunpack.c.l.b16 %v1174
    %v1311 = vunpack.c.l.b16 %v1175
    %v1312 = vunpack.c.l.b16 %v1176
    %v1313 = vunpack.c.l.b16 %v1177
    %v1314 = vpack.c.b16 %v1255, %v1254
    %v1315 = vpack.c.b16 %v1257, %v1256
    %v1316 = vpack.c.b16 %v1259, %v1258
    %v1317 = vpack.c.b16 %v1261, %v1260
    %v1318 = vpack.c.b16 %v1263, %v1262
    %v1319 = vpack.c.b16 %v1265, %v1264
    %v1320 = vpack.c.b16 %v1267, %v1266
    %v1321 = vpack.c.b16 %v1269, %v1268
    %v1322 = vpack.c.b16 %v1271, %v1270
    %v1323 = vpack.c.b16 %v1273, %v1272
    %v1324 = vpack.c.b16 %v1275, %v1274
    %v1325 = vpack.c.b16 %v1277, %v1276
    %v1326 = vpack.c.b16 %v1279, %v1278
    %v1327 = vpack.c.b16 %v1281, %v1280
    %v1328 = vpack.c.b16 %v1283, %v1282
    %v1329 = vpack.c.b16 %v1285, %v1284
    %v1330 = vpack.c.b16 %v1287, %v1286
    %v1331 = vpack.c.b16 %v1289, %v1288
    %v1332 = vpack.c.b16 %v1291, %v1290
    %v1333 = vpack.c.b16 %v1293, %v1292
    %v1334 = vpack.c.b16 %v1295, %v1294
    %v1335 = vpack.c.b16 %v1297, %v1296
    %v1336 = vpack.c.b16 %v1299, %v1298
    %v1337 = vpack.c.b16 %v1301, %v1300
    %v1338 = vpack.c.b16 %v1303, %v1302
    %v1339 = vpack.c.b16 %v1305, %v1304
    %v1340 = vpack.c.b16 %v1307, %v1306
    %v1341 = vpack.c.b16 %v1309, %v1308
    %v1342 = vpack.c.b16 %v1311, %v1310
    %v1343 = vpack.c.b16 %v1313, %v1312
    %v1390 = vunpack.c.l.b16 %v1178
    %v1391 = vunpack.c.l.b16 %v1179
    %v1392 = vunpack.c.l.b16 %v1180
    %v1393 = vunpack.c.l.b16 %v1181
    %v1394 = vunpack.c.l.b16 %v1182
    %v1395 = vunpack.c.l.b16 %v1183
    %v1396 = vunpack.c.l.b16 %v1184
    %v1397 = vunpack.c.l.b16 %v1185
    %v1398 = vunpack.c.l.b16 %v1186
    %v1399 = vunpack.c.l.b16 %v1187
    %v1400 = vunpack.c.l.b16 %v1188
    %v1401 = vunpack.c.l.b16 %v1189
    %v1402 = vunpack.c.l.b16 %v1190
    %v1403 = vunpack.c.l.b16 %v1191
    %v1404 = vunpack.c.l.b16 %v1192
    %v1405 = vunpack.c.l.b16 %v1193
    %v1406 = vpack.c.b16 %v1391, %v1390
    %v1407 = vpack.c.b16 %v1393, %v1392
    %v1408 = vpack.c.b16 %v1395, %v1394
    %v1409 = vpack.c.b16 %v1397, %v1396
    %v1410 = vpack.c.b16 %v1399, %v1398
    %v1411 = vpack.c.b16 %v1401, %v1400
    %v1412 = vpack.c.b16 %v1403, %v1402
    %v1413 = vpack.c.b16 %v1405, %v1404
    %1422 = vmatprep.subr.bf16.mxu0 0
    %1423 = vmatpush1.bf16.msra.mxu0 %v1413
    %1424 = vmatprep.subr.bf16.mxu0 0
    %1425 = vmatpush1.bf16.msra.mxu0 %v1412
    %1426 = vmatprep.subr.bf16.mxu0 0
    %1427 = vmatpush1.bf16.msra.mxu0 %v1411
    %1428 = vmatprep.subr.bf16.mxu0 0
    %1429 = vmatpush1.bf16.msra.mxu0 %v1410
    %1430 = vmatprep.subr.bf16.mxu0 0
    %1431 = vmatpush1.bf16.msra.mxu0 %v1409
    %1432 = vmatprep.subr.bf16.mxu0 0
    %1433 = vmatpush1.bf16.msra.mxu0 %v1408
    %1434 = vmatprep.subr.bf16.mxu0 0
    %1435 = vmatpush1.bf16.msra.mxu0 %v1407
    %1436 = vmatprep.subr.bf16.mxu0 0
    %1437 = vmatpush1.bf16.msra.mxu0 %v1406
    %1438 = vmatprep.subr.bf16.mxu0 0
    %1439 = vmatpush2.bf16.msra.mxu0 0
    %1440 = vmatprep.subr.bf16.mxu0 0
    %1441 = vmatpush2.bf16.msra.mxu0 0
    %1442 = vmatprep.subr.bf16.mxu0 0
    %1443 = vmatpush2.bf16.msra.mxu0 0
    %1444 = vmatprep.subr.bf16.mxu0 0
    %1445 = vmatpush2.bf16.msra.mxu0 0
    %1446 = vmatprep.subr.bf16.mxu0 0
    %1447 = vmatpush2.bf16.msra.mxu0 0
    %1448 = vmatprep.subr.bf16.mxu0 0
    %1449 = vmatpush2.bf16.msra.mxu0 0
    %1450 = vmatprep.subr.bf16.mxu0 0
    %1451 = vmatpush2.bf16.msra.mxu0 0
    %1452 = vmatprep.subr.bf16.mxu0 0
    %1453 = vmatpush2.bf16.msra.mxu0 0
    %1454 = vmatprep.mubr.bf16.mxu0 0
    %1455 = vmatmul.mubr.bf16.gmra.mxu0 %v1314
    %v1456 = vpop.f32.mrf.mxu0
    %v1457 = vadd.f32 0.0, %v1456
    %v1458 = vpop.f32.mrf.mxu0
    %v1459 = vpop.f32.mrf.mxu0
    %v1460 = vadd.f32 0.0, %v1459
    %v1461 = vpop.f32.mrf.mxu0
    %1462 = vmatprep.mubr.bf16.mxu0 0
    %1463 = vmatmul.mubr.bf16.gmra.mxu0 %v1315
    %v1464 = vpop.f32.mrf.mxu0
    %v1465 = vadd.f32 0.0, %v1464
    %v1466 = vpop.f32.mrf.mxu0
    %v1467 = vpop.f32.mrf.mxu0
    %v1468 = vadd.f32 0.0, %v1467
    %v1469 = vpop.f32.mrf.mxu0
    %1470 = vmatprep.mubr.bf16.mxu0 0
    %1471 = vmatmul.mubr.bf16.gmra.mxu0 %v1316
    %v1472 = vpop.f32.mrf.mxu0
    %v1473 = vadd.f32 0.0, %v1472
    %v1474 = vpop.f32.mrf.mxu0
    %v1475 = vpop.f32.mrf.mxu0
    %v1476 = vadd.f32 0.0, %v1475
    %v1477 = vpop.f32.mrf.mxu0
    %1478 = vmatprep.mubr.bf16.mxu0 0
    %1479 = vmatmul.mubr.bf16.gmra.mxu0 %v1317
    %v1480 = vpop.f32.mrf.mxu0
    %v1481 = vadd.f32 0.0, %v1480
    %v1482 = vpop.f32.mrf.mxu0
    %v1483 = vpop.f32.mrf.mxu0
    %v1484 = vadd.f32 0.0, %v1483
    %v1485 = vpop.f32.mrf.mxu0
    %1486 = vmatprep.mubr.bf16.mxu0 0
    %1487 = vmatmul.mubr.bf16.gmra.mxu0 %v1318
    %v1488 = vpop.f32.mrf.mxu0
    %v1489 = vadd.f32 0.0, %v1488
    %v1490 = vpop.f32.mrf.mxu0
    %v1491 = vpop.f32.mrf.mxu0
    %v1492 = vadd.f32 0.0, %v1491
    %v1493 = vpop.f32.mrf.mxu0
    %1494 = vmatprep.mubr.bf16.mxu0 0
    %1495 = vmatmul.mubr.bf16.gmra.mxu0 %v1319
    %v1496 = vpop.f32.mrf.mxu0
    %v1497 = vadd.f32 0.0, %v1496
    %v1498 = vpop.f32.mrf.mxu0
    %v1499 = vpop.f32.mrf.mxu0
    %v1500 = vadd.f32 0.0, %v1499
    %v1501 = vpop.f32.mrf.mxu0
    %1502 = vmatprep.mubr.bf16.mxu0 0
    %1503 = vmatmul.mubr.bf16.gmra.mxu0 %v1320
    %v1504 = vpop.f32.mrf.mxu0
    %v1505 = vadd.f32 0.0, %v1504
    %v1506 = vpop.f32.mrf.mxu0
    %v1507 = vpop.f32.mrf.mxu0
    %v1508 = vadd.f32 0.0, %v1507
    %v1509 = vpop.f32.mrf.mxu0
    %1510 = vmatprep.mubr.bf16.mxu0 0
    %1511 = vmatmul.mubr.bf16.gmra.mxu0 %v1321
    %v1512 = vpop.f32.mrf.mxu0
    %v1513 = vadd.f32 0.0, %v1512
    %v1514 = vpop.f32.mrf.mxu0
    %v1515 = vpop.f32.mrf.mxu0
    %v1516 = vadd.f32 0.0, %v1515
    %v1517 = vpop.f32.mrf.mxu0
    %1518 = vmatprep.mubr.bf16.mxu0 0
    %1519 = vmatmul.mubr.bf16.gmra.mxu0 %v1322
    %v1520 = vpop.f32.mrf.mxu0
    %v1521 = vadd.f32 0.0, %v1520
    %v1522 = vpop.f32.mrf.mxu0
    %v1523 = vpop.f32.mrf.mxu0
    %v1524 = vadd.f32 0.0, %v1523
    %v1525 = vpop.f32.mrf.mxu0
    %1526 = vmatprep.mubr.bf16.mxu0 0
    %1527 = vmatmul.mubr.bf16.gmra.mxu0 %v1323
    %v1528 = vpop.f32.mrf.mxu0
    %v1529 = vadd.f32 0.0, %v1528
    %v1530 = vpop.f32.mrf.mxu0
    %v1531 = vpop.f32.mrf.mxu0
    %v1532 = vadd.f32 0.0, %v1531
    %v1533 = vpop.f32.mrf.mxu0
    %1534 = vmatprep.mubr.bf16.mxu0 0
    %1535 = vmatmul.mubr.bf16.gmra.mxu0 %v1324
    %v1536 = vpop.f32.mrf.mxu0
    %v1537 = vadd.f32 0.0, %v1536
    %v1538 = vpop.f32.mrf.mxu0
    %v1539 = vpop.f32.mrf.mxu0
    %v1540 = vadd.f32 0.0, %v1539
    %v1541 = vpop.f32.mrf.mxu0
    %1542 = vmatprep.mubr.bf16.mxu0 0
    %1543 = vmatmul.mubr.bf16.gmra.mxu0 %v1325
    %v1544 = vpop.f32.mrf.mxu0
    %v1545 = vadd.f32 0.0, %v1544
    %v1546 = vpop.f32.mrf.mxu0
    %v1547 = vpop.f32.mrf.mxu0
    %v1548 = vadd.f32 0.0, %v1547
    %v1549 = vpop.f32.mrf.mxu0
    %1550 = vmatprep.mubr.bf16.mxu0 0
    %1551 = vmatmul.mubr.bf16.gmra.mxu0 %v1326
    %v1552 = vpop.f32.mrf.mxu0
    %v1553 = vadd.f32 0.0, %v1552
    %v1554 = vpop.f32.mrf.mxu0
    %v1555 = vpop.f32.mrf.mxu0
    %v1556 = vadd.f32 0.0, %v1555
    %v1557 = vpop.f32.mrf.mxu0
    %1558 = vmatprep.mubr.bf16.mxu0 0
    %1559 = vmatmul.mubr.bf16.gmra.mxu0 %v1327
    %v1560 = vpop.f32.mrf.mxu0
    %v1561 = vadd.f32 0.0, %v1560
    %v1562 = vpop.f32.mrf.mxu0
    %v1563 = vpop.f32.mrf.mxu0
    %v1564 = vadd.f32 0.0, %v1563
    %v1565 = vpop.f32.mrf.mxu0
    %1566 = vmatprep.mubr.bf16.mxu0 0
    %1567 = vmatmul.mubr.bf16.gmra.mxu0 %v1328
    %v1568 = vpop.f32.mrf.mxu0
    %v1569 = vadd.f32 0.0, %v1568
    %v1570 = vpop.f32.mrf.mxu0
    %v1571 = vpop.f32.mrf.mxu0
    %v1572 = vadd.f32 0.0, %v1571
    %v1573 = vpop.f32.mrf.mxu0
    %1574 = vmatprep.mubr.bf16.mxu0 0
    %1575 = vmatmul.mubr.bf16.gmra.mxu0 %v1329
    %v1576 = vpop.f32.mrf.mxu0
    %v1577 = vadd.f32 0.0, %v1576
    %v1578 = vpop.f32.mrf.mxu0
    %v1579 = vpop.f32.mrf.mxu0
    %v1580 = vadd.f32 0.0, %v1579
    %v1581 = vpop.f32.mrf.mxu0
    %1582 = vmatprep.mubr.bf16.mxu0 0
    %1583 = vmatmul.mubr.bf16.gmra.mxu0 %v1330
    %v1584 = vpop.f32.mrf.mxu0
    %v1585 = vadd.f32 0.0, %v1584
    %v1586 = vpop.f32.mrf.mxu0
    %v1587 = vpop.f32.mrf.mxu0
    %v1588 = vadd.f32 0.0, %v1587
    %v1589 = vpop.f32.mrf.mxu0
    %1590 = vmatprep.mubr.bf16.mxu0 0
    %1591 = vmatmul.mubr.bf16.gmra.mxu0 %v1331
    %v1592 = vpop.f32.mrf.mxu0
    %v1593 = vadd.f32 0.0, %v1592
    %v1594 = vpop.f32.mrf.mxu0
    %v1595 = vpop.f32.mrf.mxu0
    %v1596 = vadd.f32 0.0, %v1595
    %v1597 = vpop.f32.mrf.mxu0
    %1598 = vmatprep.mubr.bf16.mxu0 0
    %1599 = vmatmul.mubr.bf16.gmra.mxu0 %v1332
    %v1600 = vpop.f32.mrf.mxu0
    %v1601 = vadd.f32 0.0, %v1600
    %v1602 = vpop.f32.mrf.mxu0
    %v1603 = vpop.f32.mrf.mxu0
    %v1604 = vadd.f32 0.0, %v1603
    %v1605 = vpop.f32.mrf.mxu0
    %1606 = vmatprep.mubr.bf16.mxu0 0
    %1607 = vmatmul.mubr.bf16.gmra.mxu0 %v1333
    %v1608 = vpop.f32.mrf.mxu0
    %v1609 = vadd.f32 0.0, %v1608
    %v1610 = vpop.f32.mrf.mxu0
    %v1611 = vpop.f32.mrf.mxu0
    %v1612 = vadd.f32 0.0, %v1611
    %v1613 = vpop.f32.mrf.mxu0
    %1614 = vmatprep.mubr.bf16.mxu0 0
    %1615 = vmatmul.mubr.bf16.gmra.mxu0 %v1334
    %v1616 = vpop.f32.mrf.mxu0
    %v1617 = vadd.f32 0.0, %v1616
    %v1618 = vpop.f32.mrf.mxu0
    %v1619 = vpop.f32.mrf.mxu0
    %v1620 = vadd.f32 0.0, %v1619
    %v1621 = vpop.f32.mrf.mxu0
    %1622 = vmatprep.mubr.bf16.mxu0 0
    %1623 = vmatmul.mubr.bf16.gmra.mxu0 %v1335
    %v1624 = vpop.f32.mrf.mxu0
    %v1625 = vadd.f32 0.0, %v1624
    %v1626 = vpop.f32.mrf.mxu0
    %v1627 = vpop.f32.mrf.mxu0
    %v1628 = vadd.f32 0.0, %v1627
    %v1629 = vpop.f32.mrf.mxu0
    %1630 = vmatprep.mubr.bf16.mxu0 0
    %1631 = vmatmul.mubr.bf16.gmra.mxu0 %v1336
    %v1632 = vpop.f32.mrf.mxu0
    %v1633 = vadd.f32 0.0, %v1632
    %v1634 = vpop.f32.mrf.mxu0
    %v1635 = vpop.f32.mrf.mxu0
    %v1636 = vadd.f32 0.0, %v1635
    %v1637 = vpop.f32.mrf.mxu0
    %1638 = vmatprep.mubr.bf16.mxu0 0
    %1639 = vmatmul.mubr.bf16.gmra.mxu0 %v1337
    %v1640 = vpop.f32.mrf.mxu0
    %v1641 = vadd.f32 0.0, %v1640
    %v1642 = vpop.f32.mrf.mxu0
    %v1643 = vpop.f32.mrf.mxu0
    %v1644 = vadd.f32 0.0, %v1643
    %v1645 = vpop.f32.mrf.mxu0
    %1646 = vmatprep.mubr.bf16.mxu0 0
    %1647 = vmatmul.mubr.bf16.gmra.mxu0 %v1338
    %v1648 = vpop.f32.mrf.mxu0
    %v1649 = vadd.f32 0.0, %v1648
    %v1650 = vpop.f32.mrf.mxu0
    %v1651 = vpop.f32.mrf.mxu0
    %v1652 = vadd.f32 0.0, %v1651
    %v1653 = vpop.f32.mrf.mxu0
    %1654 = vmatprep.mubr.bf16.mxu0 0
    %1655 = vmatmul.mubr.bf16.gmra.mxu0 %v1339
    %v1656 = vpop.f32.mrf.mxu0
    %v1657 = vadd.f32 0.0, %v1656
    %v1658 = vpop.f32.mrf.mxu0
    %v1659 = vpop.f32.mrf.mxu0
    %v1660 = vadd.f32 0.0, %v1659
    %v1661 = vpop.f32.mrf.mxu0
    %1662 = vmatprep.mubr.bf16.mxu0 0
    %1663 = vmatmul.mubr.bf16.gmra.mxu0 %v1340
    %v1664 = vpop.f32.mrf.mxu0
    %v1665 = vadd.f32 0.0, %v1664
    %v1666 = vpop.f32.mrf.mxu0
    %v1667 = vpop.f32.mrf.mxu0
    %v1668 = vadd.f32 0.0, %v1667
    %v1669 = vpop.f32.mrf.mxu0
    %1670 = vmatprep.mubr.bf16.mxu0 0
    %1671 = vmatmul.mubr.bf16.gmra.mxu0 %v1341
    %v1672 = vpop.f32.mrf.mxu0
    %v1673 = vadd.f32 0.0, %v1672
    %v1674 = vpop.f32.mrf.mxu0
    %v1675 = vpop.f32.mrf.mxu0
    %v1676 = vadd.f32 0.0, %v1675
    %v1677 = vpop.f32.mrf.mxu0
    %1678 = vmatprep.mubr.bf16.mxu0 0
    %1679 = vmatmul.mubr.bf16.gmra.mxu0 %v1342
    %v1680 = vpop.f32.mrf.mxu0
    %v1681 = vadd.f32 0.0, %v1680
    %v1682 = vpop.f32.mrf.mxu0
    %v1683 = vpop.f32.mrf.mxu0
    %v1684 = vadd.f32 0.0, %v1683
    %v1685 = vpop.f32.mrf.mxu0
    %1686 = vmatprep.mubr.bf16.mxu0 0
    %1687 = vmatmul.mubr.bf16.gmra.mxu0 %v1343
    %v1688 = vpop.f32.mrf.mxu0
    %v1689 = vadd.f32 0.0, %v1688
    %v1690 = vpop.f32.mrf.mxu0
    %v1691 = vpop.f32.mrf.mxu0
    %v1692 = vadd.f32 0.0, %v1691
    %v1693 = vpop.f32.mrf.mxu0
    %1694 = vdwg.mxu0
    %vm1695 = vcmask 523264
    %1696 = vst.msk [vmem:[#allocation3] sm:$0xff] %vm1695, %v1457
    %1697 = vst.msk [vmem:[#allocation3 + $0x8] sm:$0xff] %vm1695, %v1460
    %1698 = vst.msk [vmem:[#allocation3 + $0x10] sm:$0xff] %vm1695, %v1465
    %1699 = vst.msk [vmem:[#allocation3 + $0x18] sm:$0xff] %vm1695, %v1468
    %1700 = vst.msk [vmem:[#allocation3 + $0x20] sm:$0xff] %vm1695, %v1473
    %1701 = vst.msk [vmem:[#allocation3 + $0x28] sm:$0xff] %vm1695, %v1476
    %1702 = vst.msk [vmem:[#allocation3 + $0x30] sm:$0xff] %vm1695, %v1481
    %1703 = vst.msk [vmem:[#allocation3 + $0x38] sm:$0xff] %vm1695, %v1484
    %1704 = vst.msk [vmem:[#allocation3 + $0x40] sm:$0xff] %vm1695, %v1489
    %1705 = vst.msk [vmem:[#allocation3 + $0x48] sm:$0xff] %vm1695, %v1492
    %1706 = vst.msk [vmem:[#allocation3 + $0x50] sm:$0xff] %vm1695, %v1497
    %1707 = vst.msk [vmem:[#allocation3 + $0x58] sm:$0xff] %vm1695, %v1500
    %1708 = vst.msk [vmem:[#allocation3 + $0x60] sm:$0xff] %vm1695, %v1505
    %1709 = vst.msk [vmem:[#allocation3 + $0x68] sm:$0xff] %vm1695, %v1508
    %1710 = vst.msk [vmem:[#allocation3 + $0x70] sm:$0xff] %vm1695, %v1513
    %1711 = vst.msk [vmem:[#allocation3 + $0x78] sm:$0xff] %vm1695, %v1516
    %1712 = vst.msk [vmem:[#allocation3 + $0x80] sm:$0xff] %vm1695, %v1521
    %1713 = vst.msk [vmem:[#allocation3 + $0x88] sm:$0xff] %vm1695, %v1524
    %1714 = vst.msk [vmem:[#allocation3 + $0x90] sm:$0xff] %vm1695, %v1529
    %1715 = vst.msk [vmem:[#allocation3 + $0x98] sm:$0xff] %vm1695, %v1532
    %1716 = vst.msk [vmem:[#allocation3 + $0xa0] sm:$0xff] %vm1695, %v1537
    %1717 = vst.msk [vmem:[#allocation3 + $0xa8] sm:$0xff] %vm1695, %v1540
    %1718 = vst.msk [vmem:[#allocation3 + $0xb0] sm:$0xff] %vm1695, %v1545
    %1719 = vst.msk [vmem:[#allocation3 + $0xb8] sm:$0xff] %vm1695, %v1548
    %1720 = vst.msk [vmem:[#allocation3 + $0xc0] sm:$0xff] %vm1695, %v1553
    %1721 = vst.msk [vmem:[#allocation3 + $0xc8] sm:$0xff] %vm1695, %v1556
    %1722 = vst.msk [vmem:[#allocation3 + $0xd0] sm:$0xff] %vm1695, %v1561
    %1723 = vst.msk [vmem:[#allocation3 + $0xd8] sm:$0xff] %vm1695, %v1564
    %1724 = vst.msk [vmem:[#allocation3 + $0xe0] sm:$0xff] %vm1695, %v1569
    %1725 = vst.msk [vmem:[#allocation3 + $0xe8] sm:$0xff] %vm1695, %v1572
    %1726 = vst.msk [vmem:[#allocation3 + $0xf0] sm:$0xff] %vm1695, %v1577
    %1727 = vst.msk [vmem:[#allocation3 + $0xf8] sm:$0xff] %vm1695, %v1580
    %1728 = vst.msk [vmem:[#allocation3 + $0x100] sm:$0xff] %vm1695, %v1585
    %1729 = vst.msk [vmem:[#allocation3 + $0x108] sm:$0xff] %vm1695, %v1588
    %1730 = vst.msk [vmem:[#allocation3 + $0x110] sm:$0xff] %vm1695, %v1593
    %1731 = vst.msk [vmem:[#allocation3 + $0x118] sm:$0xff] %vm1695, %v1596
    %1732 = vst.msk [vmem:[#allocation3 + $0x120] sm:$0xff] %vm1695, %v1601
    %1733 = vst.msk [vmem:[#allocation3 + $0x128] sm:$0xff] %vm1695, %v1604
    %1734 = vst.msk [vmem:[#allocation3 + $0x130] sm:$0xff] %vm1695, %v1609
    %1735 = vst.msk [vmem:[#allocation3 + $0x138] sm:$0xff] %vm1695, %v1612
    %1736 = vst.msk [vmem:[#allocation3 + $0x140] sm:$0xff] %vm1695, %v1617
    %1737 = vst.msk [vmem:[#allocation3 + $0x148] sm:$0xff] %vm1695, %v1620
    %1738 = vst.msk [vmem:[#allocation3 + $0x150] sm:$0xff] %vm1695, %v1625
    %1739 = vst.msk [vmem:[#allocation3 + $0x158] sm:$0xff] %vm1695, %v1628
    %1740 = vst.msk [vmem:[#allocation3 + $0x160] sm:$0xff] %vm1695, %v1633
    %1741 = vst.msk [vmem:[#allocation3 + $0x168] sm:$0xff] %vm1695, %v1636
    %1742 = vst.msk [vmem:[#allocation3 + $0x170] sm:$0xff] %vm1695, %v1641
    %1743 = vst.msk [vmem:[#allocation3 + $0x178] sm:$0xff] %vm1695, %v1644
    %1744 = vst.msk [vmem:[#allocation3 + $0x180] sm:$0xff] %vm1695, %v1649
    %1745 = vst.msk [vmem:[#allocation3 + $0x188] sm:$0xff] %vm1695, %v1652
    %1746 = vst.msk [vmem:[#allocation3 + $0x190] sm:$0xff] %vm1695, %v1657
    %1747 = vst.msk [vmem:[#allocation3 + $0x198] sm:$0xff] %vm1695, %v1660
    %1748 = vst.msk [vmem:[#allocation3 + $0x1a0] sm:$0xff] %vm1695, %v1665
    %1749 = vst.msk [vmem:[#allocation3 + $0x1a8] sm:$0xff] %vm1695, %v1668
    %1750 = vst.msk [vmem:[#allocation3 + $0x1b0] sm:$0xff] %vm1695, %v1673
    %1751 = vst.msk [vmem:[#allocation3 + $0x1b8] sm:$0xff] %vm1695, %v1676
    %1752 = vst.msk [vmem:[#allocation3 + $0x1c0] sm:$0xff] %vm1695, %v1681
    %1753 = vst.msk [vmem:[#allocation3 + $0x1c8] sm:$0xff] %vm1695, %v1684
    %1754 = vst.msk [vmem:[#allocation3 + $0x1d0] sm:$0xff] %vm1695, %v1689
    %1755 = vst.msk [vmem:[#allocation3 + $0x1d8] sm:$0xff] %vm1695, %v1692
    %v1756 = vld [vmem:[#allocation3] sm:$0xff]
    %v1757 = vld [vmem:[#allocation3 + $0x8] sm:$0xff]
    %v1758 = vld [vmem:[#allocation3 + $0x10] sm:$0xff]
    %v1759 = vld [vmem:[#allocation3 + $0x18] sm:$0xff]
    %v1760 = vld [vmem:[#allocation3 + $0x20] sm:$0xff]
    %v1761 = vld [vmem:[#allocation3 + $0x28] sm:$0xff]
    %v1762 = vld [vmem:[#allocation3 + $0x30] sm:$0xff]
    %v1763 = vld [vmem:[#allocation3 + $0x38] sm:$0xff]
    %v1764 = vld [vmem:[#allocation3 + $0x40] sm:$0xff]
    %v1765 = vld [vmem:[#allocation3 + $0x48] sm:$0xff]
    %v1766 = vld [vmem:[#allocation3 + $0x50] sm:$0xff]
    %v1767 = vld [vmem:[#allocation3 + $0x58] sm:$0xff]
    %v1768 = vld [vmem:[#allocation3 + $0x60] sm:$0xff]
    %v1769 = vld [vmem:[#allocation3 + $0x68] sm:$0xff]
    %v1770 = vld [vmem:[#allocation3 + $0x70] sm:$0xff]
    %v1771 = vld [vmem:[#allocation3 + $0x78] sm:$0xff]
    %v1772 = vld [vmem:[#allocation3 + $0x80] sm:$0xff]
    %v1773 = vld [vmem:[#allocation3 + $0x88] sm:$0xff]
    %v1774 = vld [vmem:[#allocation3 + $0x90] sm:$0xff]
    %v1775 = vld [vmem:[#allocation3 + $0x98] sm:$0xff]
    %v1776 = vld [vmem:[#allocation3 + $0xa0] sm:$0xff]
    %v1777 = vld [vmem:[#allocation3 + $0xa8] sm:$0xff]
    %v1778 = vld [vmem:[#allocation3 + $0xb0] sm:$0xff]
    %v1779 = vld [vmem:[#allocation3 + $0xb8] sm:$0xff]
    %v1780 = vld [vmem:[#allocation3 + $0xc0] sm:$0xff]
    %v1781 = vld [vmem:[#allocation3 + $0xc8] sm:$0xff]
    %v1782 = vld [vmem:[#allocation3 + $0xd0] sm:$0xff]
    %v1783 = vld [vmem:[#allocation3 + $0xd8] sm:$0xff]
    %v1784 = vld [vmem:[#allocation3 + $0xe0] sm:$0xff]
    %v1785 = vld [vmem:[#allocation3 + $0xe8] sm:$0xff]
    %v1786 = vld [vmem:[#allocation3 + $0xf0] sm:$0xff]
    %v1787 = vld [vmem:[#allocation3 + $0xf8] sm:$0xff]
    %v1788 = vld [vmem:[#allocation3 + $0x100] sm:$0xff]
    %v1789 = vld [vmem:[#allocation3 + $0x108] sm:$0xff]
    %v1790 = vld [vmem:[#allocation3 + $0x110] sm:$0xff]
    %v1791 = vld [vmem:[#allocation3 + $0x118] sm:$0xff]
    %v1792 = vld [vmem:[#allocation3 + $0x120] sm:$0xff]
    %v1793 = vld [vmem:[#allocation3 + $0x128] sm:$0xff]
    %v1794 = vld [vmem:[#allocation3 + $0x130] sm:$0xff]
    %v1795 = vld [vmem:[#allocation3 + $0x138] sm:$0xff]
    %v1796 = vld [vmem:[#allocation3 + $0x140] sm:$0xff]
    %v1797 = vld [vmem:[#allocation3 + $0x148] sm:$0xff]
    %v1798 = vld [vmem:[#allocation3 + $0x150] sm:$0xff]
    %v1799 = vld [vmem:[#allocation3 + $0x158] sm:$0xff]
    %v1800 = vld [vmem:[#allocation3 + $0x160] sm:$0xff]
    %v1801 = vld [vmem:[#allocation3 + $0x168] sm:$0xff]
    %v1802 = vld [vmem:[#allocation3 + $0x170] sm:$0xff]
    %v1803 = vld [vmem:[#allocation3 + $0x178] sm:$0xff]
    %v1804 = vld [vmem:[#allocation3 + $0x180] sm:$0xff]
    %v1805 = vld [vmem:[#allocation3 + $0x188] sm:$0xff]
    %v1806 = vld [vmem:[#allocation3 + $0x190] sm:$0xff]
    %v1807 = vld [vmem:[#allocation3 + $0x198] sm:$0xff]
    %v1808 = vld [vmem:[#allocation3 + $0x1a0] sm:$0xff]
    %v1809 = vld [vmem:[#allocation3 + $0x1a8] sm:$0xff]
    %v1810 = vld [vmem:[#allocation3 + $0x1b0] sm:$0xff]
    %v1811 = vld [vmem:[#allocation3 + $0x1b8] sm:$0xff]
    %v1812 = vld [vmem:[#allocation3 + $0x1c0] sm:$0xff]
    %v1813 = vld [vmem:[#allocation3 + $0x1c8] sm:$0xff]
    %v1814 = vld [vmem:[#allocation3 + $0x1d0] sm:$0xff]
    %v1815 = vld [vmem:[#allocation3 + $0x1d8] sm:$0xff]
    %v1816 = vld [vmem:[#allocation2] sm:$0xf]
    %v1817 = vld [vmem:[#allocation2 + $0x4] sm:$0xf]
    %v1818 = vld [vmem:[#allocation2 + $0x8] sm:$0xf]
    %v1819 = vld [vmem:[#allocation2 + $0xc] sm:$0xf]
    %v1820 = vld [vmem:[#allocation2 + $0x10] sm:$0xf]
    %v1821 = vld [vmem:[#allocation2 + $0x14] sm:$0xf]
    %v1822 = vld [vmem:[#allocation2 + $0x18] sm:$0xf]
    %v1823 = vld [vmem:[#allocation2 + $0x1c] sm:$0xf]
    %v1824 = vld [vmem:[#allocation2 + $0x20] sm:$0xf]
    %v1825 = vld [vmem:[#allocation2 + $0x24] sm:$0xf]
    %v1826 = vld [vmem:[#allocation2 + $0x28] sm:$0xf]
    %v1827 = vld [vmem:[#allocation2 + $0x2c] sm:$0xf]
    %v1828 = vld [vmem:[#allocation2 + $0x30] sm:$0xf]
    %v1829 = vld [vmem:[#allocation2 + $0x34] sm:$0xf]
    %v1830 = vld [vmem:[#allocation2 + $0x38] sm:$0xf]
    %v1831 = vld [vmem:[#allocation2 + $0x3c] sm:$0xf]
    %v1832 = vld [vmem:[#allocation2 + $0x40] sm:$0xf]
    %v1833 = vld [vmem:[#allocation2 + $0x44] sm:$0xf]
    %v1834 = vld [vmem:[#allocation2 + $0x48] sm:$0xf]
    %v1835 = vld [vmem:[#allocation2 + $0x4c] sm:$0xf]
    %v1836 = vld [vmem:[#allocation2 + $0x50] sm:$0xf]
    %v1837 = vld [vmem:[#allocation2 + $0x54] sm:$0xf]
    %v1838 = vld [vmem:[#allocation2 + $0x58] sm:$0xf]
    %v1839 = vld [vmem:[#allocation2 + $0x5c] sm:$0xf]
    %v1840 = vld [vmem:[#allocation2 + $0x60] sm:$0xf]
    %v1841 = vld [vmem:[#allocation2 + $0x64] sm:$0xf]
    %v1842 = vld [vmem:[#allocation2 + $0x68] sm:$0xf]
    %v1843 = vld [vmem:[#allocation2 + $0x6c] sm:$0xf]
    %v1844 = vld [vmem:[#allocation2 + $0x70] sm:$0xf]
    %v1845 = vld [vmem:[#allocation2 + $0x74] sm:$0xf]
    %v1846 = vld [vmem:[#allocation2 + $0x78] sm:$0xf]
    %v1847 = vld [vmem:[#allocation2 + $0x7c] sm:$0xf]
    %v1848 = vld [vmem:[#allocation2 + $0x80] sm:$0xf]
    %v1849 = vld [vmem:[#allocation2 + $0x84] sm:$0xf]
    %v1850 = vld [vmem:[#allocation2 + $0x88] sm:$0xf]
    %v1851 = vld [vmem:[#allocation2 + $0x8c] sm:$0xf]
    %v1852 = vld [vmem:[#allocation2 + $0x90] sm:$0xf]
    %v1853 = vld [vmem:[#allocation2 + $0x94] sm:$0xf]
    %v1854 = vld [vmem:[#allocation2 + $0x98] sm:$0xf]
    %v1855 = vld [vmem:[#allocation2 + $0x9c] sm:$0xf]
    %v1856 = vld [vmem:[#allocation2 + $0xa0] sm:$0xf]
    %v1857 = vld [vmem:[#allocation2 + $0xa4] sm:$0xf]
    %v1858 = vld [vmem:[#allocation2 + $0xa8] sm:$0xf]
    %v1859 = vld [vmem:[#allocation2 + $0xac] sm:$0xf]
    %v1860 = vld [vmem:[#allocation2 + $0xb0] sm:$0xf]
    %v1861 = vld [vmem:[#allocation2 + $0xb4] sm:$0xf]
    %v1862 = vld [vmem:[#allocation2 + $0xb8] sm:$0xf]
    %v1863 = vld [vmem:[#allocation2 + $0xbc] sm:$0xf]
    %v1864 = vld [vmem:[#allocation2 + $0xc0] sm:$0xf]
    %v1865 = vld [vmem:[#allocation2 + $0xc4] sm:$0xf]
    %v1866 = vld [vmem:[#allocation2 + $0xc8] sm:$0xf]
    %v1867 = vld [vmem:[#allocation2 + $0xcc] sm:$0xf]
    %v1868 = vld [vmem:[#allocation2 + $0xd0] sm:$0xf]
    %v1869 = vld [vmem:[#allocation2 + $0xd4] sm:$0xf]
    %v1870 = vld [vmem:[#allocation2 + $0xd8] sm:$0xf]
    %v1871 = vld [vmem:[#allocation2 + $0xdc] sm:$0xf]
    %v1872 = vld [vmem:[#allocation2 + $0xe0] sm:$0xf]
    %v1873 = vld [vmem:[#allocation2 + $0xe4] sm:$0xf]
    %v1874 = vld [vmem:[#allocation2 + $0xe8] sm:$0xf]
    %v1875 = vld [vmem:[#allocation2 + $0xec] sm:$0xf]
    %v1876 = vld [vmem:[#allocation2 + $0xf0] sm:$0x1]
    %v1877 = vld [vmem:[%s3 + $0x40] sm:$0xf]
    %v1878 = vld [vmem:[%s3 + $0x44] sm:$0xf]
    %v1879 = vld [vmem:[%s3 + $0x48] sm:$0xf]
    %v1880 = vld [vmem:[%s3 + $0x4c] sm:$0xf]
    %v1881 = vld [vmem:[%s3 + $0x50] sm:$0xf]
    %v1882 = vld [vmem:[%s3 + $0x54] sm:$0xf]
    %v1883 = vld [vmem:[%s3 + $0x58] sm:$0xf]
    %v1884 = vld [vmem:[%s3 + $0x5c] sm:$0xf]
    %v1885 = vld [vmem:[%s3 + $0x60] sm:$0xf]
    %v1886 = vld [vmem:[%s3 + $0x64] sm:$0xf]
    %v1887 = vld [vmem:[%s3 + $0x68] sm:$0xf]
    %v1888 = vld [vmem:[%s3 + $0x6c] sm:$0xf]
    %v1889 = vld [vmem:[%s3 + $0x70] sm:$0xf]
    %v1890 = vld [vmem:[%s3 + $0x74] sm:$0xf]
    %v1891 = vld [vmem:[%s3 + $0x78] sm:$0xf]
    %v1892 = vld [vmem:[%s3 + $0x7c] sm:$0xf]
    %v1954 = vunpack.c.l.b16 %v1816
    %v1955 = vunpack.c.l.b16 %v1817
    %v1956 = vunpack.c.l.b16 %v1818
    %v1957 = vunpack.c.l.b16 %v1819
    %v1958 = vunpack.c.l.b16 %v1820
    %v1959 = vunpack.c.l.b16 %v1821
    %v1960 = vunpack.c.l.b16 %v1822
    %v1961 = vunpack.c.l.b16 %v1823
    %v1962 = vunpack.c.l.b16 %v1824
    %v1963 = vunpack.c.l.b16 %v1825
    %v1964 = vunpack.c.l.b16 %v1826
    %v1965 = vunpack.c.l.b16 %v1827
    %v1966 = vunpack.c.l.b16 %v1828
    %v1967 = vunpack.c.l.b16 %v1829
    %v1968 = vunpack.c.l.b16 %v1830
    %v1969 = vunpack.c.l.b16 %v1831
    %v1970 = vunpack.c.l.b16 %v1832
    %v1971 = vunpack.c.l.b16 %v1833
    %v1972 = vunpack.c.l.b16 %v1834
    %v1973 = vunpack.c.l.b16 %v1835
    %v1974 = vunpack.c.l.b16 %v1836
    %v1975 = vunpack.c.l.b16 %v1837
    %v1976 = vunpack.c.l.b16 %v1838
    %v1977 = vunpack.c.l.b16 %v1839
    %v1978 = vunpack.c.l.b16 %v1840
    %v1979 = vunpack.c.l.b16 %v1841
    %v1980 = vunpack.c.l.b16 %v1842
    %v1981 = vunpack.c.l.b16 %v1843
    %v1982 = vunpack.c.l.b16 %v1844
    %v1983 = vunpack.c.l.b16 %v1845
    %v1984 = vunpack.c.l.b16 %v1846
    %v1985 = vunpack.c.l.b16 %v1847
    %v1986 = vunpack.c.l.b16 %v1848
    %v1987 = vunpack.c.l.b16 %v1849
    %v1988 = vunpack.c.l.b16 %v1850
    %v1989 = vunpack.c.l.b16 %v1851
    %v1990 = vunpack.c.l.b16 %v1852
    %v1991 = vunpack.c.l.b16 %v1853
    %v1992 = vunpack.c.l.b16 %v1854
    %v1993 = vunpack.c.l.b16 %v1855
    %v1994 = vunpack.c.l.b16 %v1856
    %v1995 = vunpack.c.l.b16 %v1857
    %v1996 = vunpack.c.l.b16 %v1858
    %v1997 = vunpack.c.l.b16 %v1859
    %v1998 = vunpack.c.l.b16 %v1860
    %v1999 = vunpack.c.l.b16 %v1861
    %v2000 = vunpack.c.l.b16 %v1862
    %v2001 = vunpack.c.l.b16 %v1863
    %v2002 = vunpack.c.l.b16 %v1864
    %v2003 = vunpack.c.l.b16 %v1865
    %v2004 = vunpack.c.l.b16 %v1866
    %v2005 = vunpack.c.l.b16 %v1867
    %v2006 = vunpack.c.l.b16 %v1868
    %v2007 = vunpack.c.l.b16 %v1869
    %v2008 = vunpack.c.l.b16 %v1870
    %v2009 = vunpack.c.l.b16 %v1871
    %v2010 = vunpack.c.l.b16 %v1872
    %v2011 = vunpack.c.l.b16 %v1873
    %v2012 = vunpack.c.l.b16 %v1874
    %v2013 = vunpack.c.l.b16 %v1875
    %v2014 = vunpack.c.l.b16 %v1876
    %v2015 = vpack.c.b16 %v1955, %v1954
    %v2016 = vpack.c.b16 %v1957, %v1956
    %v2017 = vpack.c.b16 %v1959, %v1958
    %v2018 = vpack.c.b16 %v1961, %v1960
    %v2019 = vpack.c.b16 %v1963, %v1962
    %v2020 = vpack.c.b16 %v1965, %v1964
    %v2021 = vpack.c.b16 %v1967, %v1966
    %v2022 = vpack.c.b16 %v1969, %v1968
    %v2023 = vpack.c.b16 %v1971, %v1970
    %v2024 = vpack.c.b16 %v1973, %v1972
    %v2025 = vpack.c.b16 %v1975, %v1974
    %v2026 = vpack.c.b16 %v1977, %v1976
    %v2027 = vpack.c.b16 %v1979, %v1978
    %v2028 = vpack.c.b16 %v1981, %v1980
    %v2029 = vpack.c.b16 %v1983, %v1982
    %v2030 = vpack.c.b16 %v1985, %v1984
    %v2031 = vpack.c.b16 %v1987, %v1986
    %v2032 = vpack.c.b16 %v1989, %v1988
    %v2033 = vpack.c.b16 %v1991, %v1990
    %v2034 = vpack.c.b16 %v1993, %v1992
    %v2035 = vpack.c.b16 %v1995, %v1994
    %v2036 = vpack.c.b16 %v1997, %v1996
    %v2037 = vpack.c.b16 %v1999, %v1998
    %v2038 = vpack.c.b16 %v2001, %v2000
    %v2039 = vpack.c.b16 %v2003, %v2002
    %v2040 = vpack.c.b16 %v2005, %v2004
    %v2041 = vpack.c.b16 %v2007, %v2006
    %v2042 = vpack.c.b16 %v2009, %v2008
    %v2043 = vpack.c.b16 %v2011, %v2010
    %v2044 = vpack.c.b16 %v2013, %v2012
    %v2045 = vpack.c.b16 %v2014, %v2014
    %vm2046 = vsmask.f32 7424
    %v2048 = vshrl.u32 %v2015, 16
    %v2050 = vshll.u32 %v2015, 16
    %v2052 = vrot.slane %v2050, 1
    %v2053 = vor.u32 %v2048, %v2052
    %v2055 = vshll.u32 %v2016, 16
    %v2057 = vrot.slane %v2055, 1
    %v2058 = vsel %vm2046, %v2053, %v2057
    %v2059 = vshrl.u32 %v2016, 16
    %v2061 = vor.u32 %v2059, %v2057
    %v2063 = vshll.u32 %v2017, 16
    %v2065 = vrot.slane %v2063, 1
    %v2066 = vsel %vm2046, %v2061, %v2065
    %v2067 = vshrl.u32 %v2017, 16
    %v2069 = vor.u32 %v2067, %v2065
    %v2071 = vshll.u32 %v2018, 16
    %v2073 = vrot.slane %v2071, 1
    %v2074 = vsel %vm2046, %v2069, %v2073
    %v2075 = vshrl.u32 %v2018, 16
    %v2077 = vor.u32 %v2075, %v2073
    %v2079 = vshll.u32 %v2019, 16
    %v2081 = vrot.slane %v2079, 1
    %v2082 = vsel %vm2046, %v2077, %v2081
    %v2083 = vshrl.u32 %v2019, 16
    %v2085 = vor.u32 %v2083, %v2081
    %v2087 = vshll.u32 %v2020, 16
    %v2089 = vrot.slane %v2087, 1
    %v2090 = vsel %vm2046, %v2085, %v2089
    %v2091 = vshrl.u32 %v2020, 16
    %v2093 = vor.u32 %v2091, %v2089
    %v2095 = vshll.u32 %v2021, 16
    %v2097 = vrot.slane %v2095, 1
    %v2098 = vsel %vm2046, %v2093, %v2097
    %v2099 = vshrl.u32 %v2021, 16
    %v2101 = vor.u32 %v2099, %v2097
    %v2103 = vshll.u32 %v2022, 16
    %v2105 = vrot.slane %v2103, 1
    %v2106 = vsel %vm2046, %v2101, %v2105
    %v2107 = vshrl.u32 %v2022, 16
    %v2109 = vor.u32 %v2107, %v2105
    %v2111 = vshll.u32 %v2023, 16
    %v2113 = vrot.slane %v2111, 1
    %v2114 = vsel %vm2046, %v2109, %v2113
    %v2115 = vshrl.u32 %v2023, 16
    %v2117 = vor.u32 %v2115, %v2113
    %v2119 = vshll.u32 %v2024, 16
    %v2121 = vrot.slane %v2119, 1
    %v2122 = vsel %vm2046, %v2117, %v2121
    %v2123 = vshrl.u32 %v2024, 16
    %v2125 = vor.u32 %v2123, %v2121
    %v2127 = vshll.u32 %v2025, 16
    %v2129 = vrot.slane %v2127, 1
    %v2130 = vsel %vm2046, %v2125, %v2129
    %v2131 = vshrl.u32 %v2025, 16
    %v2133 = vor.u32 %v2131, %v2129
    %v2135 = vshll.u32 %v2026, 16
    %v2137 = vrot.slane %v2135, 1
    %v2138 = vsel %vm2046, %v2133, %v2137
    %v2139 = vshrl.u32 %v2026, 16
    %v2141 = vor.u32 %v2139, %v2137
    %v2143 = vshll.u32 %v2027, 16
    %v2145 = vrot.slane %v2143, 1
    %v2146 = vsel %vm2046, %v2141, %v2145
    %v2147 = vshrl.u32 %v2027, 16
    %v2149 = vor.u32 %v2147, %v2145
    %v2151 = vshll.u32 %v2028, 16
    %v2153 = vrot.slane %v2151, 1
    %v2154 = vsel %vm2046, %v2149, %v2153
    %v2155 = vshrl.u32 %v2028, 16
    %v2157 = vor.u32 %v2155, %v2153
    %v2159 = vshll.u32 %v2029, 16
    %v2161 = vrot.slane %v2159, 1
    %v2162 = vsel %vm2046, %v2157, %v2161
    %v2163 = vshrl.u32 %v2029, 16
    %v2165 = vor.u32 %v2163, %v2161
    %v2167 = vshll.u32 %v2030, 16
    %v2169 = vrot.slane %v2167, 1
    %v2170 = vsel %vm2046, %v2165, %v2169
    %v2171 = vshrl.u32 %v2030, 16
    %v2173 = vor.u32 %v2171, %v2169
    %v2175 = vshll.u32 %v2031, 16
    %v2177 = vrot.slane %v2175, 1
    %v2178 = vsel %vm2046, %v2173, %v2177
    %v2179 = vshrl.u32 %v2031, 16
    %v2181 = vor.u32 %v2179, %v2177
    %v2183 = vshll.u32 %v2032, 16
    %v2185 = vrot.slane %v2183, 1
    %v2186 = vsel %vm2046, %v2181, %v2185
    %v2187 = vshrl.u32 %v2032, 16
    %v2189 = vor.u32 %v2187, %v2185
    %v2191 = vshll.u32 %v2033, 16
    %v2193 = vrot.slane %v2191, 1
    %v2194 = vsel %vm2046, %v2189, %v2193
    %v2195 = vshrl.u32 %v2033, 16
    %v2197 = vor.u32 %v2195, %v2193
    %v2199 = vshll.u32 %v2034, 16
    %v2201 = vrot.slane %v2199, 1
    %v2202 = vsel %vm2046, %v2197, %v2201
    %v2203 = vshrl.u32 %v2034, 16
    %v2205 = vor.u32 %v2203, %v2201
    %v2207 = vshll.u32 %v2035, 16
    %v2209 = vrot.slane %v2207, 1
    %v2210 = vsel %vm2046, %v2205, %v2209
    %v2211 = vshrl.u32 %v2035, 16
    %v2213 = vor.u32 %v2211, %v2209
    %v2215 = vshll.u32 %v2036, 16
    %v2217 = vrot.slane %v2215, 1
    %v2218 = vsel %vm2046, %v2213, %v2217
    %v2219 = vshrl.u32 %v2036, 16
    %v2221 = vor.u32 %v2219, %v2217
    %v2223 = vshll.u32 %v2037, 16
    %v2225 = vrot.slane %v2223, 1
    %v2226 = vsel %vm2046, %v2221, %v2225
    %v2227 = vshrl.u32 %v2037, 16
    %v2229 = vor.u32 %v2227, %v2225
    %v2231 = vshll.u32 %v2038, 16
    %v2233 = vrot.slane %v2231, 1
    %v2234 = vsel %vm2046, %v2229, %v2233
    %v2235 = vshrl.u32 %v2038, 16
    %v2237 = vor.u32 %v2235, %v2233
    %v2239 = vshll.u32 %v2039, 16
    %v2241 = vrot.slane %v2239, 1
    %v2242 = vsel %vm2046, %v2237, %v2241
    %v2243 = vshrl.u32 %v2039, 16
    %v2245 = vor.u32 %v2243, %v2241
    %v2247 = vshll.u32 %v2040, 16
    %v2249 = vrot.slane %v2247, 1
    %v2250 = vsel %vm2046, %v2245, %v2249
    %v2251 = vshrl.u32 %v2040, 16
    %v2253 = vor.u32 %v2251, %v2249
    %v2255 = vshll.u32 %v2041, 16
    %v2257 = vrot.slane %v2255, 1
    %v2258 = vsel %vm2046, %v2253, %v2257
    %v2259 = vshrl.u32 %v2041, 16
    %v2261 = vor.u32 %v2259, %v2257
    %v2263 = vshll.u32 %v2042, 16
    %v2265 = vrot.slane %v2263, 1
    %v2266 = vsel %vm2046, %v2261, %v2265
    %v2267 = vshrl.u32 %v2042, 16
    %v2269 = vor.u32 %v2267, %v2265
    %v2271 = vshll.u32 %v2043, 16
    %v2273 = vrot.slane %v2271, 1
    %v2274 = vsel %vm2046, %v2269, %v2273
    %v2275 = vshrl.u32 %v2043, 16
    %v2277 = vor.u32 %v2275, %v2273
    %v2279 = vshll.u32 %v2044, 16
    %v2281 = vrot.slane %v2279, 1
    %v2282 = vsel %vm2046, %v2277, %v2281
    %v2283 = vshrl.u32 %v2044, 16
    %v2285 = vor.u32 %v2283, %v2281
    %v2287 = vshll.u32 %v2045, 16
    %v2289 = vrot.slane %v2287, 1
    %v2290 = vsel %vm2046, %v2285, %v2289
    %v2337 = vunpack.c.l.b16 %v1877
    %v2338 = vunpack.c.l.b16 %v1878
    %v2339 = vunpack.c.l.b16 %v1879
    %v2340 = vunpack.c.l.b16 %v1880
    %v2341 = vunpack.c.l.b16 %v1881
    %v2342 = vunpack.c.l.b16 %v1882
    %v2343 = vunpack.c.l.b16 %v1883
    %v2344 = vunpack.c.l.b16 %v1884
    %v2345 = vunpack.c.l.b16 %v1885
    %v2346 = vunpack.c.l.b16 %v1886
    %v2347 = vunpack.c.l.b16 %v1887
    %v2348 = vunpack.c.l.b16 %v1888
    %v2349 = vunpack.c.l.b16 %v1889
    %v2350 = vunpack.c.l.b16 %v1890
    %v2351 = vunpack.c.l.b16 %v1891
    %v2352 = vunpack.c.l.b16 %v1892
    %v2353 = vpack.c.b16 %v2338, %v2337
    %v2354 = vpack.c.b16 %v2340, %v2339
    %v2355 = vpack.c.b16 %v2342, %v2341
    %v2356 = vpack.c.b16 %v2344, %v2343
    %v2357 = vpack.c.b16 %v2346, %v2345
    %v2358 = vpack.c.b16 %v2348, %v2347
    %v2359 = vpack.c.b16 %v2350, %v2349
    %v2360 = vpack.c.b16 %v2352, %v2351
    %2369 = vmatprep.subr.bf16.mxu0 0
    %2370 = vmatpush1.bf16.msra.mxu0 %v2360
    %2371 = vmatprep.subr.bf16.mxu0 0
    %2372 = vmatpush1.bf16.msra.mxu0 %v2359
    %2373 = vmatprep.subr.bf16.mxu0 0
    %2374 = vmatpush1.bf16.msra.mxu0 %v2358
    %2375 = vmatprep.subr.bf16.mxu0 0
    %2376 = vmatpush1.bf16.msra.mxu0 %v2357
    %2377 = vmatprep.subr.bf16.mxu0 0
    %2378 = vmatpush1.bf16.msra.mxu0 %v2356
    %2379 = vmatprep.subr.bf16.mxu0 0
    %2380 = vmatpush1.bf16.msra.mxu0 %v2355
    %2381 = vmatprep.subr.bf16.mxu0 0
    %2382 = vmatpush1.bf16.msra.mxu0 %v2354
    %2383 = vmatprep.subr.bf16.mxu0 0
    %2384 = vmatpush1.bf16.msra.mxu0 %v2353
    %2385 = vmatprep.subr.bf16.mxu0 0
    %2386 = vmatpush2.bf16.msra.mxu0 0
    %2387 = vmatprep.subr.bf16.mxu0 0
    %2388 = vmatpush2.bf16.msra.mxu0 0
    %2389 = vmatprep.subr.bf16.mxu0 0
    %2390 = vmatpush2.bf16.msra.mxu0 0
    %2391 = vmatprep.subr.bf16.mxu0 0
    %2392 = vmatpush2.bf16.msra.mxu0 0
    %2393 = vmatprep.subr.bf16.mxu0 0
    %2394 = vmatpush2.bf16.msra.mxu0 0
    %2395 = vmatprep.subr.bf16.mxu0 0
    %2396 = vmatpush2.bf16.msra.mxu0 0
    %2397 = vmatprep.subr.bf16.mxu0 0
    %2398 = vmatpush2.bf16.msra.mxu0 0
    %2399 = vmatprep.subr.bf16.mxu0 0
    %2400 = vmatpush2.bf16.msra.mxu0 0
    %2401 = vmatprep.mubr.bf16.mxu0 0
    %2402 = vmatmul.mubr.bf16.gmra.mxu0 %v2058
    %v2403 = vpop.f32.mrf.mxu0
    %v2404 = vadd.f32 0.0, %v2403
    %v2405 = vpop.f32.mrf.mxu0
    %v2406 = vpop.f32.mrf.mxu0
    %v2407 = vadd.f32 0.0, %v2406
    %v2408 = vpop.f32.mrf.mxu0
    %2409 = vmatprep.mubr.bf16.mxu0 0
    %2410 = vmatmul.mubr.bf16.gmra.mxu0 %v2066
    %v2411 = vpop.f32.mrf.mxu0
    %v2412 = vadd.f32 0.0, %v2411
    %v2413 = vpop.f32.mrf.mxu0
    %v2414 = vpop.f32.mrf.mxu0
    %v2415 = vadd.f32 0.0, %v2414
    %v2416 = vpop.f32.mrf.mxu0
    %2417 = vmatprep.mubr.bf16.mxu0 0
    %2418 = vmatmul.mubr.bf16.gmra.mxu0 %v2074
    %v2419 = vpop.f32.mrf.mxu0
    %v2420 = vadd.f32 0.0, %v2419
    %v2421 = vpop.f32.mrf.mxu0
    %v2422 = vpop.f32.mrf.mxu0
    %v2423 = vadd.f32 0.0, %v2422
    %v2424 = vpop.f32.mrf.mxu0
    %2425 = vmatprep.mubr.bf16.mxu0 0
    %2426 = vmatmul.mubr.bf16.gmra.mxu0 %v2082
    %v2427 = vpop.f32.mrf.mxu0
    %v2428 = vadd.f32 0.0, %v2427
    %v2429 = vpop.f32.mrf.mxu0
    %v2430 = vpop.f32.mrf.mxu0
    %v2431 = vadd.f32 0.0, %v2430
    %v2432 = vpop.f32.mrf.mxu0
    %2433 = vmatprep.mubr.bf16.mxu0 0
    %2434 = vmatmul.mubr.bf16.gmra.mxu0 %v2090
    %v2435 = vpop.f32.mrf.mxu0
    %v2436 = vadd.f32 0.0, %v2435
    %v2437 = vpop.f32.mrf.mxu0
    %v2438 = vpop.f32.mrf.mxu0
    %v2439 = vadd.f32 0.0, %v2438
    %v2440 = vpop.f32.mrf.mxu0
    %2441 = vmatprep.mubr.bf16.mxu0 0
    %2442 = vmatmul.mubr.bf16.gmra.mxu0 %v2098
    %v2443 = vpop.f32.mrf.mxu0
    %v2444 = vadd.f32 0.0, %v2443
    %v2445 = vpop.f32.mrf.mxu0
    %v2446 = vpop.f32.mrf.mxu0
    %v2447 = vadd.f32 0.0, %v2446
    %v2448 = vpop.f32.mrf.mxu0
    %2449 = vmatprep.mubr.bf16.mxu0 0
    %2450 = vmatmul.mubr.bf16.gmra.mxu0 %v2106
    %v2451 = vpop.f32.mrf.mxu0
    %v2452 = vadd.f32 0.0, %v2451
    %v2453 = vpop.f32.mrf.mxu0
    %v2454 = vpop.f32.mrf.mxu0
    %v2455 = vadd.f32 0.0, %v2454
    %v2456 = vpop.f32.mrf.mxu0
    %2457 = vmatprep.mubr.bf16.mxu0 0
    %2458 = vmatmul.mubr.bf16.gmra.mxu0 %v2114
    %v2459 = vpop.f32.mrf.mxu0
    %v2460 = vadd.f32 0.0, %v2459
    %v2461 = vpop.f32.mrf.mxu0
    %v2462 = vpop.f32.mrf.mxu0
    %v2463 = vadd.f32 0.0, %v2462
    %v2464 = vpop.f32.mrf.mxu0
    %2465 = vmatprep.mubr.bf16.mxu0 0
    %2466 = vmatmul.mubr.bf16.gmra.mxu0 %v2122
    %v2467 = vpop.f32.mrf.mxu0
    %v2468 = vadd.f32 0.0, %v2467
    %v2469 = vpop.f32.mrf.mxu0
    %v2470 = vpop.f32.mrf.mxu0
    %v2471 = vadd.f32 0.0, %v2470
    %v2472 = vpop.f32.mrf.mxu0
    %2473 = vmatprep.mubr.bf16.mxu0 0
    %2474 = vmatmul.mubr.bf16.gmra.mxu0 %v2130
    %v2475 = vpop.f32.mrf.mxu0
    %v2476 = vadd.f32 0.0, %v2475
    %v2477 = vpop.f32.mrf.mxu0
    %v2478 = vpop.f32.mrf.mxu0
    %v2479 = vadd.f32 0.0, %v2478
    %v2480 = vpop.f32.mrf.mxu0
    %2481 = vmatprep.mubr.bf16.mxu0 0
    %2482 = vmatmul.mubr.bf16.gmra.mxu0 %v2138
    %v2483 = vpop.f32.mrf.mxu0
    %v2484 = vadd.f32 0.0, %v2483
    %v2485 = vpop.f32.mrf.mxu0
    %v2486 = vpop.f32.mrf.mxu0
    %v2487 = vadd.f32 0.0, %v2486
    %v2488 = vpop.f32.mrf.mxu0
    %2489 = vmatprep.mubr.bf16.mxu0 0
    %2490 = vmatmul.mubr.bf16.gmra.mxu0 %v2146
    %v2491 = vpop.f32.mrf.mxu0
    %v2492 = vadd.f32 0.0, %v2491
    %v2493 = vpop.f32.mrf.mxu0
    %v2494 = vpop.f32.mrf.mxu0
    %v2495 = vadd.f32 0.0, %v2494
    %v2496 = vpop.f32.mrf.mxu0
    %2497 = vmatprep.mubr.bf16.mxu0 0
    %2498 = vmatmul.mubr.bf16.gmra.mxu0 %v2154
    %v2499 = vpop.f32.mrf.mxu0
    %v2500 = vadd.f32 0.0, %v2499
    %v2501 = vpop.f32.mrf.mxu0
    %v2502 = vpop.f32.mrf.mxu0
    %v2503 = vadd.f32 0.0, %v2502
    %v2504 = vpop.f32.mrf.mxu0
    %2505 = vmatprep.mubr.bf16.mxu0 0
    %2506 = vmatmul.mubr.bf16.gmra.mxu0 %v2162
    %v2507 = vpop.f32.mrf.mxu0
    %v2508 = vadd.f32 0.0, %v2507
    %v2509 = vpop.f32.mrf.mxu0
    %v2510 = vpop.f32.mrf.mxu0
    %v2511 = vadd.f32 0.0, %v2510
    %v2512 = vpop.f32.mrf.mxu0
    %2513 = vmatprep.mubr.bf16.mxu0 0
    %2514 = vmatmul.mubr.bf16.gmra.mxu0 %v2170
    %v2515 = vpop.f32.mrf.mxu0
    %v2516 = vadd.f32 0.0, %v2515
    %v2517 = vpop.f32.mrf.mxu0
    %v2518 = vpop.f32.mrf.mxu0
    %v2519 = vadd.f32 0.0, %v2518
    %v2520 = vpop.f32.mrf.mxu0
    %2521 = vmatprep.mubr.bf16.mxu0 0
    %2522 = vmatmul.mubr.bf16.gmra.mxu0 %v2178
    %v2523 = vpop.f32.mrf.mxu0
    %v2524 = vadd.f32 0.0, %v2523
    %v2525 = vpop.f32.mrf.mxu0
    %v2526 = vpop.f32.mrf.mxu0
    %v2527 = vadd.f32 0.0, %v2526
    %v2528 = vpop.f32.mrf.mxu0
    %2529 = vmatprep.mubr.bf16.mxu0 0
    %2530 = vmatmul.mubr.bf16.gmra.mxu0 %v2186
    %v2531 = vpop.f32.mrf.mxu0
    %v2532 = vadd.f32 0.0, %v2531
    %v2533 = vpop.f32.mrf.mxu0
    %v2534 = vpop.f32.mrf.mxu0
    %v2535 = vadd.f32 0.0, %v2534
    %v2536 = vpop.f32.mrf.mxu0
    %2537 = vmatprep.mubr.bf16.mxu0 0
    %2538 = vmatmul.mubr.bf16.gmra.mxu0 %v2194
    %v2539 = vpop.f32.mrf.mxu0
    %v2540 = vadd.f32 0.0, %v2539
    %v2541 = vpop.f32.mrf.mxu0
    %v2542 = vpop.f32.mrf.mxu0
    %v2543 = vadd.f32 0.0, %v2542
    %v2544 = vpop.f32.mrf.mxu0
    %2545 = vmatprep.mubr.bf16.mxu0 0
    %2546 = vmatmul.mubr.bf16.gmra.mxu0 %v2202
    %v2547 = vpop.f32.mrf.mxu0
    %v2548 = vadd.f32 0.0, %v2547
    %v2549 = vpop.f32.mrf.mxu0
    %v2550 = vpop.f32.mrf.mxu0
    %v2551 = vadd.f32 0.0, %v2550
    %v2552 = vpop.f32.mrf.mxu0
    %2553 = vmatprep.mubr.bf16.mxu0 0
    %2554 = vmatmul.mubr.bf16.gmra.mxu0 %v2210
    %v2555 = vpop.f32.mrf.mxu0
    %v2556 = vadd.f32 0.0, %v2555
    %v2557 = vpop.f32.mrf.mxu0
    %v2558 = vpop.f32.mrf.mxu0
    %v2559 = vadd.f32 0.0, %v2558
    %v2560 = vpop.f32.mrf.mxu0
    %2561 = vmatprep.mubr.bf16.mxu0 0
    %2562 = vmatmul.mubr.bf16.gmra.mxu0 %v2218
    %v2563 = vpop.f32.mrf.mxu0
    %v2564 = vadd.f32 0.0, %v2563
    %v2565 = vpop.f32.mrf.mxu0
    %v2566 = vpop.f32.mrf.mxu0
    %v2567 = vadd.f32 0.0, %v2566
    %v2568 = vpop.f32.mrf.mxu0
    %2569 = vmatprep.mubr.bf16.mxu0 0
    %2570 = vmatmul.mubr.bf16.gmra.mxu0 %v2226
    %v2571 = vpop.f32.mrf.mxu0
    %v2572 = vadd.f32 0.0, %v2571
    %v2573 = vpop.f32.mrf.mxu0
    %v2574 = vpop.f32.mrf.mxu0
    %v2575 = vadd.f32 0.0, %v2574
    %v2576 = vpop.f32.mrf.mxu0
    %2577 = vmatprep.mubr.bf16.mxu0 0
    %2578 = vmatmul.mubr.bf16.gmra.mxu0 %v2234
    %v2579 = vpop.f32.mrf.mxu0
    %v2580 = vadd.f32 0.0, %v2579
    %v2581 = vpop.f32.mrf.mxu0
    %v2582 = vpop.f32.mrf.mxu0
    %v2583 = vadd.f32 0.0, %v2582
    %v2584 = vpop.f32.mrf.mxu0
    %2585 = vmatprep.mubr.bf16.mxu0 0
    %2586 = vmatmul.mubr.bf16.gmra.mxu0 %v2242
    %v2587 = vpop.f32.mrf.mxu0
    %v2588 = vadd.f32 0.0, %v2587
    %v2589 = vpop.f32.mrf.mxu0
    %v2590 = vpop.f32.mrf.mxu0
    %v2591 = vadd.f32 0.0, %v2590
    %v2592 = vpop.f32.mrf.mxu0
    %2593 = vmatprep.mubr.bf16.mxu0 0
    %2594 = vmatmul.mubr.bf16.gmra.mxu0 %v2250
    %v2595 = vpop.f32.mrf.mxu0
    %v2596 = vadd.f32 0.0, %v2595
    %v2597 = vpop.f32.mrf.mxu0
    %v2598 = vpop.f32.mrf.mxu0
    %v2599 = vadd.f32 0.0, %v2598
    %v2600 = vpop.f32.mrf.mxu0
    %2601 = vmatprep.mubr.bf16.mxu0 0
    %2602 = vmatmul.mubr.bf16.gmra.mxu0 %v2258
    %v2603 = vpop.f32.mrf.mxu0
    %v2604 = vadd.f32 0.0, %v2603
    %v2605 = vpop.f32.mrf.mxu0
    %v2606 = vpop.f32.mrf.mxu0
    %v2607 = vadd.f32 0.0, %v2606
    %v2608 = vpop.f32.mrf.mxu0
    %2609 = vmatprep.mubr.bf16.mxu0 0
    %2610 = vmatmul.mubr.bf16.gmra.mxu0 %v2266
    %v2611 = vpop.f32.mrf.mxu0
    %v2612 = vadd.f32 0.0, %v2611
    %v2613 = vpop.f32.mrf.mxu0
    %v2614 = vpop.f32.mrf.mxu0
    %v2615 = vadd.f32 0.0, %v2614
    %v2616 = vpop.f32.mrf.mxu0
    %2617 = vmatprep.mubr.bf16.mxu0 0
    %2618 = vmatmul.mubr.bf16.gmra.mxu0 %v2274
    %v2619 = vpop.f32.mrf.mxu0
    %v2620 = vadd.f32 0.0, %v2619
    %v2621 = vpop.f32.mrf.mxu0
    %v2622 = vpop.f32.mrf.mxu0
    %v2623 = vadd.f32 0.0, %v2622
    %v2624 = vpop.f32.mrf.mxu0
    %2625 = vmatprep.mubr.bf16.mxu0 0
    %2626 = vmatmul.mubr.bf16.gmra.mxu0 %v2282
    %v2627 = vpop.f32.mrf.mxu0
    %v2628 = vadd.f32 0.0, %v2627
    %v2629 = vpop.f32.mrf.mxu0
    %v2630 = vpop.f32.mrf.mxu0
    %v2631 = vadd.f32 0.0, %v2630
    %v2632 = vpop.f32.mrf.mxu0
    %2633 = vmatprep.mubr.bf16.mxu0 0
    %2634 = vmatmul.mubr.bf16.gmra.mxu0 %v2290
    %v2635 = vpop.f32.mrf.mxu0
    %v2636 = vadd.f32 0.0, %v2635
    %v2637 = vpop.f32.mrf.mxu0
    %v2638 = vpop.f32.mrf.mxu0
    %v2639 = vadd.f32 0.0, %v2638
    %v2640 = vpop.f32.mrf.mxu0
    %2641 = vdwg.mxu0
    %v2642 = vadd.f32 %v1756, %v2404
    %v2643 = vadd.f32 %v1757, %v2407
    %v2644 = vadd.f32 %v1758, %v2412
    %v2645 = vadd.f32 %v1759, %v2415
    %v2646 = vadd.f32 %v1760, %v2420
    %v2647 = vadd.f32 %v1761, %v2423
    %v2648 = vadd.f32 %v1762, %v2428
    %v2649 = vadd.f32 %v1763, %v2431
    %v2650 = vadd.f32 %v1764, %v2436
    %v2651 = vadd.f32 %v1765, %v2439
    %v2652 = vadd.f32 %v1766, %v2444
    %v2653 = vadd.f32 %v1767, %v2447
    %v2654 = vadd.f32 %v1768, %v2452
    %v2655 = vadd.f32 %v1769, %v2455
    %v2656 = vadd.f32 %v1770, %v2460
    %v2657 = vadd.f32 %v1771, %v2463
    %v2658 = vadd.f32 %v1772, %v2468
    %v2659 = vadd.f32 %v1773, %v2471
    %v2660 = vadd.f32 %v1774, %v2476
    %v2661 = vadd.f32 %v1775, %v2479
    %v2662 = vadd.f32 %v1776, %v2484
    %v2663 = vadd.f32 %v1777, %v2487
    %v2664 = vadd.f32 %v1778, %v2492
    %v2665 = vadd.f32 %v1779, %v2495
    %v2666 = vadd.f32 %v1780, %v2500
    %v2667 = vadd.f32 %v1781, %v2503
    %v2668 = vadd.f32 %v1782, %v2508
    %v2669 = vadd.f32 %v1783, %v2511
    %v2670 = vadd.f32 %v1784, %v2516
    %v2671 = vadd.f32 %v1785, %v2519
    %v2672 = vadd.f32 %v1786, %v2524
    %v2673 = vadd.f32 %v1787, %v2527
    %v2674 = vadd.f32 %v1788, %v2532
    %v2675 = vadd.f32 %v1789, %v2535
    %v2676 = vadd.f32 %v1790, %v2540
    %v2677 = vadd.f32 %v1791, %v2543
    %v2678 = vadd.f32 %v1792, %v2548
    %v2679 = vadd.f32 %v1793, %v2551
    %v2680 = vadd.f32 %v1794, %v2556
    %v2681 = vadd.f32 %v1795, %v2559
    %v2682 = vadd.f32 %v1796, %v2564
    %v2683 = vadd.f32 %v1797, %v2567
    %v2684 = vadd.f32 %v1798, %v2572
    %v2685 = vadd.f32 %v1799, %v2575
    %v2686 = vadd.f32 %v1800, %v2580
    %v2687 = vadd.f32 %v1801, %v2583
    %v2688 = vadd.f32 %v1802, %v2588
    %v2689 = vadd.f32 %v1803, %v2591
    %v2690 = vadd.f32 %v1804, %v2596
    %v2691 = vadd.f32 %v1805, %v2599
    %v2692 = vadd.f32 %v1806, %v2604
    %v2693 = vadd.f32 %v1807, %v2607
    %v2694 = vadd.f32 %v1808, %v2612
    %v2695 = vadd.f32 %v1809, %v2615
    %v2696 = vadd.f32 %v1810, %v2620
    %v2697 = vadd.f32 %v1811, %v2623
    %v2698 = vadd.f32 %v1812, %v2628
    %v2699 = vadd.f32 %v1813, %v2631
    %v2700 = vadd.f32 %v1814, %v2636
    %v2701 = vadd.f32 %v1815, %v2639
    %2702 = vst.msk [vmem:[#allocation3] sm:$0xff] %vm1695, %v2642
    %2703 = vst.msk [vmem:[#allocation3 + $0x8] sm:$0xff] %vm1695, %v2643
    %2704 = vst.msk [vmem:[#allocation3 + $0x10] sm:$0xff] %vm1695, %v2644
    %2705 = vst.msk [vmem:[#allocation3 + $0x18] sm:$0xff] %vm1695, %v2645
    %2706 = vst.msk [vmem:[#allocation3 + $0x20] sm:$0xff] %vm1695, %v2646
    %2707 = vst.msk [vmem:[#allocation3 + $0x28] sm:$0xff] %vm1695, %v2647
    %2708 = vst.msk [vmem:[#allocation3 + $0x30] sm:$0xff] %vm1695, %v2648
    %2709 = vst.msk [vmem:[#allocation3 + $0x38] sm:$0xff] %vm1695, %v2649
    %2710 = vst.msk [vmem:[#allocation3 + $0x40] sm:$0xff] %vm1695, %v2650
    %2711 = vst.msk [vmem:[#allocation3 + $0x48] sm:$0xff] %vm1695, %v2651
    %2712 = vst.msk [vmem:[#allocation3 + $0x50] sm:$0xff] %vm1695, %v2652
    %2713 = vst.msk [vmem:[#allocation3 + $0x58] sm:$0xff] %vm1695, %v2653
    %2714 = vst.msk [vmem:[#allocation3 + $0x60] sm:$0xff] %vm1695, %v2654
    %2715 = vst.msk [vmem:[#allocation3 + $0x68] sm:$0xff] %vm1695, %v2655
    %2716 = vst.msk [vmem:[#allocation3 + $0x70] sm:$0xff] %vm1695, %v2656
    %2717 = vst.msk [vmem:[#allocation3 + $0x78] sm:$0xff] %vm1695, %v2657
    %2718 = vst.msk [vmem:[#allocation3 + $0x80] sm:$0xff] %vm1695, %v2658
    %2719 = vst.msk [vmem:[#allocation3 + $0x88] sm:$0xff] %vm1695, %v2659
    %2720 = vst.msk [vmem:[#allocation3 + $0x90] sm:$0xff] %vm1695, %v2660
    %2721 = vst.msk [vmem:[#allocation3 + $0x98] sm:$0xff] %vm1695, %v2661
    %2722 = vst.msk [vmem:[#allocation3 + $0xa0] sm:$0xff] %vm1695, %v2662
    %2723 = vst.msk [vmem:[#allocation3 + $0xa8] sm:$0xff] %vm1695, %v2663
    %2724 = vst.msk [vmem:[#allocation3 + $0xb0] sm:$0xff] %vm1695, %v2664
    %2725 = vst.msk [vmem:[#allocation3 + $0xb8] sm:$0xff] %vm1695, %v2665
    %2726 = vst.msk [vmem:[#allocation3 + $0xc0] sm:$0xff] %vm1695, %v2666
    %2727 = vst.msk [vmem:[#allocation3 + $0xc8] sm:$0xff] %vm1695, %v2667
    %2728 = vst.msk [vmem:[#allocation3 + $0xd0] sm:$0xff] %vm1695, %v2668
    %2729 = vst.msk [vmem:[#allocation3 + $0xd8] sm:$0xff] %vm1695, %v2669
    %2730 = vst.msk [vmem:[#allocation3 + $0xe0] sm:$0xff] %vm1695, %v2670
    %2731 = vst.msk [vmem:[#allocation3 + $0xe8] sm:$0xff] %vm1695, %v2671
    %2732 = vst.msk [vmem:[#allocation3 + $0xf0] sm:$0xff] %vm1695, %v2672
    %2733 = vst.msk [vmem:[#allocation3 + $0xf8] sm:$0xff] %vm1695, %v2673
    %2734 = vst.msk [vmem:[#allocation3 + $0x100] sm:$0xff] %vm1695, %v2674
    %2735 = vst.msk [vmem:[#allocation3 + $0x108] sm:$0xff] %vm1695, %v2675
    %2736 = vst.msk [vmem:[#allocation3 + $0x110] sm:$0xff] %vm1695, %v2676
    %2737 = vst.msk [vmem:[#allocation3 + $0x118] sm:$0xff] %vm1695, %v2677
    %2738 = vst.msk [vmem:[#allocation3 + $0x120] sm:$0xff] %vm1695, %v2678
    %2739 = vst.msk [vmem:[#allocation3 + $0x128] sm:$0xff] %vm1695, %v2679
    %2740 = vst.msk [vmem:[#allocation3 + $0x130] sm:$0xff] %vm1695, %v2680
    %2741 = vst.msk [vmem:[#allocation3 + $0x138] sm:$0xff] %vm1695, %v2681
    %2742 = vst.msk [vmem:[#allocation3 + $0x140] sm:$0xff] %vm1695, %v2682
    %2743 = vst.msk [vmem:[#allocation3 + $0x148] sm:$0xff] %vm1695, %v2683
    %2744 = vst.msk [vmem:[#allocation3 + $0x150] sm:$0xff] %vm1695, %v2684
    %2745 = vst.msk [vmem:[#allocation3 + $0x158] sm:$0xff] %vm1695, %v2685
    %2746 = vst.msk [vmem:[#allocation3 + $0x160] sm:$0xff] %vm1695, %v2686
    %2747 = vst.msk [vmem:[#allocation3 + $0x168] sm:$0xff] %vm1695, %v2687
    %2748 = vst.msk [vmem:[#allocation3 + $0x170] sm:$0xff] %vm1695, %v2688
    %2749 = vst.msk [vmem:[#allocation3 + $0x178] sm:$0xff] %vm1695, %v2689
    %2750 = vst.msk [vmem:[#allocation3 + $0x180] sm:$0xff] %vm1695, %v2690
    %2751 = vst.msk [vmem:[#allocation3 + $0x188] sm:$0xff] %vm1695, %v2691
    %2752 = vst.msk [vmem:[#allocation3 + $0x190] sm:$0xff] %vm1695, %v2692
    %2753 = vst.msk [vmem:[#allocation3 + $0x198] sm:$0xff] %vm1695, %v2693
    %2754 = vst.msk [vmem:[#allocation3 + $0x1a0] sm:$0xff] %vm1695, %v2694
    %2755 = vst.msk [vmem:[#allocation3 + $0x1a8] sm:$0xff] %vm1695, %v2695
    %2756 = vst.msk [vmem:[#allocation3 + $0x1b0] sm:$0xff] %vm1695, %v2696
    %2757 = vst.msk [vmem:[#allocation3 + $0x1b8] sm:$0xff] %vm1695, %v2697
    %2758 = vst.msk [vmem:[#allocation3 + $0x1c0] sm:$0xff] %vm1695, %v2698
    %2759 = vst.msk [vmem:[#allocation3 + $0x1c8] sm:$0xff] %vm1695, %v2699
    %2760 = vst.msk [vmem:[#allocation3 + $0x1d0] sm:$0xff] %vm1695, %v2700
    %2761 = vst.msk [vmem:[#allocation3 + $0x1d8] sm:$0xff] %vm1695, %v2701
    %v2762 = vld [vmem:[#allocation3] sm:$0xff]
    %v2763 = vld [vmem:[#allocation3 + $0x8] sm:$0xff]
    %v2764 = vld [vmem:[#allocation3 + $0x10] sm:$0xff]
    %v2765 = vld [vmem:[#allocation3 + $0x18] sm:$0xff]
    %v2766 = vld [vmem:[#allocation3 + $0x20] sm:$0xff]
    %v2767 = vld [vmem:[#allocation3 + $0x28] sm:$0xff]
    %v2768 = vld [vmem:[#allocation3 + $0x30] sm:$0xff]
    %v2769 = vld [vmem:[#allocation3 + $0x38] sm:$0xff]
    %v2770 = vld [vmem:[#allocation3 + $0x40] sm:$0xff]
    %v2771 = vld [vmem:[#allocation3 + $0x48] sm:$0xff]
    %v2772 = vld [vmem:[#allocation3 + $0x50] sm:$0xff]
    %v2773 = vld [vmem:[#allocation3 + $0x58] sm:$0xff]
    %v2774 = vld [vmem:[#allocation3 + $0x60] sm:$0xff]
    %v2775 = vld [vmem:[#allocation3 + $0x68] sm:$0xff]
    %v2776 = vld [vmem:[#allocation3 + $0x70] sm:$0xff]
    %v2777 = vld [vmem:[#allocation3 + $0x78] sm:$0xff]
    %v2778 = vld [vmem:[#allocation3 + $0x80] sm:$0xff]
    %v2779 = vld [vmem:[#allocation3 + $0x88] sm:$0xff]
    %v2780 = vld [vmem:[#allocation3 + $0x90] sm:$0xff]
    %v2781 = vld [vmem:[#allocation3 + $0x98] sm:$0xff]
    %v2782 = vld [vmem:[#allocation3 + $0xa0] sm:$0xff]
    %v2783 = vld [vmem:[#allocation3 + $0xa8] sm:$0xff]
    %v2784 = vld [vmem:[#allocation3 + $0xb0] sm:$0xff]
    %v2785 = vld [vmem:[#allocation3 + $0xb8] sm:$0xff]
    %v2786 = vld [vmem:[#allocation3 + $0xc0] sm:$0xff]
    %v2787 = vld [vmem:[#allocation3 + $0xc8] sm:$0xff]
    %v2788 = vld [vmem:[#allocation3 + $0xd0] sm:$0xff]
    %v2789 = vld [vmem:[#allocation3 + $0xd8] sm:$0xff]
    %v2790 = vld [vmem:[#allocation3 + $0xe0] sm:$0xff]
    %v2791 = vld [vmem:[#allocation3 + $0xe8] sm:$0xff]
    %v2792 = vld [vmem:[#allocation3 + $0xf0] sm:$0xff]
    %v2793 = vld [vmem:[#allocation3 + $0xf8] sm:$0xff]
    %v2794 = vld [vmem:[#allocation3 + $0x100] sm:$0xff]
    %v2795 = vld [vmem:[#allocation3 + $0x108] sm:$0xff]
    %v2796 = vld [vmem:[#allocation3 + $0x110] sm:$0xff]
    %v2797 = vld [vmem:[#allocation3 + $0x118] sm:$0xff]
    %v2798 = vld [vmem:[#allocation3 + $0x120] sm:$0xff]
    %v2799 = vld [vmem:[#allocation3 + $0x128] sm:$0xff]
    %v2800 = vld [vmem:[#allocation3 + $0x130] sm:$0xff]
    %v2801 = vld [vmem:[#allocation3 + $0x138] sm:$0xff]
    %v2802 = vld [vmem:[#allocation3 + $0x140] sm:$0xff]
    %v2803 = vld [vmem:[#allocation3 + $0x148] sm:$0xff]
    %v2804 = vld [vmem:[#allocation3 + $0x150] sm:$0xff]
    %v2805 = vld [vmem:[#allocation3 + $0x158] sm:$0xff]
    %v2806 = vld [vmem:[#allocation3 + $0x160] sm:$0xff]
    %v2807 = vld [vmem:[#allocation3 + $0x168] sm:$0xff]
    %v2808 = vld [vmem:[#allocation3 + $0x170] sm:$0xff]
    %v2809 = vld [vmem:[#allocation3 + $0x178] sm:$0xff]
    %v2810 = vld [vmem:[#allocation3 + $0x180] sm:$0xff]
    %v2811 = vld [vmem:[#allocation3 + $0x188] sm:$0xff]
    %v2812 = vld [vmem:[#allocation3 + $0x190] sm:$0xff]
    %v2813 = vld [vmem:[#allocation3 + $0x198] sm:$0xff]
    %v2814 = vld [vmem:[#allocation3 + $0x1a0] sm:$0xff]
    %v2815 = vld [vmem:[#allocation3 + $0x1a8] sm:$0xff]
    %v2816 = vld [vmem:[#allocation3 + $0x1b0] sm:$0xff]
    %v2817 = vld [vmem:[#allocation3 + $0x1b8] sm:$0xff]
    %v2818 = vld [vmem:[#allocation3 + $0x1c0] sm:$0xff]
    %v2819 = vld [vmem:[#allocation3 + $0x1c8] sm:$0xff]
    %v2820 = vld [vmem:[#allocation3 + $0x1d0] sm:$0xff]
    %v2821 = vld [vmem:[#allocation3 + $0x1d8] sm:$0xff]
    %v2822 = vld [vmem:[#allocation2 + $0x8] sm:$0xf]
    %v2823 = vld [vmem:[#allocation2 + $0xc] sm:$0xf]
    %v2824 = vld [vmem:[#allocation2 + $0x10] sm:$0xf]
    %v2825 = vld [vmem:[#allocation2 + $0x14] sm:$0xf]
    %v2826 = vld [vmem:[#allocation2 + $0x18] sm:$0xf]
    %v2827 = vld [vmem:[#allocation2 + $0x1c] sm:$0xf]
    %v2828 = vld [vmem:[#allocation2 + $0x20] sm:$0xf]
    %v2829 = vld [vmem:[#allocation2 + $0x24] sm:$0xf]
    %v2830 = vld [vmem:[#allocation2 + $0x28] sm:$0xf]
    %v2831 = vld [vmem:[#allocation2 + $0x2c] sm:$0xf]
    %v2832 = vld [vmem:[#allocation2 + $0x30] sm:$0xf]
    %v2833 = vld [vmem:[#allocation2 + $0x34] sm:$0xf]
    %v2834 = vld [vmem:[#allocation2 + $0x38] sm:$0xf]
    %v2835 = vld [vmem:[#allocation2 + $0x3c] sm:$0xf]
    %v2836 = vld [vmem:[#allocation2 + $0x40] sm:$0xf]
    %v2837 = vld [vmem:[#allocation2 + $0x44] sm:$0xf]
    %v2838 = vld [vmem:[#allocation2 + $0x48] sm:$0xf]
    %v2839 = vld [vmem:[#allocation2 + $0x4c] sm:$0xf]
    %v2840 = vld [vmem:[#allocation2 + $0x50] sm:$0xf]
    %v2841 = vld [vmem:[#allocation2 + $0x54] sm:$0xf]
    %v2842 = vld [vmem:[#allocation2 + $0x58] sm:$0xf]
    %v2843 = vld [vmem:[#allocation2 + $0x5c] sm:$0xf]
    %v2844 = vld [vmem:[#allocation2 + $0x60] sm:$0xf]
    %v2845 = vld [vmem:[#allocation2 + $0x64] sm:$0xf]
    %v2846 = vld [vmem:[#allocation2 + $0x68] sm:$0xf]
    %v2847 = vld [vmem:[#allocation2 + $0x6c] sm:$0xf]
    %v2848 = vld [vmem:[#allocation2 + $0x70] sm:$0xf]
    %v2849 = vld [vmem:[#allocation2 + $0x74] sm:$0xf]
    %v2850 = vld [vmem:[#allocation2 + $0x78] sm:$0xf]
    %v2851 = vld [vmem:[#allocation2 + $0x7c] sm:$0xf]
    %v2852 = vld [vmem:[#allocation2 + $0x80] sm:$0xf]
    %v2853 = vld [vmem:[#allocation2 + $0x84] sm:$0xf]
    %v2854 = vld [vmem:[#allocation2 + $0x88] sm:$0xf]
    %v2855 = vld [vmem:[#allocation2 + $0x8c] sm:$0xf]
    %v2856 = vld [vmem:[#allocation2 + $0x90] sm:$0xf]
    %v2857 = vld [vmem:[#allocation2 + $0x94] sm:$0xf]
    %v2858 = vld [vmem:[#allocation2 + $0x98] sm:$0xf]
    %v2859 = vld [vmem:[#allocation2 + $0x9c] sm:$0xf]
    %v2860 = vld [vmem:[#allocation2 + $0xa0] sm:$0xf]
    %v2861 = vld [vmem:[#allocation2 + $0xa4] sm:$0xf]
    %v2862 = vld [vmem:[#allocation2 + $0xa8] sm:$0xf]
    %v2863 = vld [vmem:[#allocation2 + $0xac] sm:$0xf]
    %v2864 = vld [vmem:[#allocation2 + $0xb0] sm:$0xf]
    %v2865 = vld [vmem:[#allocation2 + $0xb4] sm:$0xf]
    %v2866 = vld [vmem:[#allocation2 + $0xb8] sm:$0xf]
    %v2867 = vld [vmem:[#allocation2 + $0xbc] sm:$0xf]
    %v2868 = vld [vmem:[#allocation2 + $0xc0] sm:$0xf]
    %v2869 = vld [vmem:[#allocation2 + $0xc4] sm:$0xf]
    %v2870 = vld [vmem:[#allocation2 + $0xc8] sm:$0xf]
    %v2871 = vld [vmem:[#allocation2 + $0xcc] sm:$0xf]
    %v2872 = vld [vmem:[#allocation2 + $0xd0] sm:$0xf]
    %v2873 = vld [vmem:[#allocation2 + $0xd4] sm:$0xf]
    %v2874 = vld [vmem:[#allocation2 + $0xd8] sm:$0xf]
    %v2875 = vld [vmem:[#allocation2 + $0xdc] sm:$0xf]
    %v2876 = vld [vmem:[#allocation2 + $0xe0] sm:$0xf]
    %v2877 = vld [vmem:[#allocation2 + $0xe4] sm:$0xf]
    %v2878 = vld [vmem:[#allocation2 + $0xe8] sm:$0xf]
    %v2879 = vld [vmem:[#allocation2 + $0xec] sm:$0xf]
    %v2880 = vld [vmem:[#allocation2 + $0xf0] sm:$0xf]
    %v2881 = vld [vmem:[#allocation2 + $0xf4] sm:$0xf]
    %v2882 = vld [vmem:[%s3 + $0x80] sm:$0xf]
    %v2883 = vld [vmem:[%s3 + $0x84] sm:$0xf]
    %v2884 = vld [vmem:[%s3 + $0x88] sm:$0xf]
    %v2885 = vld [vmem:[%s3 + $0x8c] sm:$0xf]
    %v2886 = vld [vmem:[%s3 + $0x90] sm:$0xf]
    %v2887 = vld [vmem:[%s3 + $0x94] sm:$0xf]
    %v2888 = vld [vmem:[%s3 + $0x98] sm:$0xf]
    %v2889 = vld [vmem:[%s3 + $0x9c] sm:$0xf]
    %v2890 = vld [vmem:[%s3 + $0xa0] sm:$0xf]
    %v2891 = vld [vmem:[%s3 + $0xa4] sm:$0xf]
    %v2892 = vld [vmem:[%s3 + $0xa8] sm:$0xf]
    %v2893 = vld [vmem:[%s3 + $0xac] sm:$0xf]
    %v2894 = vld [vmem:[%s3 + $0xb0] sm:$0xf]
    %v2895 = vld [vmem:[%s3 + $0xb4] sm:$0xf]
    %v2896 = vld [vmem:[%s3 + $0xb8] sm:$0xf]
    %v2897 = vld [vmem:[%s3 + $0xbc] sm:$0xf]
    %v2958 = vunpack.c.l.b16 %v2822
    %v2959 = vunpack.c.l.b16 %v2823
    %v2960 = vunpack.c.l.b16 %v2824
    %v2961 = vunpack.c.l.b16 %v2825
    %v2962 = vunpack.c.l.b16 %v2826
    %v2963 = vunpack.c.l.b16 %v2827
    %v2964 = vunpack.c.l.b16 %v2828
    %v2965 = vunpack.c.l.b16 %v2829
    %v2966 = vunpack.c.l.b16 %v2830
    %v2967 = vunpack.c.l.b16 %v2831
    %v2968 = vunpack.c.l.b16 %v2832
    %v2969 = vunpack.c.l.b16 %v2833
    %v2970 = vunpack.c.l.b16 %v2834
    %v2971 = vunpack.c.l.b16 %v2835
    %v2972 = vunpack.c.l.b16 %v2836
    %v2973 = vunpack.c.l.b16 %v2837
    %v2974 = vunpack.c.l.b16 %v2838
    %v2975 = vunpack.c.l.b16 %v2839
    %v2976 = vunpack.c.l.b16 %v2840
    %v2977 = vunpack.c.l.b16 %v2841
    %v2978 = vunpack.c.l.b16 %v2842
    %v2979 = vunpack.c.l.b16 %v2843
    %v2980 = vunpack.c.l.b16 %v2844
    %v2981 = vunpack.c.l.b16 %v2845
    %v2982 = vunpack.c.l.b16 %v2846
    %v2983 = vunpack.c.l.b16 %v2847
    %v2984 = vunpack.c.l.b16 %v2848
    %v2985 = vunpack.c.l.b16 %v2849
    %v2986 = vunpack.c.l.b16 %v2850
    %v2987 = vunpack.c.l.b16 %v2851
    %v2988 = vunpack.c.l.b16 %v2852
    %v2989 = vunpack.c.l.b16 %v2853
    %v2990 = vunpack.c.l.b16 %v2854
    %v2991 = vunpack.c.l.b16 %v2855
    %v2992 = vunpack.c.l.b16 %v2856
    %v2993 = vunpack.c.l.b16 %v2857
    %v2994 = vunpack.c.l.b16 %v2858
    %v2995 = vunpack.c.l.b16 %v2859
    %v2996 = vunpack.c.l.b16 %v2860
    %v2997 = vunpack.c.l.b16 %v2861
    %v2998 = vunpack.c.l.b16 %v2862
    %v2999 = vunpack.c.l.b16 %v2863
    %v3000 = vunpack.c.l.b16 %v2864
    %v3001 = vunpack.c.l.b16 %v2865
    %v3002 = vunpack.c.l.b16 %v2866
    %v3003 = vunpack.c.l.b16 %v2867
    %v3004 = vunpack.c.l.b16 %v2868
    %v3005 = vunpack.c.l.b16 %v2869
    %v3006 = vunpack.c.l.b16 %v2870
    %v3007 = vunpack.c.l.b16 %v2871
    %v3008 = vunpack.c.l.b16 %v2872
    %v3009 = vunpack.c.l.b16 %v2873
    %v3010 = vunpack.c.l.b16 %v2874
    %v3011 = vunpack.c.l.b16 %v2875
    %v3012 = vunpack.c.l.b16 %v2876
    %v3013 = vunpack.c.l.b16 %v2877
    %v3014 = vunpack.c.l.b16 %v2878
    %v3015 = vunpack.c.l.b16 %v2879
    %v3016 = vunpack.c.l.b16 %v2880
    %v3017 = vunpack.c.l.b16 %v2881
    %v3018 = vpack.c.b16 %v2959, %v2958
    %v3019 = vpack.c.b16 %v2961, %v2960
    %v3020 = vpack.c.b16 %v2963, %v2962
    %v3021 = vpack.c.b16 %v2965, %v2964
    %v3022 = vpack.c.b16 %v2967, %v2966
    %v3023 = vpack.c.b16 %v2969, %v2968
    %v3024 = vpack.c.b16 %v2971, %v2970
    %v3025 = vpack.c.b16 %v2973, %v2972
    %v3026 = vpack.c.b16 %v2975, %v2974
    %v3027 = vpack.c.b16 %v2977, %v2976
    %v3028 = vpack.c.b16 %v2979, %v2978
    %v3029 = vpack.c.b16 %v2981, %v2980
    %v3030 = vpack.c.b16 %v2983, %v2982
    %v3031 = vpack.c.b16 %v2985, %v2984
    %v3032 = vpack.c.b16 %v2987, %v2986
    %v3033 = vpack.c.b16 %v2989, %v2988
    %v3034 = vpack.c.b16 %v2991, %v2990
    %v3035 = vpack.c.b16 %v2993, %v2992
    %v3036 = vpack.c.b16 %v2995, %v2994
    %v3037 = vpack.c.b16 %v2997, %v2996
    %v3038 = vpack.c.b16 %v2999, %v2998
    %v3039 = vpack.c.b16 %v3001, %v3000
    %v3040 = vpack.c.b16 %v3003, %v3002
    %v3041 = vpack.c.b16 %v3005, %v3004
    %v3042 = vpack.c.b16 %v3007, %v3006
    %v3043 = vpack.c.b16 %v3009, %v3008
    %v3044 = vpack.c.b16 %v3011, %v3010
    %v3045 = vpack.c.b16 %v3013, %v3012
    %v3046 = vpack.c.b16 %v3015, %v3014
    %v3047 = vpack.c.b16 %v3017, %v3016
    %v3094 = vunpack.c.l.b16 %v2882
    %v3095 = vunpack.c.l.b16 %v2883
    %v3096 = vunpack.c.l.b16 %v2884
    %v3097 = vunpack.c.l.b16 %v2885
    %v3098 = vunpack.c.l.b16 %v2886
    %v3099 = vunpack.c.l.b16 %v2887
    %v3100 = vunpack.c.l.b16 %v2888
    %v3101 = vunpack.c.l.b16 %v2889
    %v3102 = vunpack.c.l.b16 %v2890
    %v3103 = vunpack.c.l.b16 %v2891
    %v3104 = vunpack.c.l.b16 %v2892
    %v3105 = vunpack.c.l.b16 %v2893
    %v3106 = vunpack.c.l.b16 %v2894
    %v3107 = vunpack.c.l.b16 %v2895
    %v3108 = vunpack.c.l.b16 %v2896
    %v3109 = vunpack.c.l.b16 %v2897
    %v3110 = vpack.c.b16 %v3095, %v3094
    %v3111 = vpack.c.b16 %v3097, %v3096
    %v3112 = vpack.c.b16 %v3099, %v3098
    %v3113 = vpack.c.b16 %v3101, %v3100
    %v3114 = vpack.c.b16 %v3103, %v3102
    %v3115 = vpack.c.b16 %v3105, %v3104
    %v3116 = vpack.c.b16 %v3107, %v3106
    %v3117 = vpack.c.b16 %v3109, %v3108
    %3126 = vmatprep.subr.bf16.mxu0 0
    %3127 = vmatpush1.bf16.msra.mxu0 %v3117
    %3128 = vmatprep.subr.bf16.mxu0 0
    %3129 = vmatpush1.bf16.msra.mxu0 %v3116
    %3130 = vmatprep.subr.bf16.mxu0 0
    %3131 = vmatpush1.bf16.msra.mxu0 %v3115
    %3132 = vmatprep.subr.bf16.mxu0 0
    %3133 = vmatpush1.bf16.msra.mxu0 %v3114
    %3134 = vmatprep.subr.bf16.mxu0 0
    %3135 = vmatpush1.bf16.msra.mxu0 %v3113
    %3136 = vmatprep.subr.bf16.mxu0 0
    %3137 = vmatpush1.bf16.msra.mxu0 %v3112
    %3138 = vmatprep.subr.bf16.mxu0 0
    %3139 = vmatpush1.bf16.msra.mxu0 %v3111
    %3140 = vmatprep.subr.bf16.mxu0 0
    %3141 = vmatpush1.bf16.msra.mxu0 %v3110
    %3142 = vmatprep.subr.bf16.mxu0 0
    %3143 = vmatpush2.bf16.msra.mxu0 0
    %3144 = vmatprep.subr.bf16.mxu0 0
    %3145 = vmatpush2.bf16.msra.mxu0 0
    %3146 = vmatprep.subr.bf16.mxu0 0
    %3147 = vmatpush2.bf16.msra.mxu0 0
    %3148 = vmatprep.subr.bf16.mxu0 0
    %3149 = vmatpush2.bf16.msra.mxu0 0
    %3150 = vmatprep.subr.bf16.mxu0 0
    %3151 = vmatpush2.bf16.msra.mxu0 0
    %3152 = vmatprep.subr.bf16.mxu0 0
    %3153 = vmatpush2.bf16.msra.mxu0 0
    %3154 = vmatprep.subr.bf16.mxu0 0
    %3155 = vmatpush2.bf16.msra.mxu0 0
    %3156 = vmatprep.subr.bf16.mxu0 0
    %3157 = vmatpush2.bf16.msra.mxu0 0
    %3158 = vmatprep.mubr.bf16.mxu0 0
    %3159 = vmatmul.mubr.bf16.gmra.mxu0 %v3018
    %v3160 = vpop.f32.mrf.mxu0
    %v3161 = vadd.f32 0.0, %v3160
    %v3162 = vpop.f32.mrf.mxu0
    %v3163 = vpop.f32.mrf.mxu0
    %v3164 = vadd.f32 0.0, %v3163
    %v3165 = vpop.f32.mrf.mxu0
    %3166 = vmatprep.mubr.bf16.mxu0 0
    %3167 = vmatmul.mubr.bf16.gmra.mxu0 %v3019
    %v3168 = vpop.f32.mrf.mxu0
    %v3169 = vadd.f32 0.0, %v3168
    %v3170 = vpop.f32.mrf.mxu0
    %v3171 = vpop.f32.mrf.mxu0
    %v3172 = vadd.f32 0.0, %v3171
    %v3173 = vpop.f32.mrf.mxu0
    %3174 = vmatprep.mubr.bf16.mxu0 0
    %3175 = vmatmul.mubr.bf16.gmra.mxu0 %v3020
    %v3176 = vpop.f32.mrf.mxu0
    %v3177 = vadd.f32 0.0, %v3176
    %v3178 = vpop.f32.mrf.mxu0
    %v3179 = vpop.f32.mrf.mxu0
    %v3180 = vadd.f32 0.0, %v3179
    %v3181 = vpop.f32.mrf.mxu0
    %3182 = vmatprep.mubr.bf16.mxu0 0
    %3183 = vmatmul.mubr.bf16.gmra.mxu0 %v3021
    %v3184 = vpop.f32.mrf.mxu0
    %v3185 = vadd.f32 0.0, %v3184
    %v3186 = vpop.f32.mrf.mxu0
    %v3187 = vpop.f32.mrf.mxu0
    %v3188 = vadd.f32 0.0, %v3187
    %v3189 = vpop.f32.mrf.mxu0
    %3190 = vmatprep.mubr.bf16.mxu0 0
    %3191 = vmatmul.mubr.bf16.gmra.mxu0 %v3022
    %v3192 = vpop.f32.mrf.mxu0
    %v3193 = vadd.f32 0.0, %v3192
    %v3194 = vpop.f32.mrf.mxu0
    %v3195 = vpop.f32.mrf.mxu0
    %v3196 = vadd.f32 0.0, %v3195
    %v3197 = vpop.f32.mrf.mxu0
    %3198 = vmatprep.mubr.bf16.mxu0 0
    %3199 = vmatmul.mubr.bf16.gmra.mxu0 %v3023
    %v3200 = vpop.f32.mrf.mxu0
    %v3201 = vadd.f32 0.0, %v3200
    %v3202 = vpop.f32.mrf.mxu0
    %v3203 = vpop.f32.mrf.mxu0
    %v3204 = vadd.f32 0.0, %v3203
    %v3205 = vpop.f32.mrf.mxu0
    %3206 = vmatprep.mubr.bf16.mxu0 0
    %3207 = vmatmul.mubr.bf16.gmra.mxu0 %v3024
    %v3208 = vpop.f32.mrf.mxu0
    %v3209 = vadd.f32 0.0, %v3208
    %v3210 = vpop.f32.mrf.mxu0
    %v3211 = vpop.f32.mrf.mxu0
    %v3212 = vadd.f32 0.0, %v3211
    %v3213 = vpop.f32.mrf.mxu0
    %3214 = vmatprep.mubr.bf16.mxu0 0
    %3215 = vmatmul.mubr.bf16.gmra.mxu0 %v3025
    %v3216 = vpop.f32.mrf.mxu0
    %v3217 = vadd.f32 0.0, %v3216
    %v3218 = vpop.f32.mrf.mxu0
    %v3219 = vpop.f32.mrf.mxu0
    %v3220 = vadd.f32 0.0, %v3219
    %v3221 = vpop.f32.mrf.mxu0
    %3222 = vmatprep.mubr.bf16.mxu0 0
    %3223 = vmatmul.mubr.bf16.gmra.mxu0 %v3026
    %v3224 = vpop.f32.mrf.mxu0
    %v3225 = vadd.f32 0.0, %v3224
    %v3226 = vpop.f32.mrf.mxu0
    %v3227 = vpop.f32.mrf.mxu0
    %v3228 = vadd.f32 0.0, %v3227
    %v3229 = vpop.f32.mrf.mxu0
    %3230 = vmatprep.mubr.bf16.mxu0 0
    %3231 = vmatmul.mubr.bf16.gmra.mxu0 %v3027
    %v3232 = vpop.f32.mrf.mxu0
    %v3233 = vadd.f32 0.0, %v3232
    %v3234 = vpop.f32.mrf.mxu0
    %v3235 = vpop.f32.mrf.mxu0
    %v3236 = vadd.f32 0.0, %v3235
    %v3237 = vpop.f32.mrf.mxu0
    %3238 = vmatprep.mubr.bf16.mxu0 0
    %3239 = vmatmul.mubr.bf16.gmra.mxu0 %v3028
    %v3240 = vpop.f32.mrf.mxu0
    %v3241 = vadd.f32 0.0, %v3240
    %v3242 = vpop.f32.mrf.mxu0
    %v3243 = vpop.f32.mrf.mxu0
    %v3244 = vadd.f32 0.0, %v3243
    %v3245 = vpop.f32.mrf.mxu0
    %3246 = vmatprep.mubr.bf16.mxu0 0
    %3247 = vmatmul.mubr.bf16.gmra.mxu0 %v3029
    %v3248 = vpop.f32.mrf.mxu0
    %v3249 = vadd.f32 0.0, %v3248
    %v3250 = vpop.f32.mrf.mxu0
    %v3251 = vpop.f32.mrf.mxu0
    %v3252 = vadd.f32 0.0, %v3251
    %v3253 = vpop.f32.mrf.mxu0
    %3254 = vmatprep.mubr.bf16.mxu0 0
    %3255 = vmatmul.mubr.bf16.gmra.mxu0 %v3030
    %v3256 = vpop.f32.mrf.mxu0
    %v3257 = vadd.f32 0.0, %v3256
    %v3258 = vpop.f32.mrf.mxu0
    %v3259 = vpop.f32.mrf.mxu0
    %v3260 = vadd.f32 0.0, %v3259
    %v3261 = vpop.f32.mrf.mxu0
    %3262 = vmatprep.mubr.bf16.mxu0 0
    %3263 = vmatmul.mubr.bf16.gmra.mxu0 %v3031
    %v3264 = vpop.f32.mrf.mxu0
    %v3265 = vadd.f32 0.0, %v3264
    %v3266 = vpop.f32.mrf.mxu0
    %v3267 = vpop.f32.mrf.mxu0
    %v3268 = vadd.f32 0.0, %v3267
    %v3269 = vpop.f32.mrf.mxu0
    %3270 = vmatprep.mubr.bf16.mxu0 0
    %3271 = vmatmul.mubr.bf16.gmra.mxu0 %v3032
    %v3272 = vpop.f32.mrf.mxu0
    %v3273 = vadd.f32 0.0, %v3272
    %v3274 = vpop.f32.mrf.mxu0
    %v3275 = vpop.f32.mrf.mxu0
    %v3276 = vadd.f32 0.0, %v3275
    %v3277 = vpop.f32.mrf.mxu0
    %3278 = vmatprep.mubr.bf16.mxu0 0
    %3279 = vmatmul.mubr.bf16.gmra.mxu0 %v3033
    %v3280 = vpop.f32.mrf.mxu0
    %v3281 = vadd.f32 0.0, %v3280
    %v3282 = vpop.f32.mrf.mxu0
    %v3283 = vpop.f32.mrf.mxu0
    %v3284 = vadd.f32 0.0, %v3283
    %v3285 = vpop.f32.mrf.mxu0
    %3286 = vmatprep.mubr.bf16.mxu0 0
    %3287 = vmatmul.mubr.bf16.gmra.mxu0 %v3034
    %v3288 = vpop.f32.mrf.mxu0
    %v3289 = vadd.f32 0.0, %v3288
    %v3290 = vpop.f32.mrf.mxu0
    %v3291 = vpop.f32.mrf.mxu0
    %v3292 = vadd.f32 0.0, %v3291
    %v3293 = vpop.f32.mrf.mxu0
    %3294 = vmatprep.mubr.bf16.mxu0 0
    %3295 = vmatmul.mubr.bf16.gmra.mxu0 %v3035
    %v3296 = vpop.f32.mrf.mxu0
    %v3297 = vadd.f32 0.0, %v3296
    %v3298 = vpop.f32.mrf.mxu0
    %v3299 = vpop.f32.mrf.mxu0
    %v3300 = vadd.f32 0.0, %v3299
    %v3301 = vpop.f32.mrf.mxu0
    %3302 = vmatprep.mubr.bf16.mxu0 0
    %3303 = vmatmul.mubr.bf16.gmra.mxu0 %v3036
    %v3304 = vpop.f32.mrf.mxu0
    %v3305 = vadd.f32 0.0, %v3304
    %v3306 = vpop.f32.mrf.mxu0
    %v3307 = vpop.f32.mrf.mxu0
    %v3308 = vadd.f32 0.0, %v3307
    %v3309 = vpop.f32.mrf.mxu0
    %3310 = vmatprep.mubr.bf16.mxu0 0
    %3311 = vmatmul.mubr.bf16.gmra.mxu0 %v3037
    %v3312 = vpop.f32.mrf.mxu0
    %v3313 = vadd.f32 0.0, %v3312
    %v3314 = vpop.f32.mrf.mxu0
    %v3315 = vpop.f32.mrf.mxu0
    %v3316 = vadd.f32 0.0, %v3315
    %v3317 = vpop.f32.mrf.mxu0
    %3318 = vmatprep.mubr.bf16.mxu0 0
    %3319 = vmatmul.mubr.bf16.gmra.mxu0 %v3038
    %v3320 = vpop.f32.mrf.mxu0
    %v3321 = vadd.f32 0.0, %v3320
    %v3322 = vpop.f32.mrf.mxu0
    %v3323 = vpop.f32.mrf.mxu0
    %v3324 = vadd.f32 0.0, %v3323
    %v3325 = vpop.f32.mrf.mxu0
    %3326 = vmatprep.mubr.bf16.mxu0 0
    %3327 = vmatmul.mubr.bf16.gmra.mxu0 %v3039
    %v3328 = vpop.f32.mrf.mxu0
    %v3329 = vadd.f32 0.0, %v3328
    %v3330 = vpop.f32.mrf.mxu0
    %v3331 = vpop.f32.mrf.mxu0
    %v3332 = vadd.f32 0.0, %v3331
    %v3333 = vpop.f32.mrf.mxu0
    %3334 = vmatprep.mubr.bf16.mxu0 0
    %3335 = vmatmul.mubr.bf16.gmra.mxu0 %v3040
    %v3336 = vpop.f32.mrf.mxu0
    %v3337 = vadd.f32 0.0, %v3336
    %v3338 = vpop.f32.mrf.mxu0
    %v3339 = vpop.f32.mrf.mxu0
    %v3340 = vadd.f32 0.0, %v3339
    %v3341 = vpop.f32.mrf.mxu0
    %3342 = vmatprep.mubr.bf16.mxu0 0
    %3343 = vmatmul.mubr.bf16.gmra.mxu0 %v3041
    %v3344 = vpop.f32.mrf.mxu0
    %v3345 = vadd.f32 0.0, %v3344
    %v3346 = vpop.f32.mrf.mxu0
    %v3347 = vpop.f32.mrf.mxu0
    %v3348 = vadd.f32 0.0, %v3347
    %v3349 = vpop.f32.mrf.mxu0
    %3350 = vmatprep.mubr.bf16.mxu0 0
    %3351 = vmatmul.mubr.bf16.gmra.mxu0 %v3042
    %v3352 = vpop.f32.mrf.mxu0
    %v3353 = vadd.f32 0.0, %v3352
    %v3354 = vpop.f32.mrf.mxu0
    %v3355 = vpop.f32.mrf.mxu0
    %v3356 = vadd.f32 0.0, %v3355
    %v3357 = vpop.f32.mrf.mxu0
    %3358 = vmatprep.mubr.bf16.mxu0 0
    %3359 = vmatmul.mubr.bf16.gmra.mxu0 %v3043
    %v3360 = vpop.f32.mrf.mxu0
    %v3361 = vadd.f32 0.0, %v3360
    %v3362 = vpop.f32.mrf.mxu0
    %v3363 = vpop.f32.mrf.mxu0
    %v3364 = vadd.f32 0.0, %v3363
    %v3365 = vpop.f32.mrf.mxu0
    %3366 = vmatprep.mubr.bf16.mxu0 0
    %3367 = vmatmul.mubr.bf16.gmra.mxu0 %v3044
    %v3368 = vpop.f32.mrf.mxu0
    %v3369 = vadd.f32 0.0, %v3368
    %v3370 = vpop.f32.mrf.mxu0
    %v3371 = vpop.f32.mrf.mxu0
    %v3372 = vadd.f32 0.0, %v3371
    %v3373 = vpop.f32.mrf.mxu0
    %3374 = vmatprep.mubr.bf16.mxu0 0
    %3375 = vmatmul.mubr.bf16.gmra.mxu0 %v3045
    %v3376 = vpop.f32.mrf.mxu0
    %v3377 = vadd.f32 0.0, %v3376
    %v3378 = vpop.f32.mrf.mxu0
    %v3379 = vpop.f32.mrf.mxu0
    %v3380 = vadd.f32 0.0, %v3379
    %v3381 = vpop.f32.mrf.mxu0
    %3382 = vmatprep.mubr.bf16.mxu0 0
    %3383 = vmatmul.mubr.bf16.gmra.mxu0 %v3046
    %v3384 = vpop.f32.mrf.mxu0
    %v3385 = vadd.f32 0.0, %v3384
    %v3386 = vpop.f32.mrf.mxu0
    %v3387 = vpop.f32.mrf.mxu0
    %v3388 = vadd.f32 0.0, %v3387
    %v3389 = vpop.f32.mrf.mxu0
    %3390 = vmatprep.mubr.bf16.mxu0 0
    %3391 = vmatmul.mubr.bf16.gmra.mxu0 %v3047
    %v3392 = vpop.f32.mrf.mxu0
    %v3393 = vadd.f32 0.0, %v3392
    %v3394 = vpop.f32.mrf.mxu0
    %v3395 = vpop.f32.mrf.mxu0
    %v3396 = vadd.f32 0.0, %v3395
    %v3397 = vpop.f32.mrf.mxu0
    %3398 = vdwg.mxu0
    %v3399 = vadd.f32 %v2762, %v3161
    %v3400 = vadd.f32 %v2763, %v3164
    %v3401 = vadd.f32 %v2764, %v3169
    %v3402 = vadd.f32 %v2765, %v3172
    %v3403 = vadd.f32 %v2766, %v3177
    %v3404 = vadd.f32 %v2767, %v3180
    %v3405 = vadd.f32 %v2768, %v3185
    %v3406 = vadd.f32 %v2769, %v3188
    %v3407 = vadd.f32 %v2770, %v3193
    %v3408 = vadd.f32 %v2771, %v3196
    %v3409 = vadd.f32 %v2772, %v3201
    %v3410 = vadd.f32 %v2773, %v3204
    %v3411 = vadd.f32 %v2774, %v3209
    %v3412 = vadd.f32 %v2775, %v3212
    %v3413 = vadd.f32 %v2776, %v3217
    %v3414 = vadd.f32 %v2777, %v3220
    %v3415 = vadd.f32 %v2778, %v3225
    %v3416 = vadd.f32 %v2779, %v3228
    %v3417 = vadd.f32 %v2780, %v3233
    %v3418 = vadd.f32 %v2781, %v3236
    %v3419 = vadd.f32 %v2782, %v3241
    %v3420 = vadd.f32 %v2783, %v3244
    %v3421 = vadd.f32 %v2784, %v3249
    %v3422 = vadd.f32 %v2785, %v3252
    %v3423 = vadd.f32 %v2786, %v3257
    %v3424 = vadd.f32 %v2787, %v3260
    %v3425 = vadd.f32 %v2788, %v3265
    %v3426 = vadd.f32 %v2789, %v3268
    %v3427 = vadd.f32 %v2790, %v3273
    %v3428 = vadd.f32 %v2791, %v3276
    %v3429 = vadd.f32 %v2792, %v3281
    %v3430 = vadd.f32 %v2793, %v3284
    %v3431 = vadd.f32 %v2794, %v3289
    %v3432 = vadd.f32 %v2795, %v3292
    %v3433 = vadd.f32 %v2796, %v3297
    %v3434 = vadd.f32 %v2797, %v3300
    %v3435 = vadd.f32 %v2798, %v3305
    %v3436 = vadd.f32 %v2799, %v3308
    %v3437 = vadd.f32 %v2800, %v3313
    %v3438 = vadd.f32 %v2801, %v3316
    %v3439 = vadd.f32 %v2802, %v3321
    %v3440 = vadd.f32 %v2803, %v3324
    %v3441 = vadd.f32 %v2804, %v3329
    %v3442 = vadd.f32 %v2805, %v3332
    %v3443 = vadd.f32 %v2806, %v3337
    %v3444 = vadd.f32 %v2807, %v3340
    %v3445 = vadd.f32 %v2808, %v3345
    %v3446 = vadd.f32 %v2809, %v3348
    %v3447 = vadd.f32 %v2810, %v3353
    %v3448 = vadd.f32 %v2811, %v3356
    %v3449 = vadd.f32 %v2812, %v3361
    %v3450 = vadd.f32 %v2813, %v3364
    %v3451 = vadd.f32 %v2814, %v3369
    %v3452 = vadd.f32 %v2815, %v3372
    %v3453 = vadd.f32 %v2816, %v3377
    %v3454 = vadd.f32 %v2817, %v3380
    %v3455 = vadd.f32 %v2818, %v3385
    %v3456 = vadd.f32 %v2819, %v3388
    %v3457 = vadd.f32 %v2820, %v3393
    %v3458 = vadd.f32 %v2821, %v3396
    %3459 = vst.msk [vmem:[#allocation3] sm:$0xff] %vm1695, %v3399
    %3460 = vst.msk [vmem:[#allocation3 + $0x8] sm:$0xff] %vm1695, %v3400
    %3461 = vst.msk [vmem:[#allocation3 + $0x10] sm:$0xff] %vm1695, %v3401
    %3462 = vst.msk [vmem:[#allocation3 + $0x18] sm:$0xff] %vm1695, %v3402
    %3463 = vst.msk [vmem:[#allocation3 + $0x20] sm:$0xff] %vm1695, %v3403
    %3464 = vst.msk [vmem:[#allocation3 + $0x28] sm:$0xff] %vm1695, %v3404
    %3465 = vst.msk [vmem:[#allocation3 + $0x30] sm:$0xff] %vm1695, %v3405
    %3466 = vst.msk [vmem:[#allocation3 + $0x38] sm:$0xff] %vm1695, %v3406
    %3467 = vst.msk [vmem:[#allocation3 + $0x40] sm:$0xff] %vm1695, %v3407
    %3468 = vst.msk [vmem:[#allocation3 + $0x48] sm:$0xff] %vm1695, %v3408
    %3469 = vst.msk [vmem:[#allocation3 + $0x50] sm:$0xff] %vm1695, %v3409
    %3470 = vst.msk [vmem:[#allocation3 + $0x58] sm:$0xff] %vm1695, %v3410
    %3471 = vst.msk [vmem:[#allocation3 + $0x60] sm:$0xff] %vm1695, %v3411
    %3472 = vst.msk [vmem:[#allocation3 + $0x68] sm:$0xff] %vm1695, %v3412
    %3473 = vst.msk [vmem:[#allocation3 + $0x70] sm:$0xff] %vm1695, %v3413
    %3474 = vst.msk [vmem:[#allocation3 + $0x78] sm:$0xff] %vm1695, %v3414
    %3475 = vst.msk [vmem:[#allocation3 + $0x80] sm:$0xff] %vm1695, %v3415
    %3476 = vst.msk [vmem:[#allocation3 + $0x88] sm:$0xff] %vm1695, %v3416
    %3477 = vst.msk [vmem:[#allocation3 + $0x90] sm:$0xff] %vm1695, %v3417
    %3478 = vst.msk [vmem:[#allocation3 + $0x98] sm:$0xff] %vm1695, %v3418
    %3479 = vst.msk [vmem:[#allocation3 + $0xa0] sm:$0xff] %vm1695, %v3419
    %3480 = vst.msk [vmem:[#allocation3 + $0xa8] sm:$0xff] %vm1695, %v3420
    %3481 = vst.msk [vmem:[#allocation3 + $0xb0] sm:$0xff] %vm1695, %v3421
    %3482 = vst.msk [vmem:[#allocation3 + $0xb8] sm:$0xff] %vm1695, %v3422
    %3483 = vst.msk [vmem:[#allocation3 + $0xc0] sm:$0xff] %vm1695, %v3423
    %3484 = vst.msk [vmem:[#allocation3 + $0xc8] sm:$0xff] %vm1695, %v3424
    %3485 = vst.msk [vmem:[#allocation3 + $0xd0] sm:$0xff] %vm1695, %v3425
    %3486 = vst.msk [vmem:[#allocation3 + $0xd8] sm:$0xff] %vm1695, %v3426
    %3487 = vst.msk [vmem:[#allocation3 + $0xe0] sm:$0xff] %vm1695, %v3427
    %3488 = vst.msk [vmem:[#allocation3 + $0xe8] sm:$0xff] %vm1695, %v3428
    %3489 = vst.msk [vmem:[#allocation3 + $0xf0] sm:$0xff] %vm1695, %v3429
    %3490 = vst.msk [vmem:[#allocation3 + $0xf8] sm:$0xff] %vm1695, %v3430
    %3491 = vst.msk [vmem:[#allocation3 + $0x100] sm:$0xff] %vm1695, %v3431
    %3492 = vst.msk [vmem:[#allocation3 + $0x108] sm:$0xff] %vm1695, %v3432
    %3493 = vst.msk [vmem:[#allocation3 + $0x110] sm:$0xff] %vm1695, %v3433
    %3494 = vst.msk [vmem:[#allocation3 + $0x118] sm:$0xff] %vm1695, %v3434
    %3495 = vst.msk [vmem:[#allocation3 + $0x120] sm:$0xff] %vm1695, %v3435
    %3496 = vst.msk [vmem:[#allocation3 + $0x128] sm:$0xff] %vm1695, %v3436
    %3497 = vst.msk [vmem:[#allocation3 + $0x130] sm:$0xff] %vm1695, %v3437
    %3498 = vst.msk [vmem:[#allocation3 + $0x138] sm:$0xff] %vm1695, %v3438
    %3499 = vst.msk [vmem:[#allocation3 + $0x140] sm:$0xff] %vm1695, %v3439
    %3500 = vst.msk [vmem:[#allocation3 + $0x148] sm:$0xff] %vm1695, %v3440
    %3501 = vst.msk [vmem:[#allocation3 + $0x150] sm:$0xff] %vm1695, %v3441
    %3502 = vst.msk [vmem:[#allocation3 + $0x158] sm:$0xff] %vm1695, %v3442
    %3503 = vst.msk [vmem:[#allocation3 + $0x160] sm:$0xff] %vm1695, %v3443
    %3504 = vst.msk [vmem:[#allocation3 + $0x168] sm:$0xff] %vm1695, %v3444
    %3505 = vst.msk [vmem:[#allocation3 + $0x170] sm:$0xff] %vm1695, %v3445
    %3506 = vst.msk [vmem:[#allocation3 + $0x178] sm:$0xff] %vm1695, %v3446
    %3507 = vst.msk [vmem:[#allocation3 + $0x180] sm:$0xff] %vm1695, %v3447
    %3508 = vst.msk [vmem:[#allocation3 + $0x188] sm:$0xff] %vm1695, %v3448
    %3509 = vst.msk [vmem:[#allocation3 + $0x190] sm:$0xff] %vm1695, %v3449
    %3510 = vst.msk [vmem:[#allocation3 + $0x198] sm:$0xff] %vm1695, %v3450
    %3511 = vst.msk [vmem:[#allocation3 + $0x1a0] sm:$0xff] %vm1695, %v3451
    %3512 = vst.msk [vmem:[#allocation3 + $0x1a8] sm:$0xff] %vm1695, %v3452
    %3513 = vst.msk [vmem:[#allocation3 + $0x1b0] sm:$0xff] %vm1695, %v3453
    %3514 = vst.msk [vmem:[#allocation3 + $0x1b8] sm:$0xff] %vm1695, %v3454
    %3515 = vst.msk [vmem:[#allocation3 + $0x1c0] sm:$0xff] %vm1695, %v3455
    %3516 = vst.msk [vmem:[#allocation3 + $0x1c8] sm:$0xff] %vm1695, %v3456
    %3517 = vst.msk [vmem:[#allocation3 + $0x1d0] sm:$0xff] %vm1695, %v3457
    %3518 = vst.msk [vmem:[#allocation3 + $0x1d8] sm:$0xff] %vm1695, %v3458
    %v3519 = vld [vmem:[#allocation3] sm:$0xff]
    %v3520 = vld [vmem:[#allocation3 + $0x8] sm:$0xff]
    %v3521 = vld [vmem:[#allocation3 + $0x10] sm:$0xff]
    %v3522 = vld [vmem:[#allocation3 + $0x18] sm:$0xff]
    %v3523 = vld [vmem:[#allocation3 + $0x20] sm:$0xff]
    %v3524 = vld [vmem:[#allocation3 + $0x28] sm:$0xff]
    %v3525 = vld [vmem:[#allocation3 + $0x30] sm:$0xff]
    %v3526 = vld [vmem:[#allocation3 + $0x38] sm:$0xff]
    %v3527 = vld [vmem:[#allocation3 + $0x40] sm:$0xff]
    %v3528 = vld [vmem:[#allocation3 + $0x48] sm:$0xff]
    %v3529 = vld [vmem:[#allocation3 + $0x50] sm:$0xff]
    %v3530 = vld [vmem:[#allocation3 + $0x58] sm:$0xff]
    %v3531 = vld [vmem:[#allocation3 + $0x60] sm:$0xff]
    %v3532 = vld [vmem:[#allocation3 + $0x68] sm:$0xff]
    %v3533 = vld [vmem:[#allocation3 + $0x70] sm:$0xff]
    %v3534 = vld [vmem:[#allocation3 + $0x78] sm:$0xff]
    %v3535 = vld [vmem:[#allocation3 + $0x80] sm:$0xff]
    %v3536 = vld [vmem:[#allocation3 + $0x88] sm:$0xff]
    %v3537 = vld [vmem:[#allocation3 + $0x90] sm:$0xff]
    %v3538 = vld [vmem:[#allocation3 + $0x98] sm:$0xff]
    %v3539 = vld [vmem:[#allocation3 + $0xa0] sm:$0xff]
    %v3540 = vld [vmem:[#allocation3 + $0xa8] sm:$0xff]
    %v3541 = vld [vmem:[#allocation3 + $0xb0] sm:$0xff]
    %v3542 = vld [vmem:[#allocation3 + $0xb8] sm:$0xff]
    %v3543 = vld [vmem:[#allocation3 + $0xc0] sm:$0xff]
    %v3544 = vld [vmem:[#allocation3 + $0xc8] sm:$0xff]
    %v3545 = vld [vmem:[#allocation3 + $0xd0] sm:$0xff]
    %v3546 = vld [vmem:[#allocation3 + $0xd8] sm:$0xff]
    %v3547 = vld [vmem:[#allocation3 + $0xe0] sm:$0xff]
    %v3548 = vld [vmem:[#allocation3 + $0xe8] sm:$0xff]
    %v3549 = vld [vmem:[#allocation3 + $0xf0] sm:$0xff]
    %v3550 = vld [vmem:[#allocation3 + $0xf8] sm:$0xff]
    %v3551 = vld [vmem:[#allocation3 + $0x100] sm:$0xff]
    %v3552 = vld [vmem:[#allocation3 + $0x108] sm:$0xff]
    %v3553 = vld [vmem:[#allocation3 + $0x110] sm:$0xff]
    %v3554 = vld [vmem:[#allocation3 + $0x118] sm:$0xff]
    %v3555 = vld [vmem:[#allocation3 + $0x120] sm:$0xff]
    %v3556 = vld [vmem:[#allocation3 + $0x128] sm:$0xff]
    %v3557 = vld [vmem:[#allocation3 + $0x130] sm:$0xff]
    %v3558 = vld [vmem:[#allocation3 + $0x138] sm:$0xff]
    %v3559 = vld [vmem:[#allocation3 + $0x140] sm:$0xff]
    %v3560 = vld [vmem:[#allocation3 + $0x148] sm:$0xff]
    %v3561 = vld [vmem:[#allocation3 + $0x150] sm:$0xff]
    %v3562 = vld [vmem:[#allocation3 + $0x158] sm:$0xff]
    %v3563 = vld [vmem:[#allocation3 + $0x160] sm:$0xff]
    %v3564 = vld [vmem:[#allocation3 + $0x168] sm:$0xff]
    %v3565 = vld [vmem:[#allocation3 + $0x170] sm:$0xff]
    %v3566 = vld [vmem:[#allocation3 + $0x178] sm:$0xff]
    %v3567 = vld [vmem:[#allocation3 + $0x180] sm:$0xff]
    %v3568 = vld [vmem:[#allocation3 + $0x188] sm:$0xff]
    %v3569 = vld [vmem:[#allocation3 + $0x190] sm:$0xff]
    %v3570 = vld [vmem:[#allocation3 + $0x198] sm:$0xff]
    %v3571 = vld [vmem:[#allocation3 + $0x1a0] sm:$0xff]
    %v3572 = vld [vmem:[#allocation3 + $0x1a8] sm:$0xff]
    %v3573 = vld [vmem:[#allocation3 + $0x1b0] sm:$0xff]
    %v3574 = vld [vmem:[#allocation3 + $0x1b8] sm:$0xff]
    %v3575 = vld [vmem:[#allocation3 + $0x1c0] sm:$0xff]
    %v3576 = vld [vmem:[#allocation3 + $0x1c8] sm:$0xff]
    %v3577 = vld [vmem:[#allocation3 + $0x1d0] sm:$0xff]
    %v3578 = vld [vmem:[#allocation3 + $0x1d8] sm:$0xff]
    %v3579 = vld [vmem:[#allocation2 + $0x8] sm:$0xf]
    %v3580 = vld [vmem:[#allocation2 + $0xc] sm:$0xf]
    %v3581 = vld [vmem:[#allocation2 + $0x10] sm:$0xf]
    %v3582 = vld [vmem:[#allocation2 + $0x14] sm:$0xf]
    %v3583 = vld [vmem:[#allocation2 + $0x18] sm:$0xf]
    %v3584 = vld [vmem:[#allocation2 + $0x1c] sm:$0xf]
    %v3585 = vld [vmem:[#allocation2 + $0x20] sm:$0xf]
    %v3586 = vld [vmem:[#allocation2 + $0x24] sm:$0xf]
    %v3587 = vld [vmem:[#allocation2 + $0x28] sm:$0xf]
    %v3588 = vld [vmem:[#allocation2 + $0x2c] sm:$0xf]
    %v3589 = vld [vmem:[#allocation2 + $0x30] sm:$0xf]
    %v3590 = vld [vmem:[#allocation2 + $0x34] sm:$0xf]
    %v3591 = vld [vmem:[#allocation2 + $0x38] sm:$0xf]
    %v3592 = vld [vmem:[#allocation2 + $0x3c] sm:$0xf]
    %v3593 = vld [vmem:[#allocation2 + $0x40] sm:$0xf]
    %v3594 = vld [vmem:[#allocation2 + $0x44] sm:$0xf]
    %v3595 = vld [vmem:[#allocation2 + $0x48] sm:$0xf]
    %v3596 = vld [vmem:[#allocation2 + $0x4c] sm:$0xf]
    %v3597 = vld [vmem:[#allocation2 + $0x50] sm:$0xf]
    %v3598 = vld [vmem:[#allocation2 + $0x54] sm:$0xf]
    %v3599 = vld [vmem:[#allocation2 + $0x58] sm:$0xf]
    %v3600 = vld [vmem:[#allocation2 + $0x5c] sm:$0xf]
    %v3601 = vld [vmem:[#allocation2 + $0x60] sm:$0xf]
    %v3602 = vld [vmem:[#allocation2 + $0x64] sm:$0xf]
    %v3603 = vld [vmem:[#allocation2 + $0x68] sm:$0xf]
    %v3604 = vld [vmem:[#allocation2 + $0x6c] sm:$0xf]
    %v3605 = vld [vmem:[#allocation2 + $0x70] sm:$0xf]
    %v3606 = vld [vmem:[#allocation2 + $0x74] sm:$0xf]
    %v3607 = vld [vmem:[#allocation2 + $0x78] sm:$0xf]
    %v3608 = vld [vmem:[#allocation2 + $0x7c] sm:$0xf]
    %v3609 = vld [vmem:[#allocation2 + $0x80] sm:$0xf]
    %v3610 = vld [vmem:[#allocation2 + $0x84] sm:$0xf]
    %v3611 = vld [vmem:[#allocation2 + $0x88] sm:$0xf]
    %v3612 = vld [vmem:[#allocation2 + $0x8c] sm:$0xf]
    %v3613 = vld [vmem:[#allocation2 + $0x90] sm:$0xf]
    %v3614 = vld [vmem:[#allocation2 + $0x94] sm:$0xf]
    %v3615 = vld [vmem:[#allocation2 + $0x98] sm:$0xf]
    %v3616 = vld [vmem:[#allocation2 + $0x9c] sm:$0xf]
    %v3617 = vld [vmem:[#allocation2 + $0xa0] sm:$0xf]
    %v3618 = vld [vmem:[#allocation2 + $0xa4] sm:$0xf]
    %v3619 = vld [vmem:[#allocation2 + $0xa8] sm:$0xf]
    %v3620 = vld [vmem:[#allocation2 + $0xac] sm:$0xf]
    %v3621 = vld [vmem:[#allocation2 + $0xb0] sm:$0xf]
    %v3622 = vld [vmem:[#allocation2 + $0xb4] sm:$0xf]
    %v3623 = vld [vmem:[#allocation2 + $0xb8] sm:$0xf]
    %v3624 = vld [vmem:[#allocation2 + $0xbc] sm:$0xf]
    %v3625 = vld [vmem:[#allocation2 + $0xc0] sm:$0xf]
    %v3626 = vld [vmem:[#allocation2 + $0xc4] sm:$0xf]
    %v3627 = vld [vmem:[#allocation2 + $0xc8] sm:$0xf]
    %v3628 = vld [vmem:[#allocation2 + $0xcc] sm:$0xf]
    %v3629 = vld [vmem:[#allocation2 + $0xd0] sm:$0xf]
    %v3630 = vld [vmem:[#allocation2 + $0xd4] sm:$0xf]
    %v3631 = vld [vmem:[#allocation2 + $0xd8] sm:$0xf]
    %v3632 = vld [vmem:[#allocation2 + $0xdc] sm:$0xf]
    %v3633 = vld [vmem:[#allocation2 + $0xe0] sm:$0xf]
    %v3634 = vld [vmem:[#allocation2 + $0xe4] sm:$0xf]
    %v3635 = vld [vmem:[#allocation2 + $0xe8] sm:$0xf]
    %v3636 = vld [vmem:[#allocation2 + $0xec] sm:$0xf]
    %v3637 = vld [vmem:[#allocation2 + $0xf0] sm:$0xf]
    %v3638 = vld [vmem:[#allocation2 + $0xf4] sm:$0xf]
    %v3639 = vld [vmem:[#allocation2 + $0xf8] sm:$0x1]
    %v3640 = vld [vmem:[%s3 + $0xc0] sm:$0xf]
    %v3641 = vld [vmem:[%s3 + $0xc4] sm:$0xf]
    %v3642 = vld [vmem:[%s3 + $0xc8] sm:$0xf]
    %v3643 = vld [vmem:[%s3 + $0xcc] sm:$0xf]
    %v3644 = vld [vmem:[%s3 + $0xd0] sm:$0xf]
    %v3645 = vld [vmem:[%s3 + $0xd4] sm:$0xf]
    %v3646 = vld [vmem:[%s3 + $0xd8] sm:$0xf]
    %v3647 = vld [vmem:[%s3 + $0xdc] sm:$0xf]
    %v3648 = vld [vmem:[%s3 + $0xe0] sm:$0xf]
    %v3649 = vld [vmem:[%s3 + $0xe4] sm:$0xf]
    %v3650 = vld [vmem:[%s3 + $0xe8] sm:$0xf]
    %v3651 = vld [vmem:[%s3 + $0xec] sm:$0xf]
    %v3652 = vld [vmem:[%s3 + $0xf0] sm:$0xf]
    %v3653 = vld [vmem:[%s3 + $0xf4] sm:$0xf]
    %v3654 = vld [vmem:[%s3 + $0xf8] sm:$0xf]
    %v3655 = vld [vmem:[%s3 + $0xfc] sm:$0xf]
    %v3717 = vunpack.c.l.b16 %v3579
    %v3718 = vunpack.c.l.b16 %v3580
    %v3719 = vunpack.c.l.b16 %v3581
    %v3720 = vunpack.c.l.b16 %v3582
    %v3721 = vunpack.c.l.b16 %v3583
    %v3722 = vunpack.c.l.b16 %v3584
    %v3723 = vunpack.c.l.b16 %v3585
    %v3724 = vunpack.c.l.b16 %v3586
    %v3725 = vunpack.c.l.b16 %v3587
    %v3726 = vunpack.c.l.b16 %v3588
    %v3727 = vunpack.c.l.b16 %v3589
    %v3728 = vunpack.c.l.b16 %v3590
    %v3729 = vunpack.c.l.b16 %v3591
    %v3730 = vunpack.c.l.b16 %v3592
    %v3731 = vunpack.c.l.b16 %v3593
    %v3732 = vunpack.c.l.b16 %v3594
    %v3733 = vunpack.c.l.b16 %v3595
    %v3734 = vunpack.c.l.b16 %v3596
    %v3735 = vunpack.c.l.b16 %v3597
    %v3736 = vunpack.c.l.b16 %v3598
    %v3737 = vunpack.c.l.b16 %v3599
    %v3738 = vunpack.c.l.b16 %v3600
    %v3739 = vunpack.c.l.b16 %v3601
    %v3740 = vunpack.c.l.b16 %v3602
    %v3741 = vunpack.c.l.b16 %v3603
    %v3742 = vunpack.c.l.b16 %v3604
    %v3743 = vunpack.c.l.b16 %v3605
    %v3744 = vunpack.c.l.b16 %v3606
    %v3745 = vunpack.c.l.b16 %v3607
    %v3746 = vunpack.c.l.b16 %v3608
    %v3747 = vunpack.c.l.b16 %v3609
    %v3748 = vunpack.c.l.b16 %v3610
    %v3749 = vunpack.c.l.b16 %v3611
    %v3750 = vunpack.c.l.b16 %v3612
    %v3751 = vunpack.c.l.b16 %v3613
    %v3752 = vunpack.c.l.b16 %v3614
    %v3753 = vunpack.c.l.b16 %v3615
    %v3754 = vunpack.c.l.b16 %v3616
    %v3755 = vunpack.c.l.b16 %v3617
    %v3756 = vunpack.c.l.b16 %v3618
    %v3757 = vunpack.c.l.b16 %v3619
    %v3758 = vunpack.c.l.b16 %v3620
    %v3759 = vunpack.c.l.b16 %v3621
    %v3760 = vunpack.c.l.b16 %v3622
    %v3761 = vunpack.c.l.b16 %v3623
    %v3762 = vunpack.c.l.b16 %v3624
    %v3763 = vunpack.c.l.b16 %v3625
    %v3764 = vunpack.c.l.b16 %v3626
    %v3765 = vunpack.c.l.b16 %v3627
    %v3766 = vunpack.c.l.b16 %v3628
    %v3767 = vunpack.c.l.b16 %v3629
    %v3768 = vunpack.c.l.b16 %v3630
    %v3769 = vunpack.c.l.b16 %v3631
    %v3770 = vunpack.c.l.b16 %v3632
    %v3771 = vunpack.c.l.b16 %v3633
    %v3772 = vunpack.c.l.b16 %v3634
    %v3773 = vunpack.c.l.b16 %v3635
    %v3774 = vunpack.c.l.b16 %v3636
    %v3775 = vunpack.c.l.b16 %v3637
    %v3776 = vunpack.c.l.b16 %v3638
    %v3777 = vunpack.c.l.b16 %v3639
    %v3778 = vpack.c.b16 %v3718, %v3717
    %v3779 = vpack.c.b16 %v3720, %v3719
    %v3780 = vpack.c.b16 %v3722, %v3721
    %v3781 = vpack.c.b16 %v3724, %v3723
    %v3782 = vpack.c.b16 %v3726, %v3725
    %v3783 = vpack.c.b16 %v3728, %v3727
    %v3784 = vpack.c.b16 %v3730, %v3729
    %v3785 = vpack.c.b16 %v3732, %v3731
    %v3786 = vpack.c.b16 %v3734, %v3733
    %v3787 = vpack.c.b16 %v3736, %v3735
    %v3788 = vpack.c.b16 %v3738, %v3737
    %v3789 = vpack.c.b16 %v3740, %v3739
    %v3790 = vpack.c.b16 %v3742, %v3741
    %v3791 = vpack.c.b16 %v3744, %v3743
    %v3792 = vpack.c.b16 %v3746, %v3745
    %v3793 = vpack.c.b16 %v3748, %v3747
    %v3794 = vpack.c.b16 %v3750, %v3749
    %v3795 = vpack.c.b16 %v3752, %v3751
    %v3796 = vpack.c.b16 %v3754, %v3753
    %v3797 = vpack.c.b16 %v3756, %v3755
    %v3798 = vpack.c.b16 %v3758, %v3757
    %v3799 = vpack.c.b16 %v3760, %v3759
    %v3800 = vpack.c.b16 %v3762, %v3761
    %v3801 = vpack.c.b16 %v3764, %v3763
    %v3802 = vpack.c.b16 %v3766, %v3765
    %v3803 = vpack.c.b16 %v3768, %v3767
    %v3804 = vpack.c.b16 %v3770, %v3769
    %v3805 = vpack.c.b16 %v3772, %v3771
    %v3806 = vpack.c.b16 %v3774, %v3773
    %v3807 = vpack.c.b16 %v3776, %v3775
    %v3808 = vpack.c.b16 %v3777, %v3777
    %v3810 = vshrl.u32 %v3778, 16
    %v3812 = vshll.u32 %v3778, 16
    %v3814 = vrot.slane %v3812, 1
    %v3815 = vor.u32 %v3810, %v3814
    %v3817 = vshll.u32 %v3779, 16
    %v3819 = vrot.slane %v3817, 1
    %v3820 = vsel %vm2046, %v3815, %v3819
    %v3821 = vshrl.u32 %v3779, 16
    %v3823 = vor.u32 %v3821, %v3819
    %v3825 = vshll.u32 %v3780, 16
    %v3827 = vrot.slane %v3825, 1
    %v3828 = vsel %vm2046, %v3823, %v3827
    %v3829 = vshrl.u32 %v3780, 16
    %v3831 = vor.u32 %v3829, %v3827
    %v3833 = vshll.u32 %v3781, 16
    %v3835 = vrot.slane %v3833, 1
    %v3836 = vsel %vm2046, %v3831, %v3835
    %v3837 = vshrl.u32 %v3781, 16
    %v3839 = vor.u32 %v3837, %v3835
    %v3841 = vshll.u32 %v3782, 16
    %v3843 = vrot.slane %v3841, 1
    %v3844 = vsel %vm2046, %v3839, %v3843
    %v3845 = vshrl.u32 %v3782, 16
    %v3847 = vor.u32 %v3845, %v3843
    %v3849 = vshll.u32 %v3783, 16
    %v3851 = vrot.slane %v3849, 1
    %v3852 = vsel %vm2046, %v3847, %v3851
    %v3853 = vshrl.u32 %v3783, 16
    %v3855 = vor.u32 %v3853, %v3851
    %v3857 = vshll.u32 %v3784, 16
    %v3859 = vrot.slane %v3857, 1
    %v3860 = vsel %vm2046, %v3855, %v3859
    %v3861 = vshrl.u32 %v3784, 16
    %v3863 = vor.u32 %v3861, %v3859
    %v3865 = vshll.u32 %v3785, 16
    %v3867 = vrot.slane %v3865, 1
    %v3868 = vsel %vm2046, %v3863, %v3867
    %v3869 = vshrl.u32 %v3785, 16
    %v3871 = vor.u32 %v3869, %v3867
    %v3873 = vshll.u32 %v3786, 16
    %v3875 = vrot.slane %v3873, 1
    %v3876 = vsel %vm2046, %v3871, %v3875
    %v3877 = vshrl.u32 %v3786, 16
    %v3879 = vor.u32 %v3877, %v3875
    %v3881 = vshll.u32 %v3787, 16
    %v3883 = vrot.slane %v3881, 1
    %v3884 = vsel %vm2046, %v3879, %v3883
    %v3885 = vshrl.u32 %v3787, 16
    %v3887 = vor.u32 %v3885, %v3883
    %v3889 = vshll.u32 %v3788, 16
    %v3891 = vrot.slane %v3889, 1
    %v3892 = vsel %vm2046, %v3887, %v3891
    %v3893 = vshrl.u32 %v3788, 16
    %v3895 = vor.u32 %v3893, %v3891
    %v3897 = vshll.u32 %v3789, 16
    %v3899 = vrot.slane %v3897, 1
    %v3900 = vsel %vm2046, %v3895, %v3899
    %v3901 = vshrl.u32 %v3789, 16
    %v3903 = vor.u32 %v3901, %v3899
    %v3905 = vshll.u32 %v3790, 16
    %v3907 = vrot.slane %v3905, 1
    %v3908 = vsel %vm2046, %v3903, %v3907
    %v3909 = vshrl.u32 %v3790, 16
    %v3911 = vor.u32 %v3909, %v3907
    %v3913 = vshll.u32 %v3791, 16
    %v3915 = vrot.slane %v3913, 1
    %v3916 = vsel %vm2046, %v3911, %v3915
    %v3917 = vshrl.u32 %v3791, 16
    %v3919 = vor.u32 %v3917, %v3915
    %v3921 = vshll.u32 %v3792, 16
    %v3923 = vrot.slane %v3921, 1
    %v3924 = vsel %vm2046, %v3919, %v3923
    %v3925 = vshrl.u32 %v3792, 16
    %v3927 = vor.u32 %v3925, %v3923
    %v3929 = vshll.u32 %v3793, 16
    %v3931 = vrot.slane %v3929, 1
    %v3932 = vsel %vm2046, %v3927, %v3931
    %v3933 = vshrl.u32 %v3793, 16
    %v3935 = vor.u32 %v3933, %v3931
    %v3937 = vshll.u32 %v3794, 16
    %v3939 = vrot.slane %v3937, 1
    %v3940 = vsel %vm2046, %v3935, %v3939
    %v3941 = vshrl.u32 %v3794, 16
    %v3943 = vor.u32 %v3941, %v3939
    %v3945 = vshll.u32 %v3795, 16
    %v3947 = vrot.slane %v3945, 1
    %v3948 = vsel %vm2046, %v3943, %v3947
    %v3949 = vshrl.u32 %v3795, 16
    %v3951 = vor.u32 %v3949, %v3947
    %v3953 = vshll.u32 %v3796, 16
    %v3955 = vrot.slane %v3953, 1
    %v3956 = vsel %vm2046, %v3951, %v3955
    %v3957 = vshrl.u32 %v3796, 16
    %v3959 = vor.u32 %v3957, %v3955
    %v3961 = vshll.u32 %v3797, 16
    %v3963 = vrot.slane %v3961, 1
    %v3964 = vsel %vm2046, %v3959, %v3963
    %v3965 = vshrl.u32 %v3797, 16
    %v3967 = vor.u32 %v3965, %v3963
    %v3969 = vshll.u32 %v3798, 16
    %v3971 = vrot.slane %v3969, 1
    %v3972 = vsel %vm2046, %v3967, %v3971
    %v3973 = vshrl.u32 %v3798, 16
    %v3975 = vor.u32 %v3973, %v3971
    %v3977 = vshll.u32 %v3799, 16
    %v3979 = vrot.slane %v3977, 1
    %v3980 = vsel %vm2046, %v3975, %v3979
    %v3981 = vshrl.u32 %v3799, 16
    %v3983 = vor.u32 %v3981, %v3979
    %v3985 = vshll.u32 %v3800, 16
    %v3987 = vrot.slane %v3985, 1
    %v3988 = vsel %vm2046, %v3983, %v3987
    %v3989 = vshrl.u32 %v3800, 16
    %v3991 = vor.u32 %v3989, %v3987
    %v3993 = vshll.u32 %v3801, 16
    %v3995 = vrot.slane %v3993, 1
    %v3996 = vsel %vm2046, %v3991, %v3995
    %v3997 = vshrl.u32 %v3801, 16
    %v3999 = vor.u32 %v3997, %v3995
    %v4001 = vshll.u32 %v3802, 16
    %v4003 = vrot.slane %v4001, 1
    %v4004 = vsel %vm2046, %v3999, %v4003
    %v4005 = vshrl.u32 %v3802, 16
    %v4007 = vor.u32 %v4005, %v4003
    %v4009 = vshll.u32 %v3803, 16
    %v4011 = vrot.slane %v4009, 1
    %v4012 = vsel %vm2046, %v4007, %v4011
    %v4013 = vshrl.u32 %v3803, 16
    %v4015 = vor.u32 %v4013, %v4011
    %v4017 = vshll.u32 %v3804, 16
    %v4019 = vrot.slane %v4017, 1
    %v4020 = vsel %vm2046, %v4015, %v4019
    %v4021 = vshrl.u32 %v3804, 16
    %v4023 = vor.u32 %v4021, %v4019
    %v4025 = vshll.u32 %v3805, 16
    %v4027 = vrot.slane %v4025, 1
    %v4028 = vsel %vm2046, %v4023, %v4027
    %v4029 = vshrl.u32 %v3805, 16
    %v4031 = vor.u32 %v4029, %v4027
    %v4033 = vshll.u32 %v3806, 16
    %v4035 = vrot.slane %v4033, 1
    %v4036 = vsel %vm2046, %v4031, %v4035
    %v4037 = vshrl.u32 %v3806, 16
    %v4039 = vor.u32 %v4037, %v4035
    %v4041 = vshll.u32 %v3807, 16
    %v4043 = vrot.slane %v4041, 1
    %v4044 = vsel %vm2046, %v4039, %v4043
    %v4045 = vshrl.u32 %v3807, 16
    %v4047 = vor.u32 %v4045, %v4043
    %v4049 = vshll.u32 %v3808, 16
    %v4051 = vrot.slane %v4049, 1
    %v4052 = vsel %vm2046, %v4047, %v4051
    %v4099 = vunpack.c.l.b16 %v3640
    %v4100 = vunpack.c.l.b16 %v3641
    %v4101 = vunpack.c.l.b16 %v3642
    %v4102 = vunpack.c.l.b16 %v3643
    %v4103 = vunpack.c.l.b16 %v3644
    %v4104 = vunpack.c.l.b16 %v3645
    %v4105 = vunpack.c.l.b16 %v3646
    %v4106 = vunpack.c.l.b16 %v3647
    %v4107 = vunpack.c.l.b16 %v3648
    %v4108 = vunpack.c.l.b16 %v3649
    %v4109 = vunpack.c.l.b16 %v3650
    %v4110 = vunpack.c.l.b16 %v3651
    %v4111 = vunpack.c.l.b16 %v3652
    %v4112 = vunpack.c.l.b16 %v3653
    %v4113 = vunpack.c.l.b16 %v3654
    %v4114 = vunpack.c.l.b16 %v3655
    %v4115 = vpack.c.b16 %v4100, %v4099
    %v4116 = vpack.c.b16 %v4102, %v4101
    %v4117 = vpack.c.b16 %v4104, %v4103
    %v4118 = vpack.c.b16 %v4106, %v4105
    %v4119 = vpack.c.b16 %v4108, %v4107
    %v4120 = vpack.c.b16 %v4110, %v4109
    %v4121 = vpack.c.b16 %v4112, %v4111
    %v4122 = vpack.c.b16 %v4114, %v4113
    %4131 = vmatprep.subr.bf16.mxu0 0
    %4132 = vmatpush1.bf16.msra.mxu0 %v4122
    %4133 = vmatprep.subr.bf16.mxu0 0
    %4134 = vmatpush1.bf16.msra.mxu0 %v4121
    %4135 = vmatprep.subr.bf16.mxu0 0
    %4136 = vmatpush1.bf16.msra.mxu0 %v4120
    %4137 = vmatprep.subr.bf16.mxu0 0
    %4138 = vmatpush1.bf16.msra.mxu0 %v4119
    %4139 = vmatprep.subr.bf16.mxu0 0
    %4140 = vmatpush1.bf16.msra.mxu0 %v4118
    %4141 = vmatprep.subr.bf16.mxu0 0
    %4142 = vmatpush1.bf16.msra.mxu0 %v4117
    %4143 = vmatprep.subr.bf16.mxu0 0
    %4144 = vmatpush1.bf16.msra.mxu0 %v4116
    %4145 = vmatprep.subr.bf16.mxu0 0
    %4146 = vmatpush1.bf16.msra.mxu0 %v4115
    %4147 = vmatprep.subr.bf16.mxu0 0
    %4148 = vmatpush2.bf16.msra.mxu0 0
    %4149 = vmatprep.subr.bf16.mxu0 0
    %4150 = vmatpush2.bf16.msra.mxu0 0
    %4151 = vmatprep.subr.bf16.mxu0 0
    %4152 = vmatpush2.bf16.msra.mxu0 0
    %4153 = vmatprep.subr.bf16.mxu0 0
    %4154 = vmatpush2.bf16.msra.mxu0 0
    %4155 = vmatprep.subr.bf16.mxu0 0
    %4156 = vmatpush2.bf16.msra.mxu0 0
    %4157 = vmatprep.subr.bf16.mxu0 0
    %4158 = vmatpush2.bf16.msra.mxu0 0
    %4159 = vmatprep.subr.bf16.mxu0 0
    %4160 = vmatpush2.bf16.msra.mxu0 0
    %4161 = vmatprep.subr.bf16.mxu0 0
    %4162 = vmatpush2.bf16.msra.mxu0 0
    %4163 = vmatprep.mubr.bf16.mxu0 0
    %4164 = vmatmul.mubr.bf16.gmra.mxu0 %v3820
    %v4165 = vpop.f32.mrf.mxu0
    %v4166 = vadd.f32 0.0, %v4165
    %v4167 = vpop.f32.mrf.mxu0
    %v4168 = vpop.f32.mrf.mxu0
    %v4169 = vadd.f32 0.0, %v4168
    %v4170 = vpop.f32.mrf.mxu0
    %4171 = vmatprep.mubr.bf16.mxu0 0
    %4172 = vmatmul.mubr.bf16.gmra.mxu0 %v3828
    %v4173 = vpop.f32.mrf.mxu0
    %v4174 = vadd.f32 0.0, %v4173
    %v4175 = vpop.f32.mrf.mxu0
    %v4176 = vpop.f32.mrf.mxu0
    %v4177 = vadd.f32 0.0, %v4176
    %v4178 = vpop.f32.mrf.mxu0
    %4179 = vmatprep.mubr.bf16.mxu0 0
    %4180 = vmatmul.mubr.bf16.gmra.mxu0 %v3836
    %v4181 = vpop.f32.mrf.mxu0
    %v4182 = vadd.f32 0.0, %v4181
    %v4183 = vpop.f32.mrf.mxu0
    %v4184 = vpop.f32.mrf.mxu0
    %v4185 = vadd.f32 0.0, %v4184
    %v4186 = vpop.f32.mrf.mxu0
    %4187 = vmatprep.mubr.bf16.mxu0 0
    %4188 = vmatmul.mubr.bf16.gmra.mxu0 %v3844
    %v4189 = vpop.f32.mrf.mxu0
    %v4190 = vadd.f32 0.0, %v4189
    %v4191 = vpop.f32.mrf.mxu0
    %v4192 = vpop.f32.mrf.mxu0
    %v4193 = vadd.f32 0.0, %v4192
    %v4194 = vpop.f32.mrf.mxu0
    %4195 = vmatprep.mubr.bf16.mxu0 0
    %4196 = vmatmul.mubr.bf16.gmra.mxu0 %v3852
    %v4197 = vpop.f32.mrf.mxu0
    %v4198 = vadd.f32 0.0, %v4197
    %v4199 = vpop.f32.mrf.mxu0
    %v4200 = vpop.f32.mrf.mxu0
    %v4201 = vadd.f32 0.0, %v4200
    %v4202 = vpop.f32.mrf.mxu0
    %4203 = vmatprep.mubr.bf16.mxu0 0
    %4204 = vmatmul.mubr.bf16.gmra.mxu0 %v3860
    %v4205 = vpop.f32.mrf.mxu0
    %v4206 = vadd.f32 0.0, %v4205
    %v4207 = vpop.f32.mrf.mxu0
    %v4208 = vpop.f32.mrf.mxu0
    %v4209 = vadd.f32 0.0, %v4208
    %v4210 = vpop.f32.mrf.mxu0
    %4211 = vmatprep.mubr.bf16.mxu0 0
    %4212 = vmatmul.mubr.bf16.gmra.mxu0 %v3868
    %v4213 = vpop.f32.mrf.mxu0
    %v4214 = vadd.f32 0.0, %v4213
    %v4215 = vpop.f32.mrf.mxu0
    %v4216 = vpop.f32.mrf.mxu0
    %v4217 = vadd.f32 0.0, %v4216
    %v4218 = vpop.f32.mrf.mxu0
    %4219 = vmatprep.mubr.bf16.mxu0 0
    %4220 = vmatmul.mubr.bf16.gmra.mxu0 %v3876
    %v4221 = vpop.f32.mrf.mxu0
    %v4222 = vadd.f32 0.0, %v4221
    %v4223 = vpop.f32.mrf.mxu0
    %v4224 = vpop.f32.mrf.mxu0
    %v4225 = vadd.f32 0.0, %v4224
    %v4226 = vpop.f32.mrf.mxu0
    %4227 = vmatprep.mubr.bf16.mxu0 0
    %4228 = vmatmul.mubr.bf16.gmra.mxu0 %v3884
    %v4229 = vpop.f32.mrf.mxu0
    %v4230 = vadd.f32 0.0, %v4229
    %v4231 = vpop.f32.mrf.mxu0
    %v4232 = vpop.f32.mrf.mxu0
    %v4233 = vadd.f32 0.0, %v4232
    %v4234 = vpop.f32.mrf.mxu0
    %4235 = vmatprep.mubr.bf16.mxu0 0
    %4236 = vmatmul.mubr.bf16.gmra.mxu0 %v3892
    %v4237 = vpop.f32.mrf.mxu0
    %v4238 = vadd.f32 0.0, %v4237
    %v4239 = vpop.f32.mrf.mxu0
    %v4240 = vpop.f32.mrf.mxu0
    %v4241 = vadd.f32 0.0, %v4240
    %v4242 = vpop.f32.mrf.mxu0
    %4243 = vmatprep.mubr.bf16.mxu0 0
    %4244 = vmatmul.mubr.bf16.gmra.mxu0 %v3900
    %v4245 = vpop.f32.mrf.mxu0
    %v4246 = vadd.f32 0.0, %v4245
    %v4247 = vpop.f32.mrf.mxu0
    %v4248 = vpop.f32.mrf.mxu0
    %v4249 = vadd.f32 0.0, %v4248
    %v4250 = vpop.f32.mrf.mxu0
    %4251 = vmatprep.mubr.bf16.mxu0 0
    %4252 = vmatmul.mubr.bf16.gmra.mxu0 %v3908
    %v4253 = vpop.f32.mrf.mxu0
    %v4254 = vadd.f32 0.0, %v4253
    %v4255 = vpop.f32.mrf.mxu0
    %v4256 = vpop.f32.mrf.mxu0
    %v4257 = vadd.f32 0.0, %v4256
    %v4258 = vpop.f32.mrf.mxu0
    %4259 = vmatprep.mubr.bf16.mxu0 0
    %4260 = vmatmul.mubr.bf16.gmra.mxu0 %v3916
    %v4261 = vpop.f32.mrf.mxu0
    %v4262 = vadd.f32 0.0, %v4261
    %v4263 = vpop.f32.mrf.mxu0
    %v4264 = vpop.f32.mrf.mxu0
    %v4265 = vadd.f32 0.0, %v4264
    %v4266 = vpop.f32.mrf.mxu0
    %4267 = vmatprep.mubr.bf16.mxu0 0
    %4268 = vmatmul.mubr.bf16.gmra.mxu0 %v3924
    %v4269 = vpop.f32.mrf.mxu0
    %v4270 = vadd.f32 0.0, %v4269
    %v4271 = vpop.f32.mrf.mxu0
    %v4272 = vpop.f32.mrf.mxu0
    %v4273 = vadd.f32 0.0, %v4272
    %v4274 = vpop.f32.mrf.mxu0
    %4275 = vmatprep.mubr.bf16.mxu0 0
    %4276 = vmatmul.mubr.bf16.gmra.mxu0 %v3932
    %v4277 = vpop.f32.mrf.mxu0
    %v4278 = vadd.f32 0.0, %v4277
    %v4279 = vpop.f32.mrf.mxu0
    %v4280 = vpop.f32.mrf.mxu0
    %v4281 = vadd.f32 0.0, %v4280
    %v4282 = vpop.f32.mrf.mxu0
    %4283 = vmatprep.mubr.bf16.mxu0 0
    %4284 = vmatmul.mubr.bf16.gmra.mxu0 %v3940
    %v4285 = vpop.f32.mrf.mxu0
    %v4286 = vadd.f32 0.0, %v4285
    %v4287 = vpop.f32.mrf.mxu0
    %v4288 = vpop.f32.mrf.mxu0
    %v4289 = vadd.f32 0.0, %v4288
    %v4290 = vpop.f32.mrf.mxu0
    %4291 = vmatprep.mubr.bf16.mxu0 0
    %4292 = vmatmul.mubr.bf16.gmra.mxu0 %v3948
    %v4293 = vpop.f32.mrf.mxu0
    %v4294 = vadd.f32 0.0, %v4293
    %v4295 = vpop.f32.mrf.mxu0
    %v4296 = vpop.f32.mrf.mxu0
    %v4297 = vadd.f32 0.0, %v4296
    %v4298 = vpop.f32.mrf.mxu0
    %4299 = vmatprep.mubr.bf16.mxu0 0
    %4300 = vmatmul.mubr.bf16.gmra.mxu0 %v3956
    %v4301 = vpop.f32.mrf.mxu0
    %v4302 = vadd.f32 0.0, %v4301
    %v4303 = vpop.f32.mrf.mxu0
    %v4304 = vpop.f32.mrf.mxu0
    %v4305 = vadd.f32 0.0, %v4304
    %v4306 = vpop.f32.mrf.mxu0
    %4307 = vmatprep.mubr.bf16.mxu0 0
    %4308 = vmatmul.mubr.bf16.gmra.mxu0 %v3964
    %v4309 = vpop.f32.mrf.mxu0
    %v4310 = vadd.f32 0.0, %v4309
    %v4311 = vpop.f32.mrf.mxu0
    %v4312 = vpop.f32.mrf.mxu0
    %v4313 = vadd.f32 0.0, %v4312
    %v4314 = vpop.f32.mrf.mxu0
    %4315 = vmatprep.mubr.bf16.mxu0 0
    %4316 = vmatmul.mubr.bf16.gmra.mxu0 %v3972
    %v4317 = vpop.f32.mrf.mxu0
    %v4318 = vadd.f32 0.0, %v4317
    %v4319 = vpop.f32.mrf.mxu0
    %v4320 = vpop.f32.mrf.mxu0
    %v4321 = vadd.f32 0.0, %v4320
    %v4322 = vpop.f32.mrf.mxu0
    %4323 = vmatprep.mubr.bf16.mxu0 0
    %4324 = vmatmul.mubr.bf16.gmra.mxu0 %v3980
    %v4325 = vpop.f32.mrf.mxu0
    %v4326 = vadd.f32 0.0, %v4325
    %v4327 = vpop.f32.mrf.mxu0
    %v4328 = vpop.f32.mrf.mxu0
    %v4329 = vadd.f32 0.0, %v4328
    %v4330 = vpop.f32.mrf.mxu0
    %4331 = vmatprep.mubr.bf16.mxu0 0
    %4332 = vmatmul.mubr.bf16.gmra.mxu0 %v3988
    %v4333 = vpop.f32.mrf.mxu0
    %v4334 = vadd.f32 0.0, %v4333
    %v4335 = vpop.f32.mrf.mxu0
    %v4336 = vpop.f32.mrf.mxu0
    %v4337 = vadd.f32 0.0, %v4336
    %v4338 = vpop.f32.mrf.mxu0
    %4339 = vmatprep.mubr.bf16.mxu0 0
    %4340 = vmatmul.mubr.bf16.gmra.mxu0 %v3996
    %v4341 = vpop.f32.mrf.mxu0
    %v4342 = vadd.f32 0.0, %v4341
    %v4343 = vpop.f32.mrf.mxu0
    %v4344 = vpop.f32.mrf.mxu0
    %v4345 = vadd.f32 0.0, %v4344
    %v4346 = vpop.f32.mrf.mxu0
    %4347 = vmatprep.mubr.bf16.mxu0 0
    %4348 = vmatmul.mubr.bf16.gmra.mxu0 %v4004
    %v4349 = vpop.f32.mrf.mxu0
    %v4350 = vadd.f32 0.0, %v4349
    %v4351 = vpop.f32.mrf.mxu0
    %v4352 = vpop.f32.mrf.mxu0
    %v4353 = vadd.f32 0.0, %v4352
    %v4354 = vpop.f32.mrf.mxu0
    %4355 = vmatprep.mubr.bf16.mxu0 0
    %4356 = vmatmul.mubr.bf16.gmra.mxu0 %v4012
    %v4357 = vpop.f32.mrf.mxu0
    %v4358 = vadd.f32 0.0, %v4357
    %v4359 = vpop.f32.mrf.mxu0
    %v4360 = vpop.f32.mrf.mxu0
    %v4361 = vadd.f32 0.0, %v4360
    %v4362 = vpop.f32.mrf.mxu0
    %4363 = vmatprep.mubr.bf16.mxu0 0
    %4364 = vmatmul.mubr.bf16.gmra.mxu0 %v4020
    %v4365 = vpop.f32.mrf.mxu0
    %v4366 = vadd.f32 0.0, %v4365
    %v4367 = vpop.f32.mrf.mxu0
    %v4368 = vpop.f32.mrf.mxu0
    %v4369 = vadd.f32 0.0, %v4368
    %v4370 = vpop.f32.mrf.mxu0
    %4371 = vmatprep.mubr.bf16.mxu0 0
    %4372 = vmatmul.mubr.bf16.gmra.mxu0 %v4028
    %v4373 = vpop.f32.mrf.mxu0
    %v4374 = vadd.f32 0.0, %v4373
    %v4375 = vpop.f32.mrf.mxu0
    %v4376 = vpop.f32.mrf.mxu0
    %v4377 = vadd.f32 0.0, %v4376
    %v4378 = vpop.f32.mrf.mxu0
    %4379 = vmatprep.mubr.bf16.mxu0 0
    %4380 = vmatmul.mubr.bf16.gmra.mxu0 %v4036
    %v4381 = vpop.f32.mrf.mxu0
    %v4382 = vadd.f32 0.0, %v4381
    %v4383 = vpop.f32.mrf.mxu0
    %v4384 = vpop.f32.mrf.mxu0
    %v4385 = vadd.f32 0.0, %v4384
    %v4386 = vpop.f32.mrf.mxu0
    %4387 = vmatprep.mubr.bf16.mxu0 0
    %4388 = vmatmul.mubr.bf16.gmra.mxu0 %v4044
    %v4389 = vpop.f32.mrf.mxu0
    %v4390 = vadd.f32 0.0, %v4389
    %v4391 = vpop.f32.mrf.mxu0
    %v4392 = vpop.f32.mrf.mxu0
    %v4393 = vadd.f32 0.0, %v4392
    %v4394 = vpop.f32.mrf.mxu0
    %4395 = vmatprep.mubr.bf16.mxu0 0
    %4396 = vmatmul.mubr.bf16.gmra.mxu0 %v4052
    %v4397 = vpop.f32.mrf.mxu0
    %v4398 = vadd.f32 0.0, %v4397
    %v4399 = vpop.f32.mrf.mxu0
    %v4400 = vpop.f32.mrf.mxu0
    %v4401 = vadd.f32 0.0, %v4400
    %v4402 = vpop.f32.mrf.mxu0
    %4403 = vdwg.mxu0
    %v4404 = vadd.f32 %v3519, %v4166
    %v4405 = vadd.f32 %v3520, %v4169
    %v4406 = vadd.f32 %v3521, %v4174
    %v4407 = vadd.f32 %v3522, %v4177
    %v4408 = vadd.f32 %v3523, %v4182
    %v4409 = vadd.f32 %v3524, %v4185
    %v4410 = vadd.f32 %v3525, %v4190
    %v4411 = vadd.f32 %v3526, %v4193
    %v4412 = vadd.f32 %v3527, %v4198
    %v4413 = vadd.f32 %v3528, %v4201
    %v4414 = vadd.f32 %v3529, %v4206
    %v4415 = vadd.f32 %v3530, %v4209
    %v4416 = vadd.f32 %v3531, %v4214
    %v4417 = vadd.f32 %v3532, %v4217
    %v4418 = vadd.f32 %v3533, %v4222
    %v4419 = vadd.f32 %v3534, %v4225
    %v4420 = vadd.f32 %v3535, %v4230
    %v4421 = vadd.f32 %v3536, %v4233
    %v4422 = vadd.f32 %v3537, %v4238
    %v4423 = vadd.f32 %v3538, %v4241
    %v4424 = vadd.f32 %v3539, %v4246
    %v4425 = vadd.f32 %v3540, %v4249
    %v4426 = vadd.f32 %v3541, %v4254
    %v4427 = vadd.f32 %v3542, %v4257
    %v4428 = vadd.f32 %v3543, %v4262
    %v4429 = vadd.f32 %v3544, %v4265
    %v4430 = vadd.f32 %v3545, %v4270
    %v4431 = vadd.f32 %v3546, %v4273
    %v4432 = vadd.f32 %v3547, %v4278
    %v4433 = vadd.f32 %v3548, %v4281
    %v4434 = vadd.f32 %v3549, %v4286
    %v4435 = vadd.f32 %v3550, %v4289
    %v4436 = vadd.f32 %v3551, %v4294
    %v4437 = vadd.f32 %v3552, %v4297
    %v4438 = vadd.f32 %v3553, %v4302
    %v4439 = vadd.f32 %v3554, %v4305
    %v4440 = vadd.f32 %v3555, %v4310
    %v4441 = vadd.f32 %v3556, %v4313
    %v4442 = vadd.f32 %v3557, %v4318
    %v4443 = vadd.f32 %v3558, %v4321
    %v4444 = vadd.f32 %v3559, %v4326
    %v4445 = vadd.f32 %v3560, %v4329
    %v4446 = vadd.f32 %v3561, %v4334
    %v4447 = vadd.f32 %v3562, %v4337
    %v4448 = vadd.f32 %v3563, %v4342
    %v4449 = vadd.f32 %v3564, %v4345
    %v4450 = vadd.f32 %v3565, %v4350
    %v4451 = vadd.f32 %v3566, %v4353
    %v4452 = vadd.f32 %v3567, %v4358
    %v4453 = vadd.f32 %v3568, %v4361
    %v4454 = vadd.f32 %v3569, %v4366
    %v4455 = vadd.f32 %v3570, %v4369
    %v4456 = vadd.f32 %v3571, %v4374
    %v4457 = vadd.f32 %v3572, %v4377
    %v4458 = vadd.f32 %v3573, %v4382
    %v4459 = vadd.f32 %v3574, %v4385
    %v4460 = vadd.f32 %v3575, %v4390
    %v4461 = vadd.f32 %v3576, %v4393
    %v4462 = vadd.f32 %v3577, %v4398
    %v4463 = vadd.f32 %v3578, %v4401
    %4464 = vst.msk [vmem:[#allocation3] sm:$0xff] %vm1695, %v4404
    %4465 = vst.msk [vmem:[#allocation3 + $0x8] sm:$0xff] %vm1695, %v4405
    %4466 = vst.msk [vmem:[#allocation3 + $0x10] sm:$0xff] %vm1695, %v4406
    %4467 = vst.msk [vmem:[#allocation3 + $0x18] sm:$0xff] %vm1695, %v4407
    %4468 = vst.msk [vmem:[#allocation3 + $0x20] sm:$0xff] %vm1695, %v4408
    %4469 = vst.msk [vmem:[#allocation3 + $0x28] sm:$0xff] %vm1695, %v4409
    %4470 = vst.msk [vmem:[#allocation3 + $0x30] sm:$0xff] %vm1695, %v4410
    %4471 = vst.msk [vmem:[#allocation3 + $0x38] sm:$0xff] %vm1695, %v4411
    %4472 = vst.msk [vmem:[#allocation3 + $0x40] sm:$0xff] %vm1695, %v4412
    %4473 = vst.msk [vmem:[#allocation3 + $0x48] sm:$0xff] %vm1695, %v4413
    %4474 = vst.msk [vmem:[#allocation3 + $0x50] sm:$0xff] %vm1695, %v4414
    %4475 = vst.msk [vmem:[#allocation3 + $0x58] sm:$0xff] %vm1695, %v4415
    %4476 = vst.msk [vmem:[#allocation3 + $0x60] sm:$0xff] %vm1695, %v4416
    %4477 = vst.msk [vmem:[#allocation3 + $0x68] sm:$0xff] %vm1695, %v4417
    %4478 = vst.msk [vmem:[#allocation3 + $0x70] sm:$0xff] %vm1695, %v4418
    %4479 = vst.msk [vmem:[#allocation3 + $0x78] sm:$0xff] %vm1695, %v4419
    %4480 = vst.msk [vmem:[#allocation3 + $0x80] sm:$0xff] %vm1695, %v4420
    %4481 = vst.msk [vmem:[#allocation3 + $0x88] sm:$0xff] %vm1695, %v4421
    %4482 = vst.msk [vmem:[#allocation3 + $0x90] sm:$0xff] %vm1695, %v4422
    %4483 = vst.msk [vmem:[#allocation3 + $0x98] sm:$0xff] %vm1695, %v4423
    %4484 = vst.msk [vmem:[#allocation3 + $0xa0] sm:$0xff] %vm1695, %v4424
    %4485 = vst.msk [vmem:[#allocation3 + $0xa8] sm:$0xff] %vm1695, %v4425
    %4486 = vst.msk [vmem:[#allocation3 + $0xb0] sm:$0xff] %vm1695, %v4426
    %4487 = vst.msk [vmem:[#allocation3 + $0xb8] sm:$0xff] %vm1695, %v4427
    %4488 = vst.msk [vmem:[#allocation3 + $0xc0] sm:$0xff] %vm1695, %v4428
    %4489 = vst.msk [vmem:[#allocation3 + $0xc8] sm:$0xff] %vm1695, %v4429
    %4490 = vst.msk [vmem:[#allocation3 + $0xd0] sm:$0xff] %vm1695, %v4430
    %4491 = vst.msk [vmem:[#allocation3 + $0xd8] sm:$0xff] %vm1695, %v4431
    %4492 = vst.msk [vmem:[#allocation3 + $0xe0] sm:$0xff] %vm1695, %v4432
    %4493 = vst.msk [vmem:[#allocation3 + $0xe8] sm:$0xff] %vm1695, %v4433
    %4494 = vst.msk [vmem:[#allocation3 + $0xf0] sm:$0xff] %vm1695, %v4434
    %4495 = vst.msk [vmem:[#allocation3 + $0xf8] sm:$0xff] %vm1695, %v4435
    %4496 = vst.msk [vmem:[#allocation3 + $0x100] sm:$0xff] %vm1695, %v4436
    %4497 = vst.msk [vmem:[#allocation3 + $0x108] sm:$0xff] %vm1695, %v4437
    %4498 = vst.msk [vmem:[#allocation3 + $0x110] sm:$0xff] %vm1695, %v4438
    %4499 = vst.msk [vmem:[#allocation3 + $0x118] sm:$0xff] %vm1695, %v4439
    %4500 = vst.msk [vmem:[#allocation3 + $0x120] sm:$0xff] %vm1695, %v4440
    %4501 = vst.msk [vmem:[#allocation3 + $0x128] sm:$0xff] %vm1695, %v4441
    %4502 = vst.msk [vmem:[#allocation3 + $0x130] sm:$0xff] %vm1695, %v4442
    %4503 = vst.msk [vmem:[#allocation3 + $0x138] sm:$0xff] %vm1695, %v4443
    %4504 = vst.msk [vmem:[#allocation3 + $0x140] sm:$0xff] %vm1695, %v4444
    %4505 = vst.msk [vmem:[#allocation3 + $0x148] sm:$0xff] %vm1695, %v4445
    %4506 = vst.msk [vmem:[#allocation3 + $0x150] sm:$0xff] %vm1695, %v4446
    %4507 = vst.msk [vmem:[#allocation3 + $0x158] sm:$0xff] %vm1695, %v4447
    %4508 = vst.msk [vmem:[#allocation3 + $0x160] sm:$0xff] %vm1695, %v4448
    %4509 = vst.msk [vmem:[#allocation3 + $0x168] sm:$0xff] %vm1695, %v4449
    %4510 = vst.msk [vmem:[#allocation3 + $0x170] sm:$0xff] %vm1695, %v4450
    %4511 = vst.msk [vmem:[#allocation3 + $0x178] sm:$0xff] %vm1695, %v4451
    %4512 = vst.msk [vmem:[#allocation3 + $0x180] sm:$0xff] %vm1695, %v4452
    %4513 = vst.msk [vmem:[#allocation3 + $0x188] sm:$0xff] %vm1695, %v4453
    %4514 = vst.msk [vmem:[#allocation3 + $0x190] sm:$0xff] %vm1695, %v4454
    %4515 = vst.msk [vmem:[#allocation3 + $0x198] sm:$0xff] %vm1695, %v4455
    %4516 = vst.msk [vmem:[#allocation3 + $0x1a0] sm:$0xff] %vm1695, %v4456
    %4517 = vst.msk [vmem:[#allocation3 + $0x1a8] sm:$0xff] %vm1695, %v4457
    %4518 = vst.msk [vmem:[#allocation3 + $0x1b0] sm:$0xff] %vm1695, %v4458
    %4519 = vst.msk [vmem:[#allocation3 + $0x1b8] sm:$0xff] %vm1695, %v4459
    %4520 = vst.msk [vmem:[#allocation3 + $0x1c0] sm:$0xff] %vm1695, %v4460
    %4521 = vst.msk [vmem:[#allocation3 + $0x1c8] sm:$0xff] %vm1695, %v4461
    %4522 = vst.msk [vmem:[#allocation3 + $0x1d0] sm:$0xff] %vm1695, %v4462
    %4523 = vst.msk [vmem:[#allocation3 + $0x1d8] sm:$0xff] %vm1695, %v4463
    %v4524 = vld [vmem:[#allocation3] sm:$0xff]
    %v4525 = vld [vmem:[#allocation3 + $0x8] sm:$0xff]
    %v4526 = vld [vmem:[#allocation3 + $0x10] sm:$0xff]
    %v4527 = vld [vmem:[#allocation3 + $0x18] sm:$0xff]
    %v4528 = vld [vmem:[#allocation3 + $0x20] sm:$0xff]
    %v4529 = vld [vmem:[#allocation3 + $0x28] sm:$0xff]
    %v4530 = vld [vmem:[#allocation3 + $0x30] sm:$0xff]
    %v4531 = vld [vmem:[#allocation3 + $0x38] sm:$0xff]
    %v4532 = vld [vmem:[#allocation3 + $0x40] sm:$0xff]
    %v4533 = vld [vmem:[#allocation3 + $0x48] sm:$0xff]
    %v4534 = vld [vmem:[#allocation3 + $0x50] sm:$0xff]
    %v4535 = vld [vmem:[#allocation3 + $0x58] sm:$0xff]
    %v4536 = vld [vmem:[#allocation3 + $0x60] sm:$0xff]
    %v4537 = vld [vmem:[#allocation3 + $0x68] sm:$0xff]
    %v4538 = vld [vmem:[#allocation3 + $0x70] sm:$0xff]
    %v4539 = vld [vmem:[#allocation3 + $0x78] sm:$0xff]
    %v4540 = vld [vmem:[#allocation3 + $0x80] sm:$0xff]
    %v4541 = vld [vmem:[#allocation3 + $0x88] sm:$0xff]
    %v4542 = vld [vmem:[#allocation3 + $0x90] sm:$0xff]
    %v4543 = vld [vmem:[#allocation3 + $0x98] sm:$0xff]
    %v4544 = vld [vmem:[#allocation3 + $0xa0] sm:$0xff]
    %v4545 = vld [vmem:[#allocation3 + $0xa8] sm:$0xff]
    %v4546 = vld [vmem:[#allocation3 + $0xb0] sm:$0xff]
    %v4547 = vld [vmem:[#allocation3 + $0xb8] sm:$0xff]
    %v4548 = vld [vmem:[#allocation3 + $0xc0] sm:$0xff]
    %v4549 = vld [vmem:[#allocation3 + $0xc8] sm:$0xff]
    %v4550 = vld [vmem:[#allocation3 + $0xd0] sm:$0xff]
    %v4551 = vld [vmem:[#allocation3 + $0xd8] sm:$0xff]
    %v4552 = vld [vmem:[#allocation3 + $0xe0] sm:$0xff]
    %v4553 = vld [vmem:[#allocation3 + $0xe8] sm:$0xff]
    %v4554 = vld [vmem:[#allocation3 + $0xf0] sm:$0xff]
    %v4555 = vld [vmem:[#allocation3 + $0xf8] sm:$0xff]
    %v4556 = vld [vmem:[#allocation3 + $0x100] sm:$0xff]
    %v4557 = vld [vmem:[#allocation3 + $0x108] sm:$0xff]
    %v4558 = vld [vmem:[#allocation3 + $0x110] sm:$0xff]
    %v4559 = vld [vmem:[#allocation3 + $0x118] sm:$0xff]
    %v4560 = vld [vmem:[#allocation3 + $0x120] sm:$0xff]
    %v4561 = vld [vmem:[#allocation3 + $0x128] sm:$0xff]
    %v4562 = vld [vmem:[#allocation3 + $0x130] sm:$0xff]
    %v4563 = vld [vmem:[#allocation3 + $0x138] sm:$0xff]
    %v4564 = vld [vmem:[#allocation3 + $0x140] sm:$0xff]
    %v4565 = vld [vmem:[#allocation3 + $0x148] sm:$0xff]
    %v4566 = vld [vmem:[#allocation3 + $0x150] sm:$0xff]
    %v4567 = vld [vmem:[#allocation3 + $0x158] sm:$0xff]
    %v4568 = vld [vmem:[#allocation3 + $0x160] sm:$0xff]
    %v4569 = vld [vmem:[#allocation3 + $0x168] sm:$0xff]
    %v4570 = vld [vmem:[#allocation3 + $0x170] sm:$0xff]
    %v4571 = vld [vmem:[#allocation3 + $0x178] sm:$0xff]
    %v4572 = vld [vmem:[#allocation3 + $0x180] sm:$0xff]
    %v4573 = vld [vmem:[#allocation3 + $0x188] sm:$0xff]
    %v4574 = vld [vmem:[#allocation3 + $0x190] sm:$0xff]
    %v4575 = vld [vmem:[#allocation3 + $0x198] sm:$0xff]
    %v4576 = vld [vmem:[#allocation3 + $0x1a0] sm:$0xff]
    %v4577 = vld [vmem:[#allocation3 + $0x1a8] sm:$0xff]
    %v4578 = vld [vmem:[#allocation3 + $0x1b0] sm:$0xff]
    %v4579 = vld [vmem:[#allocation3 + $0x1b8] sm:$0xff]
    %v4580 = vld [vmem:[#allocation3 + $0x1c0] sm:$0xff]
    %v4581 = vld [vmem:[#allocation3 + $0x1c8] sm:$0xff]
    %v4582 = vld [vmem:[#allocation3 + $0x1d0] sm:$0xff]
    %v4583 = vld [vmem:[#allocation3 + $0x1d8] sm:$0xff]
    %v4584 = vld [vmem:[#allocation12] sm:$0x1]
    %v4586 = vlaneseq
    %v4587 = vshrl.u32 %v4586, 7
    %v4588 = vsub.s32 0, %v4587
    %v4589 = vrot.slane %v4584, %v4588
    %v4591 = vadd.f32 %v4524, %v4589
    %v4592 = vadd.f32 %v4525, %v4589
    %v4593 = vadd.f32 %v4526, %v4589
    %v4594 = vadd.f32 %v4527, %v4589
    %v4595 = vadd.f32 %v4528, %v4589
    %v4596 = vadd.f32 %v4529, %v4589
    %v4597 = vadd.f32 %v4530, %v4589
    %v4598 = vadd.f32 %v4531, %v4589
    %v4599 = vadd.f32 %v4532, %v4589
    %v4600 = vadd.f32 %v4533, %v4589
    %v4601 = vadd.f32 %v4534, %v4589
    %v4602 = vadd.f32 %v4535, %v4589
    %v4603 = vadd.f32 %v4536, %v4589
    %v4604 = vadd.f32 %v4537, %v4589
    %v4605 = vadd.f32 %v4538, %v4589
    %v4606 = vadd.f32 %v4539, %v4589
    %v4607 = vadd.f32 %v4540, %v4589
    %v4608 = vadd.f32 %v4541, %v4589
    %v4609 = vadd.f32 %v4542, %v4589
    %v4610 = vadd.f32 %v4543, %v4589
    %v4611 = vadd.f32 %v4544, %v4589
    %v4612 = vadd.f32 %v4545, %v4589
    %v4613 = vadd.f32 %v4546, %v4589
    %v4614 = vadd.f32 %v4547, %v4589
    %v4615 = vadd.f32 %v4548, %v4589
    %v4616 = vadd.f32 %v4549, %v4589
    %v4617 = vadd.f32 %v4550, %v4589
    %v4618 = vadd.f32 %v4551, %v4589
    %v4619 = vadd.f32 %v4552, %v4589
    %v4620 = vadd.f32 %v4553, %v4589
    %v4621 = vadd.f32 %v4554, %v4589
    %v4622 = vadd.f32 %v4555, %v4589
    %v4623 = vadd.f32 %v4556, %v4589
    %v4624 = vadd.f32 %v4557, %v4589
    %v4625 = vadd.f32 %v4558, %v4589
    %v4626 = vadd.f32 %v4559, %v4589
    %v4627 = vadd.f32 %v4560, %v4589
    %v4628 = vadd.f32 %v4561, %v4589
    %v4629 = vadd.f32 %v4562, %v4589
    %v4630 = vadd.f32 %v4563, %v4589
    %v4631 = vadd.f32 %v4564, %v4589
    %v4632 = vadd.f32 %v4565, %v4589
    %v4633 = vadd.f32 %v4566, %v4589
    %v4634 = vadd.f32 %v4567, %v4589
    %v4635 = vadd.f32 %v4568, %v4589
    %v4636 = vadd.f32 %v4569, %v4589
    %v4637 = vadd.f32 %v4570, %v4589
    %v4638 = vadd.f32 %v4571, %v4589
    %v4639 = vadd.f32 %v4572, %v4589
    %v4640 = vadd.f32 %v4573, %v4589
    %v4641 = vadd.f32 %v4574, %v4589
    %v4642 = vadd.f32 %v4575, %v4589
    %v4643 = vadd.f32 %v4576, %v4589
    %v4644 = vadd.f32 %v4577, %v4589
    %v4645 = vadd.f32 %v4578, %v4589
    %v4646 = vadd.f32 %v4579, %v4589
    %v4647 = vadd.f32 %v4580, %v4589
    %v4648 = vadd.f32 %v4581, %v4589
    %v4649 = vadd.f32 %v4582, %v4589
    %v4650 = vadd.f32 %v4583, %v4589
    %v4651 = vmax.f32 %v4591, 0.0
    %v4652 = vmax.f32 %v4592, 0.0
    %v4653 = vmax.f32 %v4593, 0.0
    %v4654 = vmax.f32 %v4594, 0.0
    %v4655 = vmax.f32 %v4595, 0.0
    %v4656 = vmax.f32 %v4596, 0.0
    %v4657 = vmax.f32 %v4597, 0.0
    %v4658 = vmax.f32 %v4598, 0.0
    %v4659 = vmax.f32 %v4599, 0.0
    %v4660 = vmax.f32 %v4600, 0.0
    %v4661 = vmax.f32 %v4601, 0.0
    %v4662 = vmax.f32 %v4602, 0.0
    %v4663 = vmax.f32 %v4603, 0.0
    %v4664 = vmax.f32 %v4604, 0.0
    %v4665 = vmax.f32 %v4605, 0.0
    %v4666 = vmax.f32 %v4606, 0.0
    %v4667 = vmax.f32 %v4607, 0.0
    %v4668 = vmax.f32 %v4608, 0.0
    %v4669 = vmax.f32 %v4609, 0.0
    %v4670 = vmax.f32 %v4610, 0.0
    %v4671 = vmax.f32 %v4611, 0.0
    %v4672 = vmax.f32 %v4612, 0.0
    %v4673 = vmax.f32 %v4613, 0.0
    %v4674 = vmax.f32 %v4614, 0.0
    %v4675 = vmax.f32 %v4615, 0.0
    %v4676 = vmax.f32 %v4616, 0.0
    %v4677 = vmax.f32 %v4617, 0.0
    %v4678 = vmax.f32 %v4618, 0.0
    %v4679 = vmax.f32 %v4619, 0.0
    %v4680 = vmax.f32 %v4620, 0.0
    %v4681 = vmax.f32 %v4621, 0.0
    %v4682 = vmax.f32 %v4622, 0.0
    %v4683 = vmax.f32 %v4623, 0.0
    %v4684 = vmax.f32 %v4624, 0.0
    %v4685 = vmax.f32 %v4625, 0.0
    %v4686 = vmax.f32 %v4626, 0.0
    %v4687 = vmax.f32 %v4627, 0.0
    %v4688 = vmax.f32 %v4628, 0.0
    %v4689 = vmax.f32 %v4629, 0.0
    %v4690 = vmax.f32 %v4630, 0.0
    %v4691 = vmax.f32 %v4631, 0.0
    %v4692 = vmax.f32 %v4632, 0.0
    %v4693 = vmax.f32 %v4633, 0.0
    %v4694 = vmax.f32 %v4634, 0.0
    %v4695 = vmax.f32 %v4635, 0.0
    %v4696 = vmax.f32 %v4636, 0.0
    %v4697 = vmax.f32 %v4637, 0.0
    %v4698 = vmax.f32 %v4638, 0.0
    %v4699 = vmax.f32 %v4639, 0.0
    %v4700 = vmax.f32 %v4640, 0.0
    %v4701 = vmax.f32 %v4641, 0.0
    %v4702 = vmax.f32 %v4642, 0.0
    %v4703 = vmax.f32 %v4643, 0.0
    %v4704 = vmax.f32 %v4644, 0.0
    %v4705 = vmax.f32 %v4645, 0.0
    %v4706 = vmax.f32 %v4646, 0.0
    %v4707 = vmax.f32 %v4647, 0.0
    %v4708 = vmax.f32 %v4648, 0.0
    %v4709 = vmax.f32 %v4649, 0.0
    %v4710 = vmax.f32 %v4650, 0.0
    %4711 = vst.msk [vmem:[#allocation3] sm:$0xff] %vm1695, %v4651
    %4712 = vst.msk [vmem:[#allocation3 + $0x8] sm:$0xff] %vm1695, %v4652
    %4713 = vst.msk [vmem:[#allocation3 + $0x10] sm:$0xff] %vm1695, %v4653
    %4714 = vst.msk [vmem:[#allocation3 + $0x18] sm:$0xff] %vm1695, %v4654
    %4715 = vst.msk [vmem:[#allocation3 + $0x20] sm:$0xff] %vm1695, %v4655
    %4716 = vst.msk [vmem:[#allocation3 + $0x28] sm:$0xff] %vm1695, %v4656
    %4717 = vst.msk [vmem:[#allocation3 + $0x30] sm:$0xff] %vm1695, %v4657
    %4718 = vst.msk [vmem:[#allocation3 + $0x38] sm:$0xff] %vm1695, %v4658
    %4719 = vst.msk [vmem:[#allocation3 + $0x40] sm:$0xff] %vm1695, %v4659
    %4720 = vst.msk [vmem:[#allocation3 + $0x48] sm:$0xff] %vm1695, %v4660
    %4721 = vst.msk [vmem:[#allocation3 + $0x50] sm:$0xff] %vm1695, %v4661
    %4722 = vst.msk [vmem:[#allocation3 + $0x58] sm:$0xff] %vm1695, %v4662
    %4723 = vst.msk [vmem:[#allocation3 + $0x60] sm:$0xff] %vm1695, %v4663
    %4724 = vst.msk [vmem:[#allocation3 + $0x68] sm:$0xff] %vm1695, %v4664
    %4725 = vst.msk [vmem:[#allocation3 + $0x70] sm:$0xff] %vm1695, %v4665
    %4726 = vst.msk [vmem:[#allocation3 + $0x78] sm:$0xff] %vm1695, %v4666
    %4727 = vst.msk [vmem:[#allocation3 + $0x80] sm:$0xff] %vm1695, %v4667
    %4728 = vst.msk [vmem:[#allocation3 + $0x88] sm:$0xff] %vm1695, %v4668
    %4729 = vst.msk [vmem:[#allocation3 + $0x90] sm:$0xff] %vm1695, %v4669
    %4730 = vst.msk [vmem:[#allocation3 + $0x98] sm:$0xff] %vm1695, %v4670
    %4731 = vst.msk [vmem:[#allocation3 + $0xa0] sm:$0xff] %vm1695, %v4671
    %4732 = vst.msk [vmem:[#allocation3 + $0xa8] sm:$0xff] %vm1695, %v4672
    %4733 = vst.msk [vmem:[#allocation3 + $0xb0] sm:$0xff] %vm1695, %v4673
    %4734 = vst.msk [vmem:[#allocation3 + $0xb8] sm:$0xff] %vm1695, %v4674
    %4735 = vst.msk [vmem:[#allocation3 + $0xc0] sm:$0xff] %vm1695, %v4675
    %4736 = vst.msk [vmem:[#allocation3 + $0xc8] sm:$0xff] %vm1695, %v4676
    %4737 = vst.msk [vmem:[#allocation3 + $0xd0] sm:$0xff] %vm1695, %v4677
    %4738 = vst.msk [vmem:[#allocation3 + $0xd8] sm:$0xff] %vm1695, %v4678
    %4739 = vst.msk [vmem:[#allocation3 + $0xe0] sm:$0xff] %vm1695, %v4679
    %4740 = vst.msk [vmem:[#allocation3 + $0xe8] sm:$0xff] %vm1695, %v4680
    %4741 = vst.msk [vmem:[#allocation3 + $0xf0] sm:$0xff] %vm1695, %v4681
    %4742 = vst.msk [vmem:[#allocation3 + $0xf8] sm:$0xff] %vm1695, %v4682
    %4743 = vst.msk [vmem:[#allocation3 + $0x100] sm:$0xff] %vm1695, %v4683
    %4744 = vst.msk [vmem:[#allocation3 + $0x108] sm:$0xff] %vm1695, %v4684
    %4745 = vst.msk [vmem:[#allocation3 + $0x110] sm:$0xff] %vm1695, %v4685
    %4746 = vst.msk [vmem:[#allocation3 + $0x118] sm:$0xff] %vm1695, %v4686
    %4747 = vst.msk [vmem:[#allocation3 + $0x120] sm:$0xff] %vm1695, %v4687
    %4748 = vst.msk [vmem:[#allocation3 + $0x128] sm:$0xff] %vm1695, %v4688
    %4749 = vst.msk [vmem:[#allocation3 + $0x130] sm:$0xff] %vm1695, %v4689
    %4750 = vst.msk [vmem:[#allocation3 + $0x138] sm:$0xff] %vm1695, %v4690
    %4751 = vst.msk [vmem:[#allocation3 + $0x140] sm:$0xff] %vm1695, %v4691
    %4752 = vst.msk [vmem:[#allocation3 + $0x148] sm:$0xff] %vm1695, %v4692
    %4753 = vst.msk [vmem:[#allocation3 + $0x150] sm:$0xff] %vm1695, %v4693
    %4754 = vst.msk [vmem:[#allocation3 + $0x158] sm:$0xff] %vm1695, %v4694
    %4755 = vst.msk [vmem:[#allocation3 + $0x160] sm:$0xff] %vm1695, %v4695
    %4756 = vst.msk [vmem:[#allocation3 + $0x168] sm:$0xff] %vm1695, %v4696
    %4757 = vst.msk [vmem:[#allocation3 + $0x170] sm:$0xff] %vm1695, %v4697
    %4758 = vst.msk [vmem:[#allocation3 + $0x178] sm:$0xff] %vm1695, %v4698
    %4759 = vst.msk [vmem:[#allocation3 + $0x180] sm:$0xff] %vm1695, %v4699
    %4760 = vst.msk [vmem:[#allocation3 + $0x188] sm:$0xff] %vm1695, %v4700
    %4761 = vst.msk [vmem:[#allocation3 + $0x190] sm:$0xff] %vm1695, %v4701
    %4762 = vst.msk [vmem:[#allocation3 + $0x198] sm:$0xff] %vm1695, %v4702
    %4763 = vst.msk [vmem:[#allocation3 + $0x1a0] sm:$0xff] %vm1695, %v4703
    %4764 = vst.msk [vmem:[#allocation3 + $0x1a8] sm:$0xff] %vm1695, %v4704
    %4765 = vst.msk [vmem:[#allocation3 + $0x1b0] sm:$0xff] %vm1695, %v4705
    %4766 = vst.msk [vmem:[#allocation3 + $0x1b8] sm:$0xff] %vm1695, %v4706
    %4767 = vst.msk [vmem:[#allocation3 + $0x1c0] sm:$0xff] %vm1695, %v4707
    %4768 = vst.msk [vmem:[#allocation3 + $0x1c8] sm:$0xff] %vm1695, %v4708
    %4769 = vst.msk [vmem:[#allocation3 + $0x1d0] sm:$0xff] %vm1695, %v4709
    %4770 = vst.msk [vmem:[#allocation3 + $0x1d8] sm:$0xff] %vm1695, %v4710
    %v4771 = vld [vmem:[#allocation3] sm:$0xff]
    %v4772 = vld [vmem:[#allocation3 + $0x8] sm:$0xff]
    %v4773 = vld [vmem:[#allocation3 + $0x10] sm:$0xff]
    %v4774 = vld [vmem:[#allocation3 + $0x18] sm:$0xff]
    %v4775 = vld [vmem:[#allocation3 + $0x20] sm:$0xff]
    %v4776 = vld [vmem:[#allocation3 + $0x28] sm:$0xff]
    %v4777 = vld [vmem:[#allocation3 + $0x30] sm:$0xff]
    %v4778 = vld [vmem:[#allocation3 + $0x38] sm:$0xff]
    %v4779 = vld [vmem:[#allocation3 + $0x40] sm:$0xff]
    %v4780 = vld [vmem:[#allocation3 + $0x48] sm:$0xff]
    %v4781 = vld [vmem:[#allocation3 + $0x50] sm:$0xff]
    %v4782 = vld [vmem:[#allocation3 + $0x58] sm:$0xff]
    %v4783 = vld [vmem:[#allocation3 + $0x60] sm:$0xff]
    %v4784 = vld [vmem:[#allocation3 + $0x68] sm:$0xff]
    %v4785 = vld [vmem:[#allocation3 + $0x70] sm:$0xff]
    %v4786 = vld [vmem:[#allocation3 + $0x78] sm:$0xff]
    %v4787 = vld [vmem:[#allocation3 + $0x80] sm:$0xff]
    %v4788 = vld [vmem:[#allocation3 + $0x88] sm:$0xff]
    %v4789 = vld [vmem:[#allocation3 + $0x90] sm:$0xff]
    %v4790 = vld [vmem:[#allocation3 + $0x98] sm:$0xff]
    %v4791 = vld [vmem:[#allocation3 + $0xa0] sm:$0xff]
    %v4792 = vld [vmem:[#allocation3 + $0xa8] sm:$0xff]
    %v4793 = vld [vmem:[#allocation3 + $0xb0] sm:$0xff]
    %v4794 = vld [vmem:[#allocation3 + $0xb8] sm:$0xff]
    %v4795 = vld [vmem:[#allocation3 + $0xc0] sm:$0xff]
    %v4796 = vld [vmem:[#allocation3 + $0xc8] sm:$0xff]
    %v4797 = vld [vmem:[#allocation3 + $0xd0] sm:$0xff]
    %v4798 = vld [vmem:[#allocation3 + $0xd8] sm:$0xff]
    %v4799 = vld [vmem:[#allocation3 + $0xe0] sm:$0xff]
    %v4800 = vld [vmem:[#allocation3 + $0xe8] sm:$0xff]
    %v4801 = vld [vmem:[#allocation3 + $0xf0] sm:$0xff]
    %v4802 = vld [vmem:[#allocation3 + $0xf8] sm:$0xff]
    %v4803 = vld [vmem:[#allocation3 + $0x100] sm:$0xff]
    %v4804 = vld [vmem:[#allocation3 + $0x108] sm:$0xff]
    %v4805 = vld [vmem:[#allocation3 + $0x110] sm:$0xff]
    %v4806 = vld [vmem:[#allocation3 + $0x118] sm:$0xff]
    %v4807 = vld [vmem:[#allocation3 + $0x120] sm:$0xff]
    %v4808 = vld [vmem:[#allocation3 + $0x128] sm:$0xff]
    %v4809 = vld [vmem:[#allocation3 + $0x130] sm:$0xff]
    %v4810 = vld [vmem:[#allocation3 + $0x138] sm:$0xff]
    %v4811 = vld [vmem:[#allocation3 + $0x140] sm:$0xff]
    %v4812 = vld [vmem:[#allocation3 + $0x148] sm:$0xff]
    %v4813 = vld [vmem:[#allocation3 + $0x150] sm:$0xff]
    %v4814 = vld [vmem:[#allocation3 + $0x158] sm:$0xff]
    %v4815 = vld [vmem:[#allocation3 + $0x160] sm:$0xff]
    %v4816 = vld [vmem:[#allocation3 + $0x168] sm:$0xff]
    %v4817 = vld [vmem:[#allocation3 + $0x170] sm:$0xff]
    %v4818 = vld [vmem:[#allocation3 + $0x178] sm:$0xff]
    %v4819 = vld [vmem:[#allocation3 + $0x180] sm:$0xff]
    %v4820 = vld [vmem:[#allocation3 + $0x188] sm:$0xff]
    %v4821 = vld [vmem:[#allocation3 + $0x190] sm:$0xff]
    %v4822 = vld [vmem:[#allocation3 + $0x198] sm:$0xff]
    %v4823 = vld [vmem:[#allocation3 + $0x1a0] sm:$0xff]
    %v4824 = vld [vmem:[#allocation3 + $0x1a8] sm:$0xff]
    %v4825 = vld [vmem:[#allocation3 + $0x1b0] sm:$0xff]
    %v4826 = vld [vmem:[#allocation3 + $0x1b8] sm:$0xff]
    %v4827 = vld [vmem:[#allocation3 + $0x1c0] sm:$0xff]
    %v4828 = vld [vmem:[#allocation3 + $0x1c8] sm:$0xff]
    %v4829 = vld [vmem:[#allocation3 + $0x1] sm:$0xff]
    %v4830 = vld [vmem:[#allocation3 + $0x9] sm:$0xff]
    %v4831 = vld [vmem:[#allocation3 + $0x11] sm:$0xff]
    %v4832 = vld [vmem:[#allocation3 + $0x19] sm:$0xff]
    %v4833 = vld [vmem:[#allocation3 + $0x21] sm:$0xff]
    %v4834 = vld [vmem:[#allocation3 + $0x29] sm:$0xff]
    %v4835 = vld [vmem:[#allocation3 + $0x31] sm:$0xff]
    %v4836 = vld [vmem:[#allocation3 + $0x39] sm:$0xff]
    %v4837 = vld [vmem:[#allocation3 + $0x41] sm:$0xff]
    %v4838 = vld [vmem:[#allocation3 + $0x49] sm:$0xff]
    %v4839 = vld [vmem:[#allocation3 + $0x51] sm:$0xff]
    %v4840 = vld [vmem:[#allocation3 + $0x59] sm:$0xff]
    %v4841 = vld [vmem:[#allocation3 + $0x61] sm:$0xff]
    %v4842 = vld [vmem:[#allocation3 + $0x69] sm:$0xff]
    %v4843 = vld [vmem:[#allocation3 + $0x71] sm:$0xff]
    %v4844 = vld [vmem:[#allocation3 + $0x79] sm:$0xff]
    %v4845 = vld [vmem:[#allocation3 + $0x81] sm:$0xff]
    %v4846 = vld [vmem:[#allocation3 + $0x89] sm:$0xff]
    %v4847 = vld [vmem:[#allocation3 + $0x91] sm:$0xff]
    %v4848 = vld [vmem:[#allocation3 + $0x99] sm:$0xff]
    %v4849 = vld [vmem:[#allocation3 + $0xa1] sm:$0xff]
    %v4850 = vld [vmem:[#allocation3 + $0xa9] sm:$0xff]
    %v4851 = vld [vmem:[#allocation3 + $0xb1] sm:$0xff]
    %v4852 = vld [vmem:[#allocation3 + $0xb9] sm:$0xff]
    %v4853 = vld [vmem:[#allocation3 + $0xc1] sm:$0xff]
    %v4854 = vld [vmem:[#allocation3 + $0xc9] sm:$0xff]
    %v4855 = vld [vmem:[#allocation3 + $0xd1] sm:$0xff]
    %v4856 = vld [vmem:[#allocation3 + $0xd9] sm:$0xff]
    %v4857 = vld [vmem:[#allocation3 + $0xe1] sm:$0xff]
    %v4858 = vld [vmem:[#allocation3 + $0xe9] sm:$0xff]
    %v4859 = vld [vmem:[#allocation3 + $0xf1] sm:$0xff]
    %v4860 = vld [vmem:[#allocation3 + $0xf9] sm:$0xff]
    %v4861 = vld [vmem:[#allocation3 + $0x101] sm:$0xff]
    %v4862 = vld [vmem:[#allocation3 + $0x109] sm:$0xff]
    %v4863 = vld [vmem:[#allocation3 + $0x111] sm:$0xff]
    %v4864 = vld [vmem:[#allocation3 + $0x119] sm:$0xff]
    %v4865 = vld [vmem:[#allocation3 + $0x121] sm:$0xff]
    %v4866 = vld [vmem:[#allocation3 + $0x129] sm:$0xff]
    %v4867 = vld [vmem:[#allocation3 + $0x131] sm:$0xff]
    %v4868 = vld [vmem:[#allocation3 + $0x139] sm:$0xff]
    %v4869 = vld [vmem:[#allocation3 + $0x141] sm:$0xff]
    %v4870 = vld [vmem:[#allocation3 + $0x149] sm:$0xff]
    %v4871 = vld [vmem:[#allocation3 + $0x151] sm:$0xff]
    %v4872 = vld [vmem:[#allocation3 + $0x159] sm:$0xff]
    %v4873 = vld [vmem:[#allocation3 + $0x161] sm:$0xff]
    %v4874 = vld [vmem:[#allocation3 + $0x169] sm:$0xff]
    %v4875 = vld [vmem:[#allocation3 + $0x171] sm:$0xff]
    %v4876 = vld [vmem:[#allocation3 + $0x179] sm:$0xff]
    %v4877 = vld [vmem:[#allocation3 + $0x181] sm:$0xff]
    %v4878 = vld [vmem:[#allocation3 + $0x189] sm:$0xff]
    %v4879 = vld [vmem:[#allocation3 + $0x191] sm:$0xff]
    %v4880 = vld [vmem:[#allocation3 + $0x199] sm:$0xff]
    %v4881 = vld [vmem:[#allocation3 + $0x1a1] sm:$0xff]
    %v4882 = vld [vmem:[#allocation3 + $0x1a9] sm:$0xff]
    %v4883 = vld [vmem:[#allocation3 + $0x1b1] sm:$0xff]
    %v4884 = vld [vmem:[#allocation3 + $0x1b9] sm:$0xff]
    %v4885 = vld [vmem:[#allocation3 + $0x1c1] sm:$0xff]
    %v4886 = vld [vmem:[#allocation3 + $0x1c9] sm:$0xff]
    %v4887 = vmax.f32 %v4771, %v4829
    %v4888 = vmax.f32 %v4772, %v4830
    %v4889 = vmax.f32 %v4773, %v4831
    %v4890 = vmax.f32 %v4774, %v4832
    %v4891 = vmax.f32 %v4775, %v4833
    %v4892 = vmax.f32 %v4776, %v4834
    %v4893 = vmax.f32 %v4777, %v4835
    %v4894 = vmax.f32 %v4778, %v4836
    %v4895 = vmax.f32 %v4779, %v4837
    %v4896 = vmax.f32 %v4780, %v4838
    %v4897 = vmax.f32 %v4781, %v4839
    %v4898 = vmax.f32 %v4782, %v4840
    %v4899 = vmax.f32 %v4783, %v4841
    %v4900 = vmax.f32 %v4784, %v4842
    %v4901 = vmax.f32 %v4785, %v4843
    %v4902 = vmax.f32 %v4786, %v4844
    %v4903 = vmax.f32 %v4787, %v4845
    %v4904 = vmax.f32 %v4788, %v4846
    %v4905 = vmax.f32 %v4789, %v4847
    %v4906 = vmax.f32 %v4790, %v4848
    %v4907 = vmax.f32 %v4791, %v4849
    %v4908 = vmax.f32 %v4792, %v4850
    %v4909 = vmax.f32 %v4793, %v4851
    %v4910 = vmax.f32 %v4794, %v4852
    %v4911 = vmax.f32 %v4795, %v4853
    %v4912 = vmax.f32 %v4796, %v4854
    %v4913 = vmax.f32 %v4797, %v4855
    %v4914 = vmax.f32 %v4798, %v4856
    %v4915 = vmax.f32 %v4799, %v4857
    %v4916 = vmax.f32 %v4800, %v4858
    %v4917 = vmax.f32 %v4801, %v4859
    %v4918 = vmax.f32 %v4802, %v4860
    %v4919 = vmax.f32 %v4803, %v4861
    %v4920 = vmax.f32 %v4804, %v4862
    %v4921 = vmax.f32 %v4805, %v4863
    %v4922 = vmax.f32 %v4806, %v4864
    %v4923 = vmax.f32 %v4807, %v4865
    %v4924 = vmax.f32 %v4808, %v4866
    %v4925 = vmax.f32 %v4809, %v4867
    %v4926 = vmax.f32 %v4810, %v4868
    %v4927 = vmax.f32 %v4811, %v4869
    %v4928 = vmax.f32 %v4812, %v4870
    %v4929 = vmax.f32 %v4813, %v4871
    %v4930 = vmax.f32 %v4814, %v4872
    %v4931 = vmax.f32 %v4815, %v4873
    %v4932 = vmax.f32 %v4816, %v4874
    %v4933 = vmax.f32 %v4817, %v4875
    %v4934 = vmax.f32 %v4818, %v4876
    %v4935 = vmax.f32 %v4819, %v4877
    %v4936 = vmax.f32 %v4820, %v4878
    %v4937 = vmax.f32 %v4821, %v4879
    %v4938 = vmax.f32 %v4822, %v4880
    %v4939 = vmax.f32 %v4823, %v4881
    %v4940 = vmax.f32 %v4824, %v4882
    %v4941 = vmax.f32 %v4825, %v4883
    %v4942 = vmax.f32 %v4826, %v4884
    %v4943 = vmax.f32 %v4827, %v4885
    %v4944 = vmax.f32 %v4828, %v4886
    %v4945 = vmax.f32 %v4887, %v4889
    %v4946 = vmax.f32 %v4888, %v4890
    %v4947 = vmax.f32 %v4889, %v4891
    %v4948 = vmax.f32 %v4890, %v4892
    %v4949 = vmax.f32 %v4891, %v4893
    %v4950 = vmax.f32 %v4892, %v4894
    %v4951 = vmax.f32 %v4893, %v4895
    %v4952 = vmax.f32 %v4894, %v4896
    %v4953 = vmax.f32 %v4895, %v4897
    %v4954 = vmax.f32 %v4896, %v4898
    %v4955 = vmax.f32 %v4897, %v4899
    %v4956 = vmax.f32 %v4898, %v4900
    %v4957 = vmax.f32 %v4899, %v4901
    %v4958 = vmax.f32 %v4900, %v4902
    %v4959 = vmax.f32 %v4901, %v4903
    %v4960 = vmax.f32 %v4902, %v4904
    %v4961 = vmax.f32 %v4903, %v4905
    %v4962 = vmax.f32 %v4904, %v4906
    %v4963 = vmax.f32 %v4905, %v4907
    %v4964 = vmax.f32 %v4906, %v4908
    %v4965 = vmax.f32 %v4907, %v4909
    %v4966 = vmax.f32 %v4908, %v4910
    %v4967 = vmax.f32 %v4909, %v4911
    %v4968 = vmax.f32 %v4910, %v4912
    %v4969 = vmax.f32 %v4911, %v4913
    %v4970 = vmax.f32 %v4912, %v4914
    %v4971 = vmax.f32 %v4913, %v4915
    %v4972 = vmax.f32 %v4914, %v4916
    %v4973 = vmax.f32 %v4915, %v4917
    %v4974 = vmax.f32 %v4916, %v4918
    %v4975 = vmax.f32 %v4917, %v4919
    %v4976 = vmax.f32 %v4918, %v4920
    %v4977 = vmax.f32 %v4919, %v4921
    %v4978 = vmax.f32 %v4920, %v4922
    %v4979 = vmax.f32 %v4921, %v4923
    %v4980 = vmax.f32 %v4922, %v4924
    %v4981 = vmax.f32 %v4923, %v4925
    %v4982 = vmax.f32 %v4924, %v4926
    %v4983 = vmax.f32 %v4925, %v4927
    %v4984 = vmax.f32 %v4926, %v4928
    %v4985 = vmax.f32 %v4927, %v4929
    %v4986 = vmax.f32 %v4928, %v4930
    %v4987 = vmax.f32 %v4929, %v4931
    %v4988 = vmax.f32 %v4930, %v4932
    %v4989 = vmax.f32 %v4931, %v4933
    %v4990 = vmax.f32 %v4932, %v4934
    %v4991 = vmax.f32 %v4933, %v4935
    %v4992 = vmax.f32 %v4934, %v4936
    %v4993 = vmax.f32 %v4935, %v4937
    %v4994 = vmax.f32 %v4936, %v4938
    %v4995 = vmax.f32 %v4937, %v4939
    %v4996 = vmax.f32 %v4938, %v4940
    %v4997 = vmax.f32 %v4939, %v4941
    %v4998 = vmax.f32 %v4940, %v4942
    %v4999 = vmax.f32 %v4941, %v4943
    %v5000 = vmax.f32 %v4942, %v4944
    %5001 = vst.msk [vmem:[#allocation4] sm:$0xff] %vm1695, %v4945
    %5002 = vst.msk [vmem:[#allocation4 + $0x8] sm:$0xff] %vm1695, %v4946
    %5003 = vst.msk [vmem:[#allocation4 + $0x10] sm:$0xff] %vm1695, %v4947
    %5004 = vst.msk [vmem:[#allocation4 + $0x18] sm:$0xff] %vm1695, %v4948
    %5005 = vst.msk [vmem:[#allocation4 + $0x20] sm:$0xff] %vm1695, %v4949
    %5006 = vst.msk [vmem:[#allocation4 + $0x28] sm:$0xff] %vm1695, %v4950
    %5007 = vst.msk [vmem:[#allocation4 + $0x30] sm:$0xff] %vm1695, %v4951
    %5008 = vst.msk [vmem:[#allocation4 + $0x38] sm:$0xff] %vm1695, %v4952
    %5009 = vst.msk [vmem:[#allocation4 + $0x40] sm:$0xff] %vm1695, %v4953
    %5010 = vst.msk [vmem:[#allocation4 + $0x48] sm:$0xff] %vm1695, %v4954
    %5011 = vst.msk [vmem:[#allocation4 + $0x50] sm:$0xff] %vm1695, %v4955
    %5012 = vst.msk [vmem:[#allocation4 + $0x58] sm:$0xff] %vm1695, %v4956
    %5013 = vst.msk [vmem:[#allocation4 + $0x60] sm:$0xff] %vm1695, %v4957
    %5014 = vst.msk [vmem:[#allocation4 + $0x68] sm:$0xff] %vm1695, %v4958
    %5015 = vst.msk [vmem:[#allocation4 + $0x70] sm:$0xff] %vm1695, %v4959
    %5016 = vst.msk [vmem:[#allocation4 + $0x78] sm:$0xff] %vm1695, %v4960
    %5017 = vst.msk [vmem:[#allocation4 + $0x80] sm:$0xff] %vm1695, %v4961
    %5018 = vst.msk [vmem:[#allocation4 + $0x88] sm:$0xff] %vm1695, %v4962
    %5019 = vst.msk [vmem:[#allocation4 + $0x90] sm:$0xff] %vm1695, %v4963
    %5020 = vst.msk [vmem:[#allocation4 + $0x98] sm:$0xff] %vm1695, %v4964
    %5021 = vst.msk [vmem:[#allocation4 + $0xa0] sm:$0xff] %vm1695, %v4965
    %5022 = vst.msk [vmem:[#allocation4 + $0xa8] sm:$0xff] %vm1695, %v4966
    %5023 = vst.msk [vmem:[#allocation4 + $0xb0] sm:$0xff] %vm1695, %v4967
    %5024 = vst.msk [vmem:[#allocation4 + $0xb8] sm:$0xff] %vm1695, %v4968
    %5025 = vst.msk [vmem:[#allocation4 + $0xc0] sm:$0xff] %vm1695, %v4969
    %5026 = vst.msk [vmem:[#allocation4 + $0xc8] sm:$0xff] %vm1695, %v4970
    %5027 = vst.msk [vmem:[#allocation4 + $0xd0] sm:$0xff] %vm1695, %v4971
    %5028 = vst.msk [vmem:[#allocation4 + $0xd8] sm:$0xff] %vm1695, %v4972
    %5029 = vst.msk [vmem:[#allocation4 + $0xe0] sm:$0xff] %vm1695, %v4973
    %5030 = vst.msk [vmem:[#allocation4 + $0xe8] sm:$0xff] %vm1695, %v4974
    %5031 = vst.msk [vmem:[#allocation4 + $0xf0] sm:$0xff] %vm1695, %v4975
    %5032 = vst.msk [vmem:[#allocation4 + $0xf8] sm:$0xff] %vm1695, %v4976
    %5033 = vst.msk [vmem:[#allocation4 + $0x100] sm:$0xff] %vm1695, %v4977
    %5034 = vst.msk [vmem:[#allocation4 + $0x108] sm:$0xff] %vm1695, %v4978
    %5035 = vst.msk [vmem:[#allocation4 + $0x110] sm:$0xff] %vm1695, %v4979
    %5036 = vst.msk [vmem:[#allocation4 + $0x118] sm:$0xff] %vm1695, %v4980
    %5037 = vst.msk [vmem:[#allocation4 + $0x120] sm:$0xff] %vm1695, %v4981
    %5038 = vst.msk [vmem:[#allocation4 + $0x128] sm:$0xff] %vm1695, %v4982
    %5039 = vst.msk [vmem:[#allocation4 + $0x130] sm:$0xff] %vm1695, %v4983
    %5040 = vst.msk [vmem:[#allocation4 + $0x138] sm:$0xff] %vm1695, %v4984
    %5041 = vst.msk [vmem:[#allocation4 + $0x140] sm:$0xff] %vm1695, %v4985
    %5042 = vst.msk [vmem:[#allocation4 + $0x148] sm:$0xff] %vm1695, %v4986
    %5043 = vst.msk [vmem:[#allocation4 + $0x150] sm:$0xff] %vm1695, %v4987
    %5044 = vst.msk [vmem:[#allocation4 + $0x158] sm:$0xff] %vm1695, %v4988
    %5045 = vst.msk [vmem:[#allocation4 + $0x160] sm:$0xff] %vm1695, %v4989
    %5046 = vst.msk [vmem:[#allocation4 + $0x168] sm:$0xff] %vm1695, %v4990
    %5047 = vst.msk [vmem:[#allocation4 + $0x170] sm:$0xff] %vm1695, %v4991
    %5048 = vst.msk [vmem:[#allocation4 + $0x178] sm:$0xff] %vm1695, %v4992
    %5049 = vst.msk [vmem:[#allocation4 + $0x180] sm:$0xff] %vm1695, %v4993
    %5050 = vst.msk [vmem:[#allocation4 + $0x188] sm:$0xff] %vm1695, %v4994
    %5051 = vst.msk [vmem:[#allocation4 + $0x190] sm:$0xff] %vm1695, %v4995
    %5052 = vst.msk [vmem:[#allocation4 + $0x198] sm:$0xff] %vm1695, %v4996
    %5053 = vst.msk [vmem:[#allocation4 + $0x1a0] sm:$0xff] %vm1695, %v4997
    %5054 = vst.msk [vmem:[#allocation4 + $0x1a8] sm:$0xff] %vm1695, %v4998
    %5055 = vst.msk [vmem:[#allocation4 + $0x1b0] sm:$0xff] %vm1695, %v4999
    %5056 = vst.msk [vmem:[#allocation4 + $0x1b8] sm:$0xff] %vm1695, %v5000
    %s5057 = smul.u32 4, 392
    %s5058 = smul.u32 %s5057, 2
    %s5059 = sshll.u32 %s5058, 4
    %5060 = dma.done [#allocation6], %s5059
    %v5061 = vld [vmem:[#allocation4] ss:$240 sm:$0x3]
    %v5062 = vpack.c.bf16 %v5061, %v5061
    %v5063 = vld [vmem:[#allocation5] sm:$0xff]
    %v5064 = vld [vmem:[#allocation5 + $0x8] sm:$0xff]
    %v5065 = vld [vmem:[#allocation5 + $0x10] sm:$0xff]
    %v5066 = vld [vmem:[#allocation5 + $0x18] sm:$0xff]
    %v5067 = vld [vmem:[#allocation5 + $0x20] sm:$0xff]
    %v5068 = vld [vmem:[#allocation5 + $0x28] sm:$0xff]
    %v5069 = vld [vmem:[#allocation5 + $0x30] sm:$0xff]
    %v5070 = vld [vmem:[#allocation5 + $0x38] sm:$0xff]
    %s5071 = scalar_lea.vmem [#allocation4], 2
    %v5072 = vld [vmem:[%s5071] ss:$240 sm:$0x3]
    %v5073 = vpack.c.bf16 %v5072, %v5072
    %v5074 = vld [vmem:[#allocation5 + $0x40] sm:$0xff]
    %v5075 = vld [vmem:[#allocation5 + $0x48] sm:$0xff]
    %v5076 = vld [vmem:[#allocation5 + $0x50] sm:$0xff]
    %v5077 = vld [vmem:[#allocation5 + $0x58] sm:$0xff]
    %v5078 = vld [vmem:[#allocation5 + $0x60] sm:$0xff]
    %v5079 = vld [vmem:[#allocation5 + $0x68] sm:$0xff]
    %v5080 = vld [vmem:[#allocation5 + $0x70] sm:$0xff]
    %v5081 = vld [vmem:[#allocation5 + $0x78] sm:$0xff]
    %v5090 = vunpack.c.l.b16 %v5074
    %v5091 = vunpack.c.h.b16 %v5074
    %v5092 = vunpack.c.l.b16 %v5075
    %v5093 = vunpack.c.h.b16 %v5075
    %v5094 = vunpack.c.l.b16 %v5076
    %v5095 = vunpack.c.h.b16 %v5076
    %v5096 = vunpack.c.l.b16 %v5077
    %v5097 = vunpack.c.h.b16 %v5077
    %v5098 = vunpack.c.l.b16 %v5078
    %v5099 = vunpack.c.h.b16 %v5078
    %v5100 = vunpack.c.l.b16 %v5079
    %v5101 = vunpack.c.h.b16 %v5079
    %v5102 = vunpack.c.l.b16 %v5080
    %v5103 = vunpack.c.h.b16 %v5080
    %v5104 = vunpack.c.l.b16 %v5081
    %v5105 = vunpack.c.h.b16 %v5081
    %v5106 = vpack.c.b16 %v5092, %v5090
    %v5107 = vpack.c.b16 %v5093, %v5091
    %v5108 = vpack.c.b16 %v5096, %v5094
    %v5109 = vpack.c.b16 %v5097, %v5095
    %v5110 = vpack.c.b16 %v5100, %v5098
    %v5111 = vpack.c.b16 %v5101, %v5099
    %v5112 = vpack.c.b16 %v5104, %v5102
    %v5113 = vpack.c.b16 %v5105, %v5103
    %v5123 = vsel %vm1695, %v5073, 0
    %5125 = vmatprep.subr.bf16.mxu0 0
    %5126 = vmatpush1.bf16.msra.mxu0 0
    %5127 = vmatprep.subr.bf16.mxu0 0
    %5128 = vmatpush1.bf16.msra.mxu0 0
    %5129 = vmatprep.subr.bf16.mxu0 0
    %5130 = vmatpush1.bf16.msra.mxu0 0
    %5131 = vmatprep.subr.bf16.mxu0 0
    %5132 = vmatpush1.bf16.msra.mxu0 0
    %5133 = vmatprep.subr.bf16.mxu0 %v5113
    %5134 = vmatpush1.bf16.msra.mxu0 %v5112
    %5135 = vmatprep.subr.bf16.mxu0 %v5111
    %5136 = vmatpush1.bf16.msra.mxu0 %v5110
    %5137 = vmatprep.subr.bf16.mxu0 %v5109
    %5138 = vmatpush1.bf16.msra.mxu0 %v5108
    %5139 = vmatprep.subr.bf16.mxu0 %v5107
    %5140 = vmatpush1.bf16.msra.mxu0 %v5106
    %5141 = vmatprep.subr.bf16.mxu0 0
    %5142 = vmatpush2.bf16.msra.mxu0 0
    %5143 = vmatprep.subr.bf16.mxu0 0
    %5144 = vmatpush2.bf16.msra.mxu0 0
    %5145 = vmatprep.subr.bf16.mxu0 0
    %5146 = vmatpush2.bf16.msra.mxu0 0
    %5147 = vmatprep.subr.bf16.mxu0 0
    %5148 = vmatpush2.bf16.msra.mxu0 0
    %5149 = vmatprep.subr.bf16.mxu0 0
    %5150 = vmatpush2.bf16.msra.mxu0 0
    %5151 = vmatprep.subr.bf16.mxu0 0
    %5152 = vmatpush2.bf16.msra.mxu0 0
    %5153 = vmatprep.subr.bf16.mxu0 0
    %5154 = vmatpush2.bf16.msra.mxu0 0
    %5155 = vmatprep.subr.bf16.mxu0 0
    %5156 = vmatpush2.bf16.msra.mxu0 0
    %5157 = vmatprep.mubr.bf16.mxu0 0
    %5158 = vmatmul.mubr.bf16.gmra.mxu0 %v5123
    %v5159 = vpop.f32.mrf.mxu0
    %v5160 = vadd.f32 0.0, %v5159
    %v5161 = vpop.f32.mrf.mxu0
    %v5162 = vadd.f32 0.0, %v5161
    %v5163 = vpop.f32.mrf.mxu0
    %v5164 = vpop.f32.mrf.mxu0
    %5165 = vdwg.mxu0
    %v5174 = vunpack.c.l.b16 %v5063
    %v5175 = vunpack.c.h.b16 %v5063
    %v5176 = vunpack.c.l.b16 %v5064
    %v5177 = vunpack.c.h.b16 %v5064
    %v5178 = vunpack.c.l.b16 %v5065
    %v5179 = vunpack.c.h.b16 %v5065
    %v5180 = vunpack.c.l.b16 %v5066
    %v5181 = vunpack.c.h.b16 %v5066
    %v5182 = vunpack.c.l.b16 %v5067
    %v5183 = vunpack.c.h.b16 %v5067
    %v5184 = vunpack.c.l.b16 %v5068
    %v5185 = vunpack.c.h.b16 %v5068
    %v5186 = vunpack.c.l.b16 %v5069
    %v5187 = vunpack.c.h.b16 %v5069
    %v5188 = vunpack.c.l.b16 %v5070
    %v5189 = vunpack.c.h.b16 %v5070
    %v5190 = vpack.c.b16 %v5176, %v5174
    %v5191 = vpack.c.b16 %v5177, %v5175
    %v5192 = vpack.c.b16 %v5180, %v5178
    %v5193 = vpack.c.b16 %v5181, %v5179
    %v5194 = vpack.c.b16 %v5184, %v5182
    %v5195 = vpack.c.b16 %v5185, %v5183
    %v5196 = vpack.c.b16 %v5188, %v5186
    %v5197 = vpack.c.b16 %v5189, %v5187
    %v5207 = vsel %vm1695, %v5062, 0
    %5209 = vmatprep.subr.bf16.mxu0 0
    %5210 = vmatpush1.bf16.msra.mxu0 0
    %5211 = vmatprep.subr.bf16.mxu0 0
    %5212 = vmatpush1.bf16.msra.mxu0 0
    %5213 = vmatprep.subr.bf16.mxu0 0
    %5214 = vmatpush1.bf16.msra.mxu0 0
    %5215 = vmatprep.subr.bf16.mxu0 0
    %5216 = vmatpush1.bf16.msra.mxu0 0
    %5217 = vmatprep.subr.bf16.mxu0 %v5197
    %5218 = vmatpush1.bf16.msra.mxu0 %v5196
    %5219 = vmatprep.subr.bf16.mxu0 %v5195
    %5220 = vmatpush1.bf16.msra.mxu0 %v5194
    %5221 = vmatprep.subr.bf16.mxu0 %v5193
    %5222 = vmatpush1.bf16.msra.mxu0 %v5192
    %5223 = vmatprep.subr.bf16.mxu0 %v5191
    %5224 = vmatpush1.bf16.msra.mxu0 %v5190
    %5225 = vmatprep.subr.bf16.mxu0 0
    %5226 = vmatpush2.bf16.msra.mxu0 0
    %5227 = vmatprep.subr.bf16.mxu0 0
    %5228 = vmatpush2.bf16.msra.mxu0 0
    %5229 = vmatprep.subr.bf16.mxu0 0
    %5230 = vmatpush2.bf16.msra.mxu0 0
    %5231 = vmatprep.subr.bf16.mxu0 0
    %5232 = vmatpush2.bf16.msra.mxu0 0
    %5233 = vmatprep.subr.bf16.mxu0 0
    %5234 = vmatpush2.bf16.msra.mxu0 0
    %5235 = vmatprep.subr.bf16.mxu0 0
    %5236 = vmatpush2.bf16.msra.mxu0 0
    %5237 = vmatprep.subr.bf16.mxu0 0
    %5238 = vmatpush2.bf16.msra.mxu0 0
    %5239 = vmatprep.subr.bf16.mxu0 0
    %5240 = vmatpush2.bf16.msra.mxu0 0
    %5241 = vmatprep.mubr.bf16.mxu0 0
    %5242 = vmatmul.mubr.bf16.gmra.mxu0 %v5207
    %v5243 = vpop.f32.mrf.mxu0
    %v5244 = vadd.f32 %v5160, %v5243
    %v5245 = vpop.f32.mrf.mxu0
    %v5246 = vadd.f32 %v5162, %v5245
    %v5247 = vpop.f32.mrf.mxu0
    %v5248 = vpop.f32.mrf.mxu0
    %5249 = vdwg.mxu0
    %s5250 = scalar_lea.vmem [#allocation4], 4
    %v5251 = vld [vmem:[%s5250] ss:$240 sm:$0x3]
    %v5252 = vpack.c.bf16 %v5251, %v5251
    %v5253 = vld [vmem:[#allocation5 + $0x80] sm:$0xff]
    %v5254 = vld [vmem:[#allocation5 + $0x88] sm:$0xff]
    %v5255 = vld [vmem:[#allocation5 + $0x90] sm:$0xff]
    %v5256 = vld [vmem:[#allocation5 + $0x98] sm:$0xff]
    %v5257 = vld [vmem:[#allocation5 + $0xa0] sm:$0xff]
    %v5258 = vld [vmem:[#allocation5 + $0xa8] sm:$0xff]
    %v5259 = vld [vmem:[#allocation5 + $0xb0] sm:$0xff]
    %v5260 = vld [vmem:[#allocation5 + $0xb8] sm:$0xff]
    %v5269 = vunpack.c.l.b16 %v5253
    %v5270 = vunpack.c.h.b16 %v5253
    %v5271 = vunpack.c.l.b16 %v5254
    %v5272 = vunpack.c.h.b16 %v5254
    %v5273 = vunpack.c.l.b16 %v5255
    %v5274 = vunpack.c.h.b16 %v5255
    %v5275 = vunpack.c.l.b16 %v5256
    %v5276 = vunpack.c.h.b16 %v5256
    %v5277 = vunpack.c.l.b16 %v5257
    %v5278 = vunpack.c.h.b16 %v5257
    %v5279 = vunpack.c.l.b16 %v5258
    %v5280 = vunpack.c.h.b16 %v5258
    %v5281 = vunpack.c.l.b16 %v5259
    %v5282 = vunpack.c.h.b16 %v5259
    %v5283 = vunpack.c.l.b16 %v5260
    %v5284 = vunpack.c.h.b16 %v5260
    %v5285 = vpack.c.b16 %v5271, %v5269
    %v5286 = vpack.c.b16 %v5272, %v5270
    %v5287 = vpack.c.b16 %v5275, %v5273
    %v5288 = vpack.c.b16 %v5276, %v5274
    %v5289 = vpack.c.b16 %v5279, %v5277
    %v5290 = vpack.c.b16 %v5280, %v5278
    %v5291 = vpack.c.b16 %v5283, %v5281
    %v5292 = vpack.c.b16 %v5284, %v5282
    %v5302 = vsel %vm1695, %v5252, 0
    %5304 = vmatprep.subr.bf16.mxu0 0
    %5305 = vmatpush1.bf16.msra.mxu0 0
    %5306 = vmatprep.subr.bf16.mxu0 0
    %5307 = vmatpush1.bf16.msra.mxu0 0
    %5308 = vmatprep.subr.bf16.mxu0 0
    %5309 = vmatpush1.bf16.msra.mxu0 0
    %5310 = vmatprep.subr.bf16.mxu0 0
    %5311 = vmatpush1.bf16.msra.mxu0 0
    %5312 = vmatprep.subr.bf16.mxu0 %v5292
    %5313 = vmatpush1.bf16.msra.mxu0 %v5291
    %5314 = vmatprep.subr.bf16.mxu0 %v5290
    %5315 = vmatpush1.bf16.msra.mxu0 %v5289
    %5316 = vmatprep.subr.bf16.mxu0 %v5288
    %5317 = vmatpush1.bf16.msra.mxu0 %v5287
    %5318 = vmatprep.subr.bf16.mxu0 %v5286
    %5319 = vmatpush1.bf16.msra.mxu0 %v5285
    %5320 = vmatprep.subr.bf16.mxu0 0
    %5321 = vmatpush2.bf16.msra.mxu0 0
    %5322 = vmatprep.subr.bf16.mxu0 0
    %5323 = vmatpush2.bf16.msra.mxu0 0
    %5324 = vmatprep.subr.bf16.mxu0 0
    %5325 = vmatpush2.bf16.msra.mxu0 0
    %5326 = vmatprep.subr.bf16.mxu0 0
    %5327 = vmatpush2.bf16.msra.mxu0 0
    %5328 = vmatprep.subr.bf16.mxu0 0
    %5329 = vmatpush2.bf16.msra.mxu0 0
    %5330 = vmatprep.subr.bf16.mxu0 0
    %5331 = vmatpush2.bf16.msra.mxu0 0
    %5332 = vmatprep.subr.bf16.mxu0 0
    %5333 = vmatpush2.bf16.msra.mxu0 0
    %5334 = vmatprep.subr.bf16.mxu0 0
    %5335 = vmatpush2.bf16.msra.mxu0 0
    %5336 = vmatprep.mubr.bf16.mxu0 0
    %5337 = vmatmul.mubr.bf16.gmra.mxu0 %v5302
    %v5338 = vpop.f32.mrf.mxu0
    %v5339 = vadd.f32 0.0, %v5338
    %v5340 = vpop.f32.mrf.mxu0
    %v5341 = vadd.f32 0.0, %v5340
    %v5342 = vpop.f32.mrf.mxu0
    %v5343 = vpop.f32.mrf.mxu0
    %5344 = vdwg.mxu0
    %v5345 = vadd.f32 %v5244, %v5339
    %v5346 = vadd.f32 %v5246, %v5341
    %s5347 = scalar_lea.vmem [#allocation4], 6
    %v5348 = vld [vmem:[%s5347] ss:$240 sm:$0x3]
    %v5349 = vpack.c.bf16 %v5348, %v5348
    %v5350 = vld [vmem:[#allocation5 + $0xc0] sm:$0xff]
    %v5351 = vld [vmem:[#allocation5 + $0xc8] sm:$0xff]
    %v5352 = vld [vmem:[#allocation5 + $0xd0] sm:$0xff]
    %v5353 = vld [vmem:[#allocation5 + $0xd8] sm:$0xff]
    %v5354 = vld [vmem:[#allocation5 + $0xe0] sm:$0xff]
    %v5355 = vld [vmem:[#allocation5 + $0xe8] sm:$0xff]
    %v5356 = vld [vmem:[#allocation5 + $0xf0] sm:$0xff]
    %v5357 = vld [vmem:[#allocation5 + $0xf8] sm:$0xff]
    %v5366 = vunpack.c.l.b16 %v5350
    %v5367 = vunpack.c.h.b16 %v5350
    %v5368 = vunpack.c.l.b16 %v5351
    %v5369 = vunpack.c.h.b16 %v5351
    %v5370 = vunpack.c.l.b16 %v5352
    %v5371 = vunpack.c.h.b16 %v5352
    %v5372 = vunpack.c.l.b16 %v5353
    %v5373 = vunpack.c.h.b16 %v5353
    %v5374 = vunpack.c.l.b16 %v5354
    %v5375 = vunpack.c.h.b16 %v5354
    %v5376 = vunpack.c.l.b16 %v5355
    %v5377 = vunpack.c.h.b16 %v5355
    %v5378 = vunpack.c.l.b16 %v5356
    %v5379 = vunpack.c.h.b16 %v5356
    %v5380 = vunpack.c.l.b16 %v5357
    %v5381 = vunpack.c.h.b16 %v5357
    %v5382 = vpack.c.b16 %v5368, %v5366
    %v5383 = vpack.c.b16 %v5369, %v5367
    %v5384 = vpack.c.b16 %v5372, %v5370
    %v5385 = vpack.c.b16 %v5373, %v5371
    %v5386 = vpack.c.b16 %v5376, %v5374
    %v5387 = vpack.c.b16 %v5377, %v5375
    %v5388 = vpack.c.b16 %v5380, %v5378
    %v5389 = vpack.c.b16 %v5381, %v5379
    %v5399 = vsel %vm1695, %v5349, 0
    %5401 = vmatprep.subr.bf16.mxu0 0
    %5402 = vmatpush1.bf16.msra.mxu0 0
    %5403 = vmatprep.subr.bf16.mxu0 0
    %5404 = vmatpush1.bf16.msra.mxu0 0
    %5405 = vmatprep.subr.bf16.mxu0 0
    %5406 = vmatpush1.bf16.msra.mxu0 0
    %5407 = vmatprep.subr.bf16.mxu0 0
    %5408 = vmatpush1.bf16.msra.mxu0 0
    %5409 = vmatprep.subr.bf16.mxu0 %v5389
    %5410 = vmatpush1.bf16.msra.mxu0 %v5388
    %5411 = vmatprep.subr.bf16.mxu0 %v5387
    %5412 = vmatpush1.bf16.msra.mxu0 %v5386
    %5413 = vmatprep.subr.bf16.mxu0 %v5385
    %5414 = vmatpush1.bf16.msra.mxu0 %v5384
    %5415 = vmatprep.subr.bf16.mxu0 %v5383
    %5416 = vmatpush1.bf16.msra.mxu0 %v5382
    %5417 = vmatprep.subr.bf16.mxu0 0
    %5418 = vmatpush2.bf16.msra.mxu0 0
    %5419 = vmatprep.subr.bf16.mxu0 0
    %5420 = vmatpush2.bf16.msra.mxu0 0
    %5421 = vmatprep.subr.bf16.mxu0 0
    %5422 = vmatpush2.bf16.msra.mxu0 0
    %5423 = vmatprep.subr.bf16.mxu0 0
    %5424 = vmatpush2.bf16.msra.mxu0 0
    %5425 = vmatprep.subr.bf16.mxu0 0
    %5426 = vmatpush2.bf16.msra.mxu0 0
    %5427 = vmatprep.subr.bf16.mxu0 0
    %5428 = vmatpush2.bf16.msra.mxu0 0
    %5429 = vmatprep.subr.bf16.mxu0 0
    %5430 = vmatpush2.bf16.msra.mxu0 0
    %5431 = vmatprep.subr.bf16.mxu0 0
    %5432 = vmatpush2.bf16.msra.mxu0 0
    %5433 = vmatprep.mubr.bf16.mxu0 0
    %5434 = vmatmul.mubr.bf16.gmra.mxu0 %v5399
    %v5435 = vpop.f32.mrf.mxu0
    %v5436 = vadd.f32 0.0, %v5435
    %v5437 = vpop.f32.mrf.mxu0
    %v5438 = vadd.f32 0.0, %v5437
    %v5439 = vpop.f32.mrf.mxu0
    %v5440 = vpop.f32.mrf.mxu0
    %5441 = vdwg.mxu0
    %v5442 = vadd.f32 %v5345, %v5436
    %v5443 = vadd.f32 %v5346, %v5438
    %s5444 = scalar_lea.vmem [#allocation4], 8
    %v5445 = vld [vmem:[%s5444] ss:$240 sm:$0x3]
    %v5446 = vpack.c.bf16 %v5445, %v5445
    %v5447 = vld [vmem:[#allocation5 + $0x100] sm:$0xff]
    %v5448 = vld [vmem:[#allocation5 + $0x108] sm:$0xff]
    %v5449 = vld [vmem:[#allocation5 + $0x110] sm:$0xff]
    %v5450 = vld [vmem:[#allocation5 + $0x118] sm:$0xff]
    %v5451 = vld [vmem:[#allocation5 + $0x120] sm:$0xff]
    %v5452 = vld [vmem:[#allocation5 + $0x128] sm:$0xff]
    %v5453 = vld [vmem:[#allocation5 + $0x130] sm:$0xff]
    %v5454 = vld [vmem:[#allocation5 + $0x138] sm:$0xff]
    %v5463 = vunpack.c.l.b16 %v5447
    %v5464 = vunpack.c.h.b16 %v5447
    %v5465 = vunpack.c.l.b16 %v5448
    %v5466 = vunpack.c.h.b16 %v5448
    %v5467 = vunpack.c.l.b16 %v5449
    %v5468 = vunpack.c.h.b16 %v5449
    %v5469 = vunpack.c.l.b16 %v5450
    %v5470 = vunpack.c.h.b16 %v5450
    %v5471 = vunpack.c.l.b16 %v5451
    %v5472 = vunpack.c.h.b16 %v5451
    %v5473 = vunpack.c.l.b16 %v5452
    %v5474 = vunpack.c.h.b16 %v5452
    %v5475 = vunpack.c.l.b16 %v5453
    %v5476 = vunpack.c.h.b16 %v5453
    %v5477 = vunpack.c.l.b16 %v5454
    %v5478 = vunpack.c.h.b16 %v5454
    %v5479 = vpack.c.b16 %v5465, %v5463
    %v5480 = vpack.c.b16 %v5466, %v5464
    %v5481 = vpack.c.b16 %v5469, %v5467
    %v5482 = vpack.c.b16 %v5470, %v5468
    %v5483 = vpack.c.b16 %v5473, %v5471
    %v5484 = vpack.c.b16 %v5474, %v5472
    %v5485 = vpack.c.b16 %v5477, %v5475
    %v5486 = vpack.c.b16 %v5478, %v5476
    %v5496 = vsel %vm1695, %v5446, 0
    %5498 = vmatprep.subr.bf16.mxu0 0
    %5499 = vmatpush1.bf16.msra.mxu0 0
    %5500 = vmatprep.subr.bf16.mxu0 0
    %5501 = vmatpush1.bf16.msra.mxu0 0
    %5502 = vmatprep.subr.bf16.mxu0 0
    %5503 = vmatpush1.bf16.msra.mxu0 0
    %5504 = vmatprep.subr.bf16.mxu0 0
    %5505 = vmatpush1.bf16.msra.mxu0 0
    %5506 = vmatprep.subr.bf16.mxu0 %v5486
    %5507 = vmatpush1.bf16.msra.mxu0 %v5485
    %5508 = vmatprep.subr.bf16.mxu0 %v5484
    %5509 = vmatpush1.bf16.msra.mxu0 %v5483
    %5510 = vmatprep.subr.bf16.mxu0 %v5482
    %5511 = vmatpush1.bf16.msra.mxu0 %v5481
    %5512 = vmatprep.subr.bf16.mxu0 %v5480
    %5513 = vmatpush1.bf16.msra.mxu0 %v5479
    %5514 = vmatprep.subr.bf16.mxu0 0
    %5515 = vmatpush2.bf16.msra.mxu0 0
    %5516 = vmatprep.subr.bf16.mxu0 0
    %5517 = vmatpush2.bf16.msra.mxu0 0
    %5518 = vmatprep.subr.bf16.mxu0 0
    %5519 = vmatpush2.bf16.msra.mxu0 0
    %5520 = vmatprep.subr.bf16.mxu0 0
    %5521 = vmatpush2.bf16.msra.mxu0 0
    %5522 = vmatprep.subr.bf16.mxu0 0
    %5523 = vmatpush2.bf16.msra.mxu0 0
    %5524 = vmatprep.subr.bf16.mxu0 0
    %5525 = vmatpush2.bf16.msra.mxu0 0
    %5526 = vmatprep.subr.bf16.mxu0 0
    %5527 = vmatpush2.bf16.msra.mxu0 0
    %5528 = vmatprep.subr.bf16.mxu0 0
    %5529 = vmatpush2.bf16.msra.mxu0 0
    %5530 = vmatprep.mubr.bf16.mxu0 0
    %5531 = vmatmul.mubr.bf16.gmra.mxu0 %v5496
    %v5532 = vpop.f32.mrf.mxu0
    %v5533 = vadd.f32 0.0, %v5532
    %v5534 = vpop.f32.mrf.mxu0
    %v5535 = vadd.f32 0.0, %v5534
    %v5536 = vpop.f32.mrf.mxu0
    %v5537 = vpop.f32.mrf.mxu0
    %5538 = vdwg.mxu0
    %v5539 = vadd.f32 %v5442, %v5533
    %v5540 = vadd.f32 %v5443, %v5535
    %s5541 = scalar_lea.vmem [#allocation4], 10
    %v5542 = vld [vmem:[%s5541] ss:$240 sm:$0x3]
    %v5543 = vpack.c.bf16 %v5542, %v5542
    %v5544 = vld [vmem:[#allocation5 + $0x140] sm:$0xff]
    %v5545 = vld [vmem:[#allocation5 + $0x148] sm:$0xff]
    %v5546 = vld [vmem:[#allocation5 + $0x150] sm:$0xff]
    %v5547 = vld [vmem:[#allocation5 + $0x158] sm:$0xff]
    %v5548 = vld [vmem:[#allocation5 + $0x160] sm:$0xff]
    %v5549 = vld [vmem:[#allocation5 + $0x168] sm:$0xff]
    %v5550 = vld [vmem:[#allocation5 + $0x170] sm:$0xff]
    %v5551 = vld [vmem:[#allocation5 + $0x178] sm:$0xff]
    %v5560 = vunpack.c.l.b16 %v5544
    %v5561 = vunpack.c.h.b16 %v5544
    %v5562 = vunpack.c.l.b16 %v5545
    %v5563 = vunpack.c.h.b16 %v5545
    %v5564 = vunpack.c.l.b16 %v5546
    %v5565 = vunpack.c.h.b16 %v5546
    %v5566 = vunpack.c.l.b16 %v5547
    %v5567 = vunpack.c.h.b16 %v5547
    %v5568 = vunpack.c.l.b16 %v5548
    %v5569 = vunpack.c.h.b16 %v5548
    %v5570 = vunpack.c.l.b16 %v5549
    %v5571 = vunpack.c.h.b16 %v5549
    %v5572 = vunpack.c.l.b16 %v5550
    %v5573 = vunpack.c.h.b16 %v5550
    %v5574 = vunpack.c.l.b16 %v5551
    %v5575 = vunpack.c.h.b16 %v5551
    %v5576 = vpack.c.b16 %v5562, %v5560
    %v5577 = vpack.c.b16 %v5563, %v5561
    %v5578 = vpack.c.b16 %v5566, %v5564
    %v5579 = vpack.c.b16 %v5567, %v5565
    %v5580 = vpack.c.b16 %v5570, %v5568
    %v5581 = vpack.c.b16 %v5571, %v5569
    %v5582 = vpack.c.b16 %v5574, %v5572
    %v5583 = vpack.c.b16 %v5575, %v5573
    %v5593 = vsel %vm1695, %v5543, 0
    %5595 = vmatprep.subr.bf16.mxu0 0
    %5596 = vmatpush1.bf16.msra.mxu0 0
    %5597 = vmatprep.subr.bf16.mxu0 0
    %5598 = vmatpush1.bf16.msra.mxu0 0
    %5599 = vmatprep.subr.bf16.mxu0 0
    %5600 = vmatpush1.bf16.msra.mxu0 0
    %5601 = vmatprep.subr.bf16.mxu0 0
    %5602 = vmatpush1.bf16.msra.mxu0 0
    %5603 = vmatprep.subr.bf16.mxu0 %v5583
    %5604 = vmatpush1.bf16.msra.mxu0 %v5582
    %5605 = vmatprep.subr.bf16.mxu0 %v5581
    %5606 = vmatpush1.bf16.msra.mxu0 %v5580
    %5607 = vmatprep.subr.bf16.mxu0 %v5579
    %5608 = vmatpush1.bf16.msra.mxu0 %v5578
    %5609 = vmatprep.subr.bf16.mxu0 %v5577
    %5610 = vmatpush1.bf16.msra.mxu0 %v5576
    %5611 = vmatprep.subr.bf16.mxu0 0
    %5612 = vmatpush2.bf16.msra.mxu0 0
    %5613 = vmatprep.subr.bf16.mxu0 0
    %5614 = vmatpush2.bf16.msra.mxu0 0
    %5615 = vmatprep.subr.bf16.mxu0 0
    %5616 = vmatpush2.bf16.msra.mxu0 0
    %5617 = vmatprep.subr.bf16.mxu0 0
    %5618 = vmatpush2.bf16.msra.mxu0 0
    %5619 = vmatprep.subr.bf16.mxu0 0
    %5620 = vmatpush2.bf16.msra.mxu0 0
    %5621 = vmatprep.subr.bf16.mxu0 0
    %5622 = vmatpush2.bf16.msra.mxu0 0
    %5623 = vmatprep.subr.bf16.mxu0 0
    %5624 = vmatpush2.bf16.msra.mxu0 0
    %5625 = vmatprep.subr.bf16.mxu0 0
    %5626 = vmatpush2.bf16.msra.mxu0 0
    %5627 = vmatprep.mubr.bf16.mxu0 0
    %5628 = vmatmul.mubr.bf16.gmra.mxu0 %v5593
    %v5629 = vpop.f32.mrf.mxu0
    %v5630 = vadd.f32 0.0, %v5629
    %v5631 = vpop.f32.mrf.mxu0
    %v5632 = vadd.f32 0.0, %v5631
    %v5633 = vpop.f32.mrf.mxu0
    %v5634 = vpop.f32.mrf.mxu0
    %5635 = vdwg.mxu0
    %v5636 = vadd.f32 %v5539, %v5630
    %v5637 = vadd.f32 %v5540, %v5632
    %s5638 = scalar_lea.vmem [#allocation4], 12
    %v5639 = vld [vmem:[%s5638] ss:$240 sm:$0x3]
    %v5640 = vpack.c.bf16 %v5639, %v5639
    %v5641 = vld [vmem:[#allocation5 + $0x180] sm:$0xff]
    %v5642 = vld [vmem:[#allocation5 + $0x188] sm:$0xff]
    %v5643 = vld [vmem:[#allocation5 + $0x190] sm:$0xff]
    %v5644 = vld [vmem:[#allocation5 + $0x198] sm:$0xff]
    %v5645 = vld [vmem:[#allocation5 + $0x1a0] sm:$0xff]
    %v5646 = vld [vmem:[#allocation5 + $0x1a8] sm:$0xff]
    %v5647 = vld [vmem:[#allocation5 + $0x1b0] sm:$0xff]
    %v5648 = vld [vmem:[#allocation5 + $0x1b8] sm:$0xff]
    %v5657 = vunpack.c.l.b16 %v5641
    %v5658 = vunpack.c.h.b16 %v5641
    %v5659 = vunpack.c.l.b16 %v5642
    %v5660 = vunpack.c.h.b16 %v5642
    %v5661 = vunpack.c.l.b16 %v5643
    %v5662 = vunpack.c.h.b16 %v5643
    %v5663 = vunpack.c.l.b16 %v5644
    %v5664 = vunpack.c.h.b16 %v5644
    %v5665 = vunpack.c.l.b16 %v5645
    %v5666 = vunpack.c.h.b16 %v5645
    %v5667 = vunpack.c.l.b16 %v5646
    %v5668 = vunpack.c.h.b16 %v5646
    %v5669 = vunpack.c.l.b16 %v5647
    %v5670 = vunpack.c.h.b16 %v5647
    %v5671 = vunpack.c.l.b16 %v5648
    %v5672 = vunpack.c.h.b16 %v5648
    %v5673 = vpack.c.b16 %v5659, %v5657
    %v5674 = vpack.c.b16 %v5660, %v5658
    %v5675 = vpack.c.b16 %v5663, %v5661
    %v5676 = vpack.c.b16 %v5664, %v5662
    %v5677 = vpack.c.b16 %v5667, %v5665
    %v5678 = vpack.c.b16 %v5668, %v5666
    %v5679 = vpack.c.b16 %v5671, %v5669
    %v5680 = vpack.c.b16 %v5672, %v5670
    %v5690 = vsel %vm1695, %v5640, 0
    %5692 = vmatprep.subr.bf16.mxu0 0
    %5693 = vmatpush1.bf16.msra.mxu0 0
    %5694 = vmatprep.subr.bf16.mxu0 0
    %5695 = vmatpush1.bf16.msra.mxu0 0
    %5696 = vmatprep.subr.bf16.mxu0 0
    %5697 = vmatpush1.bf16.msra.mxu0 0
    %5698 = vmatprep.subr.bf16.mxu0 0
    %5699 = vmatpush1.bf16.msra.mxu0 0
    %5700 = vmatprep.subr.bf16.mxu0 %v5680
    %5701 = vmatpush1.bf16.msra.mxu0 %v5679
    %5702 = vmatprep.subr.bf16.mxu0 %v5678
    %5703 = vmatpush1.bf16.msra.mxu0 %v5677
    %5704 = vmatprep.subr.bf16.mxu0 %v5676
    %5705 = vmatpush1.bf16.msra.mxu0 %v5675
    %5706 = vmatprep.subr.bf16.mxu0 %v5674
    %5707 = vmatpush1.bf16.msra.mxu0 %v5673
    %5708 = vmatprep.subr.bf16.mxu0 0
    %5709 = vmatpush2.bf16.msra.mxu0 0
    %5710 = vmatprep.subr.bf16.mxu0 0
    %5711 = vmatpush2.bf16.msra.mxu0 0
    %5712 = vmatprep.subr.bf16.mxu0 0
    %5713 = vmatpush2.bf16.msra.mxu0 0
    %5714 = vmatprep.subr.bf16.mxu0 0
    %5715 = vmatpush2.bf16.msra.mxu0 0
    %5716 = vmatprep.subr.bf16.mxu0 0
    %5717 = vmatpush2.bf16.msra.mxu0 0
    %5718 = vmatprep.subr.bf16.mxu0 0
    %5719 = vmatpush2.bf16.msra.mxu0 0
    %5720 = vmatprep.subr.bf16.mxu0 0
    %5721 = vmatpush2.bf16.msra.mxu0 0
    %5722 = vmatprep.subr.bf16.mxu0 0
    %5723 = vmatpush2.bf16.msra.mxu0 0
    %5724 = vmatprep.mubr.bf16.mxu0 0
    %5725 = vmatmul.mubr.bf16.gmra.mxu0 %v5690
    %v5726 = vpop.f32.mrf.mxu0
    %v5727 = vadd.f32 0.0, %v5726
    %v5728 = vpop.f32.mrf.mxu0
    %v5729 = vadd.f32 0.0, %v5728
    %v5730 = vpop.f32.mrf.mxu0
    %v5731 = vpop.f32.mrf.mxu0
    %5732 = vdwg.mxu0
    %v5733 = vadd.f32 %v5636, %v5727
    %v5734 = vadd.f32 %v5637, %v5729
    %s5735 = scalar_lea.vmem [#allocation4], 32
    %v5736 = vld [vmem:[%s5735] ss:$240 sm:$0x3]
    %v5737 = vpack.c.bf16 %v5736, %v5736
    %v5738 = vld [vmem:[#allocation5 + $0x1c0] sm:$0xff]
    %v5739 = vld [vmem:[#allocation5 + $0x1c8] sm:$0xff]
    %v5740 = vld [vmem:[#allocation5 + $0x1d0] sm:$0xff]
    %v5741 = vld [vmem:[#allocation5 + $0x1d8] sm:$0xff]
    %v5742 = vld [vmem:[#allocation5 + $0x1e0] sm:$0xff]
    %v5743 = vld [vmem:[#allocation5 + $0x1e8] sm:$0xff]
    %v5744 = vld [vmem:[#allocation5 + $0x1f0] sm:$0xff]
    %v5745 = vld [vmem:[#allocation5 + $0x1f8] sm:$0xff]
    %v5754 = vunpack.c.l.b16 %v5738
    %v5755 = vunpack.c.h.b16 %v5738
    %v5756 = vunpack.c.l.b16 %v5739
    %v5757 = vunpack.c.h.b16 %v5739
    %v5758 = vunpack.c.l.b16 %v5740
    %v5759 = vunpack.c.h.b16 %v5740
    %v5760 = vunpack.c.l.b16 %v5741
    %v5761 = vunpack.c.h.b16 %v5741
    %v5762 = vunpack.c.l.b16 %v5742
    %v5763 = vunpack.c.h.b16 %v5742
    %v5764 = vunpack.c.l.b16 %v5743
    %v5765 = vunpack.c.h.b16 %v5743
    %v5766 = vunpack.c.l.b16 %v5744
    %v5767 = vunpack.c.h.b16 %v5744
    %v5768 = vunpack.c.l.b16 %v5745
    %v5769 = vunpack.c.h.b16 %v5745
    %v5770 = vpack.c.b16 %v5756, %v5754
    %v5771 = vpack.c.b16 %v5757, %v5755
    %v5772 = vpack.c.b16 %v5760, %v5758
    %v5773 = vpack.c.b16 %v5761, %v5759
    %v5774 = vpack.c.b16 %v5764, %v5762
    %v5775 = vpack.c.b16 %v5765, %v5763
    %v5776 = vpack.c.b16 %v5768, %v5766
    %v5777 = vpack.c.b16 %v5769, %v5767
    %v5787 = vsel %vm1695, %v5737, 0
    %5789 = vmatprep.subr.bf16.mxu0 0
    %5790 = vmatpush1.bf16.msra.mxu0 0
    %5791 = vmatprep.subr.bf16.mxu0 0
    %5792 = vmatpush1.bf16.msra.mxu0 0
    %5793 = vmatprep.subr.bf16.mxu0 0
    %5794 = vmatpush1.bf16.msra.mxu0 0
    %5795 = vmatprep.subr.bf16.mxu0 0
    %5796 = vmatpush1.bf16.msra.mxu0 0
    %5797 = vmatprep.subr.bf16.mxu0 %v5777
    %5798 = vmatpush1.bf16.msra.mxu0 %v5776
    %5799 = vmatprep.subr.bf16.mxu0 %v5775
    %5800 = vmatpush1.bf16.msra.mxu0 %v5774
    %5801 = vmatprep.subr.bf16.mxu0 %v5773
    %5802 = vmatpush1.bf16.msra.mxu0 %v5772
    %5803 = vmatprep.subr.bf16.mxu0 %v5771
    %5804 = vmatpush1.bf16.msra.mxu0 %v5770
    %5805 = vmatprep.subr.bf16.mxu0 0
    %5806 = vmatpush2.bf16.msra.mxu0 0
    %5807 = vmatprep.subr.bf16.mxu0 0
    %5808 = vmatpush2.bf16.msra.mxu0 0
    %5809 = vmatprep.subr.bf16.mxu0 0
    %5810 = vmatpush2.bf16.msra.mxu0 0
    %5811 = vmatprep.subr.bf16.mxu0 0
    %5812 = vmatpush2.bf16.msra.mxu0 0
    %5813 = vmatprep.subr.bf16.mxu0 0
    %5814 = vmatpush2.bf16.msra.mxu0 0
    %5815 = vmatprep.subr.bf16.mxu0 0
    %5816 = vmatpush2.bf16.msra.mxu0 0
    %5817 = vmatprep.subr.bf16.mxu0 0
    %5818 = vmatpush2.bf16.msra.mxu0 0
    %5819 = vmatprep.subr.bf16.mxu0 0
    %5820 = vmatpush2.bf16.msra.mxu0 0
    %5821 = vmatprep.mubr.bf16.mxu0 0
    %5822 = vmatmul.mubr.bf16.gmra.mxu0 %v5787
    %v5823 = vpop.f32.mrf.mxu0
    %v5824 = vadd.f32 0.0, %v5823
    %v5825 = vpop.f32.mrf.mxu0
    %v5826 = vadd.f32 0.0, %v5825
    %v5827 = vpop.f32.mrf.mxu0
    %v5828 = vpop.f32.mrf.mxu0
    %5829 = vdwg.mxu0
    %v5830 = vadd.f32 %v5733, %v5824
    %v5831 = vadd.f32 %v5734, %v5826
    %s5832 = scalar_lea.vmem [#allocation4], 34
    %v5833 = vld [vmem:[%s5832] ss:$240 sm:$0x3]
    %v5834 = vpack.c.bf16 %v5833, %v5833
    %v5835 = vld [vmem:[#allocation5 + $0x200] sm:$0xff]
    %v5836 = vld [vmem:[#allocation5 + $0x208] sm:$0xff]
    %v5837 = vld [vmem:[#allocation5 + $0x210] sm:$0xff]
    %v5838 = vld [vmem:[#allocation5 + $0x218] sm:$0xff]
    %v5839 = vld [vmem:[#allocation5 + $0x220] sm:$0xff]
    %v5840 = vld [vmem:[#allocation5 + $0x228] sm:$0xff]
    %v5841 = vld [vmem:[#allocation5 + $0x230] sm:$0xff]
    %v5842 = vld [vmem:[#allocation5 + $0x238] sm:$0xff]
    %v5851 = vunpack.c.l.b16 %v5835
    %v5852 = vunpack.c.h.b16 %v5835
    %v5853 = vunpack.c.l.b16 %v5836
    %v5854 = vunpack.c.h.b16 %v5836
    %v5855 = vunpack.c.l.b16 %v5837
    %v5856 = vunpack.c.h.b16 %v5837
    %v5857 = vunpack.c.l.b16 %v5838
    %v5858 = vunpack.c.h.b16 %v5838
    %v5859 = vunpack.c.l.b16 %v5839
    %v5860 = vunpack.c.h.b16 %v5839
    %v5861 = vunpack.c.l.b16 %v5840
    %v5862 = vunpack.c.h.b16 %v5840
    %v5863 = vunpack.c.l.b16 %v5841
    %v5864 = vunpack.c.h.b16 %v5841
    %v5865 = vunpack.c.l.b16 %v5842
    %v5866 = vunpack.c.h.b16 %v5842
    %v5867 = vpack.c.b16 %v5853, %v5851
    %v5868 = vpack.c.b16 %v5854, %v5852
    %v5869 = vpack.c.b16 %v5857, %v5855
    %v5870 = vpack.c.b16 %v5858, %v5856
    %v5871 = vpack.c.b16 %v5861, %v5859
    %v5872 = vpack.c.b16 %v5862, %v5860
    %v5873 = vpack.c.b16 %v5865, %v5863
    %v5874 = vpack.c.b16 %v5866, %v5864
    %v5884 = vsel %vm1695, %v5834, 0
    %5886 = vmatprep.subr.bf16.mxu0 0
    %5887 = vmatpush1.bf16.msra.mxu0 0
    %5888 = vmatprep.subr.bf16.mxu0 0
    %5889 = vmatpush1.bf16.msra.mxu0 0
    %5890 = vmatprep.subr.bf16.mxu0 0
    %5891 = vmatpush1.bf16.msra.mxu0 0
    %5892 = vmatprep.subr.bf16.mxu0 0
    %5893 = vmatpush1.bf16.msra.mxu0 0
    %5894 = vmatprep.subr.bf16.mxu0 %v5874
    %5895 = vmatpush1.bf16.msra.mxu0 %v5873
    %5896 = vmatprep.subr.bf16.mxu0 %v5872
    %5897 = vmatpush1.bf16.msra.mxu0 %v5871
    %5898 = vmatprep.subr.bf16.mxu0 %v5870
    %5899 = vmatpush1.bf16.msra.mxu0 %v5869
    %5900 = vmatprep.subr.bf16.mxu0 %v5868
    %5901 = vmatpush1.bf16.msra.mxu0 %v5867
    %5902 = vmatprep.subr.bf16.mxu0 0
    %5903 = vmatpush2.bf16.msra.mxu0 0
    %5904 = vmatprep.subr.bf16.mxu0 0
    %5905 = vmatpush2.bf16.msra.mxu0 0
    %5906 = vmatprep.subr.bf16.mxu0 0
    %5907 = vmatpush2.bf16.msra.mxu0 0
    %5908 = vmatprep.subr.bf16.mxu0 0
    %5909 = vmatpush2.bf16.msra.mxu0 0
    %5910 = vmatprep.subr.bf16.mxu0 0
    %5911 = vmatpush2.bf16.msra.mxu0 0
    %5912 = vmatprep.subr.bf16.mxu0 0
    %5913 = vmatpush2.bf16.msra.mxu0 0
    %5914 = vmatprep.subr.bf16.mxu0 0
    %5915 = vmatpush2.bf16.msra.mxu0 0
    %5916 = vmatprep.subr.bf16.mxu0 0
    %5917 = vmatpush2.bf16.msra.mxu0 0
    %5918 = vmatprep.mubr.bf16.mxu0 0
    %5919 = vmatmul.mubr.bf16.gmra.mxu0 %v5884
    %v5920 = vpop.f32.mrf.mxu0
    %v5921 = vadd.f32 0.0, %v5920
    %v5922 = vpop.f32.mrf.mxu0
    %v5923 = vadd.f32 0.0, %v5922
    %v5924 = vpop.f32.mrf.mxu0
    %v5925 = vpop.f32.mrf.mxu0
    %5926 = vdwg.mxu0
    %v5927 = vadd.f32 %v5830, %v5921
    %v5928 = vadd.f32 %v5831, %v5923
    %s5929 = scalar_lea.vmem [#allocation4], 36
    %v5930 = vld [vmem:[%s5929] ss:$240 sm:$0x3]
    %v5931 = vpack.c.bf16 %v5930, %v5930
    %v5932 = vld [vmem:[#allocation5 + $0x240] sm:$0xff]
    %v5933 = vld [vmem:[#allocation5 + $0x248] sm:$0xff]
    %v5934 = vld [vmem:[#allocation5 + $0x250] sm:$0xff]
    %v5935 = vld [vmem:[#allocation5 + $0x258] sm:$0xff]
    %v5936 = vld [vmem:[#allocation5 + $0x260] sm:$0xff]
    %v5937 = vld [vmem:[#allocation5 + $0x268] sm:$0xff]
    %v5938 = vld [vmem:[#allocation5 + $0x270] sm:$0xff]
    %v5939 = vld [vmem:[#allocation5 + $0x278] sm:$0xff]
    %v5948 = vunpack.c.l.b16 %v5932
    %v5949 = vunpack.c.h.b16 %v5932
    %v5950 = vunpack.c.l.b16 %v5933
    %v5951 = vunpack.c.h.b16 %v5933
    %v5952 = vunpack.c.l.b16 %v5934
    %v5953 = vunpack.c.h.b16 %v5934
    %v5954 = vunpack.c.l.b16 %v5935
    %v5955 = vunpack.c.h.b16 %v5935
    %v5956 = vunpack.c.l.b16 %v5936
    %v5957 = vunpack.c.h.b16 %v5936
    %v5958 = vunpack.c.l.b16 %v5937
    %v5959 = vunpack.c.h.b16 %v5937
    %v5960 = vunpack.c.l.b16 %v5938
    %v5961 = vunpack.c.h.b16 %v5938
    %v5962 = vunpack.c.l.b16 %v5939
    %v5963 = vunpack.c.h.b16 %v5939
    %v5964 = vpack.c.b16 %v5950, %v5948
    %v5965 = vpack.c.b16 %v5951, %v5949
    %v5966 = vpack.c.b16 %v5954, %v5952
    %v5967 = vpack.c.b16 %v5955, %v5953
    %v5968 = vpack.c.b16 %v5958, %v5956
    %v5969 = vpack.c.b16 %v5959, %v5957
    %v5970 = vpack.c.b16 %v5962, %v5960
    %v5971 = vpack.c.b16 %v5963, %v5961
    %v5981 = vsel %vm1695, %v5931, 0
    %5983 = vmatprep.subr.bf16.mxu0 0
    %5984 = vmatpush1.bf16.msra.mxu0 0
    %5985 = vmatprep.subr.bf16.mxu0 0
    %5986 = vmatpush1.bf16.msra.mxu0 0
    %5987 = vmatprep.subr.bf16.mxu0 0
    %5988 = vmatpush1.bf16.msra.mxu0 0
    %5989 = vmatprep.subr.bf16.mxu0 0
    %5990 = vmatpush1.bf16.msra.mxu0 0
    %5991 = vmatprep.subr.bf16.mxu0 %v5971
    %5992 = vmatpush1.bf16.msra.mxu0 %v5970
    %5993 = vmatprep.subr.bf16.mxu0 %v5969
    %5994 = vmatpush1.bf16.msra.mxu0 %v5968
    %5995 = vmatprep.subr.bf16.mxu0 %v5967
    %5996 = vmatpush1.bf16.msra.mxu0 %v5966
    %5997 = vmatprep.subr.bf16.mxu0 %v5965
    %5998 = vmatpush1.bf16.msra.mxu0 %v5964
    %5999 = vmatprep.subr.bf16.mxu0 0
    %6000 = vmatpush2.bf16.msra.mxu0 0
    %6001 = vmatprep.subr.bf16.mxu0 0
    %6002 = vmatpush2.bf16.msra.mxu0 0
    %6003 = vmatprep.subr.bf16.mxu0 0
    %6004 = vmatpush2.bf16.msra.mxu0 0
    %6005 = vmatprep.subr.bf16.mxu0 0
    %6006 = vmatpush2.bf16.msra.mxu0 0
    %6007 = vmatprep.subr.bf16.mxu0 0
    %6008 = vmatpush2.bf16.msra.mxu0 0
    %6009 = vmatprep.subr.bf16.mxu0 0
    %6010 = vmatpush2.bf16.msra.mxu0 0
    %6011 = vmatprep.subr.bf16.mxu0 0
    %6012 = vmatpush2.bf16.msra.mxu0 0
    %6013 = vmatprep.subr.bf16.mxu0 0
    %6014 = vmatpush2.bf16.msra.mxu0 0
    %6015 = vmatprep.mubr.bf16.mxu0 0
    %6016 = vmatmul.mubr.bf16.gmra.mxu0 %v5981
    %v6017 = vpop.f32.mrf.mxu0
    %v6018 = vadd.f32 0.0, %v6017
    %v6019 = vpop.f32.mrf.mxu0
    %v6020 = vadd.f32 0.0, %v6019
    %v6021 = vpop.f32.mrf.mxu0
    %v6022 = vpop.f32.mrf.mxu0
    %6023 = vdwg.mxu0
    %v6024 = vadd.f32 %v5927, %v6018
    %v6025 = vadd.f32 %v5928, %v6020
    %s6026 = scalar_lea.vmem [#allocation4], 38
    %v6027 = vld [vmem:[%s6026] ss:$240 sm:$0x3]
    %v6028 = vpack.c.bf16 %v6027, %v6027
    %v6029 = vld [vmem:[#allocation5 + $0x280] sm:$0xff]
    %v6030 = vld [vmem:[#allocation5 + $0x288] sm:$0xff]
    %v6031 = vld [vmem:[#allocation5 + $0x290] sm:$0xff]
    %v6032 = vld [vmem:[#allocation5 + $0x298] sm:$0xff]
    %v6033 = vld [vmem:[#allocation5 + $0x2a0] sm:$0xff]
    %v6034 = vld [vmem:[#allocation5 + $0x2a8] sm:$0xff]
    %v6035 = vld [vmem:[#allocation5 + $0x2b0] sm:$0xff]
    %v6036 = vld [vmem:[#allocation5 + $0x2b8] sm:$0xff]
    %v6045 = vunpack.c.l.b16 %v6029
    %v6046 = vunpack.c.h.b16 %v6029
    %v6047 = vunpack.c.l.b16 %v6030
    %v6048 = vunpack.c.h.b16 %v6030
    %v6049 = vunpack.c.l.b16 %v6031
    %v6050 = vunpack.c.h.b16 %v6031
    %v6051 = vunpack.c.l.b16 %v6032
    %v6052 = vunpack.c.h.b16 %v6032
    %v6053 = vunpack.c.l.b16 %v6033
    %v6054 = vunpack.c.h.b16 %v6033
    %v6055 = vunpack.c.l.b16 %v6034
    %v6056 = vunpack.c.h.b16 %v6034
    %v6057 = vunpack.c.l.b16 %v6035
    %v6058 = vunpack.c.h.b16 %v6035
    %v6059 = vunpack.c.l.b16 %v6036
    %v6060 = vunpack.c.h.b16 %v6036
    %v6061 = vpack.c.b16 %v6047, %v6045
    %v6062 = vpack.c.b16 %v6048, %v6046
    %v6063 = vpack.c.b16 %v6051, %v6049
    %v6064 = vpack.c.b16 %v6052, %v6050
    %v6065 = vpack.c.b16 %v6055, %v6053
    %v6066 = vpack.c.b16 %v6056, %v6054
    %v6067 = vpack.c.b16 %v6059, %v6057
    %v6068 = vpack.c.b16 %v6060, %v6058
    %v6078 = vsel %vm1695, %v6028, 0
    %6080 = vmatprep.subr.bf16.mxu0 0
    %6081 = vmatpush1.bf16.msra.mxu0 0
    %6082 = vmatprep.subr.bf16.mxu0 0
    %6083 = vmatpush1.bf16.msra.mxu0 0
    %6084 = vmatprep.subr.bf16.mxu0 0
    %6085 = vmatpush1.bf16.msra.mxu0 0
    %6086 = vmatprep.subr.bf16.mxu0 0
    %6087 = vmatpush1.bf16.msra.mxu0 0
    %6088 = vmatprep.subr.bf16.mxu0 %v6068
    %6089 = vmatpush1.bf16.msra.mxu0 %v6067
    %6090 = vmatprep.subr.bf16.mxu0 %v6066
    %6091 = vmatpush1.bf16.msra.mxu0 %v6065
    %6092 = vmatprep.subr.bf16.mxu0 %v6064
    %6093 = vmatpush1.bf16.msra.mxu0 %v6063
    %6094 = vmatprep.subr.bf16.mxu0 %v6062
    %6095 = vmatpush1.bf16.msra.mxu0 %v6061
    %6096 = vmatprep.subr.bf16.mxu0 0
    %6097 = vmatpush2.bf16.msra.mxu0 0
    %6098 = vmatprep.subr.bf16.mxu0 0
    %6099 = vmatpush2.bf16.msra.mxu0 0
    %6100 = vmatprep.subr.bf16.mxu0 0
    %6101 = vmatpush2.bf16.msra.mxu0 0
    %6102 = vmatprep.subr.bf16.mxu0 0
    %6103 = vmatpush2.bf16.msra.mxu0 0
    %6104 = vmatprep.subr.bf16.mxu0 0
    %6105 = vmatpush2.bf16.msra.mxu0 0
    %6106 = vmatprep.subr.bf16.mxu0 0
    %6107 = vmatpush2.bf16.msra.mxu0 0
    %6108 = vmatprep.subr.bf16.mxu0 0
    %6109 = vmatpush2.bf16.msra.mxu0 0
    %6110 = vmatprep.subr.bf16.mxu0 0
    %6111 = vmatpush2.bf16.msra.mxu0 0
    %6112 = vmatprep.mubr.bf16.mxu0 0
    %6113 = vmatmul.mubr.bf16.gmra.mxu0 %v6078
    %v6114 = vpop.f32.mrf.mxu0
    %v6115 = vadd.f32 0.0, %v6114
    %v6116 = vpop.f32.mrf.mxu0
    %v6117 = vadd.f32 0.0, %v6116
    %v6118 = vpop.f32.mrf.mxu0
    %v6119 = vpop.f32.mrf.mxu0
    %6120 = vdwg.mxu0
    %v6121 = vadd.f32 %v6024, %v6115
    %v6122 = vadd.f32 %v6025, %v6117
    %s6123 = scalar_lea.vmem [#allocation4], 40
    %v6124 = vld [vmem:[%s6123] ss:$240 sm:$0x3]
    %v6125 = vpack.c.bf16 %v6124, %v6124
    %v6126 = vld [vmem:[#allocation5 + $0x2c0] sm:$0xff]
    %v6127 = vld [vmem:[#allocation5 + $0x2c8] sm:$0xff]
    %v6128 = vld [vmem:[#allocation5 + $0x2d0] sm:$0xff]
    %v6129 = vld [vmem:[#allocation5 + $0x2d8] sm:$0xff]
    %v6130 = vld [vmem:[#allocation5 + $0x2e0] sm:$0xff]
    %v6131 = vld [vmem:[#allocation5 + $0x2e8] sm:$0xff]
    %v6132 = vld [vmem:[#allocation5 + $0x2f0] sm:$0xff]
    %v6133 = vld [vmem:[#allocation5 + $0x2f8] sm:$0xff]
    %v6142 = vunpack.c.l.b16 %v6126
    %v6143 = vunpack.c.h.b16 %v6126
    %v6144 = vunpack.c.l.b16 %v6127
    %v6145 = vunpack.c.h.b16 %v6127
    %v6146 = vunpack.c.l.b16 %v6128
    %v6147 = vunpack.c.h.b16 %v6128
    %v6148 = vunpack.c.l.b16 %v6129
    %v6149 = vunpack.c.h.b16 %v6129
    %v6150 = vunpack.c.l.b16 %v6130
    %v6151 = vunpack.c.h.b16 %v6130
    %v6152 = vunpack.c.l.b16 %v6131
    %v6153 = vunpack.c.h.b16 %v6131
    %v6154 = vunpack.c.l.b16 %v6132
    %v6155 = vunpack.c.h.b16 %v6132
    %v6156 = vunpack.c.l.b16 %v6133
    %v6157 = vunpack.c.h.b16 %v6133
    %v6158 = vpack.c.b16 %v6144, %v6142
    %v6159 = vpack.c.b16 %v6145, %v6143
    %v6160 = vpack.c.b16 %v6148, %v6146
    %v6161 = vpack.c.b16 %v6149, %v6147
    %v6162 = vpack.c.b16 %v6152, %v6150
    %v6163 = vpack.c.b16 %v6153, %v6151
    %v6164 = vpack.c.b16 %v6156, %v6154
    %v6165 = vpack.c.b16 %v6157, %v6155
    %v6175 = vsel %vm1695, %v6125, 0
    %6177 = vmatprep.subr.bf16.mxu0 0
    %6178 = vmatpush1.bf16.msra.mxu0 0
    %6179 = vmatprep.subr.bf16.mxu0 0
    %6180 = vmatpush1.bf16.msra.mxu0 0
    %6181 = vmatprep.subr.bf16.mxu0 0
    %6182 = vmatpush1.bf16.msra.mxu0 0
    %6183 = vmatprep.subr.bf16.mxu0 0
    %6184 = vmatpush1.bf16.msra.mxu0 0
    %6185 = vmatprep.subr.bf16.mxu0 %v6165
    %6186 = vmatpush1.bf16.msra.mxu0 %v6164
    %6187 = vmatprep.subr.bf16.mxu0 %v6163
    %6188 = vmatpush1.bf16.msra.mxu0 %v6162
    %6189 = vmatprep.subr.bf16.mxu0 %v6161
    %6190 = vmatpush1.bf16.msra.mxu0 %v6160
    %6191 = vmatprep.subr.bf16.mxu0 %v6159
    %6192 = vmatpush1.bf16.msra.mxu0 %v6158
    %6193 = vmatprep.subr.bf16.mxu0 0
    %6194 = vmatpush2.bf16.msra.mxu0 0
    %6195 = vmatprep.subr.bf16.mxu0 0
    %6196 = vmatpush2.bf16.msra.mxu0 0
    %6197 = vmatprep.subr.bf16.mxu0 0
    %6198 = vmatpush2.bf16.msra.mxu0 0
    %6199 = vmatprep.subr.bf16.mxu0 0
    %6200 = vmatpush2.bf16.msra.mxu0 0
    %6201 = vmatprep.subr.bf16.mxu0 0
    %6202 = vmatpush2.bf16.msra.mxu0 0
    %6203 = vmatprep.subr.bf16.mxu0 0
    %6204 = vmatpush2.bf16.msra.mxu0 0
    %6205 = vmatprep.subr.bf16.mxu0 0
    %6206 = vmatpush2.bf16.msra.mxu0 0
    %6207 = vmatprep.subr.bf16.mxu0 0
    %6208 = vmatpush2.bf16.msra.mxu0 0
    %6209 = vmatprep.mubr.bf16.mxu0 0
    %6210 = vmatmul.mubr.bf16.gmra.mxu0 %v6175
    %v6211 = vpop.f32.mrf.mxu0
    %v6212 = vadd.f32 0.0, %v6211
    %v6213 = vpop.f32.mrf.mxu0
    %v6214 = vadd.f32 0.0, %v6213
    %v6215 = vpop.f32.mrf.mxu0
    %v6216 = vpop.f32.mrf.mxu0
    %6217 = vdwg.mxu0
    %v6218 = vadd.f32 %v6121, %v6212
    %v6219 = vadd.f32 %v6122, %v6214
    %s6220 = scalar_lea.vmem [#allocation4], 42
    %v6221 = vld [vmem:[%s6220] ss:$240 sm:$0x3]
    %v6222 = vpack.c.bf16 %v6221, %v6221
    %v6223 = vld [vmem:[#allocation5 + $0x300] sm:$0xff]
    %v6224 = vld [vmem:[#allocation5 + $0x308] sm:$0xff]
    %v6225 = vld [vmem:[#allocation5 + $0x310] sm:$0xff]
    %v6226 = vld [vmem:[#allocation5 + $0x318] sm:$0xff]
    %v6227 = vld [vmem:[#allocation5 + $0x320] sm:$0xff]
    %v6228 = vld [vmem:[#allocation5 + $0x328] sm:$0xff]
    %v6229 = vld [vmem:[#allocation5 + $0x330] sm:$0xff]
    %v6230 = vld [vmem:[#allocation5 + $0x338] sm:$0xff]
    %v6239 = vunpack.c.l.b16 %v6223
    %v6240 = vunpack.c.h.b16 %v6223
    %v6241 = vunpack.c.l.b16 %v6224
    %v6242 = vunpack.c.h.b16 %v6224
    %v6243 = vunpack.c.l.b16 %v6225
    %v6244 = vunpack.c.h.b16 %v6225
    %v6245 = vunpack.c.l.b16 %v6226
    %v6246 = vunpack.c.h.b16 %v6226
    %v6247 = vunpack.c.l.b16 %v6227
    %v6248 = vunpack.c.h.b16 %v6227
    %v6249 = vunpack.c.l.b16 %v6228
    %v6250 = vunpack.c.h.b16 %v6228
    %v6251 = vunpack.c.l.b16 %v6229
    %v6252 = vunpack.c.h.b16 %v6229
    %v6253 = vunpack.c.l.b16 %v6230
    %v6254 = vunpack.c.h.b16 %v6230
    %v6255 = vpack.c.b16 %v6241, %v6239
    %v6256 = vpack.c.b16 %v6242, %v6240
    %v6257 = vpack.c.b16 %v6245, %v6243
    %v6258 = vpack.c.b16 %v6246, %v6244
    %v6259 = vpack.c.b16 %v6249, %v6247
    %v6260 = vpack.c.b16 %v6250, %v6248
    %v6261 = vpack.c.b16 %v6253, %v6251
    %v6262 = vpack.c.b16 %v6254, %v6252
    %v6272 = vsel %vm1695, %v6222, 0
    %6274 = vmatprep.subr.bf16.mxu0 0
    %6275 = vmatpush1.bf16.msra.mxu0 0
    %6276 = vmatprep.subr.bf16.mxu0 0
    %6277 = vmatpush1.bf16.msra.mxu0 0
    %6278 = vmatprep.subr.bf16.mxu0 0
    %6279 = vmatpush1.bf16.msra.mxu0 0
    %6280 = vmatprep.subr.bf16.mxu0 0
    %6281 = vmatpush1.bf16.msra.mxu0 0
    %6282 = vmatprep.subr.bf16.mxu0 %v6262
    %6283 = vmatpush1.bf16.msra.mxu0 %v6261
    %6284 = vmatprep.subr.bf16.mxu0 %v6260
    %6285 = vmatpush1.bf16.msra.mxu0 %v6259
    %6286 = vmatprep.subr.bf16.mxu0 %v6258
    %6287 = vmatpush1.bf16.msra.mxu0 %v6257
    %6288 = vmatprep.subr.bf16.mxu0 %v6256
    %6289 = vmatpush1.bf16.msra.mxu0 %v6255
    %6290 = vmatprep.subr.bf16.mxu0 0
    %6291 = vmatpush2.bf16.msra.mxu0 0
    %6292 = vmatprep.subr.bf16.mxu0 0
    %6293 = vmatpush2.bf16.msra.mxu0 0
    %6294 = vmatprep.subr.bf16.mxu0 0
    %6295 = vmatpush2.bf16.msra.mxu0 0
    %6296 = vmatprep.subr.bf16.mxu0 0
    %6297 = vmatpush2.bf16.msra.mxu0 0
    %6298 = vmatprep.subr.bf16.mxu0 0
    %6299 = vmatpush2.bf16.msra.mxu0 0
    %6300 = vmatprep.subr.bf16.mxu0 0
    %6301 = vmatpush2.bf16.msra.mxu0 0
    %6302 = vmatprep.subr.bf16.mxu0 0
    %6303 = vmatpush2.bf16.msra.mxu0 0
    %6304 = vmatprep.subr.bf16.mxu0 0
    %6305 = vmatpush2.bf16.msra.mxu0 0
    %6306 = vmatprep.mubr.bf16.mxu0 0
    %6307 = vmatmul.mubr.bf16.gmra.mxu0 %v6272
    %v6308 = vpop.f32.mrf.mxu0
    %v6309 = vadd.f32 0.0, %v6308
    %v6310 = vpop.f32.mrf.mxu0
    %v6311 = vadd.f32 0.0, %v6310
    %v6312 = vpop.f32.mrf.mxu0
    %v6313 = vpop.f32.mrf.mxu0
    %6314 = vdwg.mxu0
    %v6315 = vadd.f32 %v6218, %v6309
    %v6316 = vadd.f32 %v6219, %v6311
    %s6317 = scalar_lea.vmem [#allocation4], 44
    %v6318 = vld [vmem:[%s6317] ss:$240 sm:$0x3]
    %v6319 = vpack.c.bf16 %v6318, %v6318
    %v6320 = vld [vmem:[#allocation5 + $0x340] sm:$0xff]
    %v6321 = vld [vmem:[#allocation5 + $0x348] sm:$0xff]
    %v6322 = vld [vmem:[#allocation5 + $0x350] sm:$0xff]
    %v6323 = vld [vmem:[#allocation5 + $0x358] sm:$0xff]
    %v6324 = vld [vmem:[#allocation5 + $0x360] sm:$0xff]
    %v6325 = vld [vmem:[#allocation5 + $0x368] sm:$0xff]
    %v6326 = vld [vmem:[#allocation5 + $0x370] sm:$0xff]
    %v6327 = vld [vmem:[#allocation5 + $0x378] sm:$0xff]
    %v6336 = vunpack.c.l.b16 %v6320
    %v6337 = vunpack.c.h.b16 %v6320
    %v6338 = vunpack.c.l.b16 %v6321
    %v6339 = vunpack.c.h.b16 %v6321
    %v6340 = vunpack.c.l.b16 %v6322
    %v6341 = vunpack.c.h.b16 %v6322
    %v6342 = vunpack.c.l.b16 %v6323
    %v6343 = vunpack.c.h.b16 %v6323
    %v6344 = vunpack.c.l.b16 %v6324
    %v6345 = vunpack.c.h.b16 %v6324
    %v6346 = vunpack.c.l.b16 %v6325
    %v6347 = vunpack.c.h.b16 %v6325
    %v6348 = vunpack.c.l.b16 %v6326
    %v6349 = vunpack.c.h.b16 %v6326
    %v6350 = vunpack.c.l.b16 %v6327
    %v6351 = vunpack.c.h.b16 %v6327
    %v6352 = vpack.c.b16 %v6338, %v6336
    %v6353 = vpack.c.b16 %v6339, %v6337
    %v6354 = vpack.c.b16 %v6342, %v6340
    %v6355 = vpack.c.b16 %v6343, %v6341
    %v6356 = vpack.c.b16 %v6346, %v6344
    %v6357 = vpack.c.b16 %v6347, %v6345
    %v6358 = vpack.c.b16 %v6350, %v6348
    %v6359 = vpack.c.b16 %v6351, %v6349
    %v6369 = vsel %vm1695, %v6319, 0
    %6371 = vmatprep.subr.bf16.mxu0 0
    %6372 = vmatpush1.bf16.msra.mxu0 0
    %6373 = vmatprep.subr.bf16.mxu0 0
    %6374 = vmatpush1.bf16.msra.mxu0 0
    %6375 = vmatprep.subr.bf16.mxu0 0
    %6376 = vmatpush1.bf16.msra.mxu0 0
    %6377 = vmatprep.subr.bf16.mxu0 0
    %6378 = vmatpush1.bf16.msra.mxu0 0
    %6379 = vmatprep.subr.bf16.mxu0 %v6359
    %6380 = vmatpush1.bf16.msra.mxu0 %v6358
    %6381 = vmatprep.subr.bf16.mxu0 %v6357
    %6382 = vmatpush1.bf16.msra.mxu0 %v6356
    %6383 = vmatprep.subr.bf16.mxu0 %v6355
    %6384 = vmatpush1.bf16.msra.mxu0 %v6354
    %6385 = vmatprep.subr.bf16.mxu0 %v6353
    %6386 = vmatpush1.bf16.msra.mxu0 %v6352
    %6387 = vmatprep.subr.bf16.mxu0 0
    %6388 = vmatpush2.bf16.msra.mxu0 0
    %6389 = vmatprep.subr.bf16.mxu0 0
    %6390 = vmatpush2.bf16.msra.mxu0 0
    %6391 = vmatprep.subr.bf16.mxu0 0
    %6392 = vmatpush2.bf16.msra.mxu0 0
    %6393 = vmatprep.subr.bf16.mxu0 0
    %6394 = vmatpush2.bf16.msra.mxu0 0
    %6395 = vmatprep.subr.bf16.mxu0 0
    %6396 = vmatpush2.bf16.msra.mxu0 0
    %6397 = vmatprep.subr.bf16.mxu0 0
    %6398 = vmatpush2.bf16.msra.mxu0 0
    %6399 = vmatprep.subr.bf16.mxu0 0
    %6400 = vmatpush2.bf16.msra.mxu0 0
    %6401 = vmatprep.subr.bf16.mxu0 0
    %6402 = vmatpush2.bf16.msra.mxu0 0
    %6403 = vmatprep.mubr.bf16.mxu0 0
    %6404 = vmatmul.mubr.bf16.gmra.mxu0 %v6369
    %v6405 = vpop.f32.mrf.mxu0
    %v6406 = vadd.f32 0.0, %v6405
    %v6407 = vpop.f32.mrf.mxu0
    %v6408 = vadd.f32 0.0, %v6407
    %v6409 = vpop.f32.mrf.mxu0
    %v6410 = vpop.f32.mrf.mxu0
    %6411 = vdwg.mxu0
    %v6412 = vadd.f32 %v6315, %v6406
    %v6413 = vadd.f32 %v6316, %v6408
    %s6414 = scalar_lea.vmem [#allocation4], 64
    %v6415 = vld [vmem:[%s6414] ss:$240 sm:$0x3]
    %v6416 = vpack.c.bf16 %v6415, %v6415
    %v6417 = vld [vmem:[#allocation5 + $0x380] sm:$0xff]
    %v6418 = vld [vmem:[#allocation5 + $0x388] sm:$0xff]
    %v6419 = vld [vmem:[#allocation5 + $0x390] sm:$0xff]
    %v6420 = vld [vmem:[#allocation5 + $0x398] sm:$0xff]
    %v6421 = vld [vmem:[#allocation5 + $0x3a0] sm:$0xff]
    %v6422 = vld [vmem:[#allocation5 + $0x3a8] sm:$0xff]
    %v6423 = vld [vmem:[#allocation5 + $0x3b0] sm:$0xff]
    %v6424 = vld [vmem:[#allocation5 + $0x3b8] sm:$0xff]
    %v6433 = vunpack.c.l.b16 %v6417
    %v6434 = vunpack.c.h.b16 %v6417
    %v6435 = vunpack.c.l.b16 %v6418
    %v6436 = vunpack.c.h.b16 %v6418
    %v6437 = vunpack.c.l.b16 %v6419
    %v6438 = vunpack.c.h.b16 %v6419
    %v6439 = vunpack.c.l.b16 %v6420
    %v6440 = vunpack.c.h.b16 %v6420
    %v6441 = vunpack.c.l.b16 %v6421
    %v6442 = vunpack.c.h.b16 %v6421
    %v6443 = vunpack.c.l.b16 %v6422
    %v6444 = vunpack.c.h.b16 %v6422
    %v6445 = vunpack.c.l.b16 %v6423
    %v6446 = vunpack.c.h.b16 %v6423
    %v6447 = vunpack.c.l.b16 %v6424
    %v6448 = vunpack.c.h.b16 %v6424
    %v6449 = vpack.c.b16 %v6435, %v6433
    %v6450 = vpack.c.b16 %v6436, %v6434
    %v6451 = vpack.c.b16 %v6439, %v6437
    %v6452 = vpack.c.b16 %v6440, %v6438
    %v6453 = vpack.c.b16 %v6443, %v6441
    %v6454 = vpack.c.b16 %v6444, %v6442
    %v6455 = vpack.c.b16 %v6447, %v6445
    %v6456 = vpack.c.b16 %v6448, %v6446
    %v6466 = vsel %vm1695, %v6416, 0
    %6468 = vmatprep.subr.bf16.mxu0 0
    %6469 = vmatpush1.bf16.msra.mxu0 0
    %6470 = vmatprep.subr.bf16.mxu0 0
    %6471 = vmatpush1.bf16.msra.mxu0 0
    %6472 = vmatprep.subr.bf16.mxu0 0
    %6473 = vmatpush1.bf16.msra.mxu0 0
    %6474 = vmatprep.subr.bf16.mxu0 0
    %6475 = vmatpush1.bf16.msra.mxu0 0
    %6476 = vmatprep.subr.bf16.mxu0 %v6456
    %6477 = vmatpush1.bf16.msra.mxu0 %v6455
    %6478 = vmatprep.subr.bf16.mxu0 %v6454
    %6479 = vmatpush1.bf16.msra.mxu0 %v6453
    %6480 = vmatprep.subr.bf16.mxu0 %v6452
    %6481 = vmatpush1.bf16.msra.mxu0 %v6451
    %6482 = vmatprep.subr.bf16.mxu0 %v6450
    %6483 = vmatpush1.bf16.msra.mxu0 %v6449
    %6484 = vmatprep.subr.bf16.mxu0 0
    %6485 = vmatpush2.bf16.msra.mxu0 0
    %6486 = vmatprep.subr.bf16.mxu0 0
    %6487 = vmatpush2.bf16.msra.mxu0 0
    %6488 = vmatprep.subr.bf16.mxu0 0
    %6489 = vmatpush2.bf16.msra.mxu0 0
    %6490 = vmatprep.subr.bf16.mxu0 0
    %6491 = vmatpush2.bf16.msra.mxu0 0
    %6492 = vmatprep.subr.bf16.mxu0 0
    %6493 = vmatpush2.bf16.msra.mxu0 0
    %6494 = vmatprep.subr.bf16.mxu0 0
    %6495 = vmatpush2.bf16.msra.mxu0 0
    %6496 = vmatprep.subr.bf16.mxu0 0
    %6497 = vmatpush2.bf16.msra.mxu0 0
    %6498 = vmatprep.subr.bf16.mxu0 0
    %6499 = vmatpush2.bf16.msra.mxu0 0
    %6500 = vmatprep.mubr.bf16.mxu0 0
    %6501 = vmatmul.mubr.bf16.gmra.mxu0 %v6466
    %v6502 = vpop.f32.mrf.mxu0
    %v6503 = vadd.f32 0.0, %v6502
    %v6504 = vpop.f32.mrf.mxu0
    %v6505 = vadd.f32 0.0, %v6504
    %v6506 = vpop.f32.mrf.mxu0
    %v6507 = vpop.f32.mrf.mxu0
    %6508 = vdwg.mxu0
    %v6509 = vadd.f32 %v6412, %v6503
    %v6510 = vadd.f32 %v6413, %v6505
    %s6511 = scalar_lea.vmem [#allocation4], 66
    %v6512 = vld [vmem:[%s6511] ss:$240 sm:$0x3]
    %v6513 = vpack.c.bf16 %v6512, %v6512
    %v6514 = vld [vmem:[#allocation5 + $0x3c0] sm:$0xff]
    %v6515 = vld [vmem:[#allocation5 + $0x3c8] sm:$0xff]
    %v6516 = vld [vmem:[#allocation5 + $0x3d0] sm:$0xff]
    %v6517 = vld [vmem:[#allocation5 + $0x3d8] sm:$0xff]
    %v6518 = vld [vmem:[#allocation5 + $0x3e0] sm:$0xff]
    %v6519 = vld [vmem:[#allocation5 + $0x3e8] sm:$0xff]
    %v6520 = vld [vmem:[#allocation5 + $0x3f0] sm:$0xff]
    %v6521 = vld [vmem:[#allocation5 + $0x3f8] sm:$0xff]
    %v6530 = vunpack.c.l.b16 %v6514
    %v6531 = vunpack.c.h.b16 %v6514
    %v6532 = vunpack.c.l.b16 %v6515
    %v6533 = vunpack.c.h.b16 %v6515
    %v6534 = vunpack.c.l.b16 %v6516
    %v6535 = vunpack.c.h.b16 %v6516
    %v6536 = vunpack.c.l.b16 %v6517
    %v6537 = vunpack.c.h.b16 %v6517
    %v6538 = vunpack.c.l.b16 %v6518
    %v6539 = vunpack.c.h.b16 %v6518
    %v6540 = vunpack.c.l.b16 %v6519
    %v6541 = vunpack.c.h.b16 %v6519
    %v6542 = vunpack.c.l.b16 %v6520
    %v6543 = vunpack.c.h.b16 %v6520
    %v6544 = vunpack.c.l.b16 %v6521
    %v6545 = vunpack.c.h.b16 %v6521
    %v6546 = vpack.c.b16 %v6532, %v6530
    %v6547 = vpack.c.b16 %v6533, %v6531
    %v6548 = vpack.c.b16 %v6536, %v6534
    %v6549 = vpack.c.b16 %v6537, %v6535
    %v6550 = vpack.c.b16 %v6540, %v6538
    %v6551 = vpack.c.b16 %v6541, %v6539
    %v6552 = vpack.c.b16 %v6544, %v6542
    %v6553 = vpack.c.b16 %v6545, %v6543
    %v6563 = vsel %vm1695, %v6513, 0
    %6565 = vmatprep.subr.bf16.mxu0 0
    %6566 = vmatpush1.bf16.msra.mxu0 0
    %6567 = vmatprep.subr.bf16.mxu0 0
    %6568 = vmatpush1.bf16.msra.mxu0 0
    %6569 = vmatprep.subr.bf16.mxu0 0
    %6570 = vmatpush1.bf16.msra.mxu0 0
    %6571 = vmatprep.subr.bf16.mxu0 0
    %6572 = vmatpush1.bf16.msra.mxu0 0
    %6573 = vmatprep.subr.bf16.mxu0 %v6553
    %6574 = vmatpush1.bf16.msra.mxu0 %v6552
    %6575 = vmatprep.subr.bf16.mxu0 %v6551
    %6576 = vmatpush1.bf16.msra.mxu0 %v6550
    %6577 = vmatprep.subr.bf16.mxu0 %v6549
    %6578 = vmatpush1.bf16.msra.mxu0 %v6548
    %6579 = vmatprep.subr.bf16.mxu0 %v6547
    %6580 = vmatpush1.bf16.msra.mxu0 %v6546
    %6581 = vmatprep.subr.bf16.mxu0 0
    %6582 = vmatpush2.bf16.msra.mxu0 0
    %6583 = vmatprep.subr.bf16.mxu0 0
    %6584 = vmatpush2.bf16.msra.mxu0 0
    %6585 = vmatprep.subr.bf16.mxu0 0
    %6586 = vmatpush2.bf16.msra.mxu0 0
    %6587 = vmatprep.subr.bf16.mxu0 0
    %6588 = vmatpush2.bf16.msra.mxu0 0
    %6589 = vmatprep.subr.bf16.mxu0 0
    %6590 = vmatpush2.bf16.msra.mxu0 0
    %6591 = vmatprep.subr.bf16.mxu0 0
    %6592 = vmatpush2.bf16.msra.mxu0 0
    %6593 = vmatprep.subr.bf16.mxu0 0
    %6594 = vmatpush2.bf16.msra.mxu0 0
    %6595 = vmatprep.subr.bf16.mxu0 0
    %6596 = vmatpush2.bf16.msra.mxu0 0
    %6597 = vmatprep.mubr.bf16.mxu0 0
    %6598 = vmatmul.mubr.bf16.gmra.mxu0 %v6563
    %v6599 = vpop.f32.mrf.mxu0
    %v6600 = vadd.f32 0.0, %v6599
    %v6601 = vpop.f32.mrf.mxu0
    %v6602 = vadd.f32 0.0, %v6601
    %v6603 = vpop.f32.mrf.mxu0
    %v6604 = vpop.f32.mrf.mxu0
    %6605 = vdwg.mxu0
    %v6606 = vadd.f32 %v6509, %v6600
    %v6607 = vadd.f32 %v6510, %v6602
    %s6608 = scalar_lea.vmem [#allocation4], 68
    %v6609 = vld [vmem:[%s6608] ss:$240 sm:$0x3]
    %v6610 = vpack.c.bf16 %v6609, %v6609
    %v6611 = vld [vmem:[#allocation5 + $0x400] sm:$0xff]
    %v6612 = vld [vmem:[#allocation5 + $0x408] sm:$0xff]
    %v6613 = vld [vmem:[#allocation5 + $0x410] sm:$0xff]
    %v6614 = vld [vmem:[#allocation5 + $0x418] sm:$0xff]
    %v6615 = vld [vmem:[#allocation5 + $0x420] sm:$0xff]
    %v6616 = vld [vmem:[#allocation5 + $0x428] sm:$0xff]
    %v6617 = vld [vmem:[#allocation5 + $0x430] sm:$0xff]
    %v6618 = vld [vmem:[#allocation5 + $0x438] sm:$0xff]
    %v6627 = vunpack.c.l.b16 %v6611
    %v6628 = vunpack.c.h.b16 %v6611
    %v6629 = vunpack.c.l.b16 %v6612
    %v6630 = vunpack.c.h.b16 %v6612
    %v6631 = vunpack.c.l.b16 %v6613
    %v6632 = vunpack.c.h.b16 %v6613
    %v6633 = vunpack.c.l.b16 %v6614
    %v6634 = vunpack.c.h.b16 %v6614
    %v6635 = vunpack.c.l.b16 %v6615
    %v6636 = vunpack.c.h.b16 %v6615
    %v6637 = vunpack.c.l.b16 %v6616
    %v6638 = vunpack.c.h.b16 %v6616
    %v6639 = vunpack.c.l.b16 %v6617
    %v6640 = vunpack.c.h.b16 %v6617
    %v6641 = vunpack.c.l.b16 %v6618
    %v6642 = vunpack.c.h.b16 %v6618
    %v6643 = vpack.c.b16 %v6629, %v6627
    %v6644 = vpack.c.b16 %v6630, %v6628
    %v6645 = vpack.c.b16 %v6633, %v6631
    %v6646 = vpack.c.b16 %v6634, %v6632
    %v6647 = vpack.c.b16 %v6637, %v6635
    %v6648 = vpack.c.b16 %v6638, %v6636
    %v6649 = vpack.c.b16 %v6641, %v6639
    %v6650 = vpack.c.b16 %v6642, %v6640
    %v6660 = vsel %vm1695, %v6610, 0
    %6662 = vmatprep.subr.bf16.mxu0 0
    %6663 = vmatpush1.bf16.msra.mxu0 0
    %6664 = vmatprep.subr.bf16.mxu0 0
    %6665 = vmatpush1.bf16.msra.mxu0 0
    %6666 = vmatprep.subr.bf16.mxu0 0
    %6667 = vmatpush1.bf16.msra.mxu0 0
    %6668 = vmatprep.subr.bf16.mxu0 0
    %6669 = vmatpush1.bf16.msra.mxu0 0
    %6670 = vmatprep.subr.bf16.mxu0 %v6650
    %6671 = vmatpush1.bf16.msra.mxu0 %v6649
    %6672 = vmatprep.subr.bf16.mxu0 %v6648
    %6673 = vmatpush1.bf16.msra.mxu0 %v6647
    %6674 = vmatprep.subr.bf16.mxu0 %v6646
    %6675 = vmatpush1.bf16.msra.mxu0 %v6645
    %6676 = vmatprep.subr.bf16.mxu0 %v6644
    %6677 = vmatpush1.bf16.msra.mxu0 %v6643
    %6678 = vmatprep.subr.bf16.mxu0 0
    %6679 = vmatpush2.bf16.msra.mxu0 0
    %6680 = vmatprep.subr.bf16.mxu0 0
    %6681 = vmatpush2.bf16.msra.mxu0 0
    %6682 = vmatprep.subr.bf16.mxu0 0
    %6683 = vmatpush2.bf16.msra.mxu0 0
    %6684 = vmatprep.subr.bf16.mxu0 0
    %6685 = vmatpush2.bf16.msra.mxu0 0
    %6686 = vmatprep.subr.bf16.mxu0 0
    %6687 = vmatpush2.bf16.msra.mxu0 0
    %6688 = vmatprep.subr.bf16.mxu0 0
    %6689 = vmatpush2.bf16.msra.mxu0 0
    %6690 = vmatprep.subr.bf16.mxu0 0
    %6691 = vmatpush2.bf16.msra.mxu0 0
    %6692 = vmatprep.subr.bf16.mxu0 0
    %6693 = vmatpush2.bf16.msra.mxu0 0
    %6694 = vmatprep.mubr.bf16.mxu0 0
    %6695 = vmatmul.mubr.bf16.gmra.mxu0 %v6660
    %v6696 = vpop.f32.mrf.mxu0
    %v6697 = vadd.f32 0.0, %v6696
    %v6698 = vpop.f32.mrf.mxu0
    %v6699 = vadd.f32 0.0, %v6698
    %v6700 = vpop.f32.mrf.mxu0
    %v6701 = vpop.f32.mrf.mxu0
    %6702 = vdwg.mxu0
    %v6703 = vadd.f32 %v6606, %v6697
    %v6704 = vadd.f32 %v6607, %v6699
    %s6705 = scalar_lea.vmem [#allocation4], 70
    %v6706 = vld [vmem:[%s6705] ss:$240 sm:$0x3]
    %v6707 = vpack.c.bf16 %v6706, %v6706
    %v6708 = vld [vmem:[#allocation5 + $0x440] sm:$0xff]
    %v6709 = vld [vmem:[#allocation5 + $0x448] sm:$0xff]
    %v6710 = vld [vmem:[#allocation5 + $0x450] sm:$0xff]
    %v6711 = vld [vmem:[#allocation5 + $0x458] sm:$0xff]
    %v6712 = vld [vmem:[#allocation5 + $0x460] sm:$0xff]
    %v6713 = vld [vmem:[#allocation5 + $0x468] sm:$0xff]
    %v6714 = vld [vmem:[#allocation5 + $0x470] sm:$0xff]
    %v6715 = vld [vmem:[#allocation5 + $0x478] sm:$0xff]
    %v6724 = vunpack.c.l.b16 %v6708
    %v6725 = vunpack.c.h.b16 %v6708
    %v6726 = vunpack.c.l.b16 %v6709
    %v6727 = vunpack.c.h.b16 %v6709
    %v6728 = vunpack.c.l.b16 %v6710
    %v6729 = vunpack.c.h.b16 %v6710
    %v6730 = vunpack.c.l.b16 %v6711
    %v6731 = vunpack.c.h.b16 %v6711
    %v6732 = vunpack.c.l.b16 %v6712
    %v6733 = vunpack.c.h.b16 %v6712
    %v6734 = vunpack.c.l.b16 %v6713
    %v6735 = vunpack.c.h.b16 %v6713
    %v6736 = vunpack.c.l.b16 %v6714
    %v6737 = vunpack.c.h.b16 %v6714
    %v6738 = vunpack.c.l.b16 %v6715
    %v6739 = vunpack.c.h.b16 %v6715
    %v6740 = vpack.c.b16 %v6726, %v6724
    %v6741 = vpack.c.b16 %v6727, %v6725
    %v6742 = vpack.c.b16 %v6730, %v6728
    %v6743 = vpack.c.b16 %v6731, %v6729
    %v6744 = vpack.c.b16 %v6734, %v6732
    %v6745 = vpack.c.b16 %v6735, %v6733
    %v6746 = vpack.c.b16 %v6738, %v6736
    %v6747 = vpack.c.b16 %v6739, %v6737
    %v6757 = vsel %vm1695, %v6707, 0
    %6759 = vmatprep.subr.bf16.mxu0 0
    %6760 = vmatpush1.bf16.msra.mxu0 0
    %6761 = vmatprep.subr.bf16.mxu0 0
    %6762 = vmatpush1.bf16.msra.mxu0 0
    %6763 = vmatprep.subr.bf16.mxu0 0
    %6764 = vmatpush1.bf16.msra.mxu0 0
    %6765 = vmatprep.subr.bf16.mxu0 0
    %6766 = vmatpush1.bf16.msra.mxu0 0
    %6767 = vmatprep.subr.bf16.mxu0 %v6747
    %6768 = vmatpush1.bf16.msra.mxu0 %v6746
    %6769 = vmatprep.subr.bf16.mxu0 %v6745
    %6770 = vmatpush1.bf16.msra.mxu0 %v6744
    %6771 = vmatprep.subr.bf16.mxu0 %v6743
    %6772 = vmatpush1.bf16.msra.mxu0 %v6742
    %6773 = vmatprep.subr.bf16.mxu0 %v6741
    %6774 = vmatpush1.bf16.msra.mxu0 %v6740
    %6775 = vmatprep.subr.bf16.mxu0 0
    %6776 = vmatpush2.bf16.msra.mxu0 0
    %6777 = vmatprep.subr.bf16.mxu0 0
    %6778 = vmatpush2.bf16.msra.mxu0 0
    %6779 = vmatprep.subr.bf16.mxu0 0
    %6780 = vmatpush2.bf16.msra.mxu0 0
    %6781 = vmatprep.subr.bf16.mxu0 0
    %6782 = vmatpush2.bf16.msra.mxu0 0
    %6783 = vmatprep.subr.bf16.mxu0 0
    %6784 = vmatpush2.bf16.msra.mxu0 0
    %6785 = vmatprep.subr.bf16.mxu0 0
    %6786 = vmatpush2.bf16.msra.mxu0 0
    %6787 = vmatprep.subr.bf16.mxu0 0
    %6788 = vmatpush2.bf16.msra.mxu0 0
    %6789 = vmatprep.subr.bf16.mxu0 0
    %6790 = vmatpush2.bf16.msra.mxu0 0
    %6791 = vmatprep.mubr.bf16.mxu0 0
    %6792 = vmatmul.mubr.bf16.gmra.mxu0 %v6757
    %v6793 = vpop.f32.mrf.mxu0
    %v6794 = vadd.f32 0.0, %v6793
    %v6795 = vpop.f32.mrf.mxu0
    %v6796 = vadd.f32 0.0, %v6795
    %v6797 = vpop.f32.mrf.mxu0
    %v6798 = vpop.f32.mrf.mxu0
    %6799 = vdwg.mxu0
    %v6800 = vadd.f32 %v6703, %v6794
    %v6801 = vadd.f32 %v6704, %v6796
    %s6802 = scalar_lea.vmem [#allocation4], 72
    %v6803 = vld [vmem:[%s6802] ss:$240 sm:$0x3]
    %v6804 = vpack.c.bf16 %v6803, %v6803
    %v6805 = vld [vmem:[#allocation5 + $0x480] sm:$0xff]
    %v6806 = vld [vmem:[#allocation5 + $0x488] sm:$0xff]
    %v6807 = vld [vmem:[#allocation5 + $0x490] sm:$0xff]
    %v6808 = vld [vmem:[#allocation5 + $0x498] sm:$0xff]
    %v6809 = vld [vmem:[#allocation5 + $0x4a0] sm:$0xff]
    %v6810 = vld [vmem:[#allocation5 + $0x4a8] sm:$0xff]
    %v6811 = vld [vmem:[#allocation5 + $0x4b0] sm:$0xff]
    %v6812 = vld [vmem:[#allocation5 + $0x4b8] sm:$0xff]
    %v6821 = vunpack.c.l.b16 %v6805
    %v6822 = vunpack.c.h.b16 %v6805
    %v6823 = vunpack.c.l.b16 %v6806
    %v6824 = vunpack.c.h.b16 %v6806
    %v6825 = vunpack.c.l.b16 %v6807
    %v6826 = vunpack.c.h.b16 %v6807
    %v6827 = vunpack.c.l.b16 %v6808
    %v6828 = vunpack.c.h.b16 %v6808
    %v6829 = vunpack.c.l.b16 %v6809
    %v6830 = vunpack.c.h.b16 %v6809
    %v6831 = vunpack.c.l.b16 %v6810
    %v6832 = vunpack.c.h.b16 %v6810
    %v6833 = vunpack.c.l.b16 %v6811
    %v6834 = vunpack.c.h.b16 %v6811
    %v6835 = vunpack.c.l.b16 %v6812
    %v6836 = vunpack.c.h.b16 %v6812
    %v6837 = vpack.c.b16 %v6823, %v6821
    %v6838 = vpack.c.b16 %v6824, %v6822
    %v6839 = vpack.c.b16 %v6827, %v6825
    %v6840 = vpack.c.b16 %v6828, %v6826
    %v6841 = vpack.c.b16 %v6831, %v6829
    %v6842 = vpack.c.b16 %v6832, %v6830
    %v6843 = vpack.c.b16 %v6835, %v6833
    %v6844 = vpack.c.b16 %v6836, %v6834
    %v6854 = vsel %vm1695, %v6804, 0
    %6856 = vmatprep.subr.bf16.mxu0 0
    %6857 = vmatpush1.bf16.msra.mxu0 0
    %6858 = vmatprep.subr.bf16.mxu0 0
    %6859 = vmatpush1.bf16.msra.mxu0 0
    %6860 = vmatprep.subr.bf16.mxu0 0
    %6861 = vmatpush1.bf16.msra.mxu0 0
    %6862 = vmatprep.subr.bf16.mxu0 0
    %6863 = vmatpush1.bf16.msra.mxu0 0
    %6864 = vmatprep.subr.bf16.mxu0 %v6844
    %6865 = vmatpush1.bf16.msra.mxu0 %v6843
    %6866 = vmatprep.subr.bf16.mxu0 %v6842
    %6867 = vmatpush1.bf16.msra.mxu0 %v6841
    %6868 = vmatprep.subr.bf16.mxu0 %v6840
    %6869 = vmatpush1.bf16.msra.mxu0 %v6839
    %6870 = vmatprep.subr.bf16.mxu0 %v6838
    %6871 = vmatpush1.bf16.msra.mxu0 %v6837
    %6872 = vmatprep.subr.bf16.mxu0 0
    %6873 = vmatpush2.bf16.msra.mxu0 0
    %6874 = vmatprep.subr.bf16.mxu0 0
    %6875 = vmatpush2.bf16.msra.mxu0 0
    %6876 = vmatprep.subr.bf16.mxu0 0
    %6877 = vmatpush2.bf16.msra.mxu0 0
    %6878 = vmatprep.subr.bf16.mxu0 0
    %6879 = vmatpush2.bf16.msra.mxu0 0
    %6880 = vmatprep.subr.bf16.mxu0 0
    %6881 = vmatpush2.bf16.msra.mxu0 0
    %6882 = vmatprep.subr.bf16.mxu0 0
    %6883 = vmatpush2.bf16.msra.mxu0 0
    %6884 = vmatprep.subr.bf16.mxu0 0
    %6885 = vmatpush2.bf16.msra.mxu0 0
    %6886 = vmatprep.subr.bf16.mxu0 0
    %6887 = vmatpush2.bf16.msra.mxu0 0
    %6888 = vmatprep.mubr.bf16.mxu0 0
    %6889 = vmatmul.mubr.bf16.gmra.mxu0 %v6854
    %v6890 = vpop.f32.mrf.mxu0
    %v6891 = vadd.f32 0.0, %v6890
    %v6892 = vpop.f32.mrf.mxu0
    %v6893 = vadd.f32 0.0, %v6892
    %v6894 = vpop.f32.mrf.mxu0
    %v6895 = vpop.f32.mrf.mxu0
    %6896 = vdwg.mxu0
    %v6897 = vadd.f32 %v6800, %v6891
    %v6898 = vadd.f32 %v6801, %v6893
    %s6899 = scalar_lea.vmem [#allocation4], 74
    %v6900 = vld [vmem:[%s6899] ss:$240 sm:$0x3]
    %v6901 = vpack.c.bf16 %v6900, %v6900
    %v6902 = vld [vmem:[#allocation5 + $0x4c0] sm:$0xff]
    %v6903 = vld [vmem:[#allocation5 + $0x4c8] sm:$0xff]
    %v6904 = vld [vmem:[#allocation5 + $0x4d0] sm:$0xff]
    %v6905 = vld [vmem:[#allocation5 + $0x4d8] sm:$0xff]
    %v6906 = vld [vmem:[#allocation5 + $0x4e0] sm:$0xff]
    %v6907 = vld [vmem:[#allocation5 + $0x4e8] sm:$0xff]
    %v6908 = vld [vmem:[#allocation5 + $0x4f0] sm:$0xff]
    %v6909 = vld [vmem:[#allocation5 + $0x4f8] sm:$0xff]
    %v6918 = vunpack.c.l.b16 %v6902
    %v6919 = vunpack.c.h.b16 %v6902
    %v6920 = vunpack.c.l.b16 %v6903
    %v6921 = vunpack.c.h.b16 %v6903
    %v6922 = vunpack.c.l.b16 %v6904
    %v6923 = vunpack.c.h.b16 %v6904
    %v6924 = vunpack.c.l.b16 %v6905
    %v6925 = vunpack.c.h.b16 %v6905
    %v6926 = vunpack.c.l.b16 %v6906
    %v6927 = vunpack.c.h.b16 %v6906
    %v6928 = vunpack.c.l.b16 %v6907
    %v6929 = vunpack.c.h.b16 %v6907
    %v6930 = vunpack.c.l.b16 %v6908
    %v6931 = vunpack.c.h.b16 %v6908
    %v6932 = vunpack.c.l.b16 %v6909
    %v6933 = vunpack.c.h.b16 %v6909
    %v6934 = vpack.c.b16 %v6920, %v6918
    %v6935 = vpack.c.b16 %v6921, %v6919
    %v6936 = vpack.c.b16 %v6924, %v6922
    %v6937 = vpack.c.b16 %v6925, %v6923
    %v6938 = vpack.c.b16 %v6928, %v6926
    %v6939 = vpack.c.b16 %v6929, %v6927
    %v6940 = vpack.c.b16 %v6932, %v6930
    %v6941 = vpack.c.b16 %v6933, %v6931
    %v6951 = vsel %vm1695, %v6901, 0
    %6953 = vmatprep.subr.bf16.mxu0 0
    %6954 = vmatpush1.bf16.msra.mxu0 0
    %6955 = vmatprep.subr.bf16.mxu0 0
    %6956 = vmatpush1.bf16.msra.mxu0 0
    %6957 = vmatprep.subr.bf16.mxu0 0
    %6958 = vmatpush1.bf16.msra.mxu0 0
    %6959 = vmatprep.subr.bf16.mxu0 0
    %6960 = vmatpush1.bf16.msra.mxu0 0
    %6961 = vmatprep.subr.bf16.mxu0 %v6941
    %6962 = vmatpush1.bf16.msra.mxu0 %v6940
    %6963 = vmatprep.subr.bf16.mxu0 %v6939
    %6964 = vmatpush1.bf16.msra.mxu0 %v6938
    %6965 = vmatprep.subr.bf16.mxu0 %v6937
    %6966 = vmatpush1.bf16.msra.mxu0 %v6936
    %6967 = vmatprep.subr.bf16.mxu0 %v6935
    %6968 = vmatpush1.bf16.msra.mxu0 %v6934
    %6969 = vmatprep.subr.bf16.mxu0 0
    %6970 = vmatpush2.bf16.msra.mxu0 0
    %6971 = vmatprep.subr.bf16.mxu0 0
    %6972 = vmatpush2.bf16.msra.mxu0 0
    %6973 = vmatprep.subr.bf16.mxu0 0
    %6974 = vmatpush2.bf16.msra.mxu0 0
    %6975 = vmatprep.subr.bf16.mxu0 0
    %6976 = vmatpush2.bf16.msra.mxu0 0
    %6977 = vmatprep.subr.bf16.mxu0 0
    %6978 = vmatpush2.bf16.msra.mxu0 0
    %6979 = vmatprep.subr.bf16.mxu0 0
    %6980 = vmatpush2.bf16.msra.mxu0 0
    %6981 = vmatprep.subr.bf16.mxu0 0
    %6982 = vmatpush2.bf16.msra.mxu0 0
    %6983 = vmatprep.subr.bf16.mxu0 0
    %6984 = vmatpush2.bf16.msra.mxu0 0
    %6985 = vmatprep.mubr.bf16.mxu0 0
    %6986 = vmatmul.mubr.bf16.gmra.mxu0 %v6951
    %v6987 = vpop.f32.mrf.mxu0
    %v6988 = vadd.f32 0.0, %v6987
    %v6989 = vpop.f32.mrf.mxu0
    %v6990 = vadd.f32 0.0, %v6989
    %v6991 = vpop.f32.mrf.mxu0
    %v6992 = vpop.f32.mrf.mxu0
    %6993 = vdwg.mxu0
    %v6994 = vadd.f32 %v6897, %v6988
    %v6995 = vadd.f32 %v6898, %v6990
    %s6996 = scalar_lea.vmem [#allocation4], 76
    %v6997 = vld [vmem:[%s6996] ss:$240 sm:$0x3]
    %v6998 = vpack.c.bf16 %v6997, %v6997
    %v6999 = vld [vmem:[#allocation5 + $0x500] sm:$0xff]
    %v7000 = vld [vmem:[#allocation5 + $0x508] sm:$0xff]
    %v7001 = vld [vmem:[#allocation5 + $0x510] sm:$0xff]
    %v7002 = vld [vmem:[#allocation5 + $0x518] sm:$0xff]
    %v7003 = vld [vmem:[#allocation5 + $0x520] sm:$0xff]
    %v7004 = vld [vmem:[#allocation5 + $0x528] sm:$0xff]
    %v7005 = vld [vmem:[#allocation5 + $0x530] sm:$0xff]
    %v7006 = vld [vmem:[#allocation5 + $0x538] sm:$0xff]
    %v7015 = vunpack.c.l.b16 %v6999
    %v7016 = vunpack.c.h.b16 %v6999
    %v7017 = vunpack.c.l.b16 %v7000
    %v7018 = vunpack.c.h.b16 %v7000
    %v7019 = vunpack.c.l.b16 %v7001
    %v7020 = vunpack.c.h.b16 %v7001
    %v7021 = vunpack.c.l.b16 %v7002
    %v7022 = vunpack.c.h.b16 %v7002
    %v7023 = vunpack.c.l.b16 %v7003
    %v7024 = vunpack.c.h.b16 %v7003
    %v7025 = vunpack.c.l.b16 %v7004
    %v7026 = vunpack.c.h.b16 %v7004
    %v7027 = vunpack.c.l.b16 %v7005
    %v7028 = vunpack.c.h.b16 %v7005
    %v7029 = vunpack.c.l.b16 %v7006
    %v7030 = vunpack.c.h.b16 %v7006
    %v7031 = vpack.c.b16 %v7017, %v7015
    %v7032 = vpack.c.b16 %v7018, %v7016
    %v7033 = vpack.c.b16 %v7021, %v7019
    %v7034 = vpack.c.b16 %v7022, %v7020
    %v7035 = vpack.c.b16 %v7025, %v7023
    %v7036 = vpack.c.b16 %v7026, %v7024
    %v7037 = vpack.c.b16 %v7029, %v7027
    %v7038 = vpack.c.b16 %v7030, %v7028
    %v7048 = vsel %vm1695, %v6998, 0
    %7050 = vmatprep.subr.bf16.mxu0 0
    %7051 = vmatpush1.bf16.msra.mxu0 0
    %7052 = vmatprep.subr.bf16.mxu0 0
    %7053 = vmatpush1.bf16.msra.mxu0 0
    %7054 = vmatprep.subr.bf16.mxu0 0
    %7055 = vmatpush1.bf16.msra.mxu0 0
    %7056 = vmatprep.subr.bf16.mxu0 0
    %7057 = vmatpush1.bf16.msra.mxu0 0
    %7058 = vmatprep.subr.bf16.mxu0 %v7038
    %7059 = vmatpush1.bf16.msra.mxu0 %v7037
    %7060 = vmatprep.subr.bf16.mxu0 %v7036
    %7061 = vmatpush1.bf16.msra.mxu0 %v7035
    %7062 = vmatprep.subr.bf16.mxu0 %v7034
    %7063 = vmatpush1.bf16.msra.mxu0 %v7033
    %7064 = vmatprep.subr.bf16.mxu0 %v7032
    %7065 = vmatpush1.bf16.msra.mxu0 %v7031
    %7066 = vmatprep.subr.bf16.mxu0 0
    %7067 = vmatpush2.bf16.msra.mxu0 0
    %7068 = vmatprep.subr.bf16.mxu0 0
    %7069 = vmatpush2.bf16.msra.mxu0 0
    %7070 = vmatprep.subr.bf16.mxu0 0
    %7071 = vmatpush2.bf16.msra.mxu0 0
    %7072 = vmatprep.subr.bf16.mxu0 0
    %7073 = vmatpush2.bf16.msra.mxu0 0
    %7074 = vmatprep.subr.bf16.mxu0 0
    %7075 = vmatpush2.bf16.msra.mxu0 0
    %7076 = vmatprep.subr.bf16.mxu0 0
    %7077 = vmatpush2.bf16.msra.mxu0 0
    %7078 = vmatprep.subr.bf16.mxu0 0
    %7079 = vmatpush2.bf16.msra.mxu0 0
    %7080 = vmatprep.subr.bf16.mxu0 0
    %7081 = vmatpush2.bf16.msra.mxu0 0
    %7082 = vmatprep.mubr.bf16.mxu0 0
    %7083 = vmatmul.mubr.bf16.gmra.mxu0 %v7048
    %v7084 = vpop.f32.mrf.mxu0
    %v7085 = vadd.f32 0.0, %v7084
    %v7086 = vpop.f32.mrf.mxu0
    %v7087 = vadd.f32 0.0, %v7086
    %v7088 = vpop.f32.mrf.mxu0
    %v7089 = vpop.f32.mrf.mxu0
    %7090 = vdwg.mxu0
    %v7091 = vadd.f32 %v6994, %v7085
    %v7092 = vadd.f32 %v6995, %v7087
    %s7093 = scalar_lea.vmem [#allocation4], 96
    %v7094 = vld [vmem:[%s7093] ss:$240 sm:$0x3]
    %v7095 = vpack.c.bf16 %v7094, %v7094
    %v7096 = vld [vmem:[#allocation5 + $0x540] sm:$0xff]
    %v7097 = vld [vmem:[#allocation5 + $0x548] sm:$0xff]
    %v7098 = vld [vmem:[#allocation5 + $0x550] sm:$0xff]
    %v7099 = vld [vmem:[#allocation5 + $0x558] sm:$0xff]
    %v7100 = vld [vmem:[#allocation5 + $0x560] sm:$0xff]
    %v7101 = vld [vmem:[#allocation5 + $0x568] sm:$0xff]
    %v7102 = vld [vmem:[#allocation5 + $0x570] sm:$0xff]
    %v7103 = vld [vmem:[#allocation5 + $0x578] sm:$0xff]
    %v7112 = vunpack.c.l.b16 %v7096
    %v7113 = vunpack.c.h.b16 %v7096
    %v7114 = vunpack.c.l.b16 %v7097
    %v7115 = vunpack.c.h.b16 %v7097
    %v7116 = vunpack.c.l.b16 %v7098
    %v7117 = vunpack.c.h.b16 %v7098
    %v7118 = vunpack.c.l.b16 %v7099
    %v7119 = vunpack.c.h.b16 %v7099
    %v7120 = vunpack.c.l.b16 %v7100
    %v7121 = vunpack.c.h.b16 %v7100
    %v7122 = vunpack.c.l.b16 %v7101
    %v7123 = vunpack.c.h.b16 %v7101
    %v7124 = vunpack.c.l.b16 %v7102
    %v7125 = vunpack.c.h.b16 %v7102
    %v7126 = vunpack.c.l.b16 %v7103
    %v7127 = vunpack.c.h.b16 %v7103
    %v7128 = vpack.c.b16 %v7114, %v7112
    %v7129 = vpack.c.b16 %v7115, %v7113
    %v7130 = vpack.c.b16 %v7118, %v7116
    %v7131 = vpack.c.b16 %v7119, %v7117
    %v7132 = vpack.c.b16 %v7122, %v7120
    %v7133 = vpack.c.b16 %v7123, %v7121
    %v7134 = vpack.c.b16 %v7126, %v7124
    %v7135 = vpack.c.b16 %v7127, %v7125
    %v7145 = vsel %vm1695, %v7095, 0
    %7147 = vmatprep.subr.bf16.mxu0 0
    %7148 = vmatpush1.bf16.msra.mxu0 0
    %7149 = vmatprep.subr.bf16.mxu0 0
    %7150 = vmatpush1.bf16.msra.mxu0 0
    %7151 = vmatprep.subr.bf16.mxu0 0
    %7152 = vmatpush1.bf16.msra.mxu0 0
    %7153 = vmatprep.subr.bf16.mxu0 0
    %7154 = vmatpush1.bf16.msra.mxu0 0
    %7155 = vmatprep.subr.bf16.mxu0 %v7135
    %7156 = vmatpush1.bf16.msra.mxu0 %v7134
    %7157 = vmatprep.subr.bf16.mxu0 %v7133
    %7158 = vmatpush1.bf16.msra.mxu0 %v7132
    %7159 = vmatprep.subr.bf16.mxu0 %v7131
    %7160 = vmatpush1.bf16.msra.mxu0 %v7130
    %7161 = vmatprep.subr.bf16.mxu0 %v7129
    %7162 = vmatpush1.bf16.msra.mxu0 %v7128
    %7163 = vmatprep.subr.bf16.mxu0 0
    %7164 = vmatpush2.bf16.msra.mxu0 0
    %7165 = vmatprep.subr.bf16.mxu0 0
    %7166 = vmatpush2.bf16.msra.mxu0 0
    %7167 = vmatprep.subr.bf16.mxu0 0
    %7168 = vmatpush2.bf16.msra.mxu0 0
    %7169 = vmatprep.subr.bf16.mxu0 0
    %7170 = vmatpush2.bf16.msra.mxu0 0
    %7171 = vmatprep.subr.bf16.mxu0 0
    %7172 = vmatpush2.bf16.msra.mxu0 0
    %7173 = vmatprep.subr.bf16.mxu0 0
    %7174 = vmatpush2.bf16.msra.mxu0 0
    %7175 = vmatprep.subr.bf16.mxu0 0
    %7176 = vmatpush2.bf16.msra.mxu0 0
    %7177 = vmatprep.subr.bf16.mxu0 0
    %7178 = vmatpush2.bf16.msra.mxu0 0
    %7179 = vmatprep.mubr.bf16.mxu0 0
    %7180 = vmatmul.mubr.bf16.gmra.mxu0 %v7145
    %v7181 = vpop.f32.mrf.mxu0
    %v7182 = vadd.f32 0.0, %v7181
    %v7183 = vpop.f32.mrf.mxu0
    %v7184 = vadd.f32 0.0, %v7183
    %v7185 = vpop.f32.mrf.mxu0
    %v7186 = vpop.f32.mrf.mxu0
    %7187 = vdwg.mxu0
    %v7188 = vadd.f32 %v7091, %v7182
    %v7189 = vadd.f32 %v7092, %v7184
    %s7190 = scalar_lea.vmem [#allocation4], 98
    %v7191 = vld [vmem:[%s7190] ss:$240 sm:$0x3]
    %v7192 = vpack.c.bf16 %v7191, %v7191
    %v7193 = vld [vmem:[#allocation5 + $0x580] sm:$0xff]
    %v7194 = vld [vmem:[#allocation5 + $0x588] sm:$0xff]
    %v7195 = vld [vmem:[#allocation5 + $0x590] sm:$0xff]
    %v7196 = vld [vmem:[#allocation5 + $0x598] sm:$0xff]
    %v7197 = vld [vmem:[#allocation5 + $0x5a0] sm:$0xff]
    %v7198 = vld [vmem:[#allocation5 + $0x5a8] sm:$0xff]
    %v7199 = vld [vmem:[#allocation5 + $0x5b0] sm:$0xff]
    %v7200 = vld [vmem:[#allocation5 + $0x5b8] sm:$0xff]
    %v7209 = vunpack.c.l.b16 %v7193
    %v7210 = vunpack.c.h.b16 %v7193
    %v7211 = vunpack.c.l.b16 %v7194
    %v7212 = vunpack.c.h.b16 %v7194
    %v7213 = vunpack.c.l.b16 %v7195
    %v7214 = vunpack.c.h.b16 %v7195
    %v7215 = vunpack.c.l.b16 %v7196
    %v7216 = vunpack.c.h.b16 %v7196
    %v7217 = vunpack.c.l.b16 %v7197
    %v7218 = vunpack.c.h.b16 %v7197
    %v7219 = vunpack.c.l.b16 %v7198
    %v7220 = vunpack.c.h.b16 %v7198
    %v7221 = vunpack.c.l.b16 %v7199
    %v7222 = vunpack.c.h.b16 %v7199
    %v7223 = vunpack.c.l.b16 %v7200
    %v7224 = vunpack.c.h.b16 %v7200
    %v7225 = vpack.c.b16 %v7211, %v7209
    %v7226 = vpack.c.b16 %v7212, %v7210
    %v7227 = vpack.c.b16 %v7215, %v7213
    %v7228 = vpack.c.b16 %v7216, %v7214
    %v7229 = vpack.c.b16 %v7219, %v7217
    %v7230 = vpack.c.b16 %v7220, %v7218
    %v7231 = vpack.c.b16 %v7223, %v7221
    %v7232 = vpack.c.b16 %v7224, %v7222
    %v7242 = vsel %vm1695, %v7192, 0
    %7244 = vmatprep.subr.bf16.mxu0 0
    %7245 = vmatpush1.bf16.msra.mxu0 0
    %7246 = vmatprep.subr.bf16.mxu0 0
    %7247 = vmatpush1.bf16.msra.mxu0 0
    %7248 = vmatprep.subr.bf16.mxu0 0
    %7249 = vmatpush1.bf16.msra.mxu0 0
    %7250 = vmatprep.subr.bf16.mxu0 0
    %7251 = vmatpush1.bf16.msra.mxu0 0
    %7252 = vmatprep.subr.bf16.mxu0 %v7232
    %7253 = vmatpush1.bf16.msra.mxu0 %v7231
    %7254 = vmatprep.subr.bf16.mxu0 %v7230
    %7255 = vmatpush1.bf16.msra.mxu0 %v7229
    %7256 = vmatprep.subr.bf16.mxu0 %v7228
    %7257 = vmatpush1.bf16.msra.mxu0 %v7227
    %7258 = vmatprep.subr.bf16.mxu0 %v7226
    %7259 = vmatpush1.bf16.msra.mxu0 %v7225
    %7260 = vmatprep.subr.bf16.mxu0 0
    %7261 = vmatpush2.bf16.msra.mxu0 0
    %7262 = vmatprep.subr.bf16.mxu0 0
    %7263 = vmatpush2.bf16.msra.mxu0 0
    %7264 = vmatprep.subr.bf16.mxu0 0
    %7265 = vmatpush2.bf16.msra.mxu0 0
    %7266 = vmatprep.subr.bf16.mxu0 0
    %7267 = vmatpush2.bf16.msra.mxu0 0
    %7268 = vmatprep.subr.bf16.mxu0 0
    %7269 = vmatpush2.bf16.msra.mxu0 0
    %7270 = vmatprep.subr.bf16.mxu0 0
    %7271 = vmatpush2.bf16.msra.mxu0 0
    %7272 = vmatprep.subr.bf16.mxu0 0
    %7273 = vmatpush2.bf16.msra.mxu0 0
    %7274 = vmatprep.subr.bf16.mxu0 0
    %7275 = vmatpush2.bf16.msra.mxu0 0
    %7276 = vmatprep.mubr.bf16.mxu0 0
    %7277 = vmatmul.mubr.bf16.gmra.mxu0 %v7242
    %v7278 = vpop.f32.mrf.mxu0
    %v7279 = vadd.f32 0.0, %v7278
    %v7280 = vpop.f32.mrf.mxu0
    %v7281 = vadd.f32 0.0, %v7280
    %v7282 = vpop.f32.mrf.mxu0
    %v7283 = vpop.f32.mrf.mxu0
    %7284 = vdwg.mxu0
    %v7285 = vadd.f32 %v7188, %v7279
    %v7286 = vadd.f32 %v7189, %v7281
    %s7287 = scalar_lea.vmem [#allocation4], 100
    %v7288 = vld [vmem:[%s7287] ss:$240 sm:$0x3]
    %v7289 = vpack.c.bf16 %v7288, %v7288
    %v7290 = vld [vmem:[#allocation5 + $0x5c0] sm:$0xff]
    %v7291 = vld [vmem:[#allocation5 + $0x5c8] sm:$0xff]
    %v7292 = vld [vmem:[#allocation5 + $0x5d0] sm:$0xff]
    %v7293 = vld [vmem:[#allocation5 + $0x5d8] sm:$0xff]
    %v7294 = vld [vmem:[#allocation5 + $0x5e0] sm:$0xff]
    %v7295 = vld [vmem:[#allocation5 + $0x5e8] sm:$0xff]
    %v7296 = vld [vmem:[#allocation5 + $0x5f0] sm:$0xff]
    %v7297 = vld [vmem:[#allocation5 + $0x5f8] sm:$0xff]
    %v7306 = vunpack.c.l.b16 %v7290
    %v7307 = vunpack.c.h.b16 %v7290
    %v7308 = vunpack.c.l.b16 %v7291
    %v7309 = vunpack.c.h.b16 %v7291
    %v7310 = vunpack.c.l.b16 %v7292
    %v7311 = vunpack.c.h.b16 %v7292
    %v7312 = vunpack.c.l.b16 %v7293
    %v7313 = vunpack.c.h.b16 %v7293
    %v7314 = vunpack.c.l.b16 %v7294
    %v7315 = vunpack.c.h.b16 %v7294
    %v7316 = vunpack.c.l.b16 %v7295
    %v7317 = vunpack.c.h.b16 %v7295
    %v7318 = vunpack.c.l.b16 %v7296
    %v7319 = vunpack.c.h.b16 %v7296
    %v7320 = vunpack.c.l.b16 %v7297
    %v7321 = vunpack.c.h.b16 %v7297
    %v7322 = vpack.c.b16 %v7308, %v7306
    %v7323 = vpack.c.b16 %v7309, %v7307
    %v7324 = vpack.c.b16 %v7312, %v7310
    %v7325 = vpack.c.b16 %v7313, %v7311
    %v7326 = vpack.c.b16 %v7316, %v7314
    %v7327 = vpack.c.b16 %v7317, %v7315
    %v7328 = vpack.c.b16 %v7320, %v7318
    %v7329 = vpack.c.b16 %v7321, %v7319
    %v7339 = vsel %vm1695, %v7289, 0
    %7341 = vmatprep.subr.bf16.mxu0 0
    %7342 = vmatpush1.bf16.msra.mxu0 0
    %7343 = vmatprep.subr.bf16.mxu0 0
    %7344 = vmatpush1.bf16.msra.mxu0 0
    %7345 = vmatprep.subr.bf16.mxu0 0
    %7346 = vmatpush1.bf16.msra.mxu0 0
    %7347 = vmatprep.subr.bf16.mxu0 0
    %7348 = vmatpush1.bf16.msra.mxu0 0
    %7349 = vmatprep.subr.bf16.mxu0 %v7329
    %7350 = vmatpush1.bf16.msra.mxu0 %v7328
    %7351 = vmatprep.subr.bf16.mxu0 %v7327
    %7352 = vmatpush1.bf16.msra.mxu0 %v7326
    %7353 = vmatprep.subr.bf16.mxu0 %v7325
    %7354 = vmatpush1.bf16.msra.mxu0 %v7324
    %7355 = vmatprep.subr.bf16.mxu0 %v7323
    %7356 = vmatpush1.bf16.msra.mxu0 %v7322
    %7357 = vmatprep.subr.bf16.mxu0 0
    %7358 = vmatpush2.bf16.msra.mxu0 0
    %7359 = vmatprep.subr.bf16.mxu0 0
    %7360 = vmatpush2.bf16.msra.mxu0 0
    %7361 = vmatprep.subr.bf16.mxu0 0
    %7362 = vmatpush2.bf16.msra.mxu0 0
    %7363 = vmatprep.subr.bf16.mxu0 0
    %7364 = vmatpush2.bf16.msra.mxu0 0
    %7365 = vmatprep.subr.bf16.mxu0 0
    %7366 = vmatpush2.bf16.msra.mxu0 0
    %7367 = vmatprep.subr.bf16.mxu0 0
    %7368 = vmatpush2.bf16.msra.mxu0 0
    %7369 = vmatprep.subr.bf16.mxu0 0
    %7370 = vmatpush2.bf16.msra.mxu0 0
    %7371 = vmatprep.subr.bf16.mxu0 0
    %7372 = vmatpush2.bf16.msra.mxu0 0
    %7373 = vmatprep.mubr.bf16.mxu0 0
    %7374 = vmatmul.mubr.bf16.gmra.mxu0 %v7339
    %v7375 = vpop.f32.mrf.mxu0
    %v7376 = vadd.f32 0.0, %v7375
    %v7377 = vpop.f32.mrf.mxu0
    %v7378 = vadd.f32 0.0, %v7377
    %v7379 = vpop.f32.mrf.mxu0
    %v7380 = vpop.f32.mrf.mxu0
    %7381 = vdwg.mxu0
    %v7382 = vadd.f32 %v7285, %v7376
    %v7383 = vadd.f32 %v7286, %v7378
    %s7384 = scalar_lea.vmem [#allocation4], 102
    %v7385 = vld [vmem:[%s7384] ss:$240 sm:$0x3]
    %v7386 = vpack.c.bf16 %v7385, %v7385
    %v7387 = vld [vmem:[#allocation5 + $0x600] sm:$0xff]
    %v7388 = vld [vmem:[#allocation5 + $0x608] sm:$0xff]
    %v7389 = vld [vmem:[#allocation5 + $0x610] sm:$0xff]
    %v7390 = vld [vmem:[#allocation5 + $0x618] sm:$0xff]
    %v7391 = vld [vmem:[#allocation5 + $0x620] sm:$0xff]
    %v7392 = vld [vmem:[#allocation5 + $0x628] sm:$0xff]
    %v7393 = vld [vmem:[#allocation5 + $0x630] sm:$0xff]
    %v7394 = vld [vmem:[#allocation5 + $0x638] sm:$0xff]
    %v7403 = vunpack.c.l.b16 %v7387
    %v7404 = vunpack.c.h.b16 %v7387
    %v7405 = vunpack.c.l.b16 %v7388
    %v7406 = vunpack.c.h.b16 %v7388
    %v7407 = vunpack.c.l.b16 %v7389
    %v7408 = vunpack.c.h.b16 %v7389
    %v7409 = vunpack.c.l.b16 %v7390
    %v7410 = vunpack.c.h.b16 %v7390
    %v7411 = vunpack.c.l.b16 %v7391
    %v7412 = vunpack.c.h.b16 %v7391
    %v7413 = vunpack.c.l.b16 %v7392
    %v7414 = vunpack.c.h.b16 %v7392
    %v7415 = vunpack.c.l.b16 %v7393
    %v7416 = vunpack.c.h.b16 %v7393
    %v7417 = vunpack.c.l.b16 %v7394
    %v7418 = vunpack.c.h.b16 %v7394
    %v7419 = vpack.c.b16 %v7405, %v7403
    %v7420 = vpack.c.b16 %v7406, %v7404
    %v7421 = vpack.c.b16 %v7409, %v7407
    %v7422 = vpack.c.b16 %v7410, %v7408
    %v7423 = vpack.c.b16 %v7413, %v7411
    %v7424 = vpack.c.b16 %v7414, %v7412
    %v7425 = vpack.c.b16 %v7417, %v7415
    %v7426 = vpack.c.b16 %v7418, %v7416
    %v7436 = vsel %vm1695, %v7386, 0
    %7438 = vmatprep.subr.bf16.mxu0 0
    %7439 = vmatpush1.bf16.msra.mxu0 0
    %7440 = vmatprep.subr.bf16.mxu0 0
    %7441 = vmatpush1.bf16.msra.mxu0 0
    %7442 = vmatprep.subr.bf16.mxu0 0
    %7443 = vmatpush1.bf16.msra.mxu0 0
    %7444 = vmatprep.subr.bf16.mxu0 0
    %7445 = vmatpush1.bf16.msra.mxu0 0
    %7446 = vmatprep.subr.bf16.mxu0 %v7426
    %7447 = vmatpush1.bf16.msra.mxu0 %v7425
    %7448 = vmatprep.subr.bf16.mxu0 %v7424
    %7449 = vmatpush1.bf16.msra.mxu0 %v7423
    %7450 = vmatprep.subr.bf16.mxu0 %v7422
    %7451 = vmatpush1.bf16.msra.mxu0 %v7421
    %7452 = vmatprep.subr.bf16.mxu0 %v7420
    %7453 = vmatpush1.bf16.msra.mxu0 %v7419
    %7454 = vmatprep.subr.bf16.mxu0 0
    %7455 = vmatpush2.bf16.msra.mxu0 0
    %7456 = vmatprep.subr.bf16.mxu0 0
    %7457 = vmatpush2.bf16.msra.mxu0 0
    %7458 = vmatprep.subr.bf16.mxu0 0
    %7459 = vmatpush2.bf16.msra.mxu0 0
    %7460 = vmatprep.subr.bf16.mxu0 0
    %7461 = vmatpush2.bf16.msra.mxu0 0
    %7462 = vmatprep.subr.bf16.mxu0 0
    %7463 = vmatpush2.bf16.msra.mxu0 0
    %7464 = vmatprep.subr.bf16.mxu0 0
    %7465 = vmatpush2.bf16.msra.mxu0 0
    %7466 = vmatprep.subr.bf16.mxu0 0
    %7467 = vmatpush2.bf16.msra.mxu0 0
    %7468 = vmatprep.subr.bf16.mxu0 0
    %7469 = vmatpush2.bf16.msra.mxu0 0
    %7470 = vmatprep.mubr.bf16.mxu0 0
    %7471 = vmatmul.mubr.bf16.gmra.mxu0 %v7436
    %v7472 = vpop.f32.mrf.mxu0
    %v7473 = vadd.f32 0.0, %v7472
    %v7474 = vpop.f32.mrf.mxu0
    %v7475 = vadd.f32 0.0, %v7474
    %v7476 = vpop.f32.mrf.mxu0
    %v7477 = vpop.f32.mrf.mxu0
    %7478 = vdwg.mxu0
    %v7479 = vadd.f32 %v7382, %v7473
    %v7480 = vadd.f32 %v7383, %v7475
    %s7481 = scalar_lea.vmem [#allocation4], 104
    %v7482 = vld [vmem:[%s7481] ss:$240 sm:$0x3]
    %v7483 = vpack.c.bf16 %v7482, %v7482
    %v7484 = vld [vmem:[#allocation5 + $0x640] sm:$0xff]
    %v7485 = vld [vmem:[#allocation5 + $0x648] sm:$0xff]
    %v7486 = vld [vmem:[#allocation5 + $0x650] sm:$0xff]
    %v7487 = vld [vmem:[#allocation5 + $0x658] sm:$0xff]
    %v7488 = vld [vmem:[#allocation5 + $0x660] sm:$0xff]
    %v7489 = vld [vmem:[#allocation5 + $0x668] sm:$0xff]
    %v7490 = vld [vmem:[#allocation5 + $0x670] sm:$0xff]
    %v7491 = vld [vmem:[#allocation5 + $0x678] sm:$0xff]
    %v7500 = vunpack.c.l.b16 %v7484
    %v7501 = vunpack.c.h.b16 %v7484
    %v7502 = vunpack.c.l.b16 %v7485
    %v7503 = vunpack.c.h.b16 %v7485
    %v7504 = vunpack.c.l.b16 %v7486
    %v7505 = vunpack.c.h.b16 %v7486
    %v7506 = vunpack.c.l.b16 %v7487
    %v7507 = vunpack.c.h.b16 %v7487
    %v7508 = vunpack.c.l.b16 %v7488
    %v7509 = vunpack.c.h.b16 %v7488
    %v7510 = vunpack.c.l.b16 %v7489
    %v7511 = vunpack.c.h.b16 %v7489
    %v7512 = vunpack.c.l.b16 %v7490
    %v7513 = vunpack.c.h.b16 %v7490
    %v7514 = vunpack.c.l.b16 %v7491
    %v7515 = vunpack.c.h.b16 %v7491
    %v7516 = vpack.c.b16 %v7502, %v7500
    %v7517 = vpack.c.b16 %v7503, %v7501
    %v7518 = vpack.c.b16 %v7506, %v7504
    %v7519 = vpack.c.b16 %v7507, %v7505
    %v7520 = vpack.c.b16 %v7510, %v7508
    %v7521 = vpack.c.b16 %v7511, %v7509
    %v7522 = vpack.c.b16 %v7514, %v7512
    %v7523 = vpack.c.b16 %v7515, %v7513
    %v7533 = vsel %vm1695, %v7483, 0
    %7535 = vmatprep.subr.bf16.mxu0 0
    %7536 = vmatpush1.bf16.msra.mxu0 0
    %7537 = vmatprep.subr.bf16.mxu0 0
    %7538 = vmatpush1.bf16.msra.mxu0 0
    %7539 = vmatprep.subr.bf16.mxu0 0
    %7540 = vmatpush1.bf16.msra.mxu0 0
    %7541 = vmatprep.subr.bf16.mxu0 0
    %7542 = vmatpush1.bf16.msra.mxu0 0
    %7543 = vmatprep.subr.bf16.mxu0 %v7523
    %7544 = vmatpush1.bf16.msra.mxu0 %v7522
    %7545 = vmatprep.subr.bf16.mxu0 %v7521
    %7546 = vmatpush1.bf16.msra.mxu0 %v7520
    %7547 = vmatprep.subr.bf16.mxu0 %v7519
    %7548 = vmatpush1.bf16.msra.mxu0 %v7518
    %7549 = vmatprep.subr.bf16.mxu0 %v7517
    %7550 = vmatpush1.bf16.msra.mxu0 %v7516
    %7551 = vmatprep.subr.bf16.mxu0 0
    %7552 = vmatpush2.bf16.msra.mxu0 0
    %7553 = vmatprep.subr.bf16.mxu0 0
    %7554 = vmatpush2.bf16.msra.mxu0 0
    %7555 = vmatprep.subr.bf16.mxu0 0
    %7556 = vmatpush2.bf16.msra.mxu0 0
    %7557 = vmatprep.subr.bf16.mxu0 0
    %7558 = vmatpush2.bf16.msra.mxu0 0
    %7559 = vmatprep.subr.bf16.mxu0 0
    %7560 = vmatpush2.bf16.msra.mxu0 0
    %7561 = vmatprep.subr.bf16.mxu0 0
    %7562 = vmatpush2.bf16.msra.mxu0 0
    %7563 = vmatprep.subr.bf16.mxu0 0
    %7564 = vmatpush2.bf16.msra.mxu0 0
    %7565 = vmatprep.subr.bf16.mxu0 0
    %7566 = vmatpush2.bf16.msra.mxu0 0
    %7567 = vmatprep.mubr.bf16.mxu0 0
    %7568 = vmatmul.mubr.bf16.gmra.mxu0 %v7533
    %v7569 = vpop.f32.mrf.mxu0
    %v7570 = vadd.f32 0.0, %v7569
    %v7571 = vpop.f32.mrf.mxu0
    %v7572 = vadd.f32 0.0, %v7571
    %v7573 = vpop.f32.mrf.mxu0
    %v7574 = vpop.f32.mrf.mxu0
    %7575 = vdwg.mxu0
    %v7576 = vadd.f32 %v7479, %v7570
    %v7577 = vadd.f32 %v7480, %v7572
    %s7578 = scalar_lea.vmem [#allocation4], 106
    %v7579 = vld [vmem:[%s7578] ss:$240 sm:$0x3]
    %v7580 = vpack.c.bf16 %v7579, %v7579
    %v7581 = vld [vmem:[#allocation5 + $0x680] sm:$0xff]
    %v7582 = vld [vmem:[#allocation5 + $0x688] sm:$0xff]
    %v7583 = vld [vmem:[#allocation5 + $0x690] sm:$0xff]
    %v7584 = vld [vmem:[#allocation5 + $0x698] sm:$0xff]
    %v7585 = vld [vmem:[#allocation5 + $0x6a0] sm:$0xff]
    %v7586 = vld [vmem:[#allocation5 + $0x6a8] sm:$0xff]
    %v7587 = vld [vmem:[#allocation5 + $0x6b0] sm:$0xff]
    %v7588 = vld [vmem:[#allocation5 + $0x6b8] sm:$0xff]
    %v7597 = vunpack.c.l.b16 %v7581
    %v7598 = vunpack.c.h.b16 %v7581
    %v7599 = vunpack.c.l.b16 %v7582
    %v7600 = vunpack.c.h.b16 %v7582
    %v7601 = vunpack.c.l.b16 %v7583
    %v7602 = vunpack.c.h.b16 %v7583
    %v7603 = vunpack.c.l.b16 %v7584
    %v7604 = vunpack.c.h.b16 %v7584
    %v7605 = vunpack.c.l.b16 %v7585
    %v7606 = vunpack.c.h.b16 %v7585
    %v7607 = vunpack.c.l.b16 %v7586
    %v7608 = vunpack.c.h.b16 %v7586
    %v7609 = vunpack.c.l.b16 %v7587
    %v7610 = vunpack.c.h.b16 %v7587
    %v7611 = vunpack.c.l.b16 %v7588
    %v7612 = vunpack.c.h.b16 %v7588
    %v7613 = vpack.c.b16 %v7599, %v7597
    %v7614 = vpack.c.b16 %v7600, %v7598
    %v7615 = vpack.c.b16 %v7603, %v7601
    %v7616 = vpack.c.b16 %v7604, %v7602
    %v7617 = vpack.c.b16 %v7607, %v7605
    %v7618 = vpack.c.b16 %v7608, %v7606
    %v7619 = vpack.c.b16 %v7611, %v7609
    %v7620 = vpack.c.b16 %v7612, %v7610
    %v7630 = vsel %vm1695, %v7580, 0
    %7632 = vmatprep.subr.bf16.mxu0 0
    %7633 = vmatpush1.bf16.msra.mxu0 0
    %7634 = vmatprep.subr.bf16.mxu0 0
    %7635 = vmatpush1.bf16.msra.mxu0 0
    %7636 = vmatprep.subr.bf16.mxu0 0
    %7637 = vmatpush1.bf16.msra.mxu0 0
    %7638 = vmatprep.subr.bf16.mxu0 0
    %7639 = vmatpush1.bf16.msra.mxu0 0
    %7640 = vmatprep.subr.bf16.mxu0 %v7620
    %7641 = vmatpush1.bf16.msra.mxu0 %v7619
    %7642 = vmatprep.subr.bf16.mxu0 %v7618
    %7643 = vmatpush1.bf16.msra.mxu0 %v7617
    %7644 = vmatprep.subr.bf16.mxu0 %v7616
    %7645 = vmatpush1.bf16.msra.mxu0 %v7615
    %7646 = vmatprep.subr.bf16.mxu0 %v7614
    %7647 = vmatpush1.bf16.msra.mxu0 %v7613
    %7648 = vmatprep.subr.bf16.mxu0 0
    %7649 = vmatpush2.bf16.msra.mxu0 0
    %7650 = vmatprep.subr.bf16.mxu0 0
    %7651 = vmatpush2.bf16.msra.mxu0 0
    %7652 = vmatprep.subr.bf16.mxu0 0
    %7653 = vmatpush2.bf16.msra.mxu0 0
    %7654 = vmatprep.subr.bf16.mxu0 0
    %7655 = vmatpush2.bf16.msra.mxu0 0
    %7656 = vmatprep.subr.bf16.mxu0 0
    %7657 = vmatpush2.bf16.msra.mxu0 0
    %7658 = vmatprep.subr.bf16.mxu0 0
    %7659 = vmatpush2.bf16.msra.mxu0 0
    %7660 = vmatprep.subr.bf16.mxu0 0
    %7661 = vmatpush2.bf16.msra.mxu0 0
    %7662 = vmatprep.subr.bf16.mxu0 0
    %7663 = vmatpush2.bf16.msra.mxu0 0
    %7664 = vmatprep.mubr.bf16.mxu0 0
    %7665 = vmatmul.mubr.bf16.gmra.mxu0 %v7630
    %v7666 = vpop.f32.mrf.mxu0
    %v7667 = vadd.f32 0.0, %v7666
    %v7668 = vpop.f32.mrf.mxu0
    %v7669 = vadd.f32 0.0, %v7668
    %v7670 = vpop.f32.mrf.mxu0
    %v7671 = vpop.f32.mrf.mxu0
    %7672 = vdwg.mxu0
    %v7673 = vadd.f32 %v7576, %v7667
    %v7674 = vadd.f32 %v7577, %v7669
    %s7675 = scalar_lea.vmem [#allocation4], 108
    %v7676 = vld [vmem:[%s7675] ss:$240 sm:$0x3]
    %v7677 = vpack.c.bf16 %v7676, %v7676
    %v7678 = vld [vmem:[#allocation5 + $0x6c0] sm:$0xff]
    %v7679 = vld [vmem:[#allocation5 + $0x6c8] sm:$0xff]
    %v7680 = vld [vmem:[#allocation5 + $0x6d0] sm:$0xff]
    %v7681 = vld [vmem:[#allocation5 + $0x6d8] sm:$0xff]
    %v7682 = vld [vmem:[#allocation5 + $0x6e0] sm:$0xff]
    %v7683 = vld [vmem:[#allocation5 + $0x6e8] sm:$0xff]
    %v7684 = vld [vmem:[#allocation5 + $0x6f0] sm:$0xff]
    %v7685 = vld [vmem:[#allocation5 + $0x6f8] sm:$0xff]
    %v7694 = vunpack.c.l.b16 %v7678
    %v7695 = vunpack.c.h.b16 %v7678
    %v7696 = vunpack.c.l.b16 %v7679
    %v7697 = vunpack.c.h.b16 %v7679
    %v7698 = vunpack.c.l.b16 %v7680
    %v7699 = vunpack.c.h.b16 %v7680
    %v7700 = vunpack.c.l.b16 %v7681
    %v7701 = vunpack.c.h.b16 %v7681
    %v7702 = vunpack.c.l.b16 %v7682
    %v7703 = vunpack.c.h.b16 %v7682
    %v7704 = vunpack.c.l.b16 %v7683
    %v7705 = vunpack.c.h.b16 %v7683
    %v7706 = vunpack.c.l.b16 %v7684
    %v7707 = vunpack.c.h.b16 %v7684
    %v7708 = vunpack.c.l.b16 %v7685
    %v7709 = vunpack.c.h.b16 %v7685
    %v7710 = vpack.c.b16 %v7696, %v7694
    %v7711 = vpack.c.b16 %v7697, %v7695
    %v7712 = vpack.c.b16 %v7700, %v7698
    %v7713 = vpack.c.b16 %v7701, %v7699
    %v7714 = vpack.c.b16 %v7704, %v7702
    %v7715 = vpack.c.b16 %v7705, %v7703
    %v7716 = vpack.c.b16 %v7708, %v7706
    %v7717 = vpack.c.b16 %v7709, %v7707
    %v7727 = vsel %vm1695, %v7677, 0
    %7729 = vmatprep.subr.bf16.mxu0 0
    %7730 = vmatpush1.bf16.msra.mxu0 0
    %7731 = vmatprep.subr.bf16.mxu0 0
    %7732 = vmatpush1.bf16.msra.mxu0 0
    %7733 = vmatprep.subr.bf16.mxu0 0
    %7734 = vmatpush1.bf16.msra.mxu0 0
    %7735 = vmatprep.subr.bf16.mxu0 0
    %7736 = vmatpush1.bf16.msra.mxu0 0
    %7737 = vmatprep.subr.bf16.mxu0 %v7717
    %7738 = vmatpush1.bf16.msra.mxu0 %v7716
    %7739 = vmatprep.subr.bf16.mxu0 %v7715
    %7740 = vmatpush1.bf16.msra.mxu0 %v7714
    %7741 = vmatprep.subr.bf16.mxu0 %v7713
    %7742 = vmatpush1.bf16.msra.mxu0 %v7712
    %7743 = vmatprep.subr.bf16.mxu0 %v7711
    %7744 = vmatpush1.bf16.msra.mxu0 %v7710
    %7745 = vmatprep.subr.bf16.mxu0 0
    %7746 = vmatpush2.bf16.msra.mxu0 0
    %7747 = vmatprep.subr.bf16.mxu0 0
    %7748 = vmatpush2.bf16.msra.mxu0 0
    %7749 = vmatprep.subr.bf16.mxu0 0
    %7750 = vmatpush2.bf16.msra.mxu0 0
    %7751 = vmatprep.subr.bf16.mxu0 0
    %7752 = vmatpush2.bf16.msra.mxu0 0
    %7753 = vmatprep.subr.bf16.mxu0 0
    %7754 = vmatpush2.bf16.msra.mxu0 0
    %7755 = vmatprep.subr.bf16.mxu0 0
    %7756 = vmatpush2.bf16.msra.mxu0 0
    %7757 = vmatprep.subr.bf16.mxu0 0
    %7758 = vmatpush2.bf16.msra.mxu0 0
    %7759 = vmatprep.subr.bf16.mxu0 0
    %7760 = vmatpush2.bf16.msra.mxu0 0
    %7761 = vmatprep.mubr.bf16.mxu0 0
    %7762 = vmatmul.mubr.bf16.gmra.mxu0 %v7727
    %v7763 = vpop.f32.mrf.mxu0
    %v7764 = vadd.f32 0.0, %v7763
    %v7765 = vpop.f32.mrf.mxu0
    %v7766 = vadd.f32 0.0, %v7765
    %v7767 = vpop.f32.mrf.mxu0
    %v7768 = vpop.f32.mrf.mxu0
    %7769 = vdwg.mxu0
    %v7770 = vadd.f32 %v7673, %v7764
    %v7771 = vadd.f32 %v7674, %v7766
    %s7772 = scalar_lea.vmem [#allocation4], 128
    %v7773 = vld [vmem:[%s7772] ss:$240 sm:$0x3]
    %v7774 = vpack.c.bf16 %v7773, %v7773
    %v7775 = vld [vmem:[#allocation5 + $0x700] sm:$0xff]
    %v7776 = vld [vmem:[#allocation5 + $0x708] sm:$0xff]
    %v7777 = vld [vmem:[#allocation5 + $0x710] sm:$0xff]
    %v7778 = vld [vmem:[#allocation5 + $0x718] sm:$0xff]
    %v7779 = vld [vmem:[#allocation5 + $0x720] sm:$0xff]
    %v7780 = vld [vmem:[#allocation5 + $0x728] sm:$0xff]
    %v7781 = vld [vmem:[#allocation5 + $0x730] sm:$0xff]
    %v7782 = vld [vmem:[#allocation5 + $0x738] sm:$0xff]
    %v7791 = vunpack.c.l.b16 %v7775
    %v7792 = vunpack.c.h.b16 %v7775
    %v7793 = vunpack.c.l.b16 %v7776
    %v7794 = vunpack.c.h.b16 %v7776
    %v7795 = vunpack.c.l.b16 %v7777
    %v7796 = vunpack.c.h.b16 %v7777
    %v7797 = vunpack.c.l.b16 %v7778
    %v7798 = vunpack.c.h.b16 %v7778
    %v7799 = vunpack.c.l.b16 %v7779
    %v7800 = vunpack.c.h.b16 %v7779
    %v7801 = vunpack.c.l.b16 %v7780
    %v7802 = vunpack.c.h.b16 %v7780
    %v7803 = vunpack.c.l.b16 %v7781
    %v7804 = vunpack.c.h.b16 %v7781
    %v7805 = vunpack.c.l.b16 %v7782
    %v7806 = vunpack.c.h.b16 %v7782
    %v7807 = vpack.c.b16 %v7793, %v7791
    %v7808 = vpack.c.b16 %v7794, %v7792
    %v7809 = vpack.c.b16 %v7797, %v7795
    %v7810 = vpack.c.b16 %v7798, %v7796
    %v7811 = vpack.c.b16 %v7801, %v7799
    %v7812 = vpack.c.b16 %v7802, %v7800
    %v7813 = vpack.c.b16 %v7805, %v7803
    %v7814 = vpack.c.b16 %v7806, %v7804
    %v7824 = vsel %vm1695, %v7774, 0
    %7826 = vmatprep.subr.bf16.mxu0 0
    %7827 = vmatpush1.bf16.msra.mxu0 0
    %7828 = vmatprep.subr.bf16.mxu0 0
    %7829 = vmatpush1.bf16.msra.mxu0 0
    %7830 = vmatprep.subr.bf16.mxu0 0
    %7831 = vmatpush1.bf16.msra.mxu0 0
    %7832 = vmatprep.subr.bf16.mxu0 0
    %7833 = vmatpush1.bf16.msra.mxu0 0
    %7834 = vmatprep.subr.bf16.mxu0 %v7814
    %7835 = vmatpush1.bf16.msra.mxu0 %v7813
    %7836 = vmatprep.subr.bf16.mxu0 %v7812
    %7837 = vmatpush1.bf16.msra.mxu0 %v7811
    %7838 = vmatprep.subr.bf16.mxu0 %v7810
    %7839 = vmatpush1.bf16.msra.mxu0 %v7809
    %7840 = vmatprep.subr.bf16.mxu0 %v7808
    %7841 = vmatpush1.bf16.msra.mxu0 %v7807
    %7842 = vmatprep.subr.bf16.mxu0 0
    %7843 = vmatpush2.bf16.msra.mxu0 0
    %7844 = vmatprep.subr.bf16.mxu0 0
    %7845 = vmatpush2.bf16.msra.mxu0 0
    %7846 = vmatprep.subr.bf16.mxu0 0
    %7847 = vmatpush2.bf16.msra.mxu0 0
    %7848 = vmatprep.subr.bf16.mxu0 0
    %7849 = vmatpush2.bf16.msra.mxu0 0
    %7850 = vmatprep.subr.bf16.mxu0 0
    %7851 = vmatpush2.bf16.msra.mxu0 0
    %7852 = vmatprep.subr.bf16.mxu0 0
    %7853 = vmatpush2.bf16.msra.mxu0 0
    %7854 = vmatprep.subr.bf16.mxu0 0
    %7855 = vmatpush2.bf16.msra.mxu0 0
    %7856 = vmatprep.subr.bf16.mxu0 0
    %7857 = vmatpush2.bf16.msra.mxu0 0
    %7858 = vmatprep.mubr.bf16.mxu0 0
    %7859 = vmatmul.mubr.bf16.gmra.mxu0 %v7824
    %v7860 = vpop.f32.mrf.mxu0
    %v7861 = vadd.f32 0.0, %v7860
    %v7862 = vpop.f32.mrf.mxu0
    %v7863 = vadd.f32 0.0, %v7862
    %v7864 = vpop.f32.mrf.mxu0
    %v7865 = vpop.f32.mrf.mxu0
    %7866 = vdwg.mxu0
    %v7867 = vadd.f32 %v7770, %v7861
    %v7868 = vadd.f32 %v7771, %v7863
    %s7869 = scalar_lea.vmem [#allocation4], 130
    %v7870 = vld [vmem:[%s7869] ss:$240 sm:$0x3]
    %v7871 = vpack.c.bf16 %v7870, %v7870
    %v7872 = vld [vmem:[#allocation5 + $0x740] sm:$0xff]
    %v7873 = vld [vmem:[#allocation5 + $0x748] sm:$0xff]
    %v7874 = vld [vmem:[#allocation5 + $0x750] sm:$0xff]
    %v7875 = vld [vmem:[#allocation5 + $0x758] sm:$0xff]
    %v7876 = vld [vmem:[#allocation5 + $0x760] sm:$0xff]
    %v7877 = vld [vmem:[#allocation5 + $0x768] sm:$0xff]
    %v7878 = vld [vmem:[#allocation5 + $0x770] sm:$0xff]
    %v7879 = vld [vmem:[#allocation5 + $0x778] sm:$0xff]
    %v7888 = vunpack.c.l.b16 %v7872
    %v7889 = vunpack.c.h.b16 %v7872
    %v7890 = vunpack.c.l.b16 %v7873
    %v7891 = vunpack.c.h.b16 %v7873
    %v7892 = vunpack.c.l.b16 %v7874
    %v7893 = vunpack.c.h.b16 %v7874
    %v7894 = vunpack.c.l.b16 %v7875
    %v7895 = vunpack.c.h.b16 %v7875
    %v7896 = vunpack.c.l.b16 %v7876
    %v7897 = vunpack.c.h.b16 %v7876
    %v7898 = vunpack.c.l.b16 %v7877
    %v7899 = vunpack.c.h.b16 %v7877
    %v7900 = vunpack.c.l.b16 %v7878
    %v7901 = vunpack.c.h.b16 %v7878
    %v7902 = vunpack.c.l.b16 %v7879
    %v7903 = vunpack.c.h.b16 %v7879
    %v7904 = vpack.c.b16 %v7890, %v7888
    %v7905 = vpack.c.b16 %v7891, %v7889
    %v7906 = vpack.c.b16 %v7894, %v7892
    %v7907 = vpack.c.b16 %v7895, %v7893
    %v7908 = vpack.c.b16 %v7898, %v7896
    %v7909 = vpack.c.b16 %v7899, %v7897
    %v7910 = vpack.c.b16 %v7902, %v7900
    %v7911 = vpack.c.b16 %v7903, %v7901
    %v7921 = vsel %vm1695, %v7871, 0
    %7923 = vmatprep.subr.bf16.mxu0 0
    %7924 = vmatpush1.bf16.msra.mxu0 0
    %7925 = vmatprep.subr.bf16.mxu0 0
    %7926 = vmatpush1.bf16.msra.mxu0 0
    %7927 = vmatprep.subr.bf16.mxu0 0
    %7928 = vmatpush1.bf16.msra.mxu0 0
    %7929 = vmatprep.subr.bf16.mxu0 0
    %7930 = vmatpush1.bf16.msra.mxu0 0
    %7931 = vmatprep.subr.bf16.mxu0 %v7911
    %7932 = vmatpush1.bf16.msra.mxu0 %v7910
    %7933 = vmatprep.subr.bf16.mxu0 %v7909
    %7934 = vmatpush1.bf16.msra.mxu0 %v7908
    %7935 = vmatprep.subr.bf16.mxu0 %v7907
    %7936 = vmatpush1.bf16.msra.mxu0 %v7906
    %7937 = vmatprep.subr.bf16.mxu0 %v7905
    %7938 = vmatpush1.bf16.msra.mxu0 %v7904
    %7939 = vmatprep.subr.bf16.mxu0 0
    %7940 = vmatpush2.bf16.msra.mxu0 0
    %7941 = vmatprep.subr.bf16.mxu0 0
    %7942 = vmatpush2.bf16.msra.mxu0 0
    %7943 = vmatprep.subr.bf16.mxu0 0
    %7944 = vmatpush2.bf16.msra.mxu0 0
    %7945 = vmatprep.subr.bf16.mxu0 0
    %7946 = vmatpush2.bf16.msra.mxu0 0
    %7947 = vmatprep.subr.bf16.mxu0 0
    %7948 = vmatpush2.bf16.msra.mxu0 0
    %7949 = vmatprep.subr.bf16.mxu0 0
    %7950 = vmatpush2.bf16.msra.mxu0 0
    %7951 = vmatprep.subr.bf16.mxu0 0
    %7952 = vmatpush2.bf16.msra.mxu0 0
    %7953 = vmatprep.subr.bf16.mxu0 0
    %7954 = vmatpush2.bf16.msra.mxu0 0
    %7955 = vmatprep.mubr.bf16.mxu0 0
    %7956 = vmatmul.mubr.bf16.gmra.mxu0 %v7921
    %v7957 = vpop.f32.mrf.mxu0
    %v7958 = vadd.f32 0.0, %v7957
    %v7959 = vpop.f32.mrf.mxu0
    %v7960 = vadd.f32 0.0, %v7959
    %v7961 = vpop.f32.mrf.mxu0
    %v7962 = vpop.f32.mrf.mxu0
    %7963 = vdwg.mxu0
    %v7964 = vadd.f32 %v7867, %v7958
    %v7965 = vadd.f32 %v7868, %v7960
    %s7966 = scalar_lea.vmem [#allocation4], 132
    %v7967 = vld [vmem:[%s7966] ss:$240 sm:$0x3]
    %v7968 = vpack.c.bf16 %v7967, %v7967
    %v7969 = vld [vmem:[#allocation5 + $0x780] sm:$0xff]
    %v7970 = vld [vmem:[#allocation5 + $0x788] sm:$0xff]
    %v7971 = vld [vmem:[#allocation5 + $0x790] sm:$0xff]
    %v7972 = vld [vmem:[#allocation5 + $0x798] sm:$0xff]
    %v7973 = vld [vmem:[#allocation5 + $0x7a0] sm:$0xff]
    %v7974 = vld [vmem:[#allocation5 + $0x7a8] sm:$0xff]
    %v7975 = vld [vmem:[#allocation5 + $0x7b0] sm:$0xff]
    %v7976 = vld [vmem:[#allocation5 + $0x7b8] sm:$0xff]
    %v7985 = vunpack.c.l.b16 %v7969
    %v7986 = vunpack.c.h.b16 %v7969
    %v7987 = vunpack.c.l.b16 %v7970
    %v7988 = vunpack.c.h.b16 %v7970
    %v7989 = vunpack.c.l.b16 %v7971
    %v7990 = vunpack.c.h.b16 %v7971
    %v7991 = vunpack.c.l.b16 %v7972
    %v7992 = vunpack.c.h.b16 %v7972
    %v7993 = vunpack.c.l.b16 %v7973
    %v7994 = vunpack.c.h.b16 %v7973
    %v7995 = vunpack.c.l.b16 %v7974
    %v7996 = vunpack.c.h.b16 %v7974
    %v7997 = vunpack.c.l.b16 %v7975
    %v7998 = vunpack.c.h.b16 %v7975
    %v7999 = vunpack.c.l.b16 %v7976
    %v8000 = vunpack.c.h.b16 %v7976
    %v8001 = vpack.c.b16 %v7987, %v7985
    %v8002 = vpack.c.b16 %v7988, %v7986
    %v8003 = vpack.c.b16 %v7991, %v7989
    %v8004 = vpack.c.b16 %v7992, %v7990
    %v8005 = vpack.c.b16 %v7995, %v7993
    %v8006 = vpack.c.b16 %v7996, %v7994
    %v8007 = vpack.c.b16 %v7999, %v7997
    %v8008 = vpack.c.b16 %v8000, %v7998
    %v8018 = vsel %vm1695, %v7968, 0
    %8020 = vmatprep.subr.bf16.mxu0 0
    %8021 = vmatpush1.bf16.msra.mxu0 0
    %8022 = vmatprep.subr.bf16.mxu0 0
    %8023 = vmatpush1.bf16.msra.mxu0 0
    %8024 = vmatprep.subr.bf16.mxu0 0
    %8025 = vmatpush1.bf16.msra.mxu0 0
    %8026 = vmatprep.subr.bf16.mxu0 0
    %8027 = vmatpush1.bf16.msra.mxu0 0
    %8028 = vmatprep.subr.bf16.mxu0 %v8008
    %8029 = vmatpush1.bf16.msra.mxu0 %v8007
    %8030 = vmatprep.subr.bf16.mxu0 %v8006
    %8031 = vmatpush1.bf16.msra.mxu0 %v8005
    %8032 = vmatprep.subr.bf16.mxu0 %v8004
    %8033 = vmatpush1.bf16.msra.mxu0 %v8003
    %8034 = vmatprep.subr.bf16.mxu0 %v8002
    %8035 = vmatpush1.bf16.msra.mxu0 %v8001
    %8036 = vmatprep.subr.bf16.mxu0 0
    %8037 = vmatpush2.bf16.msra.mxu0 0
    %8038 = vmatprep.subr.bf16.mxu0 0
    %8039 = vmatpush2.bf16.msra.mxu0 0
    %8040 = vmatprep.subr.bf16.mxu0 0
    %8041 = vmatpush2.bf16.msra.mxu0 0
    %8042 = vmatprep.subr.bf16.mxu0 0
    %8043 = vmatpush2.bf16.msra.mxu0 0
    %8044 = vmatprep.subr.bf16.mxu0 0
    %8045 = vmatpush2.bf16.msra.mxu0 0
    %8046 = vmatprep.subr.bf16.mxu0 0
    %8047 = vmatpush2.bf16.msra.mxu0 0
    %8048 = vmatprep.subr.bf16.mxu0 0
    %8049 = vmatpush2.bf16.msra.mxu0 0
    %8050 = vmatprep.subr.bf16.mxu0 0
    %8051 = vmatpush2.bf16.msra.mxu0 0
    %8052 = vmatprep.mubr.bf16.mxu0 0
    %8053 = vmatmul.mubr.bf16.gmra.mxu0 %v8018
    %v8054 = vpop.f32.mrf.mxu0
    %v8055 = vadd.f32 0.0, %v8054
    %v8056 = vpop.f32.mrf.mxu0
    %v8057 = vadd.f32 0.0, %v8056
    %v8058 = vpop.f32.mrf.mxu0
    %v8059 = vpop.f32.mrf.mxu0
    %8060 = vdwg.mxu0
    %v8061 = vadd.f32 %v7964, %v8055
    %v8062 = vadd.f32 %v7965, %v8057
    %s8063 = scalar_lea.vmem [#allocation4], 134
    %v8064 = vld [vmem:[%s8063] ss:$240 sm:$0x3]
    %v8065 = vpack.c.bf16 %v8064, %v8064
    %v8066 = vld [vmem:[#allocation5 + $0x7c0] sm:$0xff]
    %v8067 = vld [vmem:[#allocation5 + $0x7c8] sm:$0xff]
    %v8068 = vld [vmem:[#allocation5 + $0x7d0] sm:$0xff]
    %v8069 = vld [vmem:[#allocation5 + $0x7d8] sm:$0xff]
    %v8070 = vld [vmem:[#allocation5 + $0x7e0] sm:$0xff]
    %v8071 = vld [vmem:[#allocation5 + $0x7e8] sm:$0xff]
    %v8072 = vld [vmem:[#allocation5 + $0x7f0] sm:$0xff]
    %v8073 = vld [vmem:[#allocation5 + $0x7f8] sm:$0xff]
    %v8082 = vunpack.c.l.b16 %v8066
    %v8083 = vunpack.c.h.b16 %v8066
    %v8084 = vunpack.c.l.b16 %v8067
    %v8085 = vunpack.c.h.b16 %v8067
    %v8086 = vunpack.c.l.b16 %v8068
    %v8087 = vunpack.c.h.b16 %v8068
    %v8088 = vunpack.c.l.b16 %v8069
    %v8089 = vunpack.c.h.b16 %v8069
    %v8090 = vunpack.c.l.b16 %v8070
    %v8091 = vunpack.c.h.b16 %v8070
    %v8092 = vunpack.c.l.b16 %v8071
    %v8093 = vunpack.c.h.b16 %v8071
    %v8094 = vunpack.c.l.b16 %v8072
    %v8095 = vunpack.c.h.b16 %v8072
    %v8096 = vunpack.c.l.b16 %v8073
    %v8097 = vunpack.c.h.b16 %v8073
    %v8098 = vpack.c.b16 %v8084, %v8082
    %v8099 = vpack.c.b16 %v8085, %v8083
    %v8100 = vpack.c.b16 %v8088, %v8086
    %v8101 = vpack.c.b16 %v8089, %v8087
    %v8102 = vpack.c.b16 %v8092, %v8090
    %v8103 = vpack.c.b16 %v8093, %v8091
    %v8104 = vpack.c.b16 %v8096, %v8094
    %v8105 = vpack.c.b16 %v8097, %v8095
    %v8115 = vsel %vm1695, %v8065, 0
    %8117 = vmatprep.subr.bf16.mxu0 0
    %8118 = vmatpush1.bf16.msra.mxu0 0
    %8119 = vmatprep.subr.bf16.mxu0 0
    %8120 = vmatpush1.bf16.msra.mxu0 0
    %8121 = vmatprep.subr.bf16.mxu0 0
    %8122 = vmatpush1.bf16.msra.mxu0 0
    %8123 = vmatprep.subr.bf16.mxu0 0
    %8124 = vmatpush1.bf16.msra.mxu0 0
    %8125 = vmatprep.subr.bf16.mxu0 %v8105
    %8126 = vmatpush1.bf16.msra.mxu0 %v8104
    %8127 = vmatprep.subr.bf16.mxu0 %v8103
    %8128 = vmatpush1.bf16.msra.mxu0 %v8102
    %8129 = vmatprep.subr.bf16.mxu0 %v8101
    %8130 = vmatpush1.bf16.msra.mxu0 %v8100
    %8131 = vmatprep.subr.bf16.mxu0 %v8099
    %8132 = vmatpush1.bf16.msra.mxu0 %v8098
    %8133 = vmatprep.subr.bf16.mxu0 0
    %8134 = vmatpush2.bf16.msra.mxu0 0
    %8135 = vmatprep.subr.bf16.mxu0 0
    %8136 = vmatpush2.bf16.msra.mxu0 0
    %8137 = vmatprep.subr.bf16.mxu0 0
    %8138 = vmatpush2.bf16.msra.mxu0 0
    %8139 = vmatprep.subr.bf16.mxu0 0
    %8140 = vmatpush2.bf16.msra.mxu0 0
    %8141 = vmatprep.subr.bf16.mxu0 0
    %8142 = vmatpush2.bf16.msra.mxu0 0
    %8143 = vmatprep.subr.bf16.mxu0 0
    %8144 = vmatpush2.bf16.msra.mxu0 0
    %8145 = vmatprep.subr.bf16.mxu0 0
    %8146 = vmatpush2.bf16.msra.mxu0 0
    %8147 = vmatprep.subr.bf16.mxu0 0
    %8148 = vmatpush2.bf16.msra.mxu0 0
    %8149 = vmatprep.mubr.bf16.mxu0 0
    %8150 = vmatmul.mubr.bf16.gmra.mxu0 %v8115
    %v8151 = vpop.f32.mrf.mxu0
    %v8152 = vadd.f32 0.0, %v8151
    %v8153 = vpop.f32.mrf.mxu0
    %v8154 = vadd.f32 0.0, %v8153
    %v8155 = vpop.f32.mrf.mxu0
    %v8156 = vpop.f32.mrf.mxu0
    %8157 = vdwg.mxu0
    %v8158 = vadd.f32 %v8061, %v8152
    %v8159 = vadd.f32 %v8062, %v8154
    %s8160 = scalar_lea.vmem [#allocation4], 136
    %v8161 = vld [vmem:[%s8160] ss:$240 sm:$0x3]
    %v8162 = vpack.c.bf16 %v8161, %v8161
    %v8163 = vld [vmem:[#allocation5 + $0x800] sm:$0xff]
    %v8164 = vld [vmem:[#allocation5 + $0x808] sm:$0xff]
    %v8165 = vld [vmem:[#allocation5 + $0x810] sm:$0xff]
    %v8166 = vld [vmem:[#allocation5 + $0x818] sm:$0xff]
    %v8167 = vld [vmem:[#allocation5 + $0x820] sm:$0xff]
    %v8168 = vld [vmem:[#allocation5 + $0x828] sm:$0xff]
    %v8169 = vld [vmem:[#allocation5 + $0x830] sm:$0xff]
    %v8170 = vld [vmem:[#allocation5 + $0x838] sm:$0xff]
    %v8179 = vunpack.c.l.b16 %v8163
    %v8180 = vunpack.c.h.b16 %v8163
    %v8181 = vunpack.c.l.b16 %v8164
    %v8182 = vunpack.c.h.b16 %v8164
    %v8183 = vunpack.c.l.b16 %v8165
    %v8184 = vunpack.c.h.b16 %v8165
    %v8185 = vunpack.c.l.b16 %v8166
    %v8186 = vunpack.c.h.b16 %v8166
    %v8187 = vunpack.c.l.b16 %v8167
    %v8188 = vunpack.c.h.b16 %v8167
    %v8189 = vunpack.c.l.b16 %v8168
    %v8190 = vunpack.c.h.b16 %v8168
    %v8191 = vunpack.c.l.b16 %v8169
    %v8192 = vunpack.c.h.b16 %v8169
    %v8193 = vunpack.c.l.b16 %v8170
    %v8194 = vunpack.c.h.b16 %v8170
    %v8195 = vpack.c.b16 %v8181, %v8179
    %v8196 = vpack.c.b16 %v8182, %v8180
    %v8197 = vpack.c.b16 %v8185, %v8183
    %v8198 = vpack.c.b16 %v8186, %v8184
    %v8199 = vpack.c.b16 %v8189, %v8187
    %v8200 = vpack.c.b16 %v8190, %v8188
    %v8201 = vpack.c.b16 %v8193, %v8191
    %v8202 = vpack.c.b16 %v8194, %v8192
    %v8212 = vsel %vm1695, %v8162, 0
    %8214 = vmatprep.subr.bf16.mxu0 0
    %8215 = vmatpush1.bf16.msra.mxu0 0
    %8216 = vmatprep.subr.bf16.mxu0 0
    %8217 = vmatpush1.bf16.msra.mxu0 0
    %8218 = vmatprep.subr.bf16.mxu0 0
    %8219 = vmatpush1.bf16.msra.mxu0 0
    %8220 = vmatprep.subr.bf16.mxu0 0
    %8221 = vmatpush1.bf16.msra.mxu0 0
    %8222 = vmatprep.subr.bf16.mxu0 %v8202
    %8223 = vmatpush1.bf16.msra.mxu0 %v8201
    %8224 = vmatprep.subr.bf16.mxu0 %v8200
    %8225 = vmatpush1.bf16.msra.mxu0 %v8199
    %8226 = vmatprep.subr.bf16.mxu0 %v8198
    %8227 = vmatpush1.bf16.msra.mxu0 %v8197
    %8228 = vmatprep.subr.bf16.mxu0 %v8196
    %8229 = vmatpush1.bf16.msra.mxu0 %v8195
    %8230 = vmatprep.subr.bf16.mxu0 0
    %8231 = vmatpush2.bf16.msra.mxu0 0
    %8232 = vmatprep.subr.bf16.mxu0 0
    %8233 = vmatpush2.bf16.msra.mxu0 0
    %8234 = vmatprep.subr.bf16.mxu0 0
    %8235 = vmatpush2.bf16.msra.mxu0 0
    %8236 = vmatprep.subr.bf16.mxu0 0
    %8237 = vmatpush2.bf16.msra.mxu0 0
    %8238 = vmatprep.subr.bf16.mxu0 0
    %8239 = vmatpush2.bf16.msra.mxu0 0
    %8240 = vmatprep.subr.bf16.mxu0 0
    %8241 = vmatpush2.bf16.msra.mxu0 0
    %8242 = vmatprep.subr.bf16.mxu0 0
    %8243 = vmatpush2.bf16.msra.mxu0 0
    %8244 = vmatprep.subr.bf16.mxu0 0
    %8245 = vmatpush2.bf16.msra.mxu0 0
    %8246 = vmatprep.mubr.bf16.mxu0 0
    %8247 = vmatmul.mubr.bf16.gmra.mxu0 %v8212
    %v8248 = vpop.f32.mrf.mxu0
    %v8249 = vadd.f32 0.0, %v8248
    %v8250 = vpop.f32.mrf.mxu0
    %v8251 = vadd.f32 0.0, %v8250
    %v8252 = vpop.f32.mrf.mxu0
    %v8253 = vpop.f32.mrf.mxu0
    %8254 = vdwg.mxu0
    %v8255 = vadd.f32 %v8158, %v8249
    %v8256 = vadd.f32 %v8159, %v8251
    %s8257 = scalar_lea.vmem [#allocation4], 138
    %v8258 = vld [vmem:[%s8257] ss:$240 sm:$0x3]
    %v8259 = vpack.c.bf16 %v8258, %v8258
    %v8260 = vld [vmem:[#allocation5 + $0x840] sm:$0xff]
    %v8261 = vld [vmem:[#allocation5 + $0x848] sm:$0xff]
    %v8262 = vld [vmem:[#allocation5 + $0x850] sm:$0xff]
    %v8263 = vld [vmem:[#allocation5 + $0x858] sm:$0xff]
    %v8264 = vld [vmem:[#allocation5 + $0x860] sm:$0xff]
    %v8265 = vld [vmem:[#allocation5 + $0x868] sm:$0xff]
    %v8266 = vld [vmem:[#allocation5 + $0x870] sm:$0xff]
    %v8267 = vld [vmem:[#allocation5 + $0x878] sm:$0xff]
    %v8276 = vunpack.c.l.b16 %v8260
    %v8277 = vunpack.c.h.b16 %v8260
    %v8278 = vunpack.c.l.b16 %v8261
    %v8279 = vunpack.c.h.b16 %v8261
    %v8280 = vunpack.c.l.b16 %v8262
    %v8281 = vunpack.c.h.b16 %v8262
    %v8282 = vunpack.c.l.b16 %v8263
    %v8283 = vunpack.c.h.b16 %v8263
    %v8284 = vunpack.c.l.b16 %v8264
    %v8285 = vunpack.c.h.b16 %v8264
    %v8286 = vunpack.c.l.b16 %v8265
    %v8287 = vunpack.c.h.b16 %v8265
    %v8288 = vunpack.c.l.b16 %v8266
    %v8289 = vunpack.c.h.b16 %v8266
    %v8290 = vunpack.c.l.b16 %v8267
    %v8291 = vunpack.c.h.b16 %v8267
    %v8292 = vpack.c.b16 %v8278, %v8276
    %v8293 = vpack.c.b16 %v8279, %v8277
    %v8294 = vpack.c.b16 %v8282, %v8280
    %v8295 = vpack.c.b16 %v8283, %v8281
    %v8296 = vpack.c.b16 %v8286, %v8284
    %v8297 = vpack.c.b16 %v8287, %v8285
    %v8298 = vpack.c.b16 %v8290, %v8288
    %v8299 = vpack.c.b16 %v8291, %v8289
    %v8309 = vsel %vm1695, %v8259, 0
    %8311 = vmatprep.subr.bf16.mxu0 0
    %8312 = vmatpush1.bf16.msra.mxu0 0
    %8313 = vmatprep.subr.bf16.mxu0 0
    %8314 = vmatpush1.bf16.msra.mxu0 0
    %8315 = vmatprep.subr.bf16.mxu0 0
    %8316 = vmatpush1.bf16.msra.mxu0 0
    %8317 = vmatprep.subr.bf16.mxu0 0
    %8318 = vmatpush1.bf16.msra.mxu0 0
    %8319 = vmatprep.subr.bf16.mxu0 %v8299
    %8320 = vmatpush1.bf16.msra.mxu0 %v8298
    %8321 = vmatprep.subr.bf16.mxu0 %v8297
    %8322 = vmatpush1.bf16.msra.mxu0 %v8296
    %8323 = vmatprep.subr.bf16.mxu0 %v8295
    %8324 = vmatpush1.bf16.msra.mxu0 %v8294
    %8325 = vmatprep.subr.bf16.mxu0 %v8293
    %8326 = vmatpush1.bf16.msra.mxu0 %v8292
    %8327 = vmatprep.subr.bf16.mxu0 0
    %8328 = vmatpush2.bf16.msra.mxu0 0
    %8329 = vmatprep.subr.bf16.mxu0 0
    %8330 = vmatpush2.bf16.msra.mxu0 0
    %8331 = vmatprep.subr.bf16.mxu0 0
    %8332 = vmatpush2.bf16.msra.mxu0 0
    %8333 = vmatprep.subr.bf16.mxu0 0
    %8334 = vmatpush2.bf16.msra.mxu0 0
    %8335 = vmatprep.subr.bf16.mxu0 0
    %8336 = vmatpush2.bf16.msra.mxu0 0
    %8337 = vmatprep.subr.bf16.mxu0 0
    %8338 = vmatpush2.bf16.msra.mxu0 0
    %8339 = vmatprep.subr.bf16.mxu0 0
    %8340 = vmatpush2.bf16.msra.mxu0 0
    %8341 = vmatprep.subr.bf16.mxu0 0
    %8342 = vmatpush2.bf16.msra.mxu0 0
    %8343 = vmatprep.mubr.bf16.mxu0 0
    %8344 = vmatmul.mubr.bf16.gmra.mxu0 %v8309
    %v8345 = vpop.f32.mrf.mxu0
    %v8346 = vadd.f32 0.0, %v8345
    %v8347 = vpop.f32.mrf.mxu0
    %v8348 = vadd.f32 0.0, %v8347
    %v8349 = vpop.f32.mrf.mxu0
    %v8350 = vpop.f32.mrf.mxu0
    %8351 = vdwg.mxu0
    %v8352 = vadd.f32 %v8255, %v8346
    %v8353 = vadd.f32 %v8256, %v8348
    %s8354 = scalar_lea.vmem [#allocation4], 140
    %v8355 = vld [vmem:[%s8354] ss:$240 sm:$0x3]
    %v8356 = vpack.c.bf16 %v8355, %v8355
    %v8357 = vld [vmem:[#allocation5 + $0x880] sm:$0xff]
    %v8358 = vld [vmem:[#allocation5 + $0x888] sm:$0xff]
    %v8359 = vld [vmem:[#allocation5 + $0x890] sm:$0xff]
    %v8360 = vld [vmem:[#allocation5 + $0x898] sm:$0xff]
    %v8361 = vld [vmem:[#allocation5 + $0x8a0] sm:$0xff]
    %v8362 = vld [vmem:[#allocation5 + $0x8a8] sm:$0xff]
    %v8363 = vld [vmem:[#allocation5 + $0x8b0] sm:$0xff]
    %v8364 = vld [vmem:[#allocation5 + $0x8b8] sm:$0xff]
    %v8373 = vunpack.c.l.b16 %v8357
    %v8374 = vunpack.c.h.b16 %v8357
    %v8375 = vunpack.c.l.b16 %v8358
    %v8376 = vunpack.c.h.b16 %v8358
    %v8377 = vunpack.c.l.b16 %v8359
    %v8378 = vunpack.c.h.b16 %v8359
    %v8379 = vunpack.c.l.b16 %v8360
    %v8380 = vunpack.c.h.b16 %v8360
    %v8381 = vunpack.c.l.b16 %v8361
    %v8382 = vunpack.c.h.b16 %v8361
    %v8383 = vunpack.c.l.b16 %v8362
    %v8384 = vunpack.c.h.b16 %v8362
    %v8385 = vunpack.c.l.b16 %v8363
    %v8386 = vunpack.c.h.b16 %v8363
    %v8387 = vunpack.c.l.b16 %v8364
    %v8388 = vunpack.c.h.b16 %v8364
    %v8389 = vpack.c.b16 %v8375, %v8373
    %v8390 = vpack.c.b16 %v8376, %v8374
    %v8391 = vpack.c.b16 %v8379, %v8377
    %v8392 = vpack.c.b16 %v8380, %v8378
    %v8393 = vpack.c.b16 %v8383, %v8381
    %v8394 = vpack.c.b16 %v8384, %v8382
    %v8395 = vpack.c.b16 %v8387, %v8385
    %v8396 = vpack.c.b16 %v8388, %v8386
    %v8406 = vsel %vm1695, %v8356, 0
    %8408 = vmatprep.subr.bf16.mxu0 0
    %8409 = vmatpush1.bf16.msra.mxu0 0
    %8410 = vmatprep.subr.bf16.mxu0 0
    %8411 = vmatpush1.bf16.msra.mxu0 0
    %8412 = vmatprep.subr.bf16.mxu0 0
    %8413 = vmatpush1.bf16.msra.mxu0 0
    %8414 = vmatprep.subr.bf16.mxu0 0
    %8415 = vmatpush1.bf16.msra.mxu0 0
    %8416 = vmatprep.subr.bf16.mxu0 %v8396
    %8417 = vmatpush1.bf16.msra.mxu0 %v8395
    %8418 = vmatprep.subr.bf16.mxu0 %v8394
    %8419 = vmatpush1.bf16.msra.mxu0 %v8393
    %8420 = vmatprep.subr.bf16.mxu0 %v8392
    %8421 = vmatpush1.bf16.msra.mxu0 %v8391
    %8422 = vmatprep.subr.bf16.mxu0 %v8390
    %8423 = vmatpush1.bf16.msra.mxu0 %v8389
    %8424 = vmatprep.subr.bf16.mxu0 0
    %8425 = vmatpush2.bf16.msra.mxu0 0
    %8426 = vmatprep.subr.bf16.mxu0 0
    %8427 = vmatpush2.bf16.msra.mxu0 0
    %8428 = vmatprep.subr.bf16.mxu0 0
    %8429 = vmatpush2.bf16.msra.mxu0 0
    %8430 = vmatprep.subr.bf16.mxu0 0
    %8431 = vmatpush2.bf16.msra.mxu0 0
    %8432 = vmatprep.subr.bf16.mxu0 0
    %8433 = vmatpush2.bf16.msra.mxu0 0
    %8434 = vmatprep.subr.bf16.mxu0 0
    %8435 = vmatpush2.bf16.msra.mxu0 0
    %8436 = vmatprep.subr.bf16.mxu0 0
    %8437 = vmatpush2.bf16.msra.mxu0 0
    %8438 = vmatprep.subr.bf16.mxu0 0
    %8439 = vmatpush2.bf16.msra.mxu0 0
    %8440 = vmatprep.mubr.bf16.mxu0 0
    %8441 = vmatmul.mubr.bf16.gmra.mxu0 %v8406
    %v8442 = vpop.f32.mrf.mxu0
    %v8443 = vadd.f32 0.0, %v8442
    %v8444 = vpop.f32.mrf.mxu0
    %v8445 = vadd.f32 0.0, %v8444
    %v8446 = vpop.f32.mrf.mxu0
    %v8447 = vpop.f32.mrf.mxu0
    %8448 = vdwg.mxu0
    %v8449 = vadd.f32 %v8352, %v8443
    %v8450 = vadd.f32 %v8353, %v8445
    %s8451 = scalar_lea.vmem [#allocation4], 160
    %v8452 = vld [vmem:[%s8451] ss:$240 sm:$0x3]
    %v8453 = vpack.c.bf16 %v8452, %v8452
    %v8454 = vld [vmem:[#allocation5 + $0x8c0] sm:$0xff]
    %v8455 = vld [vmem:[#allocation5 + $0x8c8] sm:$0xff]
    %v8456 = vld [vmem:[#allocation5 + $0x8d0] sm:$0xff]
    %v8457 = vld [vmem:[#allocation5 + $0x8d8] sm:$0xff]
    %v8458 = vld [vmem:[#allocation5 + $0x8e0] sm:$0xff]
    %v8459 = vld [vmem:[#allocation5 + $0x8e8] sm:$0xff]
    %v8460 = vld [vmem:[#allocation5 + $0x8f0] sm:$0xff]
    %v8461 = vld [vmem:[#allocation5 + $0x8f8] sm:$0xff]
    %v8470 = vunpack.c.l.b16 %v8454
    %v8471 = vunpack.c.h.b16 %v8454
    %v8472 = vunpack.c.l.b16 %v8455
    %v8473 = vunpack.c.h.b16 %v8455
    %v8474 = vunpack.c.l.b16 %v8456
    %v8475 = vunpack.c.h.b16 %v8456
    %v8476 = vunpack.c.l.b16 %v8457
    %v8477 = vunpack.c.h.b16 %v8457
    %v8478 = vunpack.c.l.b16 %v8458
    %v8479 = vunpack.c.h.b16 %v8458
    %v8480 = vunpack.c.l.b16 %v8459
    %v8481 = vunpack.c.h.b16 %v8459
    %v8482 = vunpack.c.l.b16 %v8460
    %v8483 = vunpack.c.h.b16 %v8460
    %v8484 = vunpack.c.l.b16 %v8461
    %v8485 = vunpack.c.h.b16 %v8461
    %v8486 = vpack.c.b16 %v8472, %v8470
    %v8487 = vpack.c.b16 %v8473, %v8471
    %v8488 = vpack.c.b16 %v8476, %v8474
    %v8489 = vpack.c.b16 %v8477, %v8475
    %v8490 = vpack.c.b16 %v8480, %v8478
    %v8491 = vpack.c.b16 %v8481, %v8479
    %v8492 = vpack.c.b16 %v8484, %v8482
    %v8493 = vpack.c.b16 %v8485, %v8483
    %v8503 = vsel %vm1695, %v8453, 0
    %8505 = vmatprep.subr.bf16.mxu0 0
    %8506 = vmatpush1.bf16.msra.mxu0 0
    %8507 = vmatprep.subr.bf16.mxu0 0
    %8508 = vmatpush1.bf16.msra.mxu0 0
    %8509 = vmatprep.subr.bf16.mxu0 0
    %8510 = vmatpush1.bf16.msra.mxu0 0
    %8511 = vmatprep.subr.bf16.mxu0 0
    %8512 = vmatpush1.bf16.msra.mxu0 0
    %8513 = vmatprep.subr.bf16.mxu0 %v8493
    %8514 = vmatpush1.bf16.msra.mxu0 %v8492
    %8515 = vmatprep.subr.bf16.mxu0 %v8491
    %8516 = vmatpush1.bf16.msra.mxu0 %v8490
    %8517 = vmatprep.subr.bf16.mxu0 %v8489
    %8518 = vmatpush1.bf16.msra.mxu0 %v8488
    %8519 = vmatprep.subr.bf16.mxu0 %v8487
    %8520 = vmatpush1.bf16.msra.mxu0 %v8486
    %8521 = vmatprep.subr.bf16.mxu0 0
    %8522 = vmatpush2.bf16.msra.mxu0 0
    %8523 = vmatprep.subr.bf16.mxu0 0
    %8524 = vmatpush2.bf16.msra.mxu0 0
    %8525 = vmatprep.subr.bf16.mxu0 0
    %8526 = vmatpush2.bf16.msra.mxu0 0
    %8527 = vmatprep.subr.bf16.mxu0 0
    %8528 = vmatpush2.bf16.msra.mxu0 0
    %8529 = vmatprep.subr.bf16.mxu0 0
    %8530 = vmatpush2.bf16.msra.mxu0 0
    %8531 = vmatprep.subr.bf16.mxu0 0
    %8532 = vmatpush2.bf16.msra.mxu0 0
    %8533 = vmatprep.subr.bf16.mxu0 0
    %8534 = vmatpush2.bf16.msra.mxu0 0
    %8535 = vmatprep.subr.bf16.mxu0 0
    %8536 = vmatpush2.bf16.msra.mxu0 0
    %8537 = vmatprep.mubr.bf16.mxu0 0
    %8538 = vmatmul.mubr.bf16.gmra.mxu0 %v8503
    %v8539 = vpop.f32.mrf.mxu0
    %v8540 = vadd.f32 0.0, %v8539
    %v8541 = vpop.f32.mrf.mxu0
    %v8542 = vadd.f32 0.0, %v8541
    %v8543 = vpop.f32.mrf.mxu0
    %v8544 = vpop.f32.mrf.mxu0
    %8545 = vdwg.mxu0
    %v8546 = vadd.f32 %v8449, %v8540
    %v8547 = vadd.f32 %v8450, %v8542
    %s8548 = scalar_lea.vmem [#allocation4], 162
    %v8549 = vld [vmem:[%s8548] ss:$240 sm:$0x3]
    %v8550 = vpack.c.bf16 %v8549, %v8549
    %v8551 = vld [vmem:[#allocation5 + $0x900] sm:$0xff]
    %v8552 = vld [vmem:[#allocation5 + $0x908] sm:$0xff]
    %v8553 = vld [vmem:[#allocation5 + $0x910] sm:$0xff]
    %v8554 = vld [vmem:[#allocation5 + $0x918] sm:$0xff]
    %v8555 = vld [vmem:[#allocation5 + $0x920] sm:$0xff]
    %v8556 = vld [vmem:[#allocation5 + $0x928] sm:$0xff]
    %v8557 = vld [vmem:[#allocation5 + $0x930] sm:$0xff]
    %v8558 = vld [vmem:[#allocation5 + $0x938] sm:$0xff]
    %v8567 = vunpack.c.l.b16 %v8551
    %v8568 = vunpack.c.h.b16 %v8551
    %v8569 = vunpack.c.l.b16 %v8552
    %v8570 = vunpack.c.h.b16 %v8552
    %v8571 = vunpack.c.l.b16 %v8553
    %v8572 = vunpack.c.h.b16 %v8553
    %v8573 = vunpack.c.l.b16 %v8554
    %v8574 = vunpack.c.h.b16 %v8554
    %v8575 = vunpack.c.l.b16 %v8555
    %v8576 = vunpack.c.h.b16 %v8555
    %v8577 = vunpack.c.l.b16 %v8556
    %v8578 = vunpack.c.h.b16 %v8556
    %v8579 = vunpack.c.l.b16 %v8557
    %v8580 = vunpack.c.h.b16 %v8557
    %v8581 = vunpack.c.l.b16 %v8558
    %v8582 = vunpack.c.h.b16 %v8558
    %v8583 = vpack.c.b16 %v8569, %v8567
    %v8584 = vpack.c.b16 %v8570, %v8568
    %v8585 = vpack.c.b16 %v8573, %v8571
    %v8586 = vpack.c.b16 %v8574, %v8572
    %v8587 = vpack.c.b16 %v8577, %v8575
    %v8588 = vpack.c.b16 %v8578, %v8576
    %v8589 = vpack.c.b16 %v8581, %v8579
    %v8590 = vpack.c.b16 %v8582, %v8580
    %v8600 = vsel %vm1695, %v8550, 0
    %8602 = vmatprep.subr.bf16.mxu0 0
    %8603 = vmatpush1.bf16.msra.mxu0 0
    %8604 = vmatprep.subr.bf16.mxu0 0
    %8605 = vmatpush1.bf16.msra.mxu0 0
    %8606 = vmatprep.subr.bf16.mxu0 0
    %8607 = vmatpush1.bf16.msra.mxu0 0
    %8608 = vmatprep.subr.bf16.mxu0 0
    %8609 = vmatpush1.bf16.msra.mxu0 0
    %8610 = vmatprep.subr.bf16.mxu0 %v8590
    %8611 = vmatpush1.bf16.msra.mxu0 %v8589
    %8612 = vmatprep.subr.bf16.mxu0 %v8588
    %8613 = vmatpush1.bf16.msra.mxu0 %v8587
    %8614 = vmatprep.subr.bf16.mxu0 %v8586
    %8615 = vmatpush1.bf16.msra.mxu0 %v8585
    %8616 = vmatprep.subr.bf16.mxu0 %v8584
    %8617 = vmatpush1.bf16.msra.mxu0 %v8583
    %8618 = vmatprep.subr.bf16.mxu0 0
    %8619 = vmatpush2.bf16.msra.mxu0 0
    %8620 = vmatprep.subr.bf16.mxu0 0
    %8621 = vmatpush2.bf16.msra.mxu0 0
    %8622 = vmatprep.subr.bf16.mxu0 0
    %8623 = vmatpush2.bf16.msra.mxu0 0
    %8624 = vmatprep.subr.bf16.mxu0 0
    %8625 = vmatpush2.bf16.msra.mxu0 0
    %8626 = vmatprep.subr.bf16.mxu0 0
    %8627 = vmatpush2.bf16.msra.mxu0 0
    %8628 = vmatprep.subr.bf16.mxu0 0
    %8629 = vmatpush2.bf16.msra.mxu0 0
    %8630 = vmatprep.subr.bf16.mxu0 0
    %8631 = vmatpush2.bf16.msra.mxu0 0
    %8632 = vmatprep.subr.bf16.mxu0 0
    %8633 = vmatpush2.bf16.msra.mxu0 0
    %8634 = vmatprep.mubr.bf16.mxu0 0
    %8635 = vmatmul.mubr.bf16.gmra.mxu0 %v8600
    %v8636 = vpop.f32.mrf.mxu0
    %v8637 = vadd.f32 0.0, %v8636
    %v8638 = vpop.f32.mrf.mxu0
    %v8639 = vadd.f32 0.0, %v8638
    %v8640 = vpop.f32.mrf.mxu0
    %v8641 = vpop.f32.mrf.mxu0
    %8642 = vdwg.mxu0
    %v8643 = vadd.f32 %v8546, %v8637
    %v8644 = vadd.f32 %v8547, %v8639
    %s8645 = scalar_lea.vmem [#allocation4], 164
    %v8646 = vld [vmem:[%s8645] ss:$240 sm:$0x3]
    %v8647 = vpack.c.bf16 %v8646, %v8646
    %v8648 = vld [vmem:[#allocation5 + $0x940] sm:$0xff]
    %v8649 = vld [vmem:[#allocation5 + $0x948] sm:$0xff]
    %v8650 = vld [vmem:[#allocation5 + $0x950] sm:$0xff]
    %v8651 = vld [vmem:[#allocation5 + $0x958] sm:$0xff]
    %v8652 = vld [vmem:[#allocation5 + $0x960] sm:$0xff]
    %v8653 = vld [vmem:[#allocation5 + $0x968] sm:$0xff]
    %v8654 = vld [vmem:[#allocation5 + $0x970] sm:$0xff]
    %v8655 = vld [vmem:[#allocation5 + $0x978] sm:$0xff]
    %v8664 = vunpack.c.l.b16 %v8648
    %v8665 = vunpack.c.h.b16 %v8648
    %v8666 = vunpack.c.l.b16 %v8649
    %v8667 = vunpack.c.h.b16 %v8649
    %v8668 = vunpack.c.l.b16 %v8650
    %v8669 = vunpack.c.h.b16 %v8650
    %v8670 = vunpack.c.l.b16 %v8651
    %v8671 = vunpack.c.h.b16 %v8651
    %v8672 = vunpack.c.l.b16 %v8652
    %v8673 = vunpack.c.h.b16 %v8652
    %v8674 = vunpack.c.l.b16 %v8653
    %v8675 = vunpack.c.h.b16 %v8653
    %v8676 = vunpack.c.l.b16 %v8654
    %v8677 = vunpack.c.h.b16 %v8654
    %v8678 = vunpack.c.l.b16 %v8655
    %v8679 = vunpack.c.h.b16 %v8655
    %v8680 = vpack.c.b16 %v8666, %v8664
    %v8681 = vpack.c.b16 %v8667, %v8665
    %v8682 = vpack.c.b16 %v8670, %v8668
    %v8683 = vpack.c.b16 %v8671, %v8669
    %v8684 = vpack.c.b16 %v8674, %v8672
    %v8685 = vpack.c.b16 %v8675, %v8673
    %v8686 = vpack.c.b16 %v8678, %v8676
    %v8687 = vpack.c.b16 %v8679, %v8677
    %v8697 = vsel %vm1695, %v8647, 0
    %8699 = vmatprep.subr.bf16.mxu0 0
    %8700 = vmatpush1.bf16.msra.mxu0 0
    %8701 = vmatprep.subr.bf16.mxu0 0
    %8702 = vmatpush1.bf16.msra.mxu0 0
    %8703 = vmatprep.subr.bf16.mxu0 0
    %8704 = vmatpush1.bf16.msra.mxu0 0
    %8705 = vmatprep.subr.bf16.mxu0 0
    %8706 = vmatpush1.bf16.msra.mxu0 0
    %8707 = vmatprep.subr.bf16.mxu0 %v8687
    %8708 = vmatpush1.bf16.msra.mxu0 %v8686
    %8709 = vmatprep.subr.bf16.mxu0 %v8685
    %8710 = vmatpush1.bf16.msra.mxu0 %v8684
    %8711 = vmatprep.subr.bf16.mxu0 %v8683
    %8712 = vmatpush1.bf16.msra.mxu0 %v8682
    %8713 = vmatprep.subr.bf16.mxu0 %v8681
    %8714 = vmatpush1.bf16.msra.mxu0 %v8680
    %8715 = vmatprep.subr.bf16.mxu0 0
    %8716 = vmatpush2.bf16.msra.mxu0 0
    %8717 = vmatprep.subr.bf16.mxu0 0
    %8718 = vmatpush2.bf16.msra.mxu0 0
    %8719 = vmatprep.subr.bf16.mxu0 0
    %8720 = vmatpush2.bf16.msra.mxu0 0
    %8721 = vmatprep.subr.bf16.mxu0 0
    %8722 = vmatpush2.bf16.msra.mxu0 0
    %8723 = vmatprep.subr.bf16.mxu0 0
    %8724 = vmatpush2.bf16.msra.mxu0 0
    %8725 = vmatprep.subr.bf16.mxu0 0
    %8726 = vmatpush2.bf16.msra.mxu0 0
    %8727 = vmatprep.subr.bf16.mxu0 0
    %8728 = vmatpush2.bf16.msra.mxu0 0
    %8729 = vmatprep.subr.bf16.mxu0 0
    %8730 = vmatpush2.bf16.msra.mxu0 0
    %8731 = vmatprep.mubr.bf16.mxu0 0
    %8732 = vmatmul.mubr.bf16.gmra.mxu0 %v8697
    %v8733 = vpop.f32.mrf.mxu0
    %v8734 = vadd.f32 0.0, %v8733
    %v8735 = vpop.f32.mrf.mxu0
    %v8736 = vadd.f32 0.0, %v8735
    %v8737 = vpop.f32.mrf.mxu0
    %v8738 = vpop.f32.mrf.mxu0
    %8739 = vdwg.mxu0
    %v8740 = vadd.f32 %v8643, %v8734
    %v8741 = vadd.f32 %v8644, %v8736
    %s8742 = scalar_lea.vmem [#allocation4], 166
    %v8743 = vld [vmem:[%s8742] ss:$240 sm:$0x3]
    %v8744 = vpack.c.bf16 %v8743, %v8743
    %v8745 = vld [vmem:[#allocation5 + $0x980] sm:$0xff]
    %v8746 = vld [vmem:[#allocation5 + $0x988] sm:$0xff]
    %v8747 = vld [vmem:[#allocation5 + $0x990] sm:$0xff]
    %v8748 = vld [vmem:[#allocation5 + $0x998] sm:$0xff]
    %v8749 = vld [vmem:[#allocation5 + $0x9a0] sm:$0xff]
    %v8750 = vld [vmem:[#allocation5 + $0x9a8] sm:$0xff]
    %v8751 = vld [vmem:[#allocation5 + $0x9b0] sm:$0xff]
    %v8752 = vld [vmem:[#allocation5 + $0x9b8] sm:$0xff]
    %v8761 = vunpack.c.l.b16 %v8745
    %v8762 = vunpack.c.h.b16 %v8745
    %v8763 = vunpack.c.l.b16 %v8746
    %v8764 = vunpack.c.h.b16 %v8746
    %v8765 = vunpack.c.l.b16 %v8747
    %v8766 = vunpack.c.h.b16 %v8747
    %v8767 = vunpack.c.l.b16 %v8748
    %v8768 = vunpack.c.h.b16 %v8748
    %v8769 = vunpack.c.l.b16 %v8749
    %v8770 = vunpack.c.h.b16 %v8749
    %v8771 = vunpack.c.l.b16 %v8750
    %v8772 = vunpack.c.h.b16 %v8750
    %v8773 = vunpack.c.l.b16 %v8751
    %v8774 = vunpack.c.h.b16 %v8751
    %v8775 = vunpack.c.l.b16 %v8752
    %v8776 = vunpack.c.h.b16 %v8752
    %v8777 = vpack.c.b16 %v8763, %v8761
    %v8778 = vpack.c.b16 %v8764, %v8762
    %v8779 = vpack.c.b16 %v8767, %v8765
    %v8780 = vpack.c.b16 %v8768, %v8766
    %v8781 = vpack.c.b16 %v8771, %v8769
    %v8782 = vpack.c.b16 %v8772, %v8770
    %v8783 = vpack.c.b16 %v8775, %v8773
    %v8784 = vpack.c.b16 %v8776, %v8774
    %v8794 = vsel %vm1695, %v8744, 0
    %8796 = vmatprep.subr.bf16.mxu0 0
    %8797 = vmatpush1.bf16.msra.mxu0 0
    %8798 = vmatprep.subr.bf16.mxu0 0
    %8799 = vmatpush1.bf16.msra.mxu0 0
    %8800 = vmatprep.subr.bf16.mxu0 0
    %8801 = vmatpush1.bf16.msra.mxu0 0
    %8802 = vmatprep.subr.bf16.mxu0 0
    %8803 = vmatpush1.bf16.msra.mxu0 0
    %8804 = vmatprep.subr.bf16.mxu0 %v8784
    %8805 = vmatpush1.bf16.msra.mxu0 %v8783
    %8806 = vmatprep.subr.bf16.mxu0 %v8782
    %8807 = vmatpush1.bf16.msra.mxu0 %v8781
    %8808 = vmatprep.subr.bf16.mxu0 %v8780
    %8809 = vmatpush1.bf16.msra.mxu0 %v8779
    %8810 = vmatprep.subr.bf16.mxu0 %v8778
    %8811 = vmatpush1.bf16.msra.mxu0 %v8777
    %8812 = vmatprep.subr.bf16.mxu0 0
    %8813 = vmatpush2.bf16.msra.mxu0 0
    %8814 = vmatprep.subr.bf16.mxu0 0
    %8815 = vmatpush2.bf16.msra.mxu0 0
    %8816 = vmatprep.subr.bf16.mxu0 0
    %8817 = vmatpush2.bf16.msra.mxu0 0
    %8818 = vmatprep.subr.bf16.mxu0 0
    %8819 = vmatpush2.bf16.msra.mxu0 0
    %8820 = vmatprep.subr.bf16.mxu0 0
    %8821 = vmatpush2.bf16.msra.mxu0 0
    %8822 = vmatprep.subr.bf16.mxu0 0
    %8823 = vmatpush2.bf16.msra.mxu0 0
    %8824 = vmatprep.subr.bf16.mxu0 0
    %8825 = vmatpush2.bf16.msra.mxu0 0
    %8826 = vmatprep.subr.bf16.mxu0 0
    %8827 = vmatpush2.bf16.msra.mxu0 0
    %8828 = vmatprep.mubr.bf16.mxu0 0
    %8829 = vmatmul.mubr.bf16.gmra.mxu0 %v8794
    %v8830 = vpop.f32.mrf.mxu0
    %v8831 = vadd.f32 0.0, %v8830
    %v8832 = vpop.f32.mrf.mxu0
    %v8833 = vadd.f32 0.0, %v8832
    %v8834 = vpop.f32.mrf.mxu0
    %v8835 = vpop.f32.mrf.mxu0
    %8836 = vdwg.mxu0
    %v8837 = vadd.f32 %v8740, %v8831
    %v8838 = vadd.f32 %v8741, %v8833
    %s8839 = scalar_lea.vmem [#allocation4], 168
    %v8840 = vld [vmem:[%s8839] ss:$240 sm:$0x3]
    %v8841 = vpack.c.bf16 %v8840, %v8840
    %v8842 = vld [vmem:[#allocation5 + $0x9c0] sm:$0xff]
    %v8843 = vld [vmem:[#allocation5 + $0x9c8] sm:$0xff]
    %v8844 = vld [vmem:[#allocation5 + $0x9d0] sm:$0xff]
    %v8845 = vld [vmem:[#allocation5 + $0x9d8] sm:$0xff]
    %v8846 = vld [vmem:[#allocation5 + $0x9e0] sm:$0xff]
    %v8847 = vld [vmem:[#allocation5 + $0x9e8] sm:$0xff]
    %v8848 = vld [vmem:[#allocation5 + $0x9f0] sm:$0xff]
    %v8849 = vld [vmem:[#allocation5 + $0x9f8] sm:$0xff]
    %v8858 = vunpack.c.l.b16 %v8842
    %v8859 = vunpack.c.h.b16 %v8842
    %v8860 = vunpack.c.l.b16 %v8843
    %v8861 = vunpack.c.h.b16 %v8843
    %v8862 = vunpack.c.l.b16 %v8844
    %v8863 = vunpack.c.h.b16 %v8844
    %v8864 = vunpack.c.l.b16 %v8845
    %v8865 = vunpack.c.h.b16 %v8845
    %v8866 = vunpack.c.l.b16 %v8846
    %v8867 = vunpack.c.h.b16 %v8846
    %v8868 = vunpack.c.l.b16 %v8847
    %v8869 = vunpack.c.h.b16 %v8847
    %v8870 = vunpack.c.l.b16 %v8848
    %v8871 = vunpack.c.h.b16 %v8848
    %v8872 = vunpack.c.l.b16 %v8849
    %v8873 = vunpack.c.h.b16 %v8849
    %v8874 = vpack.c.b16 %v8860, %v8858
    %v8875 = vpack.c.b16 %v8861, %v8859
    %v8876 = vpack.c.b16 %v8864, %v8862
    %v8877 = vpack.c.b16 %v8865, %v8863
    %v8878 = vpack.c.b16 %v8868, %v8866
    %v8879 = vpack.c.b16 %v8869, %v8867
    %v8880 = vpack.c.b16 %v8872, %v8870
    %v8881 = vpack.c.b16 %v8873, %v8871
    %v8891 = vsel %vm1695, %v8841, 0
    %8893 = vmatprep.subr.bf16.mxu0 0
    %8894 = vmatpush1.bf16.msra.mxu0 0
    %8895 = vmatprep.subr.bf16.mxu0 0
    %8896 = vmatpush1.bf16.msra.mxu0 0
    %8897 = vmatprep.subr.bf16.mxu0 0
    %8898 = vmatpush1.bf16.msra.mxu0 0
    %8899 = vmatprep.subr.bf16.mxu0 0
    %8900 = vmatpush1.bf16.msra.mxu0 0
    %8901 = vmatprep.subr.bf16.mxu0 %v8881
    %8902 = vmatpush1.bf16.msra.mxu0 %v8880
    %8903 = vmatprep.subr.bf16.mxu0 %v8879
    %8904 = vmatpush1.bf16.msra.mxu0 %v8878
    %8905 = vmatprep.subr.bf16.mxu0 %v8877
    %8906 = vmatpush1.bf16.msra.mxu0 %v8876
    %8907 = vmatprep.subr.bf16.mxu0 %v8875
    %8908 = vmatpush1.bf16.msra.mxu0 %v8874
    %8909 = vmatprep.subr.bf16.mxu0 0
    %8910 = vmatpush2.bf16.msra.mxu0 0
    %8911 = vmatprep.subr.bf16.mxu0 0
    %8912 = vmatpush2.bf16.msra.mxu0 0
    %8913 = vmatprep.subr.bf16.mxu0 0
    %8914 = vmatpush2.bf16.msra.mxu0 0
    %8915 = vmatprep.subr.bf16.mxu0 0
    %8916 = vmatpush2.bf16.msra.mxu0 0
    %8917 = vmatprep.subr.bf16.mxu0 0
    %8918 = vmatpush2.bf16.msra.mxu0 0
    %8919 = vmatprep.subr.bf16.mxu0 0
    %8920 = vmatpush2.bf16.msra.mxu0 0
    %8921 = vmatprep.subr.bf16.mxu0 0
    %8922 = vmatpush2.bf16.msra.mxu0 0
    %8923 = vmatprep.subr.bf16.mxu0 0
    %8924 = vmatpush2.bf16.msra.mxu0 0
    %8925 = vmatprep.mubr.bf16.mxu0 0
    %8926 = vmatmul.mubr.bf16.gmra.mxu0 %v8891
    %v8927 = vpop.f32.mrf.mxu0
    %v8928 = vadd.f32 0.0, %v8927
    %v8929 = vpop.f32.mrf.mxu0
    %v8930 = vadd.f32 0.0, %v8929
    %v8931 = vpop.f32.mrf.mxu0
    %v8932 = vpop.f32.mrf.mxu0
    %8933 = vdwg.mxu0
    %v8934 = vadd.f32 %v8837, %v8928
    %v8935 = vadd.f32 %v8838, %v8930
    %s8936 = scalar_lea.vmem [#allocation4], 170
    %v8937 = vld [vmem:[%s8936] ss:$240 sm:$0x3]
    %v8938 = vpack.c.bf16 %v8937, %v8937
    %v8939 = vld [vmem:[#allocation5 + $0xa00] sm:$0xff]
    %v8940 = vld [vmem:[#allocation5 + $0xa08] sm:$0xff]
    %v8941 = vld [vmem:[#allocation5 + $0xa10] sm:$0xff]
    %v8942 = vld [vmem:[#allocation5 + $0xa18] sm:$0xff]
    %v8943 = vld [vmem:[#allocation5 + $0xa20] sm:$0xff]
    %v8944 = vld [vmem:[#allocation5 + $0xa28] sm:$0xff]
    %v8945 = vld [vmem:[#allocation5 + $0xa30] sm:$0xff]
    %v8946 = vld [vmem:[#allocation5 + $0xa38] sm:$0xff]
    %v8955 = vunpack.c.l.b16 %v8939
    %v8956 = vunpack.c.h.b16 %v8939
    %v8957 = vunpack.c.l.b16 %v8940
    %v8958 = vunpack.c.h.b16 %v8940
    %v8959 = vunpack.c.l.b16 %v8941
    %v8960 = vunpack.c.h.b16 %v8941
    %v8961 = vunpack.c.l.b16 %v8942
    %v8962 = vunpack.c.h.b16 %v8942
    %v8963 = vunpack.c.l.b16 %v8943
    %v8964 = vunpack.c.h.b16 %v8943
    %v8965 = vunpack.c.l.b16 %v8944
    %v8966 = vunpack.c.h.b16 %v8944
    %v8967 = vunpack.c.l.b16 %v8945
    %v8968 = vunpack.c.h.b16 %v8945
    %v8969 = vunpack.c.l.b16 %v8946
    %v8970 = vunpack.c.h.b16 %v8946
    %v8971 = vpack.c.b16 %v8957, %v8955
    %v8972 = vpack.c.b16 %v8958, %v8956
    %v8973 = vpack.c.b16 %v8961, %v8959
    %v8974 = vpack.c.b16 %v8962, %v8960
    %v8975 = vpack.c.b16 %v8965, %v8963
    %v8976 = vpack.c.b16 %v8966, %v8964
    %v8977 = vpack.c.b16 %v8969, %v8967
    %v8978 = vpack.c.b16 %v8970, %v8968
    %v8988 = vsel %vm1695, %v8938, 0
    %8990 = vmatprep.subr.bf16.mxu0 0
    %8991 = vmatpush1.bf16.msra.mxu0 0
    %8992 = vmatprep.subr.bf16.mxu0 0
    %8993 = vmatpush1.bf16.msra.mxu0 0
    %8994 = vmatprep.subr.bf16.mxu0 0
    %8995 = vmatpush1.bf16.msra.mxu0 0
    %8996 = vmatprep.subr.bf16.mxu0 0
    %8997 = vmatpush1.bf16.msra.mxu0 0
    %8998 = vmatprep.subr.bf16.mxu0 %v8978
    %8999 = vmatpush1.bf16.msra.mxu0 %v8977
    %9000 = vmatprep.subr.bf16.mxu0 %v8976
    %9001 = vmatpush1.bf16.msra.mxu0 %v8975
    %9002 = vmatprep.subr.bf16.mxu0 %v8974
    %9003 = vmatpush1.bf16.msra.mxu0 %v8973
    %9004 = vmatprep.subr.bf16.mxu0 %v8972
    %9005 = vmatpush1.bf16.msra.mxu0 %v8971
    %9006 = vmatprep.subr.bf16.mxu0 0
    %9007 = vmatpush2.bf16.msra.mxu0 0
    %9008 = vmatprep.subr.bf16.mxu0 0
    %9009 = vmatpush2.bf16.msra.mxu0 0
    %9010 = vmatprep.subr.bf16.mxu0 0
    %9011 = vmatpush2.bf16.msra.mxu0 0
    %9012 = vmatprep.subr.bf16.mxu0 0
    %9013 = vmatpush2.bf16.msra.mxu0 0
    %9014 = vmatprep.subr.bf16.mxu0 0
    %9015 = vmatpush2.bf16.msra.mxu0 0
    %9016 = vmatprep.subr.bf16.mxu0 0
    %9017 = vmatpush2.bf16.msra.mxu0 0
    %9018 = vmatprep.subr.bf16.mxu0 0
    %9019 = vmatpush2.bf16.msra.mxu0 0
    %9020 = vmatprep.subr.bf16.mxu0 0
    %9021 = vmatpush2.bf16.msra.mxu0 0
    %9022 = vmatprep.mubr.bf16.mxu0 0
    %9023 = vmatmul.mubr.bf16.gmra.mxu0 %v8988
    %v9024 = vpop.f32.mrf.mxu0
    %v9025 = vadd.f32 0.0, %v9024
    %v9026 = vpop.f32.mrf.mxu0
    %v9027 = vadd.f32 0.0, %v9026
    %v9028 = vpop.f32.mrf.mxu0
    %v9029 = vpop.f32.mrf.mxu0
    %9030 = vdwg.mxu0
    %v9031 = vadd.f32 %v8934, %v9025
    %v9032 = vadd.f32 %v8935, %v9027
    %s9033 = scalar_lea.vmem [#allocation4], 172
    %v9034 = vld [vmem:[%s9033] ss:$240 sm:$0x3]
    %v9035 = vpack.c.bf16 %v9034, %v9034
    %v9036 = vld [vmem:[#allocation5 + $0xa40] sm:$0xff]
    %v9037 = vld [vmem:[#allocation5 + $0xa48] sm:$0xff]
    %v9038 = vld [vmem:[#allocation5 + $0xa50] sm:$0xff]
    %v9039 = vld [vmem:[#allocation5 + $0xa58] sm:$0xff]
    %v9040 = vld [vmem:[#allocation5 + $0xa60] sm:$0xff]
    %v9041 = vld [vmem:[#allocation5 + $0xa68] sm:$0xff]
    %v9042 = vld [vmem:[#allocation5 + $0xa70] sm:$0xff]
    %v9043 = vld [vmem:[#allocation5 + $0xa78] sm:$0xff]
    %v9052 = vunpack.c.l.b16 %v9036
    %v9053 = vunpack.c.h.b16 %v9036
    %v9054 = vunpack.c.l.b16 %v9037
    %v9055 = vunpack.c.h.b16 %v9037
    %v9056 = vunpack.c.l.b16 %v9038
    %v9057 = vunpack.c.h.b16 %v9038
    %v9058 = vunpack.c.l.b16 %v9039
    %v9059 = vunpack.c.h.b16 %v9039
    %v9060 = vunpack.c.l.b16 %v9040
    %v9061 = vunpack.c.h.b16 %v9040
    %v9062 = vunpack.c.l.b16 %v9041
    %v9063 = vunpack.c.h.b16 %v9041
    %v9064 = vunpack.c.l.b16 %v9042
    %v9065 = vunpack.c.h.b16 %v9042
    %v9066 = vunpack.c.l.b16 %v9043
    %v9067 = vunpack.c.h.b16 %v9043
    %v9068 = vpack.c.b16 %v9054, %v9052
    %v9069 = vpack.c.b16 %v9055, %v9053
    %v9070 = vpack.c.b16 %v9058, %v9056
    %v9071 = vpack.c.b16 %v9059, %v9057
    %v9072 = vpack.c.b16 %v9062, %v9060
    %v9073 = vpack.c.b16 %v9063, %v9061
    %v9074 = vpack.c.b16 %v9066, %v9064
    %v9075 = vpack.c.b16 %v9067, %v9065
    %v9085 = vsel %vm1695, %v9035, 0
    %9087 = vmatprep.subr.bf16.mxu0 0
    %9088 = vmatpush1.bf16.msra.mxu0 0
    %9089 = vmatprep.subr.bf16.mxu0 0
    %9090 = vmatpush1.bf16.msra.mxu0 0
    %9091 = vmatprep.subr.bf16.mxu0 0
    %9092 = vmatpush1.bf16.msra.mxu0 0
    %9093 = vmatprep.subr.bf16.mxu0 0
    %9094 = vmatpush1.bf16.msra.mxu0 0
    %9095 = vmatprep.subr.bf16.mxu0 %v9075
    %9096 = vmatpush1.bf16.msra.mxu0 %v9074
    %9097 = vmatprep.subr.bf16.mxu0 %v9073
    %9098 = vmatpush1.bf16.msra.mxu0 %v9072
    %9099 = vmatprep.subr.bf16.mxu0 %v9071
    %9100 = vmatpush1.bf16.msra.mxu0 %v9070
    %9101 = vmatprep.subr.bf16.mxu0 %v9069
    %9102 = vmatpush1.bf16.msra.mxu0 %v9068
    %9103 = vmatprep.subr.bf16.mxu0 0
    %9104 = vmatpush2.bf16.msra.mxu0 0
    %9105 = vmatprep.subr.bf16.mxu0 0
    %9106 = vmatpush2.bf16.msra.mxu0 0
    %9107 = vmatprep.subr.bf16.mxu0 0
    %9108 = vmatpush2.bf16.msra.mxu0 0
    %9109 = vmatprep.subr.bf16.mxu0 0
    %9110 = vmatpush2.bf16.msra.mxu0 0
    %9111 = vmatprep.subr.bf16.mxu0 0
    %9112 = vmatpush2.bf16.msra.mxu0 0
    %9113 = vmatprep.subr.bf16.mxu0 0
    %9114 = vmatpush2.bf16.msra.mxu0 0
    %9115 = vmatprep.subr.bf16.mxu0 0
    %9116 = vmatpush2.bf16.msra.mxu0 0
    %9117 = vmatprep.subr.bf16.mxu0 0
    %9118 = vmatpush2.bf16.msra.mxu0 0
    %9119 = vmatprep.mubr.bf16.mxu0 0
    %9120 = vmatmul.mubr.bf16.gmra.mxu0 %v9085
    %v9121 = vpop.f32.mrf.mxu0
    %v9122 = vadd.f32 0.0, %v9121
    %v9123 = vpop.f32.mrf.mxu0
    %v9124 = vadd.f32 0.0, %v9123
    %v9125 = vpop.f32.mrf.mxu0
    %v9126 = vpop.f32.mrf.mxu0
    %9127 = vdwg.mxu0
    %v9128 = vadd.f32 %v9031, %v9122
    %v9129 = vadd.f32 %v9032, %v9124
    %s9130 = scalar_lea.vmem [#allocation4], 192
    %v9131 = vld [vmem:[%s9130] ss:$240 sm:$0x3]
    %v9132 = vpack.c.bf16 %v9131, %v9131
    %v9133 = vld [vmem:[#allocation5 + $0xa80] sm:$0xff]
    %v9134 = vld [vmem:[#allocation5 + $0xa88] sm:$0xff]
    %v9135 = vld [vmem:[#allocation5 + $0xa90] sm:$0xff]
    %v9136 = vld [vmem:[#allocation5 + $0xa98] sm:$0xff]
    %v9137 = vld [vmem:[#allocation5 + $0xaa0] sm:$0xff]
    %v9138 = vld [vmem:[#allocation5 + $0xaa8] sm:$0xff]
    %v9139 = vld [vmem:[#allocation5 + $0xab0] sm:$0xff]
    %v9140 = vld [vmem:[#allocation5 + $0xab8] sm:$0xff]
    %v9149 = vunpack.c.l.b16 %v9133
    %v9150 = vunpack.c.h.b16 %v9133
    %v9151 = vunpack.c.l.b16 %v9134
    %v9152 = vunpack.c.h.b16 %v9134
    %v9153 = vunpack.c.l.b16 %v9135
    %v9154 = vunpack.c.h.b16 %v9135
    %v9155 = vunpack.c.l.b16 %v9136
    %v9156 = vunpack.c.h.b16 %v9136
    %v9157 = vunpack.c.l.b16 %v9137
    %v9158 = vunpack.c.h.b16 %v9137
    %v9159 = vunpack.c.l.b16 %v9138
    %v9160 = vunpack.c.h.b16 %v9138
    %v9161 = vunpack.c.l.b16 %v9139
    %v9162 = vunpack.c.h.b16 %v9139
    %v9163 = vunpack.c.l.b16 %v9140
    %v9164 = vunpack.c.h.b16 %v9140
    %v9165 = vpack.c.b16 %v9151, %v9149
    %v9166 = vpack.c.b16 %v9152, %v9150
    %v9167 = vpack.c.b16 %v9155, %v9153
    %v9168 = vpack.c.b16 %v9156, %v9154
    %v9169 = vpack.c.b16 %v9159, %v9157
    %v9170 = vpack.c.b16 %v9160, %v9158
    %v9171 = vpack.c.b16 %v9163, %v9161
    %v9172 = vpack.c.b16 %v9164, %v9162
    %v9182 = vsel %vm1695, %v9132, 0
    %9184 = vmatprep.subr.bf16.mxu0 0
    %9185 = vmatpush1.bf16.msra.mxu0 0
    %9186 = vmatprep.subr.bf16.mxu0 0
    %9187 = vmatpush1.bf16.msra.mxu0 0
    %9188 = vmatprep.subr.bf16.mxu0 0
    %9189 = vmatpush1.bf16.msra.mxu0 0
    %9190 = vmatprep.subr.bf16.mxu0 0
    %9191 = vmatpush1.bf16.msra.mxu0 0
    %9192 = vmatprep.subr.bf16.mxu0 %v9172
    %9193 = vmatpush1.bf16.msra.mxu0 %v9171
    %9194 = vmatprep.subr.bf16.mxu0 %v9170
    %9195 = vmatpush1.bf16.msra.mxu0 %v9169
    %9196 = vmatprep.subr.bf16.mxu0 %v9168
    %9197 = vmatpush1.bf16.msra.mxu0 %v9167
    %9198 = vmatprep.subr.bf16.mxu0 %v9166
    %9199 = vmatpush1.bf16.msra.mxu0 %v9165
    %9200 = vmatprep.subr.bf16.mxu0 0
    %9201 = vmatpush2.bf16.msra.mxu0 0
    %9202 = vmatprep.subr.bf16.mxu0 0
    %9203 = vmatpush2.bf16.msra.mxu0 0
    %9204 = vmatprep.subr.bf16.mxu0 0
    %9205 = vmatpush2.bf16.msra.mxu0 0
    %9206 = vmatprep.subr.bf16.mxu0 0
    %9207 = vmatpush2.bf16.msra.mxu0 0
    %9208 = vmatprep.subr.bf16.mxu0 0
    %9209 = vmatpush2.bf16.msra.mxu0 0
    %9210 = vmatprep.subr.bf16.mxu0 0
    %9211 = vmatpush2.bf16.msra.mxu0 0
    %9212 = vmatprep.subr.bf16.mxu0 0
    %9213 = vmatpush2.bf16.msra.mxu0 0
    %9214 = vmatprep.subr.bf16.mxu0 0
    %9215 = vmatpush2.bf16.msra.mxu0 0
    %9216 = vmatprep.mubr.bf16.mxu0 0
    %9217 = vmatmul.mubr.bf16.gmra.mxu0 %v9182
    %v9218 = vpop.f32.mrf.mxu0
    %v9219 = vadd.f32 0.0, %v9218
    %v9220 = vpop.f32.mrf.mxu0
    %v9221 = vadd.f32 0.0, %v9220
    %v9222 = vpop.f32.mrf.mxu0
    %v9223 = vpop.f32.mrf.mxu0
    %9224 = vdwg.mxu0
    %v9225 = vadd.f32 %v9128, %v9219
    %v9226 = vadd.f32 %v9129, %v9221
    %s9227 = scalar_lea.vmem [#allocation4], 194
    %v9228 = vld [vmem:[%s9227] ss:$240 sm:$0x3]
    %v9229 = vpack.c.bf16 %v9228, %v9228
    %v9230 = vld [vmem:[#allocation5 + $0xac0] sm:$0xff]
    %v9231 = vld [vmem:[#allocation5 + $0xac8] sm:$0xff]
    %v9232 = vld [vmem:[#allocation5 + $0xad0] sm:$0xff]
    %v9233 = vld [vmem:[#allocation5 + $0xad8] sm:$0xff]
    %v9234 = vld [vmem:[#allocation5 + $0xae0] sm:$0xff]
    %v9235 = vld [vmem:[#allocation5 + $0xae8] sm:$0xff]
    %v9236 = vld [vmem:[#allocation5 + $0xaf0] sm:$0xff]
    %v9237 = vld [vmem:[#allocation5 + $0xaf8] sm:$0xff]
    %v9246 = vunpack.c.l.b16 %v9230
    %v9247 = vunpack.c.h.b16 %v9230
    %v9248 = vunpack.c.l.b16 %v9231
    %v9249 = vunpack.c.h.b16 %v9231
    %v9250 = vunpack.c.l.b16 %v9232
    %v9251 = vunpack.c.h.b16 %v9232
    %v9252 = vunpack.c.l.b16 %v9233
    %v9253 = vunpack.c.h.b16 %v9233
    %v9254 = vunpack.c.l.b16 %v9234
    %v9255 = vunpack.c.h.b16 %v9234
    %v9256 = vunpack.c.l.b16 %v9235
    %v9257 = vunpack.c.h.b16 %v9235
    %v9258 = vunpack.c.l.b16 %v9236
    %v9259 = vunpack.c.h.b16 %v9236
    %v9260 = vunpack.c.l.b16 %v9237
    %v9261 = vunpack.c.h.b16 %v9237
    %v9262 = vpack.c.b16 %v9248, %v9246
    %v9263 = vpack.c.b16 %v9249, %v9247
    %v9264 = vpack.c.b16 %v9252, %v9250
    %v9265 = vpack.c.b16 %v9253, %v9251
    %v9266 = vpack.c.b16 %v9256, %v9254
    %v9267 = vpack.c.b16 %v9257, %v9255
    %v9268 = vpack.c.b16 %v9260, %v9258
    %v9269 = vpack.c.b16 %v9261, %v9259
    %v9279 = vsel %vm1695, %v9229, 0
    %9281 = vmatprep.subr.bf16.mxu0 0
    %9282 = vmatpush1.bf16.msra.mxu0 0
    %9283 = vmatprep.subr.bf16.mxu0 0
    %9284 = vmatpush1.bf16.msra.mxu0 0
    %9285 = vmatprep.subr.bf16.mxu0 0
    %9286 = vmatpush1.bf16.msra.mxu0 0
    %9287 = vmatprep.subr.bf16.mxu0 0
    %9288 = vmatpush1.bf16.msra.mxu0 0
    %9289 = vmatprep.subr.bf16.mxu0 %v9269
    %9290 = vmatpush1.bf16.msra.mxu0 %v9268
    %9291 = vmatprep.subr.bf16.mxu0 %v9267
    %9292 = vmatpush1.bf16.msra.mxu0 %v9266
    %9293 = vmatprep.subr.bf16.mxu0 %v9265
    %9294 = vmatpush1.bf16.msra.mxu0 %v9264
    %9295 = vmatprep.subr.bf16.mxu0 %v9263
    %9296 = vmatpush1.bf16.msra.mxu0 %v9262
    %9297 = vmatprep.subr.bf16.mxu0 0
    %9298 = vmatpush2.bf16.msra.mxu0 0
    %9299 = vmatprep.subr.bf16.mxu0 0
    %9300 = vmatpush2.bf16.msra.mxu0 0
    %9301 = vmatprep.subr.bf16.mxu0 0
    %9302 = vmatpush2.bf16.msra.mxu0 0
    %9303 = vmatprep.subr.bf16.mxu0 0
    %9304 = vmatpush2.bf16.msra.mxu0 0
    %9305 = vmatprep.subr.bf16.mxu0 0
    %9306 = vmatpush2.bf16.msra.mxu0 0
    %9307 = vmatprep.subr.bf16.mxu0 0
    %9308 = vmatpush2.bf16.msra.mxu0 0
    %9309 = vmatprep.subr.bf16.mxu0 0
    %9310 = vmatpush2.bf16.msra.mxu0 0
    %9311 = vmatprep.subr.bf16.mxu0 0
    %9312 = vmatpush2.bf16.msra.mxu0 0
    %9313 = vmatprep.mubr.bf16.mxu0 0
    %9314 = vmatmul.mubr.bf16.gmra.mxu0 %v9279
    %v9315 = vpop.f32.mrf.mxu0
    %v9316 = vadd.f32 0.0, %v9315
    %v9317 = vpop.f32.mrf.mxu0
    %v9318 = vadd.f32 0.0, %v9317
    %v9319 = vpop.f32.mrf.mxu0
    %v9320 = vpop.f32.mrf.mxu0
    %9321 = vdwg.mxu0
    %v9322 = vadd.f32 %v9225, %v9316
    %v9323 = vadd.f32 %v9226, %v9318
    %s9324 = scalar_lea.vmem [#allocation4], 196
    %v9325 = vld [vmem:[%s9324] ss:$240 sm:$0x3]
    %v9326 = vpack.c.bf16 %v9325, %v9325
    %v9327 = vld [vmem:[#allocation5 + $0xb00] sm:$0xff]
    %v9328 = vld [vmem:[#allocation5 + $0xb08] sm:$0xff]
    %v9329 = vld [vmem:[#allocation5 + $0xb10] sm:$0xff]
    %v9330 = vld [vmem:[#allocation5 + $0xb18] sm:$0xff]
    %v9331 = vld [vmem:[#allocation5 + $0xb20] sm:$0xff]
    %v9332 = vld [vmem:[#allocation5 + $0xb28] sm:$0xff]
    %v9333 = vld [vmem:[#allocation5 + $0xb30] sm:$0xff]
    %v9334 = vld [vmem:[#allocation5 + $0xb38] sm:$0xff]
    %v9343 = vunpack.c.l.b16 %v9327
    %v9344 = vunpack.c.h.b16 %v9327
    %v9345 = vunpack.c.l.b16 %v9328
    %v9346 = vunpack.c.h.b16 %v9328
    %v9347 = vunpack.c.l.b16 %v9329
    %v9348 = vunpack.c.h.b16 %v9329
    %v9349 = vunpack.c.l.b16 %v9330
    %v9350 = vunpack.c.h.b16 %v9330
    %v9351 = vunpack.c.l.b16 %v9331
    %v9352 = vunpack.c.h.b16 %v9331
    %v9353 = vunpack.c.l.b16 %v9332
    %v9354 = vunpack.c.h.b16 %v9332
    %v9355 = vunpack.c.l.b16 %v9333
    %v9356 = vunpack.c.h.b16 %v9333
    %v9357 = vunpack.c.l.b16 %v9334
    %v9358 = vunpack.c.h.b16 %v9334
    %v9359 = vpack.c.b16 %v9345, %v9343
    %v9360 = vpack.c.b16 %v9346, %v9344
    %v9361 = vpack.c.b16 %v9349, %v9347
    %v9362 = vpack.c.b16 %v9350, %v9348
    %v9363 = vpack.c.b16 %v9353, %v9351
    %v9364 = vpack.c.b16 %v9354, %v9352
    %v9365 = vpack.c.b16 %v9357, %v9355
    %v9366 = vpack.c.b16 %v9358, %v9356
    %v9376 = vsel %vm1695, %v9326, 0
    %9378 = vmatprep.subr.bf16.mxu0 0
    %9379 = vmatpush1.bf16.msra.mxu0 0
    %9380 = vmatprep.subr.bf16.mxu0 0
    %9381 = vmatpush1.bf16.msra.mxu0 0
    %9382 = vmatprep.subr.bf16.mxu0 0
    %9383 = vmatpush1.bf16.msra.mxu0 0
    %9384 = vmatprep.subr.bf16.mxu0 0
    %9385 = vmatpush1.bf16.msra.mxu0 0
    %9386 = vmatprep.subr.bf16.mxu0 %v9366
    %9387 = vmatpush1.bf16.msra.mxu0 %v9365
    %9388 = vmatprep.subr.bf16.mxu0 %v9364
    %9389 = vmatpush1.bf16.msra.mxu0 %v9363
    %9390 = vmatprep.subr.bf16.mxu0 %v9362
    %9391 = vmatpush1.bf16.msra.mxu0 %v9361
    %9392 = vmatprep.subr.bf16.mxu0 %v9360
    %9393 = vmatpush1.bf16.msra.mxu0 %v9359
    %9394 = vmatprep.subr.bf16.mxu0 0
    %9395 = vmatpush2.bf16.msra.mxu0 0
    %9396 = vmatprep.subr.bf16.mxu0 0
    %9397 = vmatpush2.bf16.msra.mxu0 0
    %9398 = vmatprep.subr.bf16.mxu0 0
    %9399 = vmatpush2.bf16.msra.mxu0 0
    %9400 = vmatprep.subr.bf16.mxu0 0
    %9401 = vmatpush2.bf16.msra.mxu0 0
    %9402 = vmatprep.subr.bf16.mxu0 0
    %9403 = vmatpush2.bf16.msra.mxu0 0
    %9404 = vmatprep.subr.bf16.mxu0 0
    %9405 = vmatpush2.bf16.msra.mxu0 0
    %9406 = vmatprep.subr.bf16.mxu0 0
    %9407 = vmatpush2.bf16.msra.mxu0 0
    %9408 = vmatprep.subr.bf16.mxu0 0
    %9409 = vmatpush2.bf16.msra.mxu0 0
    %9410 = vmatprep.mubr.bf16.mxu0 0
    %9411 = vmatmul.mubr.bf16.gmra.mxu0 %v9376
    %v9412 = vpop.f32.mrf.mxu0
    %v9413 = vadd.f32 0.0, %v9412
    %v9414 = vpop.f32.mrf.mxu0
    %v9415 = vadd.f32 0.0, %v9414
    %v9416 = vpop.f32.mrf.mxu0
    %v9417 = vpop.f32.mrf.mxu0
    %9418 = vdwg.mxu0
    %v9419 = vadd.f32 %v9322, %v9413
    %v9420 = vadd.f32 %v9323, %v9415
    %s9421 = scalar_lea.vmem [#allocation4], 198
    %v9422 = vld [vmem:[%s9421] ss:$240 sm:$0x3]
    %v9423 = vpack.c.bf16 %v9422, %v9422
    %v9424 = vld [vmem:[#allocation5 + $0xb40] sm:$0xff]
    %v9425 = vld [vmem:[#allocation5 + $0xb48] sm:$0xff]
    %v9426 = vld [vmem:[#allocation5 + $0xb50] sm:$0xff]
    %v9427 = vld [vmem:[#allocation5 + $0xb58] sm:$0xff]
    %v9428 = vld [vmem:[#allocation5 + $0xb60] sm:$0xff]
    %v9429 = vld [vmem:[#allocation5 + $0xb68] sm:$0xff]
    %v9430 = vld [vmem:[#allocation5 + $0xb70] sm:$0xff]
    %v9431 = vld [vmem:[#allocation5 + $0xb78] sm:$0xff]
    %v9440 = vunpack.c.l.b16 %v9424
    %v9441 = vunpack.c.h.b16 %v9424
    %v9442 = vunpack.c.l.b16 %v9425
    %v9443 = vunpack.c.h.b16 %v9425
    %v9444 = vunpack.c.l.b16 %v9426
    %v9445 = vunpack.c.h.b16 %v9426
    %v9446 = vunpack.c.l.b16 %v9427
    %v9447 = vunpack.c.h.b16 %v9427
    %v9448 = vunpack.c.l.b16 %v9428
    %v9449 = vunpack.c.h.b16 %v9428
    %v9450 = vunpack.c.l.b16 %v9429
    %v9451 = vunpack.c.h.b16 %v9429
    %v9452 = vunpack.c.l.b16 %v9430
    %v9453 = vunpack.c.h.b16 %v9430
    %v9454 = vunpack.c.l.b16 %v9431
    %v9455 = vunpack.c.h.b16 %v9431
    %v9456 = vpack.c.b16 %v9442, %v9440
    %v9457 = vpack.c.b16 %v9443, %v9441
    %v9458 = vpack.c.b16 %v9446, %v9444
    %v9459 = vpack.c.b16 %v9447, %v9445
    %v9460 = vpack.c.b16 %v9450, %v9448
    %v9461 = vpack.c.b16 %v9451, %v9449
    %v9462 = vpack.c.b16 %v9454, %v9452
    %v9463 = vpack.c.b16 %v9455, %v9453
    %v9473 = vsel %vm1695, %v9423, 0
    %9475 = vmatprep.subr.bf16.mxu0 0
    %9476 = vmatpush1.bf16.msra.mxu0 0
    %9477 = vmatprep.subr.bf16.mxu0 0
    %9478 = vmatpush1.bf16.msra.mxu0 0
    %9479 = vmatprep.subr.bf16.mxu0 0
    %9480 = vmatpush1.bf16.msra.mxu0 0
    %9481 = vmatprep.subr.bf16.mxu0 0
    %9482 = vmatpush1.bf16.msra.mxu0 0
    %9483 = vmatprep.subr.bf16.mxu0 %v9463
    %9484 = vmatpush1.bf16.msra.mxu0 %v9462
    %9485 = vmatprep.subr.bf16.mxu0 %v9461
    %9486 = vmatpush1.bf16.msra.mxu0 %v9460
    %9487 = vmatprep.subr.bf16.mxu0 %v9459
    %9488 = vmatpush1.bf16.msra.mxu0 %v9458
    %9489 = vmatprep.subr.bf16.mxu0 %v9457
    %9490 = vmatpush1.bf16.msra.mxu0 %v9456
    %9491 = vmatprep.subr.bf16.mxu0 0
    %9492 = vmatpush2.bf16.msra.mxu0 0
    %9493 = vmatprep.subr.bf16.mxu0 0
    %9494 = vmatpush2.bf16.msra.mxu0 0
    %9495 = vmatprep.subr.bf16.mxu0 0
    %9496 = vmatpush2.bf16.msra.mxu0 0
    %9497 = vmatprep.subr.bf16.mxu0 0
    %9498 = vmatpush2.bf16.msra.mxu0 0
    %9499 = vmatprep.subr.bf16.mxu0 0
    %9500 = vmatpush2.bf16.msra.mxu0 0
    %9501 = vmatprep.subr.bf16.mxu0 0
    %9502 = vmatpush2.bf16.msra.mxu0 0
    %9503 = vmatprep.subr.bf16.mxu0 0
    %9504 = vmatpush2.bf16.msra.mxu0 0
    %9505 = vmatprep.subr.bf16.mxu0 0
    %9506 = vmatpush2.bf16.msra.mxu0 0
    %9507 = vmatprep.mubr.bf16.mxu0 0
    %9508 = vmatmul.mubr.bf16.gmra.mxu0 %v9473
    %v9509 = vpop.f32.mrf.mxu0
    %v9510 = vadd.f32 0.0, %v9509
    %v9511 = vpop.f32.mrf.mxu0
    %v9512 = vadd.f32 0.0, %v9511
    %v9513 = vpop.f32.mrf.mxu0
    %v9514 = vpop.f32.mrf.mxu0
    %9515 = vdwg.mxu0
    %v9516 = vadd.f32 %v9419, %v9510
    %v9517 = vadd.f32 %v9420, %v9512
    %s9518 = scalar_lea.vmem [#allocation4], 200
    %v9519 = vld [vmem:[%s9518] ss:$240 sm:$0x3]
    %v9520 = vpack.c.bf16 %v9519, %v9519
    %v9521 = vld [vmem:[#allocation5 + $0xb80] sm:$0xff]
    %v9522 = vld [vmem:[#allocation5 + $0xb88] sm:$0xff]
    %v9523 = vld [vmem:[#allocation5 + $0xb90] sm:$0xff]
    %v9524 = vld [vmem:[#allocation5 + $0xb98] sm:$0xff]
    %v9525 = vld [vmem:[#allocation5 + $0xba0] sm:$0xff]
    %v9526 = vld [vmem:[#allocation5 + $0xba8] sm:$0xff]
    %v9527 = vld [vmem:[#allocation5 + $0xbb0] sm:$0xff]
    %v9528 = vld [vmem:[#allocation5 + $0xbb8] sm:$0xff]
    %v9537 = vunpack.c.l.b16 %v9521
    %v9538 = vunpack.c.h.b16 %v9521
    %v9539 = vunpack.c.l.b16 %v9522
    %v9540 = vunpack.c.h.b16 %v9522
    %v9541 = vunpack.c.l.b16 %v9523
    %v9542 = vunpack.c.h.b16 %v9523
    %v9543 = vunpack.c.l.b16 %v9524
    %v9544 = vunpack.c.h.b16 %v9524
    %v9545 = vunpack.c.l.b16 %v9525
    %v9546 = vunpack.c.h.b16 %v9525
    %v9547 = vunpack.c.l.b16 %v9526
    %v9548 = vunpack.c.h.b16 %v9526
    %v9549 = vunpack.c.l.b16 %v9527
    %v9550 = vunpack.c.h.b16 %v9527
    %v9551 = vunpack.c.l.b16 %v9528
    %v9552 = vunpack.c.h.b16 %v9528
    %v9553 = vpack.c.b16 %v9539, %v9537
    %v9554 = vpack.c.b16 %v9540, %v9538
    %v9555 = vpack.c.b16 %v9543, %v9541
    %v9556 = vpack.c.b16 %v9544, %v9542
    %v9557 = vpack.c.b16 %v9547, %v9545
    %v9558 = vpack.c.b16 %v9548, %v9546
    %v9559 = vpack.c.b16 %v9551, %v9549
    %v9560 = vpack.c.b16 %v9552, %v9550
    %v9570 = vsel %vm1695, %v9520, 0
    %9572 = vmatprep.subr.bf16.mxu0 0
    %9573 = vmatpush1.bf16.msra.mxu0 0
    %9574 = vmatprep.subr.bf16.mxu0 0
    %9575 = vmatpush1.bf16.msra.mxu0 0
    %9576 = vmatprep.subr.bf16.mxu0 0
    %9577 = vmatpush1.bf16.msra.mxu0 0
    %9578 = vmatprep.subr.bf16.mxu0 0
    %9579 = vmatpush1.bf16.msra.mxu0 0
    %9580 = vmatprep.subr.bf16.mxu0 %v9560
    %9581 = vmatpush1.bf16.msra.mxu0 %v9559
    %9582 = vmatprep.subr.bf16.mxu0 %v9558
    %9583 = vmatpush1.bf16.msra.mxu0 %v9557
    %9584 = vmatprep.subr.bf16.mxu0 %v9556
    %9585 = vmatpush1.bf16.msra.mxu0 %v9555
    %9586 = vmatprep.subr.bf16.mxu0 %v9554
    %9587 = vmatpush1.bf16.msra.mxu0 %v9553
    %9588 = vmatprep.subr.bf16.mxu0 0
    %9589 = vmatpush2.bf16.msra.mxu0 0
    %9590 = vmatprep.subr.bf16.mxu0 0
    %9591 = vmatpush2.bf16.msra.mxu0 0
    %9592 = vmatprep.subr.bf16.mxu0 0
    %9593 = vmatpush2.bf16.msra.mxu0 0
    %9594 = vmatprep.subr.bf16.mxu0 0
    %9595 = vmatpush2.bf16.msra.mxu0 0
    %9596 = vmatprep.subr.bf16.mxu0 0
    %9597 = vmatpush2.bf16.msra.mxu0 0
    %9598 = vmatprep.subr.bf16.mxu0 0
    %9599 = vmatpush2.bf16.msra.mxu0 0
    %9600 = vmatprep.subr.bf16.mxu0 0
    %9601 = vmatpush2.bf16.msra.mxu0 0
    %9602 = vmatprep.subr.bf16.mxu0 0
    %9603 = vmatpush2.bf16.msra.mxu0 0
    %9604 = vmatprep.mubr.bf16.mxu0 0
    %9605 = vmatmul.mubr.bf16.gmra.mxu0 %v9570
    %v9606 = vpop.f32.mrf.mxu0
    %v9607 = vadd.f32 0.0, %v9606
    %v9608 = vpop.f32.mrf.mxu0
    %v9609 = vadd.f32 0.0, %v9608
    %v9610 = vpop.f32.mrf.mxu0
    %v9611 = vpop.f32.mrf.mxu0
    %9612 = vdwg.mxu0
    %v9613 = vadd.f32 %v9516, %v9607
    %v9614 = vadd.f32 %v9517, %v9609
    %s9615 = scalar_lea.vmem [#allocation4], 202
    %v9616 = vld [vmem:[%s9615] ss:$240 sm:$0x3]
    %v9617 = vpack.c.bf16 %v9616, %v9616
    %v9618 = vld [vmem:[#allocation5 + $0xbc0] sm:$0xff]
    %v9619 = vld [vmem:[#allocation5 + $0xbc8] sm:$0xff]
    %v9620 = vld [vmem:[#allocation5 + $0xbd0] sm:$0xff]
    %v9621 = vld [vmem:[#allocation5 + $0xbd8] sm:$0xff]
    %v9622 = vld [vmem:[#allocation5 + $0xbe0] sm:$0xff]
    %v9623 = vld [vmem:[#allocation5 + $0xbe8] sm:$0xff]
    %v9624 = vld [vmem:[#allocation5 + $0xbf0] sm:$0xff]
    %v9625 = vld [vmem:[#allocation5 + $0xbf8] sm:$0xff]
    %v9634 = vunpack.c.l.b16 %v9618
    %v9635 = vunpack.c.h.b16 %v9618
    %v9636 = vunpack.c.l.b16 %v9619
    %v9637 = vunpack.c.h.b16 %v9619
    %v9638 = vunpack.c.l.b16 %v9620
    %v9639 = vunpack.c.h.b16 %v9620
    %v9640 = vunpack.c.l.b16 %v9621
    %v9641 = vunpack.c.h.b16 %v9621
    %v9642 = vunpack.c.l.b16 %v9622
    %v9643 = vunpack.c.h.b16 %v9622
    %v9644 = vunpack.c.l.b16 %v9623
    %v9645 = vunpack.c.h.b16 %v9623
    %v9646 = vunpack.c.l.b16 %v9624
    %v9647 = vunpack.c.h.b16 %v9624
    %v9648 = vunpack.c.l.b16 %v9625
    %v9649 = vunpack.c.h.b16 %v9625
    %v9650 = vpack.c.b16 %v9636, %v9634
    %v9651 = vpack.c.b16 %v9637, %v9635
    %v9652 = vpack.c.b16 %v9640, %v9638
    %v9653 = vpack.c.b16 %v9641, %v9639
    %v9654 = vpack.c.b16 %v9644, %v9642
    %v9655 = vpack.c.b16 %v9645, %v9643
    %v9656 = vpack.c.b16 %v9648, %v9646
    %v9657 = vpack.c.b16 %v9649, %v9647
    %v9667 = vsel %vm1695, %v9617, 0
    %9669 = vmatprep.subr.bf16.mxu0 0
    %9670 = vmatpush1.bf16.msra.mxu0 0
    %9671 = vmatprep.subr.bf16.mxu0 0
    %9672 = vmatpush1.bf16.msra.mxu0 0
    %9673 = vmatprep.subr.bf16.mxu0 0
    %9674 = vmatpush1.bf16.msra.mxu0 0
    %9675 = vmatprep.subr.bf16.mxu0 0
    %9676 = vmatpush1.bf16.msra.mxu0 0
    %9677 = vmatprep.subr.bf16.mxu0 %v9657
    %9678 = vmatpush1.bf16.msra.mxu0 %v9656
    %9679 = vmatprep.subr.bf16.mxu0 %v9655
    %9680 = vmatpush1.bf16.msra.mxu0 %v9654
    %9681 = vmatprep.subr.bf16.mxu0 %v9653
    %9682 = vmatpush1.bf16.msra.mxu0 %v9652
    %9683 = vmatprep.subr.bf16.mxu0 %v9651
    %9684 = vmatpush1.bf16.msra.mxu0 %v9650
    %9685 = vmatprep.subr.bf16.mxu0 0
    %9686 = vmatpush2.bf16.msra.mxu0 0
    %9687 = vmatprep.subr.bf16.mxu0 0
    %9688 = vmatpush2.bf16.msra.mxu0 0
    %9689 = vmatprep.subr.bf16.mxu0 0
    %9690 = vmatpush2.bf16.msra.mxu0 0
    %9691 = vmatprep.subr.bf16.mxu0 0
    %9692 = vmatpush2.bf16.msra.mxu0 0
    %9693 = vmatprep.subr.bf16.mxu0 0
    %9694 = vmatpush2.bf16.msra.mxu0 0
    %9695 = vmatprep.subr.bf16.mxu0 0
    %9696 = vmatpush2.bf16.msra.mxu0 0
    %9697 = vmatprep.subr.bf16.mxu0 0
    %9698 = vmatpush2.bf16.msra.mxu0 0
    %9699 = vmatprep.subr.bf16.mxu0 0
    %9700 = vmatpush2.bf16.msra.mxu0 0
    %9701 = vmatprep.mubr.bf16.mxu0 0
    %9702 = vmatmul.mubr.bf16.gmra.mxu0 %v9667
    %v9703 = vpop.f32.mrf.mxu0
    %v9704 = vadd.f32 0.0, %v9703
    %v9705 = vpop.f32.mrf.mxu0
    %v9706 = vadd.f32 0.0, %v9705
    %v9707 = vpop.f32.mrf.mxu0
    %v9708 = vpop.f32.mrf.mxu0
    %9709 = vdwg.mxu0
    %v9710 = vadd.f32 %v9613, %v9704
    %v9711 = vadd.f32 %v9614, %v9706
    %s9712 = scalar_lea.vmem [#allocation4], 204
    %v9713 = vld [vmem:[%s9712] ss:$240 sm:$0x3]
    %v9714 = vpack.c.bf16 %v9713, %v9713
    %v9715 = vld [vmem:[#allocation5 + $0xc00] sm:$0xff]
    %v9716 = vld [vmem:[#allocation5 + $0xc08] sm:$0xff]
    %v9717 = vld [vmem:[#allocation5 + $0xc10] sm:$0xff]
    %v9718 = vld [vmem:[#allocation5 + $0xc18] sm:$0xff]
    %v9719 = vld [vmem:[#allocation5 + $0xc20] sm:$0xff]
    %v9720 = vld [vmem:[#allocation5 + $0xc28] sm:$0xff]
    %v9721 = vld [vmem:[#allocation5 + $0xc30] sm:$0xff]
    %v9722 = vld [vmem:[#allocation5 + $0xc38] sm:$0xff]
    %v9731 = vunpack.c.l.b16 %v9715
    %v9732 = vunpack.c.h.b16 %v9715
    %v9733 = vunpack.c.l.b16 %v9716
    %v9734 = vunpack.c.h.b16 %v9716
    %v9735 = vunpack.c.l.b16 %v9717
    %v9736 = vunpack.c.h.b16 %v9717
    %v9737 = vunpack.c.l.b16 %v9718
    %v9738 = vunpack.c.h.b16 %v9718
    %v9739 = vunpack.c.l.b16 %v9719
    %v9740 = vunpack.c.h.b16 %v9719
    %v9741 = vunpack.c.l.b16 %v9720
    %v9742 = vunpack.c.h.b16 %v9720
    %v9743 = vunpack.c.l.b16 %v9721
    %v9744 = vunpack.c.h.b16 %v9721
    %v9745 = vunpack.c.l.b16 %v9722
    %v9746 = vunpack.c.h.b16 %v9722
    %v9747 = vpack.c.b16 %v9733, %v9731
    %v9748 = vpack.c.b16 %v9734, %v9732
    %v9749 = vpack.c.b16 %v9737, %v9735
    %v9750 = vpack.c.b16 %v9738, %v9736
    %v9751 = vpack.c.b16 %v9741, %v9739
    %v9752 = vpack.c.b16 %v9742, %v9740
    %v9753 = vpack.c.b16 %v9745, %v9743
    %v9754 = vpack.c.b16 %v9746, %v9744
    %v9764 = vsel %vm1695, %v9714, 0
    %9766 = vmatprep.subr.bf16.mxu0 0
    %9767 = vmatpush1.bf16.msra.mxu0 0
    %9768 = vmatprep.subr.bf16.mxu0 0
    %9769 = vmatpush1.bf16.msra.mxu0 0
    %9770 = vmatprep.subr.bf16.mxu0 0
    %9771 = vmatpush1.bf16.msra.mxu0 0
    %9772 = vmatprep.subr.bf16.mxu0 0
    %9773 = vmatpush1.bf16.msra.mxu0 0
    %9774 = vmatprep.subr.bf16.mxu0 %v9754
    %9775 = vmatpush1.bf16.msra.mxu0 %v9753
    %9776 = vmatprep.subr.bf16.mxu0 %v9752
    %9777 = vmatpush1.bf16.msra.mxu0 %v9751
    %9778 = vmatprep.subr.bf16.mxu0 %v9750
    %9779 = vmatpush1.bf16.msra.mxu0 %v9749
    %9780 = vmatprep.subr.bf16.mxu0 %v9748
    %9781 = vmatpush1.bf16.msra.mxu0 %v9747
    %9782 = vmatprep.subr.bf16.mxu0 0
    %9783 = vmatpush2.bf16.msra.mxu0 0
    %9784 = vmatprep.subr.bf16.mxu0 0
    %9785 = vmatpush2.bf16.msra.mxu0 0
    %9786 = vmatprep.subr.bf16.mxu0 0
    %9787 = vmatpush2.bf16.msra.mxu0 0
    %9788 = vmatprep.subr.bf16.mxu0 0
    %9789 = vmatpush2.bf16.msra.mxu0 0
    %9790 = vmatprep.subr.bf16.mxu0 0
    %9791 = vmatpush2.bf16.msra.mxu0 0
    %9792 = vmatprep.subr.bf16.mxu0 0
    %9793 = vmatpush2.bf16.msra.mxu0 0
    %9794 = vmatprep.subr.bf16.mxu0 0
    %9795 = vmatpush2.bf16.msra.mxu0 0
    %9796 = vmatprep.subr.bf16.mxu0 0
    %9797 = vmatpush2.bf16.msra.mxu0 0
    %9798 = vmatprep.mubr.bf16.mxu0 0
    %9799 = vmatmul.mubr.bf16.gmra.mxu0 %v9764
    %v9800 = vpop.f32.mrf.mxu0
    %v9801 = vadd.f32 0.0, %v9800
    %v9802 = vpop.f32.mrf.mxu0
    %v9803 = vadd.f32 0.0, %v9802
    %v9804 = vpop.f32.mrf.mxu0
    %v9805 = vpop.f32.mrf.mxu0
    %9806 = vdwg.mxu0
    %v9807 = vadd.f32 %v9710, %v9801
    %v9808 = vadd.f32 %v9711, %v9803
    %v9809 = vld [vmem:[#allocation13] sm:$0x3]
    %v9811 = vlaneseq
    %v9812 = vshrl.u32 %v9811, 7
    %v9813 = vsub.s32 0, %v9812
    %v9814 = vrot.slane %v9809, %v9813
    %v9815 = vlaneseq
    %v9816 = vshrl.u32 %v9815, 7
    %v9817 = vsub.s32 1, %v9816
    %v9818 = vrot.slane %v9809, %v9817
    %v9821 = vadd.f32 %v9807, %v9814
    %v9822 = vadd.f32 %v9808, %v9818
    %v9823 = vmax.f32 %v9821, 0.0
    %v9824 = vmax.f32 %v9822, 0.0
    %v9825 = vpack.c.bf16 %v9823, %v9823
    %v9826 = vpack.c.bf16 %v9824, %v9824
    %v9827 = vld [vmem:[%s7] sm:$0xff]
    %v9828 = vld [vmem:[%s7 + $0x8] sm:$0xff]
    %v9829 = vld [vmem:[%s7 + $0x10] sm:$0xff]
    %v9830 = vld [vmem:[%s7 + $0x18] sm:$0xff]
    %v9831 = vld [vmem:[%s7 + $0x20] sm:$0xff]
    %v9832 = vld [vmem:[%s7 + $0x28] sm:$0xff]
    %v9833 = vld [vmem:[%s7 + $0x30] sm:$0xff]
    %v9834 = vld [vmem:[%s7 + $0x38] sm:$0xff]
    %v9835 = vld [vmem:[%s7 + $0x40] sm:$0xff]
    %v9836 = vld [vmem:[%s7 + $0x48] sm:$0xff]
    %v9837 = vld [vmem:[%s7 + $0x50] sm:$0xff]
    %v9838 = vld [vmem:[%s7 + $0x58] sm:$0xff]
    %v9839 = vld [vmem:[%s7 + $0x60] sm:$0xff]
    %v9840 = vld [vmem:[%s7 + $0x68] sm:$0xff]
    %v9841 = vld [vmem:[%s7 + $0x70] sm:$0xff]
    %v9842 = vld [vmem:[%s7 + $0x78] sm:$0xff]
    %v9843 = vld [vmem:[%s7 + $0x80] sm:$0xff]
    %v9844 = vld [vmem:[%s7 + $0x88] sm:$0xff]
    %v9845 = vld [vmem:[%s7 + $0x90] sm:$0xff]
    %v9846 = vld [vmem:[%s7 + $0x98] sm:$0xff]
    %v9847 = vld [vmem:[%s7 + $0xa0] sm:$0xff]
    %v9848 = vld [vmem:[%s7 + $0xa8] sm:$0xff]
    %v9849 = vld [vmem:[%s7 + $0xb0] sm:$0xff]
    %v9850 = vld [vmem:[%s7 + $0xb8] sm:$0xff]
    %v9851 = vld [vmem:[%s7 + $0xc0] sm:$0xff]
    %v9852 = vld [vmem:[%s7 + $0xc8] sm:$0xff]
    %v9853 = vld [vmem:[%s7 + $0xd0] sm:$0xff]
    %v9854 = vld [vmem:[%s7 + $0xd8] sm:$0xff]
    %v9855 = vld [vmem:[%s7 + $0xe0] sm:$0xff]
    %v9856 = vld [vmem:[%s7 + $0xe8] sm:$0xff]
    %v9857 = vld [vmem:[%s7 + $0xf0] sm:$0xff]
    %v9858 = vld [vmem:[%s7 + $0xf8] sm:$0xff]
    %v9859 = vld [vmem:[#allocation15] sm:$0x3]
    %v9861 = vlaneseq
    %v9862 = vshrl.u32 %v9861, 7
    %v9863 = vsub.s32 0, %v9862
    %v9864 = vrot.slane %v9859, %v9863
    %v9865 = vlaneseq
    %v9866 = vshrl.u32 %v9865, 7
    %v9867 = vsub.s32 1, %v9866
    %v9868 = vrot.slane %v9859, %v9867
    %v9903 = vunpack.c.l.b16 %v9827
    %v9904 = vunpack.c.h.b16 %v9827
    %v9905 = vunpack.c.l.b16 %v9828
    %v9906 = vunpack.c.h.b16 %v9828
    %v9907 = vunpack.c.l.b16 %v9829
    %v9908 = vunpack.c.h.b16 %v9829
    %v9909 = vunpack.c.l.b16 %v9830
    %v9910 = vunpack.c.h.b16 %v9830
    %v9911 = vunpack.c.l.b16 %v9831
    %v9912 = vunpack.c.h.b16 %v9831
    %v9913 = vunpack.c.l.b16 %v9832
    %v9914 = vunpack.c.h.b16 %v9832
    %v9915 = vunpack.c.l.b16 %v9833
    %v9916 = vunpack.c.h.b16 %v9833
    %v9917 = vunpack.c.l.b16 %v9834
    %v9918 = vunpack.c.h.b16 %v9834
    %v9919 = vunpack.c.l.b16 %v9835
    %v9920 = vunpack.c.h.b16 %v9835
    %v9921 = vunpack.c.l.b16 %v9836
    %v9922 = vunpack.c.h.b16 %v9836
    %v9923 = vunpack.c.l.b16 %v9837
    %v9924 = vunpack.c.h.b16 %v9837
    %v9925 = vunpack.c.l.b16 %v9838
    %v9926 = vunpack.c.h.b16 %v9838
    %v9927 = vunpack.c.l.b16 %v9839
    %v9928 = vunpack.c.h.b16 %v9839
    %v9929 = vunpack.c.l.b16 %v9840
    %v9930 = vunpack.c.h.b16 %v9840
    %v9931 = vunpack.c.l.b16 %v9841
    %v9932 = vunpack.c.h.b16 %v9841
    %v9933 = vunpack.c.l.b16 %v9842
    %v9934 = vunpack.c.h.b16 %v9842
    %v9935 = vunpack.c.l.b16 %v9843
    %v9936 = vunpack.c.h.b16 %v9843
    %v9937 = vunpack.c.l.b16 %v9844
    %v9938 = vunpack.c.h.b16 %v9844
    %v9939 = vunpack.c.l.b16 %v9845
    %v9940 = vunpack.c.h.b16 %v9845
    %v9941 = vunpack.c.l.b16 %v9846
    %v9942 = vunpack.c.h.b16 %v9846
    %v9943 = vunpack.c.l.b16 %v9847
    %v9944 = vunpack.c.h.b16 %v9847
    %v9945 = vunpack.c.l.b16 %v9848
    %v9946 = vunpack.c.h.b16 %v9848
    %v9947 = vunpack.c.l.b16 %v9849
    %v9948 = vunpack.c.h.b16 %v9849
    %v9949 = vunpack.c.l.b16 %v9850
    %v9950 = vunpack.c.h.b16 %v9850
    %v9951 = vunpack.c.l.b16 %v9851
    %v9952 = vunpack.c.h.b16 %v9851
    %v9953 = vunpack.c.l.b16 %v9852
    %v9954 = vunpack.c.h.b16 %v9852
    %v9955 = vunpack.c.l.b16 %v9853
    %v9956 = vunpack.c.h.b16 %v9853
    %v9957 = vunpack.c.l.b16 %v9854
    %v9958 = vunpack.c.h.b16 %v9854
    %v9959 = vunpack.c.l.b16 %v9855
    %v9960 = vunpack.c.h.b16 %v9855
    %v9961 = vunpack.c.l.b16 %v9856
    %v9962 = vunpack.c.h.b16 %v9856
    %v9963 = vunpack.c.l.b16 %v9857
    %v9964 = vunpack.c.h.b16 %v9857
    %v9965 = vunpack.c.l.b16 %v9858
    %v9966 = vunpack.c.h.b16 %v9858
    %v9967 = vpack.c.b16 %v9905, %v9903
    %v9968 = vpack.c.b16 %v9906, %v9904
    %v9969 = vpack.c.b16 %v9909, %v9907
    %v9970 = vpack.c.b16 %v9910, %v9908
    %v9971 = vpack.c.b16 %v9913, %v9911
    %v9972 = vpack.c.b16 %v9914, %v9912
    %v9973 = vpack.c.b16 %v9917, %v9915
    %v9974 = vpack.c.b16 %v9918, %v9916
    %v9975 = vpack.c.b16 %v9921, %v9919
    %v9976 = vpack.c.b16 %v9922, %v9920
    %v9977 = vpack.c.b16 %v9925, %v9923
    %v9978 = vpack.c.b16 %v9926, %v9924
    %v9979 = vpack.c.b16 %v9929, %v9927
    %v9980 = vpack.c.b16 %v9930, %v9928
    %v9981 = vpack.c.b16 %v9933, %v9931
    %v9982 = vpack.c.b16 %v9934, %v9932
    %v9983 = vpack.c.b16 %v9937, %v9935
    %v9984 = vpack.c.b16 %v9938, %v9936
    %v9985 = vpack.c.b16 %v9941, %v9939
    %v9986 = vpack.c.b16 %v9942, %v9940
    %v9987 = vpack.c.b16 %v9945, %v9943
    %v9988 = vpack.c.b16 %v9946, %v9944
    %v9989 = vpack.c.b16 %v9949, %v9947
    %v9990 = vpack.c.b16 %v9950, %v9948
    %v9991 = vpack.c.b16 %v9953, %v9951
    %v9992 = vpack.c.b16 %v9954, %v9952
    %v9993 = vpack.c.b16 %v9957, %v9955
    %v9994 = vpack.c.b16 %v9958, %v9956
    %v9995 = vpack.c.b16 %v9961, %v9959
    %v9996 = vpack.c.b16 %v9962, %v9960
    %v9997 = vpack.c.b16 %v9965, %v9963
    %v9998 = vpack.c.b16 %v9966, %v9964
    %10031 = vmatprep.subr.bf16.mxu0 %v9982
    %10032 = vmatpush1.bf16.msra.mxu0 %v9981
    %10033 = vmatprep.subr.bf16.mxu0 %v9980
    %10034 = vmatpush1.bf16.msra.mxu0 %v9979
    %10035 = vmatprep.subr.bf16.mxu0 %v9978
    %10036 = vmatpush1.bf16.msra.mxu0 %v9977
    %10037 = vmatprep.subr.bf16.mxu0 %v9976
    %10038 = vmatpush1.bf16.msra.mxu0 %v9975
    %10039 = vmatprep.subr.bf16.mxu0 %v9974
    %10040 = vmatpush1.bf16.msra.mxu0 %v9973
    %10041 = vmatprep.subr.bf16.mxu0 %v9972
    %10042 = vmatpush1.bf16.msra.mxu0 %v9971
    %10043 = vmatprep.subr.bf16.mxu0 %v9970
    %10044 = vmatpush1.bf16.msra.mxu0 %v9969
    %10045 = vmatprep.subr.bf16.mxu0 %v9968
    %10046 = vmatpush1.bf16.msra.mxu0 %v9967
    %10047 = vmatprep.subr.bf16.mxu0 %v9998
    %10048 = vmatpush2.bf16.msra.mxu0 %v9997
    %10049 = vmatprep.subr.bf16.mxu0 %v9996
    %10050 = vmatpush2.bf16.msra.mxu0 %v9995
    %10051 = vmatprep.subr.bf16.mxu0 %v9994
    %10052 = vmatpush2.bf16.msra.mxu0 %v9993
    %10053 = vmatprep.subr.bf16.mxu0 %v9992
    %10054 = vmatpush2.bf16.msra.mxu0 %v9991
    %10055 = vmatprep.subr.bf16.mxu0 %v9990
    %10056 = vmatpush2.bf16.msra.mxu0 %v9989
    %10057 = vmatprep.subr.bf16.mxu0 %v9988
    %10058 = vmatpush2.bf16.msra.mxu0 %v9987
    %10059 = vmatprep.subr.bf16.mxu0 %v9986
    %10060 = vmatpush2.bf16.msra.mxu0 %v9985
    %10061 = vmatprep.subr.bf16.mxu0 %v9984
    %10062 = vmatpush2.bf16.msra.mxu0 %v9983
    %10063 = vmatprep.mubr.bf16.mxu0 %v9826
    %10064 = vmatmul.mubr.bf16.gmra.mxu0 %v9825
    %v10065 = vpop.f32.mrf.mxu0
    %v10066 = vadd.f32 %v9864, %v10065
    %v10067 = vpop.f32.mrf.mxu0
    %v10068 = vadd.f32 %v9868, %v10067
    %v10069 = vpop.f32.mrf.mxu0
    %v10070 = vpop.f32.mrf.mxu0
    %10071 = vdwg.mxu0
    %v10074 = vcombine.low %v10066, %v10068
    %v10076 = vunpack.c.l.s4 1983009808
    %v10077 = vunpack.c.0.s8 %v10076
    %v10078 = vlaneseq
    %v10079 = vshrl.u32 %v10078, 7
    %v10080 = vsub.s32 %v10077, %v10079
    %v10081 = vrot.slane %v10074, %v10080
    %vm10083 = vcmask 1041408
    %vm10084 = vcmask 789506
    %vm10085 = vmor %vm10084, %vm10083
    %10086 = vst.msk [vmem:[#allocation16] sm:$0xf] %vm10085, %v10081
    // Predicated region
    $region58: #{agent_forward.1} parent=1 // pred_check
      _
    $region59: #{agent_forward.1} parent=1 // pred_check_branch
      %10088 = sbr.rel (0) target = $region61
    $region60: #{agent_forward.1} parent=1 // pred_region
      %s10090 = ssub.s32 64, 64
      %10091 = vsyncadd [#allocation9], %s10090
      %s10093 = sshll.u32 [#allocation16], 4
      %s10094 = int_to_ptr.vmem [resolvable:$true] %s10093
      %10096 = dma.vmem_to_hbm [thread:$0]  %s10094, 64, %s9, [#allocation9]
    $region61: #{agent_forward.1} parent=1 // pred_fallthru
      _
    // Predicated region
    $region62: #{agent_forward.1} parent=1 // pred_check
      _
    $region63: #{agent_forward.1} parent=1 // pred_check_branch
      %10098 = sbr.rel (0) target = $region65
    $region64: #{agent_forward.1} parent=1 // pred_region
      %10099 = dma.done [#allocation9], 64
    $region65: #{agent_forward.1} parent=1 // pred_fallthru
      _
    %10100 = vsyncpa [#allocation8], 1
    %10101 = vsyncpa [#allocation11], 1
    %10102 = vsyncpa [#allocation14], 1
    %10103 = vsyncpa [#allocation9], 1
  %10104 = vsyncmov [#allocation6]
  %s10105 = vpop.sfrf %10104
  %p10106 = scmp.eq.s32.totalorder %s10105, 0
  %p10107 = pneg %p10106
  %10109 = shalt.err (%p10107)

</llo_original>
